<compile_context>
chip_gen: v7x
topology: tpu7x:2x2x1
jax: 0.10.0
libtpu: 0.0.40
codegen_flags: <defaults>
</compile_context>

<pallas_src>
import functools

import jax
import jax.numpy as jnp
from jax.experimental import pallas as pl
from jax.experimental.pallas import tpu as pltpu

DIM_HEADS = 4  # fixed by the module: AxialAttention(..., dim_heads=4, ...)


# ---------------------------------------------------------------------------
# (A, B, C) -> (B, A, C) row reorder built ONLY from Mosaic-supported patterns
# (minor-dims swap, 2-D transpose, leading-dim merge/split reshapes).  A general
# jnp.transpose((1, 0, 2)) is not guaranteed to lower on TPU, so we avoid it.
# ---------------------------------------------------------------------------
def _swap_leading(x3):
    a, b, c = x3.shape
    y = jnp.swapaxes(x3, 1, 2)              # (A, C, B)   minor-dims swap
    y = y.reshape(a * c, b)                  # (A*C, B)    merge leading dims
    y = jnp.swapaxes(y, 0, 1)                # (B, A*C)    2-D transpose
    return y.reshape(b, a, c)                # (B, A, C)


# ---------------------------------------------------------------------------
# Fused kernel: one (H*W, E) image per grid step.  Computes W-axis + H-axis
# self-attention (separate params) and writes their sum.
# ---------------------------------------------------------------------------
def _fused_axial_kernel(x_ref, w_qkv_ref, w_out_ref, b_out_ref, o_ref, *,
                        H, W, heads, dim_heads):
    dh = heads * dim_heads
    n = H * W
    xf = x_ref[0]                                            # (n, E) bf16, rows (h, w)-major

    # One fused QKV projection for BOTH axial passes: (n, E) @ (E, 6*dh), f32 accumulation.
    qkv = jnp.dot(xf, w_qkv_ref[...], preferred_element_type=jnp.float32)   # (n, 6*dh)

    # W-axis pass: sequences run along W, batch over H -> rows already contiguous.
    slab_w = qkv[:, :3 * dh].astype(jnp.bfloat16).reshape(H, W, 3 * dh)
    # H-axis pass: sequences run along H, batch over W -> reorder rows to (w, h)-major.
    slab_h = _swap_leading(qkv[:, 3 * dh:].reshape(H, W, 3 * dh)).astype(jnp.bfloat16)

    def attend(slab):
        # slab: (Bp, T, 3*dh) bf16, columns = [q | k | v], heads-major inside each dh block.
        # The 1/sqrt(dim_heads) scale is folded into the Q weights in the wrapper.
        outs = []
        for h in range(heads):                               # heads is tiny & static -> unrolled
            lo = h * dim_heads
            q = slab[:, :, lo:lo + dim_heads]
            k = slab[:, :, dh + lo:dh + lo + dim_heads]
            v = slab[:, :, 2 * dh + lo:2 * dh + lo + dim_heads]
            s = jnp.einsum("bqd,bkd->bqk", q, k,
                           preferred_element_type=jnp.float32)               # (Bp, T, T)
            s = s - jnp.max(s, axis=-1, keepdims=True)
            p = jnp.exp(s)
            p = p * pl.reciprocal(jnp.sum(p, axis=-1, keepdims=True), approx=True)
            outs.append(jnp.einsum("bqk,bkd->bqd", p.astype(jnp.bfloat16), v,
                                   preferred_element_type=jnp.float32))      # (Bp, T, d)
        return jnp.concatenate(outs, axis=-1)                # (Bp, T, dh) f32

    o_w = attend(slab_w)                                     # (H, W, dh), (h, w)-major
    o_h = _swap_leading(attend(slab_h))                      # (W, H, dh) -> (H, W, dh)

    # Fused output projection across both axes and heads: (n, 2*dh) @ (2*dh, E) + (bo_w + bo_h).
    o_cat = jnp.concatenate([o_w, o_h], axis=-1).reshape(n, 2 * dh)
    y = jnp.dot(o_cat.astype(jnp.bfloat16), w_out_ref[...],
                preferred_element_type=jnp.float32) + b_out_ref[0]
    # Dropout (self.do) is identity in eval mode.
    o_ref[0] = y.astype(o_ref.dtype)


# ---------------------------------------------------------------------------
# Wrapper: one-time weight fusion / pre-transpose / scale folding, bf16 cast,
# single pallas_call with grid=(B,).
# ---------------------------------------------------------------------------
def residual_axial_block(x, params_h, params_w, *, heads, dim_heads=DIM_HEADS):
    B, H, W, E = x.shape
    dh = heads * dim_heads
    n = H * W
    scale = float(dim_heads) ** -0.5

    def qkv_cols(params):
        wq, wkv, _, _ = params
        # torch Linear weights are (out, in); pre-transpose once here (no in-kernel .T) and
        # fold the attention scale into the Q columns.
        return jnp.concatenate([jnp.asarray(wq).T * scale, jnp.asarray(wkv).T], axis=1)

    # Column layout: [W-axis q|k|v (3*dh) | H-axis q|k|v (3*dh)] -> one fused QKV matmul.
    w_qkv = jnp.concatenate([qkv_cols(params_w), qkv_cols(params_h)],
                            axis=1).astype(jnp.bfloat16)                     # (E, 6*dh)
    # Fused output projection: rows [W-axis heads (dh) | H-axis heads (dh)].
    w_out = jnp.concatenate([jnp.asarray(params_w[2]).T, jnp.asarray(params_h[2]).T],
                            axis=0).astype(jnp.bfloat16)                     # (2*dh, E)
    b_out = (jnp.asarray(params_w[3]) + jnp.asarray(params_h[3])
             ).reshape(1, E).astype(jnp.float32)                             # (1, E)

    # Free row-major flatten in HBM; bf16 halves input DMA and MXU passes.
    xf = x.reshape(B, n, E).astype(jnp.bfloat16)

    kernel = functools.partial(_fused_axial_kernel, H=H, W=W,
                               heads=heads, dim_heads=dim_heads)

    out = pl.pallas_call(
        kernel,
        out_shape=jax.ShapeDtypeStruct((B, n, E), x.dtype),
        grid=(B,),
        in_specs=[
            pl.BlockSpec((1, n, E), lambda i: (i, 0, 0)),       # x: one image per step
            pl.BlockSpec((E, 6 * dh), lambda i: (0, 0)),        # fused QKV weights (both axes)
            pl.BlockSpec((2 * dh, E), lambda i: (0, 0)),        # fused output projection
            pl.BlockSpec((1, E), lambda i: (0, 0)),             # summed output bias
        ],
        out_specs=pl.BlockSpec((1, n, E), lambda i: (i, 0, 0)),
        compiler_params=pltpu.CompilerParams(dimension_semantics=("parallel",)),
    )(xf, w_qkv, w_out, b_out)
    return out.reshape(B, H, W, E)


# ---------------------------------------------------------------------------
# Pure-JAX reference (f32, exact softmax) for the correctness check.
# ---------------------------------------------------------------------------
def _self_attention_ref(x_seq, wq, wkv, wo, bo, *, heads, dim_heads):
    dh = heads * dim_heads
    q = x_seq @ wq.T
    kv = x_seq @ wkv.T
    k, v = kv[..., :dh], kv[..., dh:]
    Bf, T, _ = q.shape
    split = lambda a: a.reshape(Bf, T, heads, dim_heads).transpose(0, 2, 1, 3)
    qh, kh, vh = split(q), split(k), split(v)
    dots = jnp.einsum("bhte,bhse->bhts", qh, kh) * (dim_heads ** -0.5)
    p = jax.nn.softmax(dots, axis=-1)
    o = jnp.einsum("bhts,bhse->bhte", p, vh).transpose(0, 2, 1, 3).reshape(Bf, T, dh)
    return o @ wo.T + bo[None, None, :]


def residual_axial_block_ref(x, params_h, params_w, *, heads, dim_heads=DIM_HEADS):
    B, H, W, E = x.shape

    def one_axis(params, axis):
        xp = jnp.transpose(x, (0, 2, 1, 3)) if axis == 1 else x
        pshape = xp.shape
        xs = xp.reshape(pshape[0] * pshape[1], pshape[2], E)
        y = _self_attention_ref(xs, *params, heads=heads, dim_heads=dim_heads)
        y = y.reshape(pshape)
        return jnp.transpose(y, (0, 2, 1, 3)) if axis == 1 else y

    return one_axis(params_h, 1) + one_axis(params_w, 2)


# ---------------------------------------------------------------------------
# Deterministic parameter init (PyTorch-Linear-style uniform).
# ---------------------------------------------------------------------------
def init_self_attention_params(key, dim, heads, dim_heads):
    dh = heads * dim_heads
    k1, k2, k3, k4 = jax.random.split(key, 4)
    lim_in = 1.0 / (dim ** 0.5)
    lim_out = 1.0 / (dh ** 0.5)
    wq = jax.random.uniform(k1, (dh, dim), jnp.float32, -lim_in, lim_in)
    wkv = jax.random.uniform(k2, (2 * dh, dim), jnp.float32, -lim_in, lim_in)
    wo = jax.random.uniform(k3, (dim, dh), jnp.float32, -lim_out, lim_out)
    bo = jax.random.uniform(k4, (dim,), jnp.float32, -lim_out, lim_out)
    return (wq, wkv, wo, bo)


if __name__ == "__main__":
    # Module config: embedding_dim=32, num_dimensions=2, num_heads=2, dropout=0.1 (identity here)
    embedding_dim, num_heads = 32, 2
    B, H, W = 2, 16, 16

    key = jax.random.PRNGKey(0)
    kx, kh, kw = jax.random.split(key, 3)
    x = jax.random.normal(kx, (B, H, W, embedding_dim), jnp.float32)

    params_h = init_self_attention_params(kh, embedding_dim, num_heads, DIM_HEADS)
    params_w = init_self_attention_params(kw, embedding_dim, num_heads, DIM_HEADS)

    out = residual_axial_block(x, params_h, params_w, heads=num_heads)
    out = jax.block_until_ready(out)

    ref = residual_axial_block_ref(x, params_h, params_w, heads=num_heads)
    assert out.shape == (B, H, W, embedding_dim)
    # Tolerance covers bf16 MXU operands (f32 accumulation) and the approximate (EUP)
    # reciprocal in the softmax normalization; typical error is ~1e-3.
    assert jnp.allclose(out, ref, rtol=2e-2, atol=2e-2), "Pallas output mismatch vs JAX reference"

    print("KERNEL_OK")
</pallas_src>

<mosaic_0001>
module attributes {stable_mosaic.version = 11 : i64} {
  func.func @_fused_axial_kernel(%arg0: i32, %arg1: memref<1x256x32xbf16, #tpu.memory_space<vmem>>, %arg2: memref<32x48xbf16, #tpu.memory_space<vmem>>, %arg3: memref<16x32xbf16, #tpu.memory_space<vmem>>, %arg4: memref<1x32xf32, #tpu.memory_space<vmem>>, %arg5: memref<1x256x32xf32, #tpu.memory_space<vmem>>) attributes {dimension_semantics = [#tpu.dimension_semantics<parallel>], iteration_bounds = array<i64: 2>, scalar_prefetch = 0 : i64, scratch_operands = 0 : i64, tpu.core_type = #tpu.core_type<tc>, window_params = [{transform_indices = @transform_0, window_bounds = array<i64: 1, 256, 32>}, {pipeline_mode = #tpu.pipeline_mode<synchronous>, transform_indices = @transform_1, window_bounds = array<i64: 32, 48>}, {pipeline_mode = #tpu.pipeline_mode<synchronous>, transform_indices = @transform_2, window_bounds = array<i64: 16, 32>}, {pipeline_mode = #tpu.pipeline_mode<synchronous>, transform_indices = @transform_3, window_bounds = array<i64: 1, 32>}, {transform_indices = @transform_4, window_bounds = array<i64: 1, 256, 32>}]} {
    %c0 = arith.constant 0 : index
    %c0_0 = arith.constant 0 : index
    %c0_1 = arith.constant 0 : index
    %0 = vector.load %arg1[%c0, %c0_0, %c0_1] : memref<1x256x32xbf16, #tpu.memory_space<vmem>>, vector<1x256x32xbf16>
    %1 = vector.shape_cast %0 : vector<1x256x32xbf16> to vector<256x32xbf16>
    %c0_2 = arith.constant 0 : index
    %c0_3 = arith.constant 0 : index
    %2 = vector.load %arg2[%c0_2, %c0_3] : memref<32x48xbf16, #tpu.memory_space<vmem>>, vector<32x48xbf16>
    %cst = arith.constant dense<0.000000e+00> : vector<256x48xf32>
    %3 = tpu.matmul %1, %2, %cst {dimension_numbers = #tpu.dot_dimension_numbers<[1], [0], [0], [1], [0, 0, 1, 1], [], []>} : vector<256x32xbf16>, vector<32x48xbf16>, vector<256x48xf32> -> vector<256x48xf32>
    %4 = vector.extract_strided_slice %3 {offsets = [0, 0], sizes = [256, 24], strides = [1, 1]} : vector<256x48xf32> to vector<256x24xf32>
    %5 = arith.truncf %4 : vector<256x24xf32> to vector<256x24xbf16>
    %6 = vector.shape_cast %5 : vector<256x24xbf16> to vector<16x16x24xbf16>
    %7 = vector.extract_strided_slice %3 {offsets = [0, 24], sizes = [256, 24], strides = [1, 1]} : vector<256x48xf32> to vector<256x24xf32>
    %8 = vector.shape_cast %7 : vector<256x24xf32> to vector<16x16x24xf32>
    %9 = tpu.transpose %8, [0, 2, 1] : vector<16x16x24xf32> -> vector<16x24x16xf32>
    %10 = vector.shape_cast %9 : vector<16x24x16xf32> to vector<384x16xf32>
    %11 = tpu.transpose %10, [1, 0] : vector<384x16xf32> -> vector<16x384xf32>
    %12 = vector.shape_cast %11 : vector<16x384xf32> to vector<16x16x24xf32>
    %13 = arith.truncf %12 : vector<16x16x24xf32> to vector<16x16x24xbf16>
    %14 = vector.extract_strided_slice %6 {offsets = [0, 0, 0], sizes = [16, 16, 4], strides = [1, 1, 1]} : vector<16x16x24xbf16> to vector<16x16x4xbf16>
    %15 = vector.extract_strided_slice %6 {offsets = [0, 0, 8], sizes = [16, 16, 4], strides = [1, 1, 1]} : vector<16x16x24xbf16> to vector<16x16x4xbf16>
    %16 = vector.extract_strided_slice %6 {offsets = [0, 0, 16], sizes = [16, 16, 4], strides = [1, 1, 1]} : vector<16x16x24xbf16> to vector<16x16x4xbf16>
    "tpu.trace_start"() <{level = 10 : i32, message = "bqd,bkd->bqk"}> : () -> ()
    %cst_4 = arith.constant dense<0.000000e+00> : vector<16x16x16xf32>
    %17 = tpu.matmul %14, %15, %cst_4 {dimension_numbers = #tpu.dot_dimension_numbers<[2], [2], [1], [1], [0, 0, 0, 1, 1, 1], [0], [0]>} : vector<16x16x4xbf16>, vector<16x16x4xbf16>, vector<16x16x16xf32> -> vector<16x16x16xf32>
    "tpu.trace_stop"() : () -> ()
    %cst_5 = arith.constant dense<0xFF800000> : vector<16x16xf32>
    %18 = vector.multi_reduction <maximumf>, %17, %cst_5 [2] : vector<16x16x16xf32> to vector<16x16xf32>
    %19 = vector.shape_cast %18 : vector<16x16xf32> to vector<16x16x1xf32>
    %20 = vector.broadcast %19 : vector<16x16x1xf32> to vector<16x16x16xf32>
    %21 = arith.subf %17, %20 : vector<16x16x16xf32>
    %22 = math.exp %21 : vector<16x16x16xf32>
    %cst_6 = arith.constant dense<0.000000e+00> : vector<16x16xf32>
    %23 = vector.multi_reduction <add>, %22, %cst_6 [2] : vector<16x16x16xf32> to vector<16x16xf32>
    %24 = vector.shape_cast %23 : vector<16x16xf32> to vector<16x16x1xf32>
    %25 = tpu.reciprocal %24 {approx = true} : vector<16x16x1xf32> -> vector<16x16x1xf32>
    %26 = vector.broadcast %25 : vector<16x16x1xf32> to vector<16x16x16xf32>
    %27 = arith.mulf %22, %26 : vector<16x16x16xf32>
    %28 = arith.truncf %27 : vector<16x16x16xf32> to vector<16x16x16xbf16>
    "tpu.trace_start"() <{level = 10 : i32, message = "bqk,bkd->bqd"}> : () -> ()
    %cst_7 = arith.constant dense<0.000000e+00> : vector<16x16x4xf32>
    %29 = tpu.matmul %28, %16, %cst_7 {dimension_numbers = #tpu.dot_dimension_numbers<[2], [1], [1], [2], [0, 0, 0, 1, 1, 2], [0], [0]>} : vector<16x16x16xbf16>, vector<16x16x4xbf16>, vector<16x16x4xf32> -> vector<16x16x4xf32>
    "tpu.trace_stop"() : () -> ()
    %30 = vector.extract_strided_slice %6 {offsets = [0, 0, 4], sizes = [16, 16, 4], strides = [1, 1, 1]} : vector<16x16x24xbf16> to vector<16x16x4xbf16>
    %31 = vector.extract_strided_slice %6 {offsets = [0, 0, 12], sizes = [16, 16, 4], strides = [1, 1, 1]} : vector<16x16x24xbf16> to vector<16x16x4xbf16>
    %32 = vector.extract_strided_slice %6 {offsets = [0, 0, 20], sizes = [16, 16, 4], strides = [1, 1, 1]} : vector<16x16x24xbf16> to vector<16x16x4xbf16>
    "tpu.trace_start"() <{level = 10 : i32, message = "bqd,bkd->bqk"}> : () -> ()
    %cst_8 = arith.constant dense<0.000000e+00> : vector<16x16x16xf32>
    %33 = tpu.matmul %30, %31, %cst_8 {dimension_numbers = #tpu.dot_dimension_numbers<[2], [2], [1], [1], [0, 0, 0, 1, 1, 1], [0], [0]>} : vector<16x16x4xbf16>, vector<16x16x4xbf16>, vector<16x16x16xf32> -> vector<16x16x16xf32>
    "tpu.trace_stop"() : () -> ()
    %cst_9 = arith.constant dense<0xFF800000> : vector<16x16xf32>
    %34 = vector.multi_reduction <maximumf>, %33, %cst_9 [2] : vector<16x16x16xf32> to vector<16x16xf32>
    %35 = vector.shape_cast %34 : vector<16x16xf32> to vector<16x16x1xf32>
    %36 = vector.broadcast %35 : vector<16x16x1xf32> to vector<16x16x16xf32>
    %37 = arith.subf %33, %36 : vector<16x16x16xf32>
    %38 = math.exp %37 : vector<16x16x16xf32>
    %cst_10 = arith.constant dense<0.000000e+00> : vector<16x16xf32>
    %39 = vector.multi_reduction <add>, %38, %cst_10 [2] : vector<16x16x16xf32> to vector<16x16xf32>
    %40 = vector.shape_cast %39 : vector<16x16xf32> to vector<16x16x1xf32>
    %41 = tpu.reciprocal %40 {approx = true} : vector<16x16x1xf32> -> vector<16x16x1xf32>
    %42 = vector.broadcast %41 : vector<16x16x1xf32> to vector<16x16x16xf32>
    %43 = arith.mulf %38, %42 : vector<16x16x16xf32>
    %44 = arith.truncf %43 : vector<16x16x16xf32> to vector<16x16x16xbf16>
    "tpu.trace_start"() <{level = 10 : i32, message = "bqk,bkd->bqd"}> : () -> ()
    %cst_11 = arith.constant dense<0.000000e+00> : vector<16x16x4xf32>
    %45 = tpu.matmul %44, %32, %cst_11 {dimension_numbers = #tpu.dot_dimension_numbers<[2], [1], [1], [2], [0, 0, 0, 1, 1, 2], [0], [0]>} : vector<16x16x16xbf16>, vector<16x16x4xbf16>, vector<16x16x4xf32> -> vector<16x16x4xf32>
    "tpu.trace_stop"() : () -> ()
    %46 = tpu.concatenate %29, %45 in 2 : vector<16x16x4xf32>, vector<16x16x4xf32> -> vector<16x16x8xf32>
    %47 = vector.extract_strided_slice %13 {offsets = [0, 0, 0], sizes = [16, 16, 4], strides = [1, 1, 1]} : vector<16x16x24xbf16> to vector<16x16x4xbf16>
    %48 = vector.extract_strided_slice %13 {offsets = [0, 0, 8], sizes = [16, 16, 4], strides = [1, 1, 1]} : vector<16x16x24xbf16> to vector<16x16x4xbf16>
    %49 = vector.extract_strided_slice %13 {offsets = [0, 0, 16], sizes = [16, 16, 4], strides = [1, 1, 1]} : vector<16x16x24xbf16> to vector<16x16x4xbf16>
    "tpu.trace_start"() <{level = 10 : i32, message = "bqd,bkd->bqk"}> : () -> ()
    %cst_12 = arith.constant dense<0.000000e+00> : vector<16x16x16xf32>
    %50 = tpu.matmul %47, %48, %cst_12 {dimension_numbers = #tpu.dot_dimension_numbers<[2], [2], [1], [1], [0, 0, 0, 1, 1, 1], [0], [0]>} : vector<16x16x4xbf16>, vector<16x16x4xbf16>, vector<16x16x16xf32> -> vector<16x16x16xf32>
    "tpu.trace_stop"() : () -> ()
    %cst_13 = arith.constant dense<0xFF800000> : vector<16x16xf32>
    %51 = vector.multi_reduction <maximumf>, %50, %cst_13 [2] : vector<16x16x16xf32> to vector<16x16xf32>
    %52 = vector.shape_cast %51 : vector<16x16xf32> to vector<16x16x1xf32>
    %53 = vector.broadcast %52 : vector<16x16x1xf32> to vector<16x16x16xf32>
    %54 = arith.subf %50, %53 : vector<16x16x16xf32>
    %55 = math.exp %54 : vector<16x16x16xf32>
    %cst_14 = arith.constant dense<0.000000e+00> : vector<16x16xf32>
    %56 = vector.multi_reduction <add>, %55, %cst_14 [2] : vector<16x16x16xf32> to vector<16x16xf32>
    %57 = vector.shape_cast %56 : vector<16x16xf32> to vector<16x16x1xf32>
    %58 = tpu.reciprocal %57 {approx = true} : vector<16x16x1xf32> -> vector<16x16x1xf32>
    %59 = vector.broadcast %58 : vector<16x16x1xf32> to vector<16x16x16xf32>
    %60 = arith.mulf %55, %59 : vector<16x16x16xf32>
    %61 = arith.truncf %60 : vector<16x16x16xf32> to vector<16x16x16xbf16>
    "tpu.trace_start"() <{level = 10 : i32, message = "bqk,bkd->bqd"}> : () -> ()
    %cst_15 = arith.constant dense<0.000000e+00> : vector<16x16x4xf32>
    %62 = tpu.matmul %61, %49, %cst_15 {dimension_numbers = #tpu.dot_dimension_numbers<[2], [1], [1], [2], [0, 0, 0, 1, 1, 2], [0], [0]>} : vector<16x16x16xbf16>, vector<16x16x4xbf16>, vector<16x16x4xf32> -> vector<16x16x4xf32>
    "tpu.trace_stop"() : () -> ()
    %63 = vector.extract_strided_slice %13 {offsets = [0, 0, 4], sizes = [16, 16, 4], strides = [1, 1, 1]} : vector<16x16x24xbf16> to vector<16x16x4xbf16>
    %64 = vector.extract_strided_slice %13 {offsets = [0, 0, 12], sizes = [16, 16, 4], strides = [1, 1, 1]} : vector<16x16x24xbf16> to vector<16x16x4xbf16>
    %65 = vector.extract_strided_slice %13 {offsets = [0, 0, 20], sizes = [16, 16, 4], strides = [1, 1, 1]} : vector<16x16x24xbf16> to vector<16x16x4xbf16>
    "tpu.trace_start"() <{level = 10 : i32, message = "bqd,bkd->bqk"}> : () -> ()
    %cst_16 = arith.constant dense<0.000000e+00> : vector<16x16x16xf32>
    %66 = tpu.matmul %63, %64, %cst_16 {dimension_numbers = #tpu.dot_dimension_numbers<[2], [2], [1], [1], [0, 0, 0, 1, 1, 1], [0], [0]>} : vector<16x16x4xbf16>, vector<16x16x4xbf16>, vector<16x16x16xf32> -> vector<16x16x16xf32>
    "tpu.trace_stop"() : () -> ()
    %cst_17 = arith.constant dense<0xFF800000> : vector<16x16xf32>
    %67 = vector.multi_reduction <maximumf>, %66, %cst_17 [2] : vector<16x16x16xf32> to vector<16x16xf32>
    %68 = vector.shape_cast %67 : vector<16x16xf32> to vector<16x16x1xf32>
    %69 = vector.broadcast %68 : vector<16x16x1xf32> to vector<16x16x16xf32>
    %70 = arith.subf %66, %69 : vector<16x16x16xf32>
    %71 = math.exp %70 : vector<16x16x16xf32>
    %cst_18 = arith.constant dense<0.000000e+00> : vector<16x16xf32>
    %72 = vector.multi_reduction <add>, %71, %cst_18 [2] : vector<16x16x16xf32> to vector<16x16xf32>
    %73 = vector.shape_cast %72 : vector<16x16xf32> to vector<16x16x1xf32>
    %74 = tpu.reciprocal %73 {approx = true} : vector<16x16x1xf32> -> vector<16x16x1xf32>
    %75 = vector.broadcast %74 : vector<16x16x1xf32> to vector<16x16x16xf32>
    %76 = arith.mulf %71, %75 : vector<16x16x16xf32>
    %77 = arith.truncf %76 : vector<16x16x16xf32> to vector<16x16x16xbf16>
    "tpu.trace_start"() <{level = 10 : i32, message = "bqk,bkd->bqd"}> : () -> ()
    %cst_19 = arith.constant dense<0.000000e+00> : vector<16x16x4xf32>
    %78 = tpu.matmul %77, %65, %cst_19 {dimension_numbers = #tpu.dot_dimension_numbers<[2], [1], [1], [2], [0, 0, 0, 1, 1, 2], [0], [0]>} : vector<16x16x16xbf16>, vector<16x16x4xbf16>, vector<16x16x4xf32> -> vector<16x16x4xf32>
    "tpu.trace_stop"() : () -> ()
    %79 = tpu.concatenate %62, %78 in 2 : vector<16x16x4xf32>, vector<16x16x4xf32> -> vector<16x16x8xf32>
    %80 = tpu.transpose %79, [0, 2, 1] : vector<16x16x8xf32> -> vector<16x8x16xf32>
    %81 = vector.shape_cast %80 : vector<16x8x16xf32> to vector<128x16xf32>
    %82 = tpu.transpose %81, [1, 0] : vector<128x16xf32> -> vector<16x128xf32>
    %83 = vector.shape_cast %82 : vector<16x128xf32> to vector<16x16x8xf32>
    %84 = tpu.concatenate %46, %83 in 2 : vector<16x16x8xf32>, vector<16x16x8xf32> -> vector<16x16x16xf32>
    %85 = vector.shape_cast %84 : vector<16x16x16xf32> to vector<256x16xf32>
    %86 = arith.truncf %85 : vector<256x16xf32> to vector<256x16xbf16>
    %c0_20 = arith.constant 0 : index
    %c0_21 = arith.constant 0 : index
    %87 = vector.load %arg3[%c0_20, %c0_21] : memref<16x32xbf16, #tpu.memory_space<vmem>>, vector<16x32xbf16>
    %cst_22 = arith.constant dense<0.000000e+00> : vector<256x32xf32>
    %88 = tpu.matmul %86, %87, %cst_22 {dimension_numbers = #tpu.dot_dimension_numbers<[1], [0], [0], [1], [0, 0, 1, 1], [], []>} : vector<256x16xbf16>, vector<16x32xbf16>, vector<256x32xf32> -> vector<256x32xf32>
    %c0_23 = arith.constant 0 : index
    %c0_24 = arith.constant 0 : index
    %89 = vector.load %arg4[%c0_23, %c0_24] : memref<1x32xf32, #tpu.memory_space<vmem>>, vector<1x32xf32>
    %90 = vector.shape_cast %89 : vector<1x32xf32> to vector<32xf32>
    %91 = vector.shape_cast %90 : vector<32xf32> to vector<1x32xf32>
    %92 = vector.broadcast %91 : vector<1x32xf32> to vector<256x32xf32>
    %93 = arith.addf %88, %92 : vector<256x32xf32>
    %c0_25 = arith.constant 0 : index
    %c0_26 = arith.constant 0 : index
    %c0_27 = arith.constant 0 : index
    %94 = vector.load %arg5[%c0_25, %c0_26, %c0_27] : memref<1x256x32xf32, #tpu.memory_space<vmem>>, vector<1x256x32xf32>
    %95 = vector.shape_cast %94 : vector<1x256x32xf32> to vector<256x32xf32>
    %96 = vector.shape_cast %93 : vector<256x32xf32> to vector<1x256x32xf32>
    tpu.vector_store %arg5[%c0_25, %c0_26, %c0_27], %96 {strides = array<i32>} : memref<1x256x32xf32, #tpu.memory_space<vmem>>, vector<1x256x32xf32>,
    return
  }
  func.func @transform_0(%arg0: i32) -> (i32, i32, i32) {
    %c0_i32 = arith.constant 0 : i32
    %c0_i32_0 = arith.constant 0 : i32
    %c0_i32_1 = arith.constant 0 : i32
    return %arg0, %c0_i32, %c0_i32_0 : i32, i32, i32
  }
  func.func @transform_1(%arg0: i32) -> (i32, i32) {
    %c0_i32 = arith.constant 0 : i32
    %c0_i32_0 = arith.constant 0 : i32
    %c0_i32_1 = arith.constant 0 : i32
    return %c0_i32, %c0_i32_0 : i32, i32
  }
  func.func @transform_2(%arg0: i32) -> (i32, i32) {
    %c0_i32 = arith.constant 0 : i32
    %c0_i32_0 = arith.constant 0 : i32
    %c0_i32_1 = arith.constant 0 : i32
    return %c0_i32, %c0_i32_0 : i32, i32
  }
  func.func @transform_3(%arg0: i32) -> (i32, i32) {
    %c0_i32 = arith.constant 0 : i32
    %c0_i32_0 = arith.constant 0 : i32
    %c0_i32_1 = arith.constant 0 : i32
    return %c0_i32, %c0_i32_0 : i32, i32
  }
  func.func @transform_4(%arg0: i32) -> (i32, i32, i32) {
    %c0_i32 = arith.constant 0 : i32
    %c0_i32_0 = arith.constant 0 : i32
    %c0_i32_1 = arith.constant 0 : i32
    return %arg0, %c0_i32, %c0_i32_0 : i32, i32, i32
  }
}

</mosaic_0001>

<llo_original>
// kernel: tpu_custom_call.1
$region0: #{tpu_custom_call.1}
  #allocation0 [shape = 'u32[]', space=smem, size = 0x4, offset = 0x4, fixed_abs, tag = 'smem constant byte address 0x4 - core index']
  #allocation1 [shape = 'u32[144,128]{1,0:T(1,128)}', space=vmem, size = 0x12000, scoped, tag = 'internal scratch']
  %s0 = inlined_call_operand.vmem [shape: bf16[2,256,32], index: 0, kind: input, shape index: {}]
  %s1 = inlined_call_operand.vmem [shape: bf16[32,48], index: 1, kind: input, shape index: {}]
  %s2 = inlined_call_operand.vmem [shape: bf16[16,32], index: 2, kind: input, shape index: {}]
  %s3 = inlined_call_operand.vmem [shape: f32[1,32], index: 3, kind: input, shape index: {}]
  %s4 = inlined_call_operand.vmem [shape: f32[2,256,32], index: 4, kind: output, shape index: {}]
  %s5 = sld [smem:[#allocation0]]
  $region49: #{tpu_custom_call.1} parent=0
    _
  %s7 = ssub.s32 1, %s5
  %s8 = scalar_select 0, %s7, %s5
  loop: start=0, step=1, limit=4
  $region2: #{tpu_custom_call.1} parent=0 // loop_pre_header
    _
  $region3: #{tpu_custom_call.1} parent=0 // loop_header
    %s10 = sphi 0, %s14
    %p11 = scmp.ge.s32.totalorder %s10, 4
    %s20 = sphi 0, %s22
    %s23 = sphi 0, %s20
    %s24 = sphi 0, %s23
    %s40 = sphi 0, %s24
    %s44 = sphi 0, %s44
    %s46 = sphi 0, %s44
    %s47 = sphi 0, %s46
    %s61 = sphi 0, %s47
    %s65 = sphi 0, %s65
    %s67 = sphi 0, %s65
    %s68 = sphi 0, %s67
    %s82 = sphi 0, %s68
    %s86 = sphi 0, %s86
    %s88 = sphi 0, %s86
    %s89 = sphi 0, %s88
    %s103 = sphi 0, %s89
    %s109 = sphi 0, %s111
    %s112 = sphi 0, %s109
    %s113 = sphi 0, %s112
    %s129 = sphi 0, %s113
  $region4: #{tpu_custom_call.1} parent=0 // loop_header_branch
    %13 = sbr.rel (%p11) target = $region8
  $region5: #{tpu_custom_call.1} parent=0 // loop_body
    %s15 = ssub.s32 %s10, 1
    %s16 = ssub.s32 %s10, 2
    %s17 = sadd.s32 %s10, 1
    %s18 = ssub.s32 %s10, %s17
    %p19 = scmp.eq.s32.totalorder %s18, 0
    %s21 = sadd.s32 %s20, 1
    %s22 = scalar_select %p19, %s20, %s21
    %p25 = pneg %p19
    %p26 = scmp.eq.s32.totalorder %s10, 1
    %p27 = por %p25, %p26
    %p28 = scmp.ne.s32.totalorder %s20, %s23
    %p29 = scmp.eq.s32.totalorder %s10, 0
    %p30 = por %p28, %p29
    %p31 = scmp.ne.s32.totalorder %s20, %s23
    %p32 = scmp.eq.s32.totalorder %s15, 1
    %p33 = por %p31, %p32
    %p34 = scmp.ne.s32.totalorder %s23, %s24
    %p35 = scmp.eq.s32.totalorder %s15, 0
    %p36 = por %p34, %p35
    %p37 = scmp.ne.s32.totalorder %s23, %s24
    %p38 = scmp.eq.s32.totalorder %s16, 1
    %p39 = por %p37, %p38
    %p41 = scmp.ne.s32.totalorder %s24, %s40
    %p42 = scmp.eq.s32.totalorder %s16, 0
    %p43 = por %p41, %p42
    %s45 = sadd.s32 %s44, 1
    %p48 = scmp.eq.s32.totalorder %s10, 1
    %p49 = scmp.ne.s32.totalorder %s44, %s46
    %p50 = scmp.eq.s32.totalorder %s10, 0
    %p51 = por %p49, %p50
    %p52 = scmp.ne.s32.totalorder %s44, %s46
    %p53 = scmp.eq.s32.totalorder %s15, 1
    %p54 = por %p52, %p53
    %p55 = scmp.ne.s32.totalorder %s46, %s47
    %p56 = scmp.eq.s32.totalorder %s15, 0
    %p57 = por %p55, %p56
    %p58 = scmp.ne.s32.totalorder %s46, %s47
    %p59 = scmp.eq.s32.totalorder %s16, 1
    %p60 = por %p58, %p59
    %p62 = scmp.ne.s32.totalorder %s47, %s61
    %p63 = scmp.eq.s32.totalorder %s16, 0
    %p64 = por %p62, %p63
    %s66 = sadd.s32 %s65, 1
    %p69 = scmp.eq.s32.totalorder %s10, 1
    %p70 = scmp.ne.s32.totalorder %s65, %s67
    %p71 = scmp.eq.s32.totalorder %s10, 0
    %p72 = por %p70, %p71
    %p73 = scmp.ne.s32.totalorder %s65, %s67
    %p74 = scmp.eq.s32.totalorder %s15, 1
    %p75 = por %p73, %p74
    %p76 = scmp.ne.s32.totalorder %s67, %s68
    %p77 = scmp.eq.s32.totalorder %s15, 0
    %p78 = por %p76, %p77
    %p79 = scmp.ne.s32.totalorder %s67, %s68
    %p80 = scmp.eq.s32.totalorder %s16, 1
    %p81 = por %p79, %p80
    %p83 = scmp.ne.s32.totalorder %s68, %s82
    %p84 = scmp.eq.s32.totalorder %s16, 0
    %p85 = por %p83, %p84
    %s87 = sadd.s32 %s86, 1
    %p90 = scmp.eq.s32.totalorder %s10, 1
    %p91 = scmp.ne.s32.totalorder %s86, %s88
    %p92 = scmp.eq.s32.totalorder %s10, 0
    %p93 = por %p91, %p92
    %p94 = scmp.ne.s32.totalorder %s86, %s88
    %p95 = scmp.eq.s32.totalorder %s15, 1
    %p96 = por %p94, %p95
    %p97 = scmp.ne.s32.totalorder %s88, %s89
    %p98 = scmp.eq.s32.totalorder %s15, 0
    %p99 = por %p97, %p98
    %p100 = scmp.ne.s32.totalorder %s88, %s89
    %p101 = scmp.eq.s32.totalorder %s16, 1
    %p102 = por %p100, %p101
    %p104 = scmp.ne.s32.totalorder %s89, %s103
    %p105 = scmp.eq.s32.totalorder %s16, 0
    %p106 = por %p104, %p105
    %s107 = ssub.s32 %s10, %s17
    %p108 = scmp.eq.s32.totalorder %s107, 0
    %s110 = sadd.s32 %s109, 1
    %s111 = scalar_select %p108, %s109, %s110
    %p114 = pneg %p108
    %p115 = scmp.eq.s32.totalorder %s10, 1
    %p116 = por %p114, %p115
    %p117 = scmp.ne.s32.totalorder %s109, %s112
    %p118 = scmp.eq.s32.totalorder %s10, 0
    %p119 = por %p117, %p118
    %p120 = scmp.ne.s32.totalorder %s109, %s112
    %p121 = scmp.eq.s32.totalorder %s15, 1
    %p122 = por %p120, %p121
    %p123 = scmp.ne.s32.totalorder %s112, %s113
    %p124 = scmp.eq.s32.totalorder %s15, 0
    %p125 = por %p123, %p124
    %p126 = scmp.ne.s32.totalorder %s112, %s113
    %p127 = scmp.eq.s32.totalorder %s16, 1
    %p128 = por %p126, %p127
    %p130 = scmp.ne.s32.totalorder %s113, %s129
    %p131 = scmp.eq.s32.totalorder %s16, 0
    %p132 = por %p130, %p131
    %p133 = scmp.le.s32.totalorder 1, %s10
    %p134 = scmp.lt.s32.totalorder %s10, 3
    %p135 = pnand %p133, %p134
    %p136 = pneg %p135
    // Predicated region
    $region9: #{tpu_custom_call.1} parent=5 // pred_check
      _
    $region10: #{tpu_custom_call.1} parent=5 // pred_check_branch
      %138 = sbr.rel (%p135) target = $region12
    $region11: #{tpu_custom_call.1} parent=5 // pred_region
      %s139 = ssub.s32 %s10, 1
      // Predicated region
      $region13: #{tpu_custom_call.1} parent=11 // pred_check
        %p140 = pneg %p57
      $region14: #{tpu_custom_call.1} parent=11 // pred_check_branch
        %142 = sbr.rel (%p140) target = $region16
      $region15: #{tpu_custom_call.1} parent=11 // pred_region
        _
      $region16: #{tpu_custom_call.1} parent=11 // pred_fallthru
        _
      // Predicated region
      $region17: #{tpu_custom_call.1} parent=11 // pred_check
        %p143 = pneg %p78
      $region18: #{tpu_custom_call.1} parent=11 // pred_check_branch
        %145 = sbr.rel (%p143) target = $region20
      $region19: #{tpu_custom_call.1} parent=11 // pred_region
        _
      $region20: #{tpu_custom_call.1} parent=11 // pred_fallthru
        _
      // Predicated region
      $region21: #{tpu_custom_call.1} parent=11 // pred_check
        %p146 = pneg %p99
      $region22: #{tpu_custom_call.1} parent=11 // pred_check_branch
        %148 = sbr.rel (%p146) target = $region24
      $region23: #{tpu_custom_call.1} parent=11 // pred_region
        _
      $region24: #{tpu_custom_call.1} parent=11 // pred_fallthru
        _
    $region12: #{tpu_custom_call.1} parent=5 // pred_fallthru
      _
    %p149 = scmp.lt.s32.totalorder %s10, 2
    // Predicated region
    $region25: #{tpu_custom_call.1} parent=5 // pred_check
      %p150 = pneg %p149
    $region26: #{tpu_custom_call.1} parent=5 // pred_check_branch
      %152 = sbr.rel (%p150) target = $region28
    $region27: #{tpu_custom_call.1} parent=5 // pred_region
      // Predicated region
      $region29: #{tpu_custom_call.1} parent=27 // pred_check
        %p153 = pneg %p30
      $region30: #{tpu_custom_call.1} parent=27 // pred_check_branch
        %155 = sbr.rel (%p153) target = $region32
      $region31: #{tpu_custom_call.1} parent=27 // pred_region
        %p156 = scmp.lt.s32.totalorder %s10, 1
        %s157 = scalar_select %p156, %s10, 1
        %s158 = smul.addr %s157, 32
        %s159 = smul.addr %s158, 4
        %s160 = scalar_lea.vmem %s0, %s159
      $region32: #{tpu_custom_call.1} parent=27 // pred_fallthru
        _
    $region28: #{tpu_custom_call.1} parent=5 // pred_fallthru
      _
    %p161 = scmp.le.s32.totalorder 1, %s10
    %p162 = scmp.lt.s32.totalorder %s10, 3
    %p163 = pnand %p161, %p162
    %p164 = pneg %p163
    // Predicated region
    $region33: #{tpu_custom_call.1} parent=5 // pred_check
      _
    $region34: #{tpu_custom_call.1} parent=5 // pred_check_branch
      %166 = sbr.rel (%p163) target = $region36
    $region35: #{tpu_custom_call.1} parent=5 // pred_region
      %s167 = ssub.s32 %s10, 1
      %p168 = scmp.lt.s32.totalorder %s15, 1
      %s169 = scalar_select %p168, %s15, 1
      %s170 = smul.addr %s169, 32
      %s171 = smul.addr %s170, 4
      %s172 = scalar_lea.vmem %s0, %s171
      %p173 = pneg %p36
      %p174 = pneg %p33
      %p175 = pneg %p57
      %p176 = pneg %p54
      %p177 = pneg %p78
      %p178 = pneg %p75
      %p179 = pneg %p99
      %p180 = pneg %p96
      %p181 = pneg %p125
      %p182 = pneg %p122
      %p183 = scmp.lt.s32.totalorder %s15, 1
      %s184 = scalar_select %p183, %s15, 1
      %s185 = smul.addr %s184, 32
      %s186 = smul.addr %s185, 8
      %s187 = scalar_lea.vmem %s4, %s186
      %p188 = scmp.lt.s32.totalorder %s15, 1
      %s189 = scalar_select %p188, %s15, 1
      %s190 = smul.addr %s189, 32
      %s191 = smul.addr %s190, 4
      %s192 = scalar_lea.vmem %s0, %s191
      %p193 = scmp.lt.s32.totalorder %s15, 1
      %s194 = scalar_select %p193, %s15, 1
      %s195 = smul.addr %s194, 32
      %s196 = smul.addr %s195, 8
      %s197 = scalar_lea.vmem %s4, %s196
      %v199 = vld [vmem:[%s192] sm:$0xf]
      %v200 = vld [vmem:[%s192 + $0x4] sm:$0xf]
      %v201 = vld [vmem:[%s192 + $0x8] sm:$0xf]
      %v202 = vld [vmem:[%s192 + $0xc] sm:$0xf]
      %v203 = vld [vmem:[%s192 + $0x10] sm:$0xf]
      %v204 = vld [vmem:[%s192 + $0x14] sm:$0xf]
      %v205 = vld [vmem:[%s192 + $0x18] sm:$0xf]
      %v206 = vld [vmem:[%s192 + $0x1c] sm:$0xf]
      %v207 = vld [vmem:[%s192 + $0x20] sm:$0xf]
      %v208 = vld [vmem:[%s192 + $0x24] sm:$0xf]
      %v209 = vld [vmem:[%s192 + $0x28] sm:$0xf]
      %v210 = vld [vmem:[%s192 + $0x2c] sm:$0xf]
      %v211 = vld [vmem:[%s192 + $0x30] sm:$0xf]
      %v212 = vld [vmem:[%s192 + $0x34] sm:$0xf]
      %v213 = vld [vmem:[%s192 + $0x38] sm:$0xf]
      %v214 = vld [vmem:[%s192 + $0x3c] sm:$0xf]
      %v215 = vld [vmem:[%s192 + $0x40] sm:$0xf]
      %v216 = vld [vmem:[%s192 + $0x44] sm:$0xf]
      %v217 = vld [vmem:[%s192 + $0x48] sm:$0xf]
      %v218 = vld [vmem:[%s192 + $0x4c] sm:$0xf]
      %v219 = vld [vmem:[%s192 + $0x50] sm:$0xf]
      %v220 = vld [vmem:[%s192 + $0x54] sm:$0xf]
      %v221 = vld [vmem:[%s192 + $0x58] sm:$0xf]
      %v222 = vld [vmem:[%s192 + $0x5c] sm:$0xf]
      %v223 = vld [vmem:[%s192 + $0x60] sm:$0xf]
      %v224 = vld [vmem:[%s192 + $0x64] sm:$0xf]
      %v225 = vld [vmem:[%s192 + $0x68] sm:$0xf]
      %v226 = vld [vmem:[%s192 + $0x6c] sm:$0xf]
      %v227 = vld [vmem:[%s192 + $0x70] sm:$0xf]
      %v228 = vld [vmem:[%s192 + $0x74] sm:$0xf]
      %v229 = vld [vmem:[%s192 + $0x78] sm:$0xf]
      %v230 = vld [vmem:[%s192 + $0x7c] sm:$0xf]
      %v231 = vld [vmem:[%s1] sm:$0xf]
      %v232 = vld [vmem:[%s1 + $0x4] sm:$0xf]
      %v233 = vld [vmem:[%s1 + $0x8] sm:$0xf]
      %v234 = vld [vmem:[%s1 + $0xc] sm:$0xf]
      %v267 = vunpack.c.l.b16 %v199
      %v268 = vunpack.c.l.b16 %v200
      %v269 = vunpack.c.l.b16 %v201
      %v270 = vunpack.c.l.b16 %v202
      %v271 = vunpack.c.l.b16 %v203
      %v272 = vunpack.c.l.b16 %v204
      %v273 = vunpack.c.l.b16 %v205
      %v274 = vunpack.c.l.b16 %v206
      %v275 = vunpack.c.l.b16 %v207
      %v276 = vunpack.c.l.b16 %v208
      %v277 = vunpack.c.l.b16 %v209
      %v278 = vunpack.c.l.b16 %v210
      %v279 = vunpack.c.l.b16 %v211
      %v280 = vunpack.c.l.b16 %v212
      %v281 = vunpack.c.l.b16 %v213
      %v282 = vunpack.c.l.b16 %v214
      %v283 = vunpack.c.l.b16 %v215
      %v284 = vunpack.c.l.b16 %v216
      %v285 = vunpack.c.l.b16 %v217
      %v286 = vunpack.c.l.b16 %v218
      %v287 = vunpack.c.l.b16 %v219
      %v288 = vunpack.c.l.b16 %v220
      %v289 = vunpack.c.l.b16 %v221
      %v290 = vunpack.c.l.b16 %v222
      %v291 = vunpack.c.l.b16 %v223
      %v292 = vunpack.c.l.b16 %v224
      %v293 = vunpack.c.l.b16 %v225
      %v294 = vunpack.c.l.b16 %v226
      %v295 = vunpack.c.l.b16 %v227
      %v296 = vunpack.c.l.b16 %v228
      %v297 = vunpack.c.l.b16 %v229
      %v298 = vunpack.c.l.b16 %v230
      %v299 = vpack.c.b16 %v268, %v267
      %v300 = vpack.c.b16 %v270, %v269
      %v301 = vpack.c.b16 %v272, %v271
      %v302 = vpack.c.b16 %v274, %v273
      %v303 = vpack.c.b16 %v276, %v275
      %v304 = vpack.c.b16 %v278, %v277
      %v305 = vpack.c.b16 %v280, %v279
      %v306 = vpack.c.b16 %v282, %v281
      %v307 = vpack.c.b16 %v284, %v283
      %v308 = vpack.c.b16 %v286, %v285
      %v309 = vpack.c.b16 %v288, %v287
      %v310 = vpack.c.b16 %v290, %v289
      %v311 = vpack.c.b16 %v292, %v291
      %v312 = vpack.c.b16 %v294, %v293
      %v313 = vpack.c.b16 %v296, %v295
      %v314 = vpack.c.b16 %v298, %v297
      %v319 = vunpack.c.l.b16 %v231
      %v320 = vunpack.c.l.b16 %v232
      %v321 = vunpack.c.l.b16 %v233
      %v322 = vunpack.c.l.b16 %v234
      %v323 = vpack.c.b16 %v320, %v319
      %v324 = vpack.c.b16 %v322, %v321
      %vm327 = vcmask 261120
      %v329 = vsel %vm327, %v299, 0
      %v332 = vsel %vm327, %v300, 0
      %v335 = vsel %vm327, %v301, 0
      %v338 = vsel %vm327, %v302, 0
      %v341 = vsel %vm327, %v303, 0
      %v344 = vsel %vm327, %v304, 0
      %v347 = vsel %vm327, %v305, 0
      %v350 = vsel %vm327, %v306, 0
      %v353 = vsel %vm327, %v307, 0
      %v356 = vsel %vm327, %v308, 0
      %v359 = vsel %vm327, %v309, 0
      %v362 = vsel %vm327, %v310, 0
      %v365 = vsel %vm327, %v311, 0
      %v368 = vsel %vm327, %v312, 0
      %v371 = vsel %vm327, %v313, 0
      %v374 = vsel %vm327, %v314, 0
      %376 = vmatprep.subr.bf16.mxu0 0
      %377 = vmatpush1.bf16.msra.mxu0 %v323
      %378 = vmatprep.subr.bf16.mxu0 0
      %379 = vmatpush1.bf16.msra.mxu0 %v324
      %380 = vmatprep.subr.bf16.mxu0 0
      %381 = vmatpush1.bf16.msra.mxu0 0
      %382 = vmatprep.subr.bf16.mxu0 0
      %383 = vmatpush1.bf16.msra.mxu0 0
      %384 = vmatprep.subr.bf16.mxu0 0
      %385 = vmatpush1.bf16.msra.mxu0 0
      %386 = vmatprep.subr.bf16.mxu0 0
      %387 = vmatpush1.bf16.msra.mxu0 0
      %388 = vmatprep.subr.bf16.mxu0 0
      %389 = vmatpush1.bf16.msra.mxu0 0
      %390 = vmatprep.subr.bf16.mxu0 0
      %391 = vmatpush1.bf16.msra.mxu0 0
      %392 = vmatprep.subr.bf16.mxu0 0
      %393 = vmatpush1.bf16.msra.mxu0 0
      %394 = vmatprep.subr.bf16.mxu0 0
      %395 = vmatpush1.bf16.msra.mxu0 0
      %396 = vmatprep.subr.bf16.mxu0 0
      %397 = vmatpush1.bf16.msra.mxu0 0
      %398 = vmatprep.subr.bf16.mxu0 0
      %399 = vmatpush1.bf16.msra.mxu0 0
      %400 = vmatprep.subr.bf16.mxu0 0
      %401 = vmatpush1.bf16.msra.mxu0 0
      %402 = vmatprep.subr.bf16.mxu0 0
      %403 = vmatpush1.bf16.msra.mxu0 0
      %404 = vmatprep.subr.bf16.mxu0 0
      %405 = vmatpush1.bf16.msra.mxu0 0
      %406 = vmatprep.subr.bf16.mxu0 0
      %407 = vmatpush1.bf16.msra.mxu0 0
      %408 = vmatprep.mubr.bf16.mxu0 0
      %409 = vmatmul.mubr.bf16.gmra.mrb[0].mxu0 %v329
      %v410 = vpop.f32.mrb[0].mxu0
      %v411 = vadd.f32 0.0, %v410
      %v412 = vpop.f32.mrb[0].mxu0
      %v413 = vpop.f32.mrb[0].mxu0
      %v414 = vadd.f32 0.0, %v413
      %v415 = vpop.f32.mrb[0].mxu0
      %416 = vmatprep.mubr.bf16.mxu0 0
      %417 = vmatmul.mubr.bf16.gmra.mrb[0].mxu0 %v332
      %v418 = vpop.f32.mrb[0].mxu0
      %v419 = vadd.f32 0.0, %v418
      %v420 = vpop.f32.mrb[0].mxu0
      %v421 = vpop.f32.mrb[0].mxu0
      %v422 = vadd.f32 0.0, %v421
      %v423 = vpop.f32.mrb[0].mxu0
      %424 = vmatprep.mubr.bf16.mxu0 0
      %425 = vmatmul.mubr.bf16.gmra.mrb[0].mxu0 %v335
      %v426 = vpop.f32.mrb[0].mxu0
      %v427 = vadd.f32 0.0, %v426
      %v428 = vpop.f32.mrb[0].mxu0
      %v429 = vpop.f32.mrb[0].mxu0
      %v430 = vadd.f32 0.0, %v429
      %v431 = vpop.f32.mrb[0].mxu0
      %432 = vmatprep.mubr.bf16.mxu0 0
      %433 = vmatmul.mubr.bf16.gmra.mrb[0].mxu0 %v338
      %v434 = vpop.f32.mrb[0].mxu0
      %v435 = vadd.f32 0.0, %v434
      %v436 = vpop.f32.mrb[0].mxu0
      %v437 = vpop.f32.mrb[0].mxu0
      %v438 = vadd.f32 0.0, %v437
      %v439 = vpop.f32.mrb[0].mxu0
      %440 = vmatprep.mubr.bf16.mxu0 0
      %441 = vmatmul.mubr.bf16.gmra.mrb[0].mxu0 %v341
      %v442 = vpop.f32.mrb[0].mxu0
      %v443 = vadd.f32 0.0, %v442
      %v444 = vpop.f32.mrb[0].mxu0
      %v445 = vpop.f32.mrb[0].mxu0
      %v446 = vadd.f32 0.0, %v445
      %v447 = vpop.f32.mrb[0].mxu0
      %448 = vmatprep.mubr.bf16.mxu0 0
      %449 = vmatmul.mubr.bf16.gmra.mrb[0].mxu0 %v344
      %v450 = vpop.f32.mrb[0].mxu0
      %v451 = vadd.f32 0.0, %v450
      %v452 = vpop.f32.mrb[0].mxu0
      %v453 = vpop.f32.mrb[0].mxu0
      %v454 = vadd.f32 0.0, %v453
      %v455 = vpop.f32.mrb[0].mxu0
      %456 = vmatprep.mubr.bf16.mxu0 0
      %457 = vmatmul.mubr.bf16.gmra.mrb[0].mxu0 %v347
      %v458 = vpop.f32.mrb[0].mxu0
      %v459 = vadd.f32 0.0, %v458
      %v460 = vpop.f32.mrb[0].mxu0
      %v461 = vpop.f32.mrb[0].mxu0
      %v462 = vadd.f32 0.0, %v461
      %v463 = vpop.f32.mrb[0].mxu0
      %464 = vmatprep.mubr.bf16.mxu0 0
      %465 = vmatmul.mubr.bf16.gmra.mrb[0].mxu0 %v350
      %v466 = vpop.f32.mrb[0].mxu0
      %v467 = vadd.f32 0.0, %v466
      %v468 = vpop.f32.mrb[0].mxu0
      %v469 = vpop.f32.mrb[0].mxu0
      %v470 = vadd.f32 0.0, %v469
      %v471 = vpop.f32.mrb[0].mxu0
      %472 = vmatprep.mubr.bf16.mxu0 0
      %473 = vmatmul.mubr.bf16.gmra.mrb[0].mxu0 %v353
      %v474 = vpop.f32.mrb[0].mxu0
      %v475 = vadd.f32 0.0, %v474
      %v476 = vpop.f32.mrb[0].mxu0
      %v477 = vpop.f32.mrb[0].mxu0
      %v478 = vadd.f32 0.0, %v477
      %v479 = vpop.f32.mrb[0].mxu0
      %480 = vmatprep.mubr.bf16.mxu0 0
      %481 = vmatmul.mubr.bf16.gmra.mrb[0].mxu0 %v356
      %v482 = vpop.f32.mrb[0].mxu0
      %v483 = vadd.f32 0.0, %v482
      %v484 = vpop.f32.mrb[0].mxu0
      %v485 = vpop.f32.mrb[0].mxu0
      %v486 = vadd.f32 0.0, %v485
      %v487 = vpop.f32.mrb[0].mxu0
      %488 = vmatprep.mubr.bf16.mxu0 0
      %489 = vmatmul.mubr.bf16.gmra.mrb[0].mxu0 %v359
      %v490 = vpop.f32.mrb[0].mxu0
      %v491 = vadd.f32 0.0, %v490
      %v492 = vpop.f32.mrb[0].mxu0
      %v493 = vpop.f32.mrb[0].mxu0
      %v494 = vadd.f32 0.0, %v493
      %v495 = vpop.f32.mrb[0].mxu0
      %496 = vmatprep.mubr.bf16.mxu0 0
      %497 = vmatmul.mubr.bf16.gmra.mrb[0].mxu0 %v362
      %v498 = vpop.f32.mrb[0].mxu0
      %v499 = vadd.f32 0.0, %v498
      %v500 = vpop.f32.mrb[0].mxu0
      %v501 = vpop.f32.mrb[0].mxu0
      %v502 = vadd.f32 0.0, %v501
      %v503 = vpop.f32.mrb[0].mxu0
      %504 = vmatprep.mubr.bf16.mxu0 0
      %505 = vmatmul.mubr.bf16.gmra.mrb[0].mxu0 %v365
      %v506 = vpop.f32.mrb[0].mxu0
      %v507 = vadd.f32 0.0, %v506
      %v508 = vpop.f32.mrb[0].mxu0
      %v509 = vpop.f32.mrb[0].mxu0
      %v510 = vadd.f32 0.0, %v509
      %v511 = vpop.f32.mrb[0].mxu0
      %512 = vmatprep.mubr.bf16.mxu0 0
      %513 = vmatmul.mubr.bf16.gmra.mrb[0].mxu0 %v368
      %v514 = vpop.f32.mrb[0].mxu0
      %v515 = vadd.f32 0.0, %v514
      %v516 = vpop.f32.mrb[0].mxu0
      %v517 = vpop.f32.mrb[0].mxu0
      %v518 = vadd.f32 0.0, %v517
      %v519 = vpop.f32.mrb[0].mxu0
      %520 = vmatprep.mubr.bf16.mxu0 0
      %521 = vmatmul.mubr.bf16.gmra.mrb[0].mxu0 %v371
      %v522 = vpop.f32.mrb[0].mxu0
      %v523 = vadd.f32 0.0, %v522
      %v524 = vpop.f32.mrb[0].mxu0
      %v525 = vpop.f32.mrb[0].mxu0
      %v526 = vadd.f32 0.0, %v525
      %v527 = vpop.f32.mrb[0].mxu0
      %528 = vmatprep.mubr.bf16.mxu0 0
      %529 = vmatmul.mubr.bf16.gmra.mrb[0].mxu0 %v374
      %v530 = vpop.f32.mrb[0].mxu0
      %v531 = vadd.f32 0.0, %v530
      %v532 = vpop.f32.mrb[0].mxu0
      %v533 = vpop.f32.mrb[0].mxu0
      %v534 = vadd.f32 0.0, %v533
      %v535 = vpop.f32.mrb[0].mxu0
      %536 = vdwg.mxu0
      %v537 = vpack.c.bf16 %v414, %v411
      %v538 = vpack.c.bf16 %v422, %v419
      %v539 = vpack.c.bf16 %v430, %v427
      %v540 = vpack.c.bf16 %v438, %v435
      %v541 = vpack.c.bf16 %v446, %v443
      %v542 = vpack.c.bf16 %v454, %v451
      %v543 = vpack.c.bf16 %v462, %v459
      %v544 = vpack.c.bf16 %v470, %v467
      %v545 = vpack.c.bf16 %v478, %v475
      %v546 = vpack.c.bf16 %v486, %v483
      %v547 = vpack.c.bf16 %v494, %v491
      %v548 = vpack.c.bf16 %v502, %v499
      %v549 = vpack.c.bf16 %v510, %v507
      %v550 = vpack.c.bf16 %v518, %v515
      %v551 = vpack.c.bf16 %v526, %v523
      %v552 = vpack.c.bf16 %v534, %v531
      %585 = vrot.lane.b32.xlu0 %v411, 104
      %v586 = vpop.permute.xlu0 %585
      %587 = vrot.lane.b32.xlu0 %v414, 104
      %v588 = vpop.permute.xlu0 %587
      %589 = vrot.lane.b32.xlu0 %v419, 104
      %v590 = vpop.permute.xlu0 %589
      %591 = vrot.lane.b32.xlu0 %v422, 104
      %v592 = vpop.permute.xlu0 %591
      %593 = vrot.lane.b32.xlu0 %v427, 104
      %v594 = vpop.permute.xlu0 %593
      %595 = vrot.lane.b32.xlu0 %v430, 104
      %v596 = vpop.permute.xlu0 %595
      %597 = vrot.lane.b32.xlu0 %v435, 104
      %v598 = vpop.permute.xlu0 %597
      %599 = vrot.lane.b32.xlu0 %v438, 104
      %v600 = vpop.permute.xlu0 %599
      %601 = vrot.lane.b32.xlu0 %v443, 104
      %v602 = vpop.permute.xlu0 %601
      %603 = vrot.lane.b32.xlu0 %v446, 104
      %v604 = vpop.permute.xlu0 %603
      %605 = vrot.lane.b32.xlu0 %v451, 104
      %v606 = vpop.permute.xlu0 %605
      %607 = vrot.lane.b32.xlu0 %v454, 104
      %v608 = vpop.permute.xlu0 %607
      %609 = vrot.lane.b32.xlu0 %v459, 104
      %v610 = vpop.permute.xlu0 %609
      %611 = vrot.lane.b32.xlu0 %v462, 104
      %v612 = vpop.permute.xlu0 %611
      %613 = vrot.lane.b32.xlu0 %v467, 104
      %v614 = vpop.permute.xlu0 %613
      %615 = vrot.lane.b32.xlu0 %v470, 104
      %v616 = vpop.permute.xlu0 %615
      %617 = vrot.lane.b32.xlu0 %v475, 104
      %v618 = vpop.permute.xlu0 %617
      %619 = vrot.lane.b32.xlu0 %v478, 104
      %v620 = vpop.permute.xlu0 %619
      %621 = vrot.lane.b32.xlu0 %v483, 104
      %v622 = vpop.permute.xlu0 %621
      %623 = vrot.lane.b32.xlu0 %v486, 104
      %v624 = vpop.permute.xlu0 %623
      %625 = vrot.lane.b32.xlu0 %v491, 104
      %v626 = vpop.permute.xlu0 %625
      %627 = vrot.lane.b32.xlu0 %v494, 104
      %v628 = vpop.permute.xlu0 %627
      %629 = vrot.lane.b32.xlu0 %v499, 104
      %v630 = vpop.permute.xlu0 %629
      %631 = vrot.lane.b32.xlu0 %v502, 104
      %v632 = vpop.permute.xlu0 %631
      %633 = vrot.lane.b32.xlu0 %v507, 104
      %v634 = vpop.permute.xlu0 %633
      %635 = vrot.lane.b32.xlu0 %v510, 104
      %v636 = vpop.permute.xlu0 %635
      %637 = vrot.lane.b32.xlu0 %v515, 104
      %v638 = vpop.permute.xlu0 %637
      %639 = vrot.lane.b32.xlu0 %v518, 104
      %v640 = vpop.permute.xlu0 %639
      %641 = vrot.lane.b32.xlu0 %v523, 104
      %v642 = vpop.permute.xlu0 %641
      %643 = vrot.lane.b32.xlu0 %v526, 104
      %v644 = vpop.permute.xlu0 %643
      %645 = vrot.lane.b32.xlu0 %v531, 104
      %v646 = vpop.permute.xlu0 %645
      %647 = vrot.lane.b32.xlu0 %v534, 104
      %v648 = vpop.permute.xlu0 %647
      %681 = vxpose.xlu0.b32.start [1/16] %v586, 128
      %682 = vxpose.xlu0.b32.cont [2/16] %v588, 128
      %683 = vxpose.xlu0.b32.cont [3/16] 0.0, 128
      %684 = vxpose.xlu0.b32.cont [4/16] 0.0, 128
      %685 = vxpose.xlu0.b32.cont [5/16] 0.0, 128
      %686 = vxpose.xlu0.b32.cont [6/16] 0.0, 128
      %687 = vxpose.xlu0.b32.cont [7/16] 0.0, 128
      %688 = vxpose.xlu0.b32.cont [8/16] 0.0, 128
      %689 = vxpose.xlu0.b32.cont [9/16] 0.0, 128
      %690 = vxpose.xlu0.b32.cont [10/16] 0.0, 128
      %691 = vxpose.xlu0.b32.cont [11/16] 0.0, 128
      %692 = vxpose.xlu0.b32.cont [12/16] 0.0, 128
      %693 = vxpose.xlu0.b32.cont [13/16] 0.0, 128
      %694 = vxpose.xlu0.b32.cont [14/16] 0.0, 128
      %695 = vxpose.xlu0.b32.cont [15/16] 0.0, 128
      %696 = vxpose.xlu0.b32.end [16/16] 0.0, 128
      %v697 = vpop.trf.xlu0
      %v698 = vpop.trf.xlu0
      %v699 = vpop.trf.xlu0
      %v700 = vpop.trf.xlu0
      %v701 = vpop.trf.xlu0
      %v702 = vpop.trf.xlu0
      %v703 = vpop.trf.xlu0
      %v704 = vpop.trf.xlu0
      %v705 = vpop.trf.xlu0
      %v706 = vpop.trf.xlu0
      %v707 = vpop.trf.xlu0
      %v708 = vpop.trf.xlu0
      %v709 = vpop.trf.xlu0
      %v710 = vpop.trf.xlu0
      %v711 = vpop.trf.xlu0
      %v712 = vpop.trf.xlu0
      %713 = vxpose.xlu0.b32.start [1/16] %v590, 128
      %714 = vxpose.xlu0.b32.cont [2/16] %v592, 128
      %715 = vxpose.xlu0.b32.cont [3/16] 0.0, 128
      %716 = vxpose.xlu0.b32.cont [4/16] 0.0, 128
      %717 = vxpose.xlu0.b32.cont [5/16] 0.0, 128
      %718 = vxpose.xlu0.b32.cont [6/16] 0.0, 128
      %719 = vxpose.xlu0.b32.cont [7/16] 0.0, 128
      %720 = vxpose.xlu0.b32.cont [8/16] 0.0, 128
      %721 = vxpose.xlu0.b32.cont [9/16] 0.0, 128
      %722 = vxpose.xlu0.b32.cont [10/16] 0.0, 128
      %723 = vxpose.xlu0.b32.cont [11/16] 0.0, 128
      %724 = vxpose.xlu0.b32.cont [12/16] 0.0, 128
      %725 = vxpose.xlu0.b32.cont [13/16] 0.0, 128
      %726 = vxpose.xlu0.b32.cont [14/16] 0.0, 128
      %727 = vxpose.xlu0.b32.cont [15/16] 0.0, 128
      %728 = vxpose.xlu0.b32.end [16/16] 0.0, 128
      %v729 = vpop.trf.xlu0
      %v730 = vpop.trf.xlu0
      %v731 = vpop.trf.xlu0
      %v732 = vpop.trf.xlu0
      %v733 = vpop.trf.xlu0
      %v734 = vpop.trf.xlu0
      %v735 = vpop.trf.xlu0
      %v736 = vpop.trf.xlu0
      %v737 = vpop.trf.xlu0
      %v738 = vpop.trf.xlu0
      %v739 = vpop.trf.xlu0
      %v740 = vpop.trf.xlu0
      %v741 = vpop.trf.xlu0
      %v742 = vpop.trf.xlu0
      %v743 = vpop.trf.xlu0
      %v744 = vpop.trf.xlu0
      %745 = vxpose.xlu0.b32.start [1/16] %v594, 128
      %746 = vxpose.xlu0.b32.cont [2/16] %v596, 128
      %747 = vxpose.xlu0.b32.cont [3/16] 0.0, 128
      %748 = vxpose.xlu0.b32.cont [4/16] 0.0, 128
      %749 = vxpose.xlu0.b32.cont [5/16] 0.0, 128
      %750 = vxpose.xlu0.b32.cont [6/16] 0.0, 128
      %751 = vxpose.xlu0.b32.cont [7/16] 0.0, 128
      %752 = vxpose.xlu0.b32.cont [8/16] 0.0, 128
      %753 = vxpose.xlu0.b32.cont [9/16] 0.0, 128
      %754 = vxpose.xlu0.b32.cont [10/16] 0.0, 128
      %755 = vxpose.xlu0.b32.cont [11/16] 0.0, 128
      %756 = vxpose.xlu0.b32.cont [12/16] 0.0, 128
      %757 = vxpose.xlu0.b32.cont [13/16] 0.0, 128
      %758 = vxpose.xlu0.b32.cont [14/16] 0.0, 128
      %759 = vxpose.xlu0.b32.cont [15/16] 0.0, 128
      %760 = vxpose.xlu0.b32.end [16/16] 0.0, 128
      %v761 = vpop.trf.xlu0
      %v762 = vpop.trf.xlu0
      %v763 = vpop.trf.xlu0
      %v764 = vpop.trf.xlu0
      %v765 = vpop.trf.xlu0
      %v766 = vpop.trf.xlu0
      %v767 = vpop.trf.xlu0
      %v768 = vpop.trf.xlu0
      %v769 = vpop.trf.xlu0
      %v770 = vpop.trf.xlu0
      %v771 = vpop.trf.xlu0
      %v772 = vpop.trf.xlu0
      %v773 = vpop.trf.xlu0
      %v774 = vpop.trf.xlu0
      %v775 = vpop.trf.xlu0
      %v776 = vpop.trf.xlu0
      %777 = vxpose.xlu0.b32.start [1/16] %v598, 128
      %778 = vxpose.xlu0.b32.cont [2/16] %v600, 128
      %779 = vxpose.xlu0.b32.cont [3/16] 0.0, 128
      %780 = vxpose.xlu0.b32.cont [4/16] 0.0, 128
      %781 = vxpose.xlu0.b32.cont [5/16] 0.0, 128
      %782 = vxpose.xlu0.b32.cont [6/16] 0.0, 128
      %783 = vxpose.xlu0.b32.cont [7/16] 0.0, 128
      %784 = vxpose.xlu0.b32.cont [8/16] 0.0, 128
      %785 = vxpose.xlu0.b32.cont [9/16] 0.0, 128
      %786 = vxpose.xlu0.b32.cont [10/16] 0.0, 128
      %787 = vxpose.xlu0.b32.cont [11/16] 0.0, 128
      %788 = vxpose.xlu0.b32.cont [12/16] 0.0, 128
      %789 = vxpose.xlu0.b32.cont [13/16] 0.0, 128
      %790 = vxpose.xlu0.b32.cont [14/16] 0.0, 128
      %791 = vxpose.xlu0.b32.cont [15/16] 0.0, 128
      %792 = vxpose.xlu0.b32.end [16/16] 0.0, 128
      %v793 = vpop.trf.xlu0
      %v794 = vpop.trf.xlu0
      %v795 = vpop.trf.xlu0
      %v796 = vpop.trf.xlu0
      %v797 = vpop.trf.xlu0
      %v798 = vpop.trf.xlu0
      %v799 = vpop.trf.xlu0
      %v800 = vpop.trf.xlu0
      %v801 = vpop.trf.xlu0
      %v802 = vpop.trf.xlu0
      %v803 = vpop.trf.xlu0
      %v804 = vpop.trf.xlu0
      %v805 = vpop.trf.xlu0
      %v806 = vpop.trf.xlu0
      %v807 = vpop.trf.xlu0
      %v808 = vpop.trf.xlu0
      %809 = vxpose.xlu0.b32.start [1/16] %v602, 128
      %810 = vxpose.xlu0.b32.cont [2/16] %v604, 128
      %811 = vxpose.xlu0.b32.cont [3/16] 0.0, 128
      %812 = vxpose.xlu0.b32.cont [4/16] 0.0, 128
      %813 = vxpose.xlu0.b32.cont [5/16] 0.0, 128
      %814 = vxpose.xlu0.b32.cont [6/16] 0.0, 128
      %815 = vxpose.xlu0.b32.cont [7/16] 0.0, 128
      %816 = vxpose.xlu0.b32.cont [8/16] 0.0, 128
      %817 = vxpose.xlu0.b32.cont [9/16] 0.0, 128
      %818 = vxpose.xlu0.b32.cont [10/16] 0.0, 128
      %819 = vxpose.xlu0.b32.cont [11/16] 0.0, 128
      %820 = vxpose.xlu0.b32.cont [12/16] 0.0, 128
      %821 = vxpose.xlu0.b32.cont [13/16] 0.0, 128
      %822 = vxpose.xlu0.b32.cont [14/16] 0.0, 128
      %823 = vxpose.xlu0.b32.cont [15/16] 0.0, 128
      %824 = vxpose.xlu0.b32.end [16/16] 0.0, 128
      %v825 = vpop.trf.xlu0
      %v826 = vpop.trf.xlu0
      %v827 = vpop.trf.xlu0
      %v828 = vpop.trf.xlu0
      %v829 = vpop.trf.xlu0
      %v830 = vpop.trf.xlu0
      %v831 = vpop.trf.xlu0
      %v832 = vpop.trf.xlu0
      %v833 = vpop.trf.xlu0
      %v834 = vpop.trf.xlu0
      %v835 = vpop.trf.xlu0
      %v836 = vpop.trf.xlu0
      %v837 = vpop.trf.xlu0
      %v838 = vpop.trf.xlu0
      %v839 = vpop.trf.xlu0
      %v840 = vpop.trf.xlu0
      %841 = vxpose.xlu0.b32.start [1/16] %v606, 128
      %842 = vxpose.xlu0.b32.cont [2/16] %v608, 128
      %843 = vxpose.xlu0.b32.cont [3/16] 0.0, 128
      %844 = vxpose.xlu0.b32.cont [4/16] 0.0, 128
      %845 = vxpose.xlu0.b32.cont [5/16] 0.0, 128
      %846 = vxpose.xlu0.b32.cont [6/16] 0.0, 128
      %847 = vxpose.xlu0.b32.cont [7/16] 0.0, 128
      %848 = vxpose.xlu0.b32.cont [8/16] 0.0, 128
      %849 = vxpose.xlu0.b32.cont [9/16] 0.0, 128
      %850 = vxpose.xlu0.b32.cont [10/16] 0.0, 128
      %851 = vxpose.xlu0.b32.cont [11/16] 0.0, 128
      %852 = vxpose.xlu0.b32.cont [12/16] 0.0, 128
      %853 = vxpose.xlu0.b32.cont [13/16] 0.0, 128
      %854 = vxpose.xlu0.b32.cont [14/16] 0.0, 128
      %855 = vxpose.xlu0.b32.cont [15/16] 0.0, 128
      %856 = vxpose.xlu0.b32.end [16/16] 0.0, 128
      %v857 = vpop.trf.xlu0
      %v858 = vpop.trf.xlu0
      %v859 = vpop.trf.xlu0
      %v860 = vpop.trf.xlu0
      %v861 = vpop.trf.xlu0
      %v862 = vpop.trf.xlu0
      %v863 = vpop.trf.xlu0
      %v864 = vpop.trf.xlu0
      %v865 = vpop.trf.xlu0
      %v866 = vpop.trf.xlu0
      %v867 = vpop.trf.xlu0
      %v868 = vpop.trf.xlu0
      %v869 = vpop.trf.xlu0
      %v870 = vpop.trf.xlu0
      %v871 = vpop.trf.xlu0
      %v872 = vpop.trf.xlu0
      %873 = vxpose.xlu0.b32.start [1/16] %v610, 128
      %874 = vxpose.xlu0.b32.cont [2/16] %v612, 128
      %875 = vxpose.xlu0.b32.cont [3/16] 0.0, 128
      %876 = vxpose.xlu0.b32.cont [4/16] 0.0, 128
      %877 = vxpose.xlu0.b32.cont [5/16] 0.0, 128
      %878 = vxpose.xlu0.b32.cont [6/16] 0.0, 128
      %879 = vxpose.xlu0.b32.cont [7/16] 0.0, 128
      %880 = vxpose.xlu0.b32.cont [8/16] 0.0, 128
      %881 = vxpose.xlu0.b32.cont [9/16] 0.0, 128
      %882 = vxpose.xlu0.b32.cont [10/16] 0.0, 128
      %883 = vxpose.xlu0.b32.cont [11/16] 0.0, 128
      %884 = vxpose.xlu0.b32.cont [12/16] 0.0, 128
      %885 = vxpose.xlu0.b32.cont [13/16] 0.0, 128
      %886 = vxpose.xlu0.b32.cont [14/16] 0.0, 128
      %887 = vxpose.xlu0.b32.cont [15/16] 0.0, 128
      %888 = vxpose.xlu0.b32.end [16/16] 0.0, 128
      %v889 = vpop.trf.xlu0
      %v890 = vpop.trf.xlu0
      %v891 = vpop.trf.xlu0
      %v892 = vpop.trf.xlu0
      %v893 = vpop.trf.xlu0
      %v894 = vpop.trf.xlu0
      %v895 = vpop.trf.xlu0
      %v896 = vpop.trf.xlu0
      %v897 = vpop.trf.xlu0
      %v898 = vpop.trf.xlu0
      %v899 = vpop.trf.xlu0
      %v900 = vpop.trf.xlu0
      %v901 = vpop.trf.xlu0
      %v902 = vpop.trf.xlu0
      %v903 = vpop.trf.xlu0
      %v904 = vpop.trf.xlu0
      %905 = vxpose.xlu0.b32.start [1/16] %v614, 128
      %906 = vxpose.xlu0.b32.cont [2/16] %v616, 128
      %907 = vxpose.xlu0.b32.cont [3/16] 0.0, 128
      %908 = vxpose.xlu0.b32.cont [4/16] 0.0, 128
      %909 = vxpose.xlu0.b32.cont [5/16] 0.0, 128
      %910 = vxpose.xlu0.b32.cont [6/16] 0.0, 128
      %911 = vxpose.xlu0.b32.cont [7/16] 0.0, 128
      %912 = vxpose.xlu0.b32.cont [8/16] 0.0, 128
      %913 = vxpose.xlu0.b32.cont [9/16] 0.0, 128
      %914 = vxpose.xlu0.b32.cont [10/16] 0.0, 128
      %915 = vxpose.xlu0.b32.cont [11/16] 0.0, 128
      %916 = vxpose.xlu0.b32.cont [12/16] 0.0, 128
      %917 = vxpose.xlu0.b32.cont [13/16] 0.0, 128
      %918 = vxpose.xlu0.b32.cont [14/16] 0.0, 128
      %919 = vxpose.xlu0.b32.cont [15/16] 0.0, 128
      %920 = vxpose.xlu0.b32.end [16/16] 0.0, 128
      %v921 = vpop.trf.xlu0
      %v922 = vpop.trf.xlu0
      %v923 = vpop.trf.xlu0
      %v924 = vpop.trf.xlu0
      %v925 = vpop.trf.xlu0
      %v926 = vpop.trf.xlu0
      %v927 = vpop.trf.xlu0
      %v928 = vpop.trf.xlu0
      %v929 = vpop.trf.xlu0
      %v930 = vpop.trf.xlu0
      %v931 = vpop.trf.xlu0
      %v932 = vpop.trf.xlu0
      %v933 = vpop.trf.xlu0
      %v934 = vpop.trf.xlu0
      %v935 = vpop.trf.xlu0
      %v936 = vpop.trf.xlu0
      %937 = vxpose.xlu0.b32.start [1/16] %v618, 128
      %938 = vxpose.xlu0.b32.cont [2/16] %v620, 128
      %939 = vxpose.xlu0.b32.cont [3/16] 0.0, 128
      %940 = vxpose.xlu0.b32.cont [4/16] 0.0, 128
      %941 = vxpose.xlu0.b32.cont [5/16] 0.0, 128
      %942 = vxpose.xlu0.b32.cont [6/16] 0.0, 128
      %943 = vxpose.xlu0.b32.cont [7/16] 0.0, 128
      %944 = vxpose.xlu0.b32.cont [8/16] 0.0, 128
      %945 = vxpose.xlu0.b32.cont [9/16] 0.0, 128
      %946 = vxpose.xlu0.b32.cont [10/16] 0.0, 128
      %947 = vxpose.xlu0.b32.cont [11/16] 0.0, 128
      %948 = vxpose.xlu0.b32.cont [12/16] 0.0, 128
      %949 = vxpose.xlu0.b32.cont [13/16] 0.0, 128
      %950 = vxpose.xlu0.b32.cont [14/16] 0.0, 128
      %951 = vxpose.xlu0.b32.cont [15/16] 0.0, 128
      %952 = vxpose.xlu0.b32.end [16/16] 0.0, 128
      %v953 = vpop.trf.xlu0
      %v954 = vpop.trf.xlu0
      %v955 = vpop.trf.xlu0
      %v956 = vpop.trf.xlu0
      %v957 = vpop.trf.xlu0
      %v958 = vpop.trf.xlu0
      %v959 = vpop.trf.xlu0
      %v960 = vpop.trf.xlu0
      %v961 = vpop.trf.xlu0
      %v962 = vpop.trf.xlu0
      %v963 = vpop.trf.xlu0
      %v964 = vpop.trf.xlu0
      %v965 = vpop.trf.xlu0
      %v966 = vpop.trf.xlu0
      %v967 = vpop.trf.xlu0
      %v968 = vpop.trf.xlu0
      %969 = vxpose.xlu0.b32.start [1/16] %v622, 128
      %970 = vxpose.xlu0.b32.cont [2/16] %v624, 128
      %971 = vxpose.xlu0.b32.cont [3/16] 0.0, 128
      %972 = vxpose.xlu0.b32.cont [4/16] 0.0, 128
      %973 = vxpose.xlu0.b32.cont [5/16] 0.0, 128
      %974 = vxpose.xlu0.b32.cont [6/16] 0.0, 128
      %975 = vxpose.xlu0.b32.cont [7/16] 0.0, 128
      %976 = vxpose.xlu0.b32.cont [8/16] 0.0, 128
      %977 = vxpose.xlu0.b32.cont [9/16] 0.0, 128
      %978 = vxpose.xlu0.b32.cont [10/16] 0.0, 128
      %979 = vxpose.xlu0.b32.cont [11/16] 0.0, 128
      %980 = vxpose.xlu0.b32.cont [12/16] 0.0, 128
      %981 = vxpose.xlu0.b32.cont [13/16] 0.0, 128
      %982 = vxpose.xlu0.b32.cont [14/16] 0.0, 128
      %983 = vxpose.xlu0.b32.cont [15/16] 0.0, 128
      %984 = vxpose.xlu0.b32.end [16/16] 0.0, 128
      %v985 = vpop.trf.xlu0
      %v986 = vpop.trf.xlu0
      %v987 = vpop.trf.xlu0
      %v988 = vpop.trf.xlu0
      %v989 = vpop.trf.xlu0
      %v990 = vpop.trf.xlu0
      %v991 = vpop.trf.xlu0
      %v992 = vpop.trf.xlu0
      %v993 = vpop.trf.xlu0
      %v994 = vpop.trf.xlu0
      %v995 = vpop.trf.xlu0
      %v996 = vpop.trf.xlu0
      %v997 = vpop.trf.xlu0
      %v998 = vpop.trf.xlu0
      %v999 = vpop.trf.xlu0
      %v1000 = vpop.trf.xlu0
      %1001 = vxpose.xlu0.b32.start [1/16] %v626, 128
      %1002 = vxpose.xlu0.b32.cont [2/16] %v628, 128
      %1003 = vxpose.xlu0.b32.cont [3/16] 0.0, 128
      %1004 = vxpose.xlu0.b32.cont [4/16] 0.0, 128
      %1005 = vxpose.xlu0.b32.cont [5/16] 0.0, 128
      %1006 = vxpose.xlu0.b32.cont [6/16] 0.0, 128
      %1007 = vxpose.xlu0.b32.cont [7/16] 0.0, 128
      %1008 = vxpose.xlu0.b32.cont [8/16] 0.0, 128
      %1009 = vxpose.xlu0.b32.cont [9/16] 0.0, 128
      %1010 = vxpose.xlu0.b32.cont [10/16] 0.0, 128
      %1011 = vxpose.xlu0.b32.cont [11/16] 0.0, 128
      %1012 = vxpose.xlu0.b32.cont [12/16] 0.0, 128
      %1013 = vxpose.xlu0.b32.cont [13/16] 0.0, 128
      %1014 = vxpose.xlu0.b32.cont [14/16] 0.0, 128
      %1015 = vxpose.xlu0.b32.cont [15/16] 0.0, 128
      %1016 = vxpose.xlu0.b32.end [16/16] 0.0, 128
      %v1017 = vpop.trf.xlu0
      %v1018 = vpop.trf.xlu0
      %v1019 = vpop.trf.xlu0
      %v1020 = vpop.trf.xlu0
      %v1021 = vpop.trf.xlu0
      %v1022 = vpop.trf.xlu0
      %v1023 = vpop.trf.xlu0
      %v1024 = vpop.trf.xlu0
      %v1025 = vpop.trf.xlu0
      %v1026 = vpop.trf.xlu0
      %v1027 = vpop.trf.xlu0
      %v1028 = vpop.trf.xlu0
      %v1029 = vpop.trf.xlu0
      %v1030 = vpop.trf.xlu0
      %v1031 = vpop.trf.xlu0
      %v1032 = vpop.trf.xlu0
      %1033 = vxpose.xlu0.b32.start [1/16] %v630, 128
      %1034 = vxpose.xlu0.b32.cont [2/16] %v632, 128
      %1035 = vxpose.xlu0.b32.cont [3/16] 0.0, 128
      %1036 = vxpose.xlu0.b32.cont [4/16] 0.0, 128
      %1037 = vxpose.xlu0.b32.cont [5/16] 0.0, 128
      %1038 = vxpose.xlu0.b32.cont [6/16] 0.0, 128
      %1039 = vxpose.xlu0.b32.cont [7/16] 0.0, 128
      %1040 = vxpose.xlu0.b32.cont [8/16] 0.0, 128
      %1041 = vxpose.xlu0.b32.cont [9/16] 0.0, 128
      %1042 = vxpose.xlu0.b32.cont [10/16] 0.0, 128
      %1043 = vxpose.xlu0.b32.cont [11/16] 0.0, 128
      %1044 = vxpose.xlu0.b32.cont [12/16] 0.0, 128
      %1045 = vxpose.xlu0.b32.cont [13/16] 0.0, 128
      %1046 = vxpose.xlu0.b32.cont [14/16] 0.0, 128
      %1047 = vxpose.xlu0.b32.cont [15/16] 0.0, 128
      %1048 = vxpose.xlu0.b32.end [16/16] 0.0, 128
      %v1049 = vpop.trf.xlu0
      %v1050 = vpop.trf.xlu0
      %v1051 = vpop.trf.xlu0
      %v1052 = vpop.trf.xlu0
      %v1053 = vpop.trf.xlu0
      %v1054 = vpop.trf.xlu0
      %v1055 = vpop.trf.xlu0
      %v1056 = vpop.trf.xlu0
      %v1057 = vpop.trf.xlu0
      %v1058 = vpop.trf.xlu0
      %v1059 = vpop.trf.xlu0
      %v1060 = vpop.trf.xlu0
      %v1061 = vpop.trf.xlu0
      %v1062 = vpop.trf.xlu0
      %v1063 = vpop.trf.xlu0
      %v1064 = vpop.trf.xlu0
      %1065 = vxpose.xlu0.b32.start [1/16] %v634, 128
      %1066 = vxpose.xlu0.b32.cont [2/16] %v636, 128
      %1067 = vxpose.xlu0.b32.cont [3/16] 0.0, 128
      %1068 = vxpose.xlu0.b32.cont [4/16] 0.0, 128
      %1069 = vxpose.xlu0.b32.cont [5/16] 0.0, 128
      %1070 = vxpose.xlu0.b32.cont [6/16] 0.0, 128
      %1071 = vxpose.xlu0.b32.cont [7/16] 0.0, 128
      %1072 = vxpose.xlu0.b32.cont [8/16] 0.0, 128
      %1073 = vxpose.xlu0.b32.cont [9/16] 0.0, 128
      %1074 = vxpose.xlu0.b32.cont [10/16] 0.0, 128
      %1075 = vxpose.xlu0.b32.cont [11/16] 0.0, 128
      %1076 = vxpose.xlu0.b32.cont [12/16] 0.0, 128
      %1077 = vxpose.xlu0.b32.cont [13/16] 0.0, 128
      %1078 = vxpose.xlu0.b32.cont [14/16] 0.0, 128
      %1079 = vxpose.xlu0.b32.cont [15/16] 0.0, 128
      %1080 = vxpose.xlu0.b32.end [16/16] 0.0, 128
      %v1081 = vpop.trf.xlu0
      %v1082 = vpop.trf.xlu0
      %v1083 = vpop.trf.xlu0
      %v1084 = vpop.trf.xlu0
      %v1085 = vpop.trf.xlu0
      %v1086 = vpop.trf.xlu0
      %v1087 = vpop.trf.xlu0
      %v1088 = vpop.trf.xlu0
      %v1089 = vpop.trf.xlu0
      %v1090 = vpop.trf.xlu0
      %v1091 = vpop.trf.xlu0
      %v1092 = vpop.trf.xlu0
      %v1093 = vpop.trf.xlu0
      %v1094 = vpop.trf.xlu0
      %v1095 = vpop.trf.xlu0
      %v1096 = vpop.trf.xlu0
      %1097 = vxpose.xlu0.b32.start [1/16] %v638, 128
      %1098 = vxpose.xlu0.b32.cont [2/16] %v640, 128
      %1099 = vxpose.xlu0.b32.cont [3/16] 0.0, 128
      %1100 = vxpose.xlu0.b32.cont [4/16] 0.0, 128
      %1101 = vxpose.xlu0.b32.cont [5/16] 0.0, 128
      %1102 = vxpose.xlu0.b32.cont [6/16] 0.0, 128
      %1103 = vxpose.xlu0.b32.cont [7/16] 0.0, 128
      %1104 = vxpose.xlu0.b32.cont [8/16] 0.0, 128
      %1105 = vxpose.xlu0.b32.cont [9/16] 0.0, 128
      %1106 = vxpose.xlu0.b32.cont [10/16] 0.0, 128
      %1107 = vxpose.xlu0.b32.cont [11/16] 0.0, 128
      %1108 = vxpose.xlu0.b32.cont [12/16] 0.0, 128
      %1109 = vxpose.xlu0.b32.cont [13/16] 0.0, 128
      %1110 = vxpose.xlu0.b32.cont [14/16] 0.0, 128
      %1111 = vxpose.xlu0.b32.cont [15/16] 0.0, 128
      %1112 = vxpose.xlu0.b32.end [16/16] 0.0, 128
      %v1113 = vpop.trf.xlu0
      %v1114 = vpop.trf.xlu0
      %v1115 = vpop.trf.xlu0
      %v1116 = vpop.trf.xlu0
      %v1117 = vpop.trf.xlu0
      %v1118 = vpop.trf.xlu0
      %v1119 = vpop.trf.xlu0
      %v1120 = vpop.trf.xlu0
      %v1121 = vpop.trf.xlu0
      %v1122 = vpop.trf.xlu0
      %v1123 = vpop.trf.xlu0
      %v1124 = vpop.trf.xlu0
      %v1125 = vpop.trf.xlu0
      %v1126 = vpop.trf.xlu0
      %v1127 = vpop.trf.xlu0
      %v1128 = vpop.trf.xlu0
      %1129 = vxpose.xlu0.b32.start [1/16] %v642, 128
      %1130 = vxpose.xlu0.b32.cont [2/16] %v644, 128
      %1131 = vxpose.xlu0.b32.cont [3/16] 0.0, 128
      %1132 = vxpose.xlu0.b32.cont [4/16] 0.0, 128
      %1133 = vxpose.xlu0.b32.cont [5/16] 0.0, 128
      %1134 = vxpose.xlu0.b32.cont [6/16] 0.0, 128
      %1135 = vxpose.xlu0.b32.cont [7/16] 0.0, 128
      %1136 = vxpose.xlu0.b32.cont [8/16] 0.0, 128
      %1137 = vxpose.xlu0.b32.cont [9/16] 0.0, 128
      %1138 = vxpose.xlu0.b32.cont [10/16] 0.0, 128
      %1139 = vxpose.xlu0.b32.cont [11/16] 0.0, 128
      %1140 = vxpose.xlu0.b32.cont [12/16] 0.0, 128
      %1141 = vxpose.xlu0.b32.cont [13/16] 0.0, 128
      %1142 = vxpose.xlu0.b32.cont [14/16] 0.0, 128
      %1143 = vxpose.xlu0.b32.cont [15/16] 0.0, 128
      %1144 = vxpose.xlu0.b32.end [16/16] 0.0, 128
      %v1145 = vpop.trf.xlu0
      %v1146 = vpop.trf.xlu0
      %v1147 = vpop.trf.xlu0
      %v1148 = vpop.trf.xlu0
      %v1149 = vpop.trf.xlu0
      %v1150 = vpop.trf.xlu0
      %v1151 = vpop.trf.xlu0
      %v1152 = vpop.trf.xlu0
      %v1153 = vpop.trf.xlu0
      %v1154 = vpop.trf.xlu0
      %v1155 = vpop.trf.xlu0
      %v1156 = vpop.trf.xlu0
      %v1157 = vpop.trf.xlu0
      %v1158 = vpop.trf.xlu0
      %v1159 = vpop.trf.xlu0
      %v1160 = vpop.trf.xlu0
      %1161 = vxpose.xlu0.b32.start [1/16] %v646, 128
      %1162 = vxpose.xlu0.b32.cont [2/16] %v648, 128
      %1163 = vxpose.xlu0.b32.cont [3/16] 0.0, 128
      %1164 = vxpose.xlu0.b32.cont [4/16] 0.0, 128
      %1165 = vxpose.xlu0.b32.cont [5/16] 0.0, 128
      %1166 = vxpose.xlu0.b32.cont [6/16] 0.0, 128
      %1167 = vxpose.xlu0.b32.cont [7/16] 0.0, 128
      %1168 = vxpose.xlu0.b32.cont [8/16] 0.0, 128
      %1169 = vxpose.xlu0.b32.cont [9/16] 0.0, 128
      %1170 = vxpose.xlu0.b32.cont [10/16] 0.0, 128
      %1171 = vxpose.xlu0.b32.cont [11/16] 0.0, 128
      %1172 = vxpose.xlu0.b32.cont [12/16] 0.0, 128
      %1173 = vxpose.xlu0.b32.cont [13/16] 0.0, 128
      %1174 = vxpose.xlu0.b32.cont [14/16] 0.0, 128
      %1175 = vxpose.xlu0.b32.cont [15/16] 0.0, 128
      %1176 = vxpose.xlu0.b32.end [16/16] 0.0, 128
      %v1177 = vpop.trf.xlu0
      %v1178 = vpop.trf.xlu0
      %v1179 = vpop.trf.xlu0
      %v1180 = vpop.trf.xlu0
      %v1181 = vpop.trf.xlu0
      %v1182 = vpop.trf.xlu0
      %v1183 = vpop.trf.xlu0
      %v1184 = vpop.trf.xlu0
      %v1185 = vpop.trf.xlu0
      %v1186 = vpop.trf.xlu0
      %v1187 = vpop.trf.xlu0
      %v1188 = vpop.trf.xlu0
      %v1189 = vpop.trf.xlu0
      %v1190 = vpop.trf.xlu0
      %v1191 = vpop.trf.xlu0
      %v1192 = vpop.trf.xlu0
      %1193 = vxpose.xlu0.b32.start [1/16] %v697, 128
      %1194 = vxpose.xlu0.b32.cont [2/16] %v698, 128
      %1195 = vxpose.xlu0.b32.cont [3/16] %v699, 128
      %1196 = vxpose.xlu0.b32.cont [4/16] %v729, 128
      %1197 = vxpose.xlu0.b32.cont [5/16] %v730, 128
      %1198 = vxpose.xlu0.b32.cont [6/16] %v731, 128
      %1199 = vxpose.xlu0.b32.cont [7/16] %v761, 128
      %1200 = vxpose.xlu0.b32.cont [8/16] %v762, 128
      %1201 = vxpose.xlu0.b32.cont [9/16] %v763, 128
      %1202 = vxpose.xlu0.b32.cont [10/16] %v793, 128
      %1203 = vxpose.xlu0.b32.cont [11/16] %v794, 128
      %1204 = vxpose.xlu0.b32.cont [12/16] %v795, 128
      %1205 = vxpose.xlu0.b32.cont [13/16] %v825, 128
      %1206 = vxpose.xlu0.b32.cont [14/16] %v826, 128
      %1207 = vxpose.xlu0.b32.cont [15/16] %v827, 128
      %1208 = vxpose.xlu0.b32.end [16/16] %v857, 128
      %v1209 = vpop.trf.xlu0
      %v1210 = vpop.trf.xlu0
      %v1211 = vpop.trf.xlu0
      %v1212 = vpop.trf.xlu0
      %v1213 = vpop.trf.xlu0
      %v1214 = vpop.trf.xlu0
      %v1215 = vpop.trf.xlu0
      %v1216 = vpop.trf.xlu0
      %v1217 = vpop.trf.xlu0
      %v1218 = vpop.trf.xlu0
      %v1219 = vpop.trf.xlu0
      %v1220 = vpop.trf.xlu0
      %v1221 = vpop.trf.xlu0
      %v1222 = vpop.trf.xlu0
      %v1223 = vpop.trf.xlu0
      %v1224 = vpop.trf.xlu0
      %1225 = vxpose.xlu0.b32.start [1/16] %v858, 128
      %1226 = vxpose.xlu0.b32.cont [2/16] %v859, 128
      %1227 = vxpose.xlu0.b32.cont [3/16] %v889, 128
      %1228 = vxpose.xlu0.b32.cont [4/16] %v890, 128
      %1229 = vxpose.xlu0.b32.cont [5/16] %v891, 128
      %1230 = vxpose.xlu0.b32.cont [6/16] %v921, 128
      %1231 = vxpose.xlu0.b32.cont [7/16] %v922, 128
      %1232 = vxpose.xlu0.b32.cont [8/16] %v923, 128
      %1233 = vxpose.xlu0.b32.cont [9/16] %v953, 128
      %1234 = vxpose.xlu0.b32.cont [10/16] %v954, 128
      %1235 = vxpose.xlu0.b32.cont [11/16] %v955, 128
      %1236 = vxpose.xlu0.b32.cont [12/16] %v985, 128
      %1237 = vxpose.xlu0.b32.cont [13/16] %v986, 128
      %1238 = vxpose.xlu0.b32.cont [14/16] %v987, 128
      %1239 = vxpose.xlu0.b32.cont [15/16] %v1017, 128
      %1240 = vxpose.xlu0.b32.end [16/16] %v1018, 128
      %v1241 = vpop.trf.xlu0
      %v1242 = vpop.trf.xlu0
      %v1243 = vpop.trf.xlu0
      %v1244 = vpop.trf.xlu0
      %v1245 = vpop.trf.xlu0
      %v1246 = vpop.trf.xlu0
      %v1247 = vpop.trf.xlu0
      %v1248 = vpop.trf.xlu0
      %v1249 = vpop.trf.xlu0
      %v1250 = vpop.trf.xlu0
      %v1251 = vpop.trf.xlu0
      %v1252 = vpop.trf.xlu0
      %v1253 = vpop.trf.xlu0
      %v1254 = vpop.trf.xlu0
      %v1255 = vpop.trf.xlu0
      %v1256 = vpop.trf.xlu0
      %1257 = vxpose.xlu0.b32.start [1/16] %v1019, 128
      %1258 = vxpose.xlu0.b32.cont [2/16] %v1049, 128
      %1259 = vxpose.xlu0.b32.cont [3/16] %v1050, 128
      %1260 = vxpose.xlu0.b32.cont [4/16] %v1051, 128
      %1261 = vxpose.xlu0.b32.cont [5/16] %v1081, 128
      %1262 = vxpose.xlu0.b32.cont [6/16] %v1082, 128
      %1263 = vxpose.xlu0.b32.cont [7/16] %v1083, 128
      %1264 = vxpose.xlu0.b32.cont [8/16] %v1113, 128
      %1265 = vxpose.xlu0.b32.cont [9/16] %v1114, 128
      %1266 = vxpose.xlu0.b32.cont [10/16] %v1115, 128
      %1267 = vxpose.xlu0.b32.cont [11/16] %v1145, 128
      %1268 = vxpose.xlu0.b32.cont [12/16] %v1146, 128
      %1269 = vxpose.xlu0.b32.cont [13/16] %v1147, 128
      %1270 = vxpose.xlu0.b32.cont [14/16] %v1177, 128
      %1271 = vxpose.xlu0.b32.cont [15/16] %v1178, 128
      %1272 = vxpose.xlu0.b32.end [16/16] %v1179, 128
      %v1273 = vpop.trf.xlu0
      %v1274 = vpop.trf.xlu0
      %v1275 = vpop.trf.xlu0
      %v1276 = vpop.trf.xlu0
      %v1277 = vpop.trf.xlu0
      %v1278 = vpop.trf.xlu0
      %v1279 = vpop.trf.xlu0
      %v1280 = vpop.trf.xlu0
      %v1281 = vpop.trf.xlu0
      %v1282 = vpop.trf.xlu0
      %v1283 = vpop.trf.xlu0
      %v1284 = vpop.trf.xlu0
      %v1285 = vpop.trf.xlu0
      %v1286 = vpop.trf.xlu0
      %v1287 = vpop.trf.xlu0
      %v1288 = vpop.trf.xlu0
      %1291 = vrot.lane.b32.xlu0 %v1209, 104
      %v1292 = vpop.permute.xlu0 %1291
      %1293 = vrot.lane.b32.xlu0 %v1210, 104
      %v1294 = vpop.permute.xlu0 %1293
      %1297 = vrot.lane.b32.xlu0 %v1209, 80
      %v1298 = vpop.permute.xlu0 %1297
      %1299 = vrot.lane.b32.xlu0 %v1210, 80
      %v1300 = vpop.permute.xlu0 %1299
      %1303 = vrot.lane.b32.xlu0 %v1209, 56
      %v1304 = vpop.permute.xlu0 %1303
      %1305 = vrot.lane.b32.xlu0 %v1210, 56
      %v1306 = vpop.permute.xlu0 %1305
      %1309 = vrot.lane.b32.xlu0 %v1209, 32
      %v1310 = vpop.permute.xlu0 %1309
      %1311 = vrot.lane.b32.xlu0 %v1210, 32
      %v1312 = vpop.permute.xlu0 %1311
      %1317 = vrot.lane.b32.xlu0 %v1209, 8
      %v1318 = vpop.permute.xlu0 %1317
      %1319 = vrot.lane.b32.xlu0 %v1241, 8
      %v1320 = vpop.permute.xlu0 %1319
      %1321 = vrot.lane.b32.xlu0 %v1210, 8
      %v1322 = vpop.permute.xlu0 %1321
      %1323 = vrot.lane.b32.xlu0 %v1242, 8
      %v1324 = vpop.permute.xlu0 %1323
      %vm1325 = vcmask 64512
      %v1326 = vsel %vm1325, %v1318, %v1320
      %v1327 = vsel %vm1325, %v1322, %v1324
      %1330 = vrot.lane.b32.xlu0 %v1241, 112
      %v1331 = vpop.permute.xlu0 %1330
      %1332 = vrot.lane.b32.xlu0 %v1242, 112
      %v1333 = vpop.permute.xlu0 %1332
      %1336 = vrot.lane.b32.xlu0 %v1241, 88
      %v1337 = vpop.permute.xlu0 %1336
      %1338 = vrot.lane.b32.xlu0 %v1242, 88
      %v1339 = vpop.permute.xlu0 %1338
      %1342 = vrot.lane.b32.xlu0 %v1241, 64
      %v1343 = vpop.permute.xlu0 %1342
      %1344 = vrot.lane.b32.xlu0 %v1242, 64
      %v1345 = vpop.permute.xlu0 %1344
      %1348 = vrot.lane.b32.xlu0 %v1241, 40
      %v1349 = vpop.permute.xlu0 %1348
      %1350 = vrot.lane.b32.xlu0 %v1242, 40
      %v1351 = vpop.permute.xlu0 %1350
      %1356 = vrot.lane.b32.xlu0 %v1241, 16
      %v1357 = vpop.permute.xlu0 %1356
      %1358 = vrot.lane.b32.xlu0 %v1273, 16
      %v1359 = vpop.permute.xlu0 %1358
      %1360 = vrot.lane.b32.xlu0 %v1242, 16
      %v1361 = vpop.permute.xlu0 %1360
      %1362 = vrot.lane.b32.xlu0 %v1274, 16
      %v1363 = vpop.permute.xlu0 %1362
      %vm1364 = vcmask 130048
      %v1365 = vsel %vm1364, %v1357, %v1359
      %v1366 = vsel %vm1364, %v1361, %v1363
      %1369 = vrot.lane.b32.xlu0 %v1273, 120
      %v1370 = vpop.permute.xlu0 %1369
      %1371 = vrot.lane.b32.xlu0 %v1274, 120
      %v1372 = vpop.permute.xlu0 %1371
      %1375 = vrot.lane.b32.xlu0 %v1273, 96
      %v1376 = vpop.permute.xlu0 %1375
      %1377 = vrot.lane.b32.xlu0 %v1274, 96
      %v1378 = vpop.permute.xlu0 %1377
      %1381 = vrot.lane.b32.xlu0 %v1273, 72
      %v1382 = vpop.permute.xlu0 %1381
      %1383 = vrot.lane.b32.xlu0 %v1274, 72
      %v1384 = vpop.permute.xlu0 %1383
      %1387 = vrot.lane.b32.xlu0 %v1273, 48
      %v1388 = vpop.permute.xlu0 %1387
      %1389 = vrot.lane.b32.xlu0 %v1274, 48
      %v1390 = vpop.permute.xlu0 %1389
      %1393 = vrot.lane.b32.xlu0 %v1273, 24
      %v1394 = vpop.permute.xlu0 %1393
      %1395 = vrot.lane.b32.xlu0 %v1274, 24
      %v1396 = vpop.permute.xlu0 %1395
      %v1399 = vcombine.low %v1209, %v1298
      %v1400 = vcombine.high %v1209, %v1298
      %v1402 = vunpack.c.l.s4 1983009808
      %v1403 = vunpack.c.0.s8 %v1402
      %v1404 = vlaneseq
      %v1405 = vshrl.u32 %v1404, 7
      %v1406 = vsub.s32 %v1403, %v1405
      %v1407 = vrot.slane %v1399, %v1406
      %v1409 = vunpack.c.l.s4 1983009808
      %v1410 = vunpack.c.0.s8 %v1409
      %v1411 = vlaneseq
      %v1412 = vshrl.u32 %v1411, 7
      %v1413 = vsub.s32 %v1410, %v1412
      %v1414 = vrot.slane %v1400, %v1413
      %v1415 = vcombine.low %v1292, %v1304
      %v1416 = vcombine.high %v1292, %v1304
      %v1418 = vunpack.c.l.s4 1983009808
      %v1419 = vunpack.c.0.s8 %v1418
      %v1420 = vlaneseq
      %v1421 = vshrl.u32 %v1420, 7
      %v1422 = vsub.s32 %v1419, %v1421
      %v1423 = vrot.slane %v1415, %v1422
      %v1425 = vunpack.c.l.s4 1983009808
      %v1426 = vunpack.c.0.s8 %v1425
      %v1427 = vlaneseq
      %v1428 = vshrl.u32 %v1427, 7
      %v1429 = vsub.s32 %v1426, %v1428
      %v1430 = vrot.slane %v1416, %v1429
      %v1431 = vcombine.low %v1310, %v1331
      %v1432 = vcombine.high %v1310, %v1331
      %v1434 = vunpack.c.l.s4 1983009808
      %v1435 = vunpack.c.0.s8 %v1434
      %v1436 = vlaneseq
      %v1437 = vshrl.u32 %v1436, 7
      %v1438 = vsub.s32 %v1435, %v1437
      %v1439 = vrot.slane %v1431, %v1438
      %v1441 = vunpack.c.l.s4 1983009808
      %v1442 = vunpack.c.0.s8 %v1441
      %v1443 = vlaneseq
      %v1444 = vshrl.u32 %v1443, 7
      %v1445 = vsub.s32 %v1442, %v1444
      %v1446 = vrot.slane %v1432, %v1445
      %v1447 = vcombine.low %v1326, %v1337
      %v1448 = vcombine.high %v1326, %v1337
      %v1450 = vunpack.c.l.s4 1983009808
      %v1451 = vunpack.c.0.s8 %v1450
      %v1452 = vlaneseq
      %v1453 = vshrl.u32 %v1452, 7
      %v1454 = vsub.s32 %v1451, %v1453
      %v1455 = vrot.slane %v1447, %v1454
      %v1457 = vunpack.c.l.s4 1983009808
      %v1458 = vunpack.c.0.s8 %v1457
      %v1459 = vlaneseq
      %v1460 = vshrl.u32 %v1459, 7
      %v1461 = vsub.s32 %v1458, %v1460
      %v1462 = vrot.slane %v1448, %v1461
      %v1463 = vcombine.low %v1407, %v1423
      %v1464 = vcombine.high %v1407, %v1423
      %v1466 = vunpack.c.l.s4 1934713408
      %v1467 = vunpack.c.0.s8 %v1466
      %v1468 = vlaneseq
      %v1469 = vshrl.u32 %v1468, 7
      %v1470 = vsub.s32 %v1467, %v1469
      %v1471 = vrot.slane %v1463, %v1470
      %v1473 = vunpack.c.l.s4 1934713408
      %v1474 = vunpack.c.0.s8 %v1473
      %v1475 = vlaneseq
      %v1476 = vshrl.u32 %v1475, 7
      %v1477 = vsub.s32 %v1474, %v1476
      %v1478 = vrot.slane %v1464, %v1477
      %v1479 = vcombine.low %v1414, %v1430
      %v1480 = vcombine.high %v1414, %v1430
      %v1482 = vunpack.c.l.s4 1934713408
      %v1483 = vunpack.c.0.s8 %v1482
      %v1484 = vlaneseq
      %v1485 = vshrl.u32 %v1484, 7
      %v1486 = vsub.s32 %v1483, %v1485
      %v1487 = vrot.slane %v1479, %v1486
      %v1489 = vunpack.c.l.s4 1934713408
      %v1490 = vunpack.c.0.s8 %v1489
      %v1491 = vlaneseq
      %v1492 = vshrl.u32 %v1491, 7
      %v1493 = vsub.s32 %v1490, %v1492
      %v1494 = vrot.slane %v1480, %v1493
      %v1495 = vcombine.low %v1439, %v1455
      %v1496 = vcombine.high %v1439, %v1455
      %v1498 = vunpack.c.l.s4 1934713408
      %v1499 = vunpack.c.0.s8 %v1498
      %v1500 = vlaneseq
      %v1501 = vshrl.u32 %v1500, 7
      %v1502 = vsub.s32 %v1499, %v1501
      %v1503 = vrot.slane %v1495, %v1502
      %v1505 = vunpack.c.l.s4 1934713408
      %v1506 = vunpack.c.0.s8 %v1505
      %v1507 = vlaneseq
      %v1508 = vshrl.u32 %v1507, 7
      %v1509 = vsub.s32 %v1506, %v1508
      %v1510 = vrot.slane %v1496, %v1509
      %v1511 = vcombine.low %v1446, %v1462
      %v1512 = vcombine.high %v1446, %v1462
      %v1514 = vunpack.c.l.s4 1934713408
      %v1515 = vunpack.c.0.s8 %v1514
      %v1516 = vlaneseq
      %v1517 = vshrl.u32 %v1516, 7
      %v1518 = vsub.s32 %v1515, %v1517
      %v1519 = vrot.slane %v1511, %v1518
      %v1521 = vunpack.c.l.s4 1934713408
      %v1522 = vunpack.c.0.s8 %v1521
      %v1523 = vlaneseq
      %v1524 = vshrl.u32 %v1523, 7
      %v1525 = vsub.s32 %v1522, %v1524
      %v1526 = vrot.slane %v1512, %v1525
      %v1527 = vcombine.low %v1471, %v1503
      %v1528 = vcombine.high %v1471, %v1503
      %v1529 = vcombine.low %v1478, %v1510
      %v1530 = vcombine.high %v1478, %v1510
      %v1531 = vcombine.low %v1487, %v1519
      %v1532 = vcombine.high %v1487, %v1519
      %v1533 = vcombine.low %v1494, %v1526
      %v1534 = vcombine.high %v1494, %v1526
      %v1535 = vcombine.low %v1343, %v1365
      %v1536 = vcombine.high %v1343, %v1365
      %v1538 = vunpack.c.l.s4 1983009808
      %v1539 = vunpack.c.0.s8 %v1538
      %v1540 = vlaneseq
      %v1541 = vshrl.u32 %v1540, 7
      %v1542 = vsub.s32 %v1539, %v1541
      %v1543 = vrot.slane %v1535, %v1542
      %v1545 = vunpack.c.l.s4 1983009808
      %v1546 = vunpack.c.0.s8 %v1545
      %v1547 = vlaneseq
      %v1548 = vshrl.u32 %v1547, 7
      %v1549 = vsub.s32 %v1546, %v1548
      %v1550 = vrot.slane %v1536, %v1549
      %v1551 = vcombine.low %v1349, %v1370
      %v1552 = vcombine.high %v1349, %v1370
      %v1554 = vunpack.c.l.s4 1983009808
      %v1555 = vunpack.c.0.s8 %v1554
      %v1556 = vlaneseq
      %v1557 = vshrl.u32 %v1556, 7
      %v1558 = vsub.s32 %v1555, %v1557
      %v1559 = vrot.slane %v1551, %v1558
      %v1561 = vunpack.c.l.s4 1983009808
      %v1562 = vunpack.c.0.s8 %v1561
      %v1563 = vlaneseq
      %v1564 = vshrl.u32 %v1563, 7
      %v1565 = vsub.s32 %v1562, %v1564
      %v1566 = vrot.slane %v1552, %v1565
      %v1567 = vcombine.low %v1376, %v1388
      %v1568 = vcombine.high %v1376, %v1388
      %v1570 = vunpack.c.l.s4 1983009808
      %v1571 = vunpack.c.0.s8 %v1570
      %v1572 = vlaneseq
      %v1573 = vshrl.u32 %v1572, 7
      %v1574 = vsub.s32 %v1571, %v1573
      %v1575 = vrot.slane %v1567, %v1574
      %v1577 = vunpack.c.l.s4 1983009808
      %v1578 = vunpack.c.0.s8 %v1577
      %v1579 = vlaneseq
      %v1580 = vshrl.u32 %v1579, 7
      %v1581 = vsub.s32 %v1578, %v1580
      %v1582 = vrot.slane %v1568, %v1581
      %v1583 = vcombine.low %v1382, %v1394
      %v1584 = vcombine.high %v1382, %v1394
      %v1586 = vunpack.c.l.s4 1983009808
      %v1587 = vunpack.c.0.s8 %v1586
      %v1588 = vlaneseq
      %v1589 = vshrl.u32 %v1588, 7
      %v1590 = vsub.s32 %v1587, %v1589
      %v1591 = vrot.slane %v1583, %v1590
      %v1593 = vunpack.c.l.s4 1983009808
      %v1594 = vunpack.c.0.s8 %v1593
      %v1595 = vlaneseq
      %v1596 = vshrl.u32 %v1595, 7
      %v1597 = vsub.s32 %v1594, %v1596
      %v1598 = vrot.slane %v1584, %v1597
      %v1599 = vcombine.low %v1543, %v1559
      %v1600 = vcombine.high %v1543, %v1559
      %v1602 = vunpack.c.l.s4 1934713408
      %v1603 = vunpack.c.0.s8 %v1602
      %v1604 = vlaneseq
      %v1605 = vshrl.u32 %v1604, 7
      %v1606 = vsub.s32 %v1603, %v1605
      %v1607 = vrot.slane %v1599, %v1606
      %v1609 = vunpack.c.l.s4 1934713408
      %v1610 = vunpack.c.0.s8 %v1609
      %v1611 = vlaneseq
      %v1612 = vshrl.u32 %v1611, 7
      %v1613 = vsub.s32 %v1610, %v1612
      %v1614 = vrot.slane %v1600, %v1613
      %v1615 = vcombine.low %v1550, %v1566
      %v1616 = vcombine.high %v1550, %v1566
      %v1618 = vunpack.c.l.s4 1934713408
      %v1619 = vunpack.c.0.s8 %v1618
      %v1620 = vlaneseq
      %v1621 = vshrl.u32 %v1620, 7
      %v1622 = vsub.s32 %v1619, %v1621
      %v1623 = vrot.slane %v1615, %v1622
      %v1625 = vunpack.c.l.s4 1934713408
      %v1626 = vunpack.c.0.s8 %v1625
      %v1627 = vlaneseq
      %v1628 = vshrl.u32 %v1627, 7
      %v1629 = vsub.s32 %v1626, %v1628
      %v1630 = vrot.slane %v1616, %v1629
      %v1631 = vcombine.low %v1575, %v1591
      %v1632 = vcombine.high %v1575, %v1591
      %v1634 = vunpack.c.l.s4 1934713408
      %v1635 = vunpack.c.0.s8 %v1634
      %v1636 = vlaneseq
      %v1637 = vshrl.u32 %v1636, 7
      %v1638 = vsub.s32 %v1635, %v1637
      %v1639 = vrot.slane %v1631, %v1638
      %v1641 = vunpack.c.l.s4 1934713408
      %v1642 = vunpack.c.0.s8 %v1641
      %v1643 = vlaneseq
      %v1644 = vshrl.u32 %v1643, 7
      %v1645 = vsub.s32 %v1642, %v1644
      %v1646 = vrot.slane %v1632, %v1645
      %v1647 = vcombine.low %v1582, %v1598
      %v1648 = vcombine.high %v1582, %v1598
      %v1650 = vunpack.c.l.s4 1934713408
      %v1651 = vunpack.c.0.s8 %v1650
      %v1652 = vlaneseq
      %v1653 = vshrl.u32 %v1652, 7
      %v1654 = vsub.s32 %v1651, %v1653
      %v1655 = vrot.slane %v1647, %v1654
      %v1657 = vunpack.c.l.s4 1934713408
      %v1658 = vunpack.c.0.s8 %v1657
      %v1659 = vlaneseq
      %v1660 = vshrl.u32 %v1659, 7
      %v1661 = vsub.s32 %v1658, %v1660
      %v1662 = vrot.slane %v1648, %v1661
      %v1663 = vcombine.low %v1607, %v1639
      %v1664 = vcombine.high %v1607, %v1639
      %v1665 = vcombine.low %v1614, %v1646
      %v1666 = vcombine.high %v1614, %v1646
      %v1667 = vcombine.low %v1623, %v1655
      %v1668 = vcombine.high %v1623, %v1655
      %v1669 = vcombine.low %v1630, %v1662
      %v1670 = vcombine.high %v1630, %v1662
      %v1671 = vcombine.low %v1210, %v1300
      %v1672 = vcombine.high %v1210, %v1300
      %v1674 = vunpack.c.l.s4 1983009808
      %v1675 = vunpack.c.0.s8 %v1674
      %v1676 = vlaneseq
      %v1677 = vshrl.u32 %v1676, 7
      %v1678 = vsub.s32 %v1675, %v1677
      %v1679 = vrot.slane %v1671, %v1678
      %v1681 = vunpack.c.l.s4 1983009808
      %v1682 = vunpack.c.0.s8 %v1681
      %v1683 = vlaneseq
      %v1684 = vshrl.u32 %v1683, 7
      %v1685 = vsub.s32 %v1682, %v1684
      %v1686 = vrot.slane %v1672, %v1685
      %v1687 = vcombine.low %v1294, %v1306
      %v1688 = vcombine.high %v1294, %v1306
      %v1690 = vunpack.c.l.s4 1983009808
      %v1691 = vunpack.c.0.s8 %v1690
      %v1692 = vlaneseq
      %v1693 = vshrl.u32 %v1692, 7
      %v1694 = vsub.s32 %v1691, %v1693
      %v1695 = vrot.slane %v1687, %v1694
      %v1697 = vunpack.c.l.s4 1983009808
      %v1698 = vunpack.c.0.s8 %v1697
      %v1699 = vlaneseq
      %v1700 = vshrl.u32 %v1699, 7
      %v1701 = vsub.s32 %v1698, %v1700
      %v1702 = vrot.slane %v1688, %v1701
      %v1703 = vcombine.low %v1312, %v1333
      %v1704 = vcombine.high %v1312, %v1333
      %v1706 = vunpack.c.l.s4 1983009808
      %v1707 = vunpack.c.0.s8 %v1706
      %v1708 = vlaneseq
      %v1709 = vshrl.u32 %v1708, 7
      %v1710 = vsub.s32 %v1707, %v1709
      %v1711 = vrot.slane %v1703, %v1710
      %v1713 = vunpack.c.l.s4 1983009808
      %v1714 = vunpack.c.0.s8 %v1713
      %v1715 = vlaneseq
      %v1716 = vshrl.u32 %v1715, 7
      %v1717 = vsub.s32 %v1714, %v1716
      %v1718 = vrot.slane %v1704, %v1717
      %v1719 = vcombine.low %v1327, %v1339
      %v1720 = vcombine.high %v1327, %v1339
      %v1722 = vunpack.c.l.s4 1983009808
      %v1723 = vunpack.c.0.s8 %v1722
      %v1724 = vlaneseq
      %v1725 = vshrl.u32 %v1724, 7
      %v1726 = vsub.s32 %v1723, %v1725
      %v1727 = vrot.slane %v1719, %v1726
      %v1729 = vunpack.c.l.s4 1983009808
      %v1730 = vunpack.c.0.s8 %v1729
      %v1731 = vlaneseq
      %v1732 = vshrl.u32 %v1731, 7
      %v1733 = vsub.s32 %v1730, %v1732
      %v1734 = vrot.slane %v1720, %v1733
      %v1735 = vcombine.low %v1679, %v1695
      %v1736 = vcombine.high %v1679, %v1695
      %v1738 = vunpack.c.l.s4 1934713408
      %v1739 = vunpack.c.0.s8 %v1738
      %v1740 = vlaneseq
      %v1741 = vshrl.u32 %v1740, 7
      %v1742 = vsub.s32 %v1739, %v1741
      %v1743 = vrot.slane %v1735, %v1742
      %v1745 = vunpack.c.l.s4 1934713408
      %v1746 = vunpack.c.0.s8 %v1745
      %v1747 = vlaneseq
      %v1748 = vshrl.u32 %v1747, 7
      %v1749 = vsub.s32 %v1746, %v1748
      %v1750 = vrot.slane %v1736, %v1749
      %v1751 = vcombine.low %v1686, %v1702
      %v1752 = vcombine.high %v1686, %v1702
      %v1754 = vunpack.c.l.s4 1934713408
      %v1755 = vunpack.c.0.s8 %v1754
      %v1756 = vlaneseq
      %v1757 = vshrl.u32 %v1756, 7
      %v1758 = vsub.s32 %v1755, %v1757
      %v1759 = vrot.slane %v1751, %v1758
      %v1761 = vunpack.c.l.s4 1934713408
      %v1762 = vunpack.c.0.s8 %v1761
      %v1763 = vlaneseq
      %v1764 = vshrl.u32 %v1763, 7
      %v1765 = vsub.s32 %v1762, %v1764
      %v1766 = vrot.slane %v1752, %v1765
      %v1767 = vcombine.low %v1711, %v1727
      %v1768 = vcombine.high %v1711, %v1727
      %v1770 = vunpack.c.l.s4 1934713408
      %v1771 = vunpack.c.0.s8 %v1770
      %v1772 = vlaneseq
      %v1773 = vshrl.u32 %v1772, 7
      %v1774 = vsub.s32 %v1771, %v1773
      %v1775 = vrot.slane %v1767, %v1774
      %v1777 = vunpack.c.l.s4 1934713408
      %v1778 = vunpack.c.0.s8 %v1777
      %v1779 = vlaneseq
      %v1780 = vshrl.u32 %v1779, 7
      %v1781 = vsub.s32 %v1778, %v1780
      %v1782 = vrot.slane %v1768, %v1781
      %v1783 = vcombine.low %v1718, %v1734
      %v1784 = vcombine.high %v1718, %v1734
      %v1786 = vunpack.c.l.s4 1934713408
      %v1787 = vunpack.c.0.s8 %v1786
      %v1788 = vlaneseq
      %v1789 = vshrl.u32 %v1788, 7
      %v1790 = vsub.s32 %v1787, %v1789
      %v1791 = vrot.slane %v1783, %v1790
      %v1793 = vunpack.c.l.s4 1934713408
      %v1794 = vunpack.c.0.s8 %v1793
      %v1795 = vlaneseq
      %v1796 = vshrl.u32 %v1795, 7
      %v1797 = vsub.s32 %v1794, %v1796
      %v1798 = vrot.slane %v1784, %v1797
      %v1799 = vcombine.low %v1743, %v1775
      %v1800 = vcombine.high %v1743, %v1775
      %v1801 = vcombine.low %v1750, %v1782
      %v1802 = vcombine.high %v1750, %v1782
      %v1803 = vcombine.low %v1759, %v1791
      %v1804 = vcombine.high %v1759, %v1791
      %v1805 = vcombine.low %v1766, %v1798
      %v1806 = vcombine.high %v1766, %v1798
      %v1807 = vcombine.low %v1345, %v1366
      %v1808 = vcombine.high %v1345, %v1366
      %v1810 = vunpack.c.l.s4 1983009808
      %v1811 = vunpack.c.0.s8 %v1810
      %v1812 = vlaneseq
      %v1813 = vshrl.u32 %v1812, 7
      %v1814 = vsub.s32 %v1811, %v1813
      %v1815 = vrot.slane %v1807, %v1814
      %v1817 = vunpack.c.l.s4 1983009808
      %v1818 = vunpack.c.0.s8 %v1817
      %v1819 = vlaneseq
      %v1820 = vshrl.u32 %v1819, 7
      %v1821 = vsub.s32 %v1818, %v1820
      %v1822 = vrot.slane %v1808, %v1821
      %v1823 = vcombine.low %v1351, %v1372
      %v1824 = vcombine.high %v1351, %v1372
      %v1826 = vunpack.c.l.s4 1983009808
      %v1827 = vunpack.c.0.s8 %v1826
      %v1828 = vlaneseq
      %v1829 = vshrl.u32 %v1828, 7
      %v1830 = vsub.s32 %v1827, %v1829
      %v1831 = vrot.slane %v1823, %v1830
      %v1833 = vunpack.c.l.s4 1983009808
      %v1834 = vunpack.c.0.s8 %v1833
      %v1835 = vlaneseq
      %v1836 = vshrl.u32 %v1835, 7
      %v1837 = vsub.s32 %v1834, %v1836
      %v1838 = vrot.slane %v1824, %v1837
      %v1839 = vcombine.low %v1378, %v1390
      %v1840 = vcombine.high %v1378, %v1390
      %v1842 = vunpack.c.l.s4 1983009808
      %v1843 = vunpack.c.0.s8 %v1842
      %v1844 = vlaneseq
      %v1845 = vshrl.u32 %v1844, 7
      %v1846 = vsub.s32 %v1843, %v1845
      %v1847 = vrot.slane %v1839, %v1846
      %v1849 = vunpack.c.l.s4 1983009808
      %v1850 = vunpack.c.0.s8 %v1849
      %v1851 = vlaneseq
      %v1852 = vshrl.u32 %v1851, 7
      %v1853 = vsub.s32 %v1850, %v1852
      %v1854 = vrot.slane %v1840, %v1853
      %v1855 = vcombine.low %v1384, %v1396
      %v1856 = vcombine.high %v1384, %v1396
      %v1858 = vunpack.c.l.s4 1983009808
      %v1859 = vunpack.c.0.s8 %v1858
      %v1860 = vlaneseq
      %v1861 = vshrl.u32 %v1860, 7
      %v1862 = vsub.s32 %v1859, %v1861
      %v1863 = vrot.slane %v1855, %v1862
      %v1865 = vunpack.c.l.s4 1983009808
      %v1866 = vunpack.c.0.s8 %v1865
      %v1867 = vlaneseq
      %v1868 = vshrl.u32 %v1867, 7
      %v1869 = vsub.s32 %v1866, %v1868
      %v1870 = vrot.slane %v1856, %v1869
      %v1871 = vcombine.low %v1815, %v1831
      %v1872 = vcombine.high %v1815, %v1831
      %v1874 = vunpack.c.l.s4 1934713408
      %v1875 = vunpack.c.0.s8 %v1874
      %v1876 = vlaneseq
      %v1877 = vshrl.u32 %v1876, 7
      %v1878 = vsub.s32 %v1875, %v1877
      %v1879 = vrot.slane %v1871, %v1878
      %v1881 = vunpack.c.l.s4 1934713408
      %v1882 = vunpack.c.0.s8 %v1881
      %v1883 = vlaneseq
      %v1884 = vshrl.u32 %v1883, 7
      %v1885 = vsub.s32 %v1882, %v1884
      %v1886 = vrot.slane %v1872, %v1885
      %v1887 = vcombine.low %v1822, %v1838
      %v1888 = vcombine.high %v1822, %v1838
      %v1890 = vunpack.c.l.s4 1934713408
      %v1891 = vunpack.c.0.s8 %v1890
      %v1892 = vlaneseq
      %v1893 = vshrl.u32 %v1892, 7
      %v1894 = vsub.s32 %v1891, %v1893
      %v1895 = vrot.slane %v1887, %v1894
      %v1897 = vunpack.c.l.s4 1934713408
      %v1898 = vunpack.c.0.s8 %v1897
      %v1899 = vlaneseq
      %v1900 = vshrl.u32 %v1899, 7
      %v1901 = vsub.s32 %v1898, %v1900
      %v1902 = vrot.slane %v1888, %v1901
      %v1903 = vcombine.low %v1847, %v1863
      %v1904 = vcombine.high %v1847, %v1863
      %v1906 = vunpack.c.l.s4 1934713408
      %v1907 = vunpack.c.0.s8 %v1906
      %v1908 = vlaneseq
      %v1909 = vshrl.u32 %v1908, 7
      %v1910 = vsub.s32 %v1907, %v1909
      %v1911 = vrot.slane %v1903, %v1910
      %v1913 = vunpack.c.l.s4 1934713408
      %v1914 = vunpack.c.0.s8 %v1913
      %v1915 = vlaneseq
      %v1916 = vshrl.u32 %v1915, 7
      %v1917 = vsub.s32 %v1914, %v1916
      %v1918 = vrot.slane %v1904, %v1917
      %v1919 = vcombine.low %v1854, %v1870
      %v1920 = vcombine.high %v1854, %v1870
      %v1922 = vunpack.c.l.s4 1934713408
      %v1923 = vunpack.c.0.s8 %v1922
      %v1924 = vlaneseq
      %v1925 = vshrl.u32 %v1924, 7
      %v1926 = vsub.s32 %v1923, %v1925
      %v1927 = vrot.slane %v1919, %v1926
      %v1929 = vunpack.c.l.s4 1934713408
      %v1930 = vunpack.c.0.s8 %v1929
      %v1931 = vlaneseq
      %v1932 = vshrl.u32 %v1931, 7
      %v1933 = vsub.s32 %v1930, %v1932
      %v1934 = vrot.slane %v1920, %v1933
      %v1935 = vcombine.low %v1879, %v1911
      %v1936 = vcombine.high %v1879, %v1911
      %v1937 = vcombine.low %v1886, %v1918
      %v1938 = vcombine.high %v1886, %v1918
      %v1939 = vcombine.low %v1895, %v1927
      %v1940 = vcombine.high %v1895, %v1927
      %v1941 = vcombine.low %v1902, %v1934
      %v1942 = vcombine.high %v1902, %v1934
      %v1943 = vpack.c.bf16 %v1663, %v1527
      %v1944 = vpack.c.bf16 %v1664, %v1528
      %v1945 = vpack.c.bf16 %v1665, %v1529
      %v1946 = vpack.c.bf16 %v1666, %v1530
      %v1947 = vpack.c.bf16 %v1667, %v1531
      %v1948 = vpack.c.bf16 %v1668, %v1532
      %v1949 = vpack.c.bf16 %v1669, %v1533
      %v1950 = vpack.c.bf16 %v1670, %v1534
      %v1951 = vpack.c.bf16 %v1935, %v1799
      %v1952 = vpack.c.bf16 %v1936, %v1800
      %v1953 = vpack.c.bf16 %v1937, %v1801
      %v1954 = vpack.c.bf16 %v1938, %v1802
      %v1955 = vpack.c.bf16 %v1939, %v1803
      %v1956 = vpack.c.bf16 %v1940, %v1804
      %v1957 = vpack.c.bf16 %v1941, %v1805
      %v1958 = vpack.c.bf16 %v1942, %v1806
      %1960 = vrot.lane.b32.xlu0 %v537, 120
      %v1961 = vpop.permute.xlu0 %1960
      %vm1962 = vcmask 31744
      %v1964 = vsel %vm1962, %v537, 0
      %v1967 = vsel %vm1962, %v1961, 0
      %1969 = vmatprep.subr.bf16.mxu0 0
      %1970 = vmatpush1.bf16.xpose.msra.mxu0 %v1967
      %1971 = vmatprep.subr.bf16.mxu0 0
      %1972 = vmatpush1.bf16.xpose.msra.mxu0 0
      %1973 = vmatprep.subr.bf16.mxu0 0
      %1974 = vmatpush1.bf16.xpose.msra.mxu0 0
      %1975 = vmatprep.subr.bf16.mxu0 0
      %1976 = vmatpush1.bf16.xpose.msra.mxu0 0
      %1977 = vmatprep.subr.bf16.mxu0 0
      %1978 = vmatpush1.bf16.xpose.msra.mxu0 0
      %1979 = vmatprep.subr.bf16.mxu0 0
      %1980 = vmatpush1.bf16.xpose.msra.mxu0 0
      %1981 = vmatprep.subr.bf16.mxu0 0
      %1982 = vmatpush1.bf16.xpose.msra.mxu0 0
      %1983 = vmatprep.subr.bf16.mxu0 0
      %1984 = vmatpush1.bf16.xpose.msra.mxu0 0
      %1985 = vmatprep.subr.bf16.mxu0 0
      %1986 = vmatpush1.bf16.xpose.msra.mxu0 0
      %1987 = vmatprep.subr.bf16.mxu0 0
      %1988 = vmatpush1.bf16.xpose.msra.mxu0 0
      %1989 = vmatprep.subr.bf16.mxu0 0
      %1990 = vmatpush1.bf16.xpose.msra.mxu0 0
      %1991 = vmatprep.subr.bf16.mxu0 0
      %1992 = vmatpush1.bf16.xpose.msra.mxu0 0
      %1993 = vmatprep.subr.bf16.mxu0 0
      %1994 = vmatpush1.bf16.xpose.msra.mxu0 0
      %1995 = vmatprep.subr.bf16.mxu0 0
      %1996 = vmatpush1.bf16.xpose.msra.mxu0 0
      %1997 = vmatprep.subr.bf16.mxu0 0
      %1998 = vmatpush1.bf16.xpose.msra.mxu0 0
      %1999 = vmatprep.subr.bf16.mxu0 0
      %2000 = vmatpush1.bf16.xpose.msra.mxu0 0
      %2001 = vmatprep.mubr.bf16.mxu0 0
      %2002 = vmatmul.mubr.bf16.gmra.mrb[0].mxu0 %v1964
      %v2003 = vpop.f32.mrb[0].mxu0
      %v2004 = vadd.f32 0.0, %v2003
      %v2005 = vpop.f32.mrb[0].mxu0
      %v2006 = vpop.f32.mrb[0].mxu0
      %v2007 = vadd.f32 0.0, %v2006
      %v2008 = vpop.f32.mrb[0].mxu0
      %2009 = vdwg.mxu0
      %2011 = vrot.lane.b32.xlu0 %v538, 120
      %v2012 = vpop.permute.xlu0 %2011
      %v2014 = vsel %vm1962, %v538, 0
      %v2017 = vsel %vm1962, %v2012, 0
      %2019 = vmatprep.subr.bf16.mxu0 0
      %2020 = vmatpush1.bf16.xpose.msra.mxu0 %v2017
      %2021 = vmatprep.subr.bf16.mxu0 0
      %2022 = vmatpush1.bf16.xpose.msra.mxu0 0
      %2023 = vmatprep.subr.bf16.mxu0 0
      %2024 = vmatpush1.bf16.xpose.msra.mxu0 0
      %2025 = vmatprep.subr.bf16.mxu0 0
      %2026 = vmatpush1.bf16.xpose.msra.mxu0 0
      %2027 = vmatprep.subr.bf16.mxu0 0
      %2028 = vmatpush1.bf16.xpose.msra.mxu0 0
      %2029 = vmatprep.subr.bf16.mxu0 0
      %2030 = vmatpush1.bf16.xpose.msra.mxu0 0
      %2031 = vmatprep.subr.bf16.mxu0 0
      %2032 = vmatpush1.bf16.xpose.msra.mxu0 0
      %2033 = vmatprep.subr.bf16.mxu0 0
      %2034 = vmatpush1.bf16.xpose.msra.mxu0 0
      %2035 = vmatprep.subr.bf16.mxu0 0
      %2036 = vmatpush1.bf16.xpose.msra.mxu0 0
      %2037 = vmatprep.subr.bf16.mxu0 0
      %2038 = vmatpush1.bf16.xpose.msra.mxu0 0
      %2039 = vmatprep.subr.bf16.mxu0 0
      %2040 = vmatpush1.bf16.xpose.msra.mxu0 0
      %2041 = vmatprep.subr.bf16.mxu0 0
      %2042 = vmatpush1.bf16.xpose.msra.mxu0 0
      %2043 = vmatprep.subr.bf16.mxu0 0
      %2044 = vmatpush1.bf16.xpose.msra.mxu0 0
      %2045 = vmatprep.subr.bf16.mxu0 0
      %2046 = vmatpush1.bf16.xpose.msra.mxu0 0
      %2047 = vmatprep.subr.bf16.mxu0 0
      %2048 = vmatpush1.bf16.xpose.msra.mxu0 0
      %2049 = vmatprep.subr.bf16.mxu0 0
      %2050 = vmatpush1.bf16.xpose.msra.mxu0 0
      %2051 = vmatprep.mubr.bf16.mxu0 0
      %2052 = vmatmul.mubr.bf16.gmra.mrb[0].mxu0 %v2014
      %v2053 = vpop.f32.mrb[0].mxu0
      %v2054 = vadd.f32 0.0, %v2053
      %v2055 = vpop.f32.mrb[0].mxu0
      %v2056 = vpop.f32.mrb[0].mxu0
      %v2057 = vadd.f32 0.0, %v2056
      %v2058 = vpop.f32.mrb[0].mxu0
      %2059 = vdwg.mxu0
      %2061 = vrot.lane.b32.xlu0 %v539, 120
      %v2062 = vpop.permute.xlu0 %2061
      %v2064 = vsel %vm1962, %v539, 0
      %v2067 = vsel %vm1962, %v2062, 0
      %2069 = vmatprep.subr.bf16.mxu0 0
      %2070 = vmatpush1.bf16.xpose.msra.mxu0 %v2067
      %2071 = vmatprep.subr.bf16.mxu0 0
      %2072 = vmatpush1.bf16.xpose.msra.mxu0 0
      %2073 = vmatprep.subr.bf16.mxu0 0
      %2074 = vmatpush1.bf16.xpose.msra.mxu0 0
      %2075 = vmatprep.subr.bf16.mxu0 0
      %2076 = vmatpush1.bf16.xpose.msra.mxu0 0
      %2077 = vmatprep.subr.bf16.mxu0 0
      %2078 = vmatpush1.bf16.xpose.msra.mxu0 0
      %2079 = vmatprep.subr.bf16.mxu0 0
      %2080 = vmatpush1.bf16.xpose.msra.mxu0 0
      %2081 = vmatprep.subr.bf16.mxu0 0
      %2082 = vmatpush1.bf16.xpose.msra.mxu0 0
      %2083 = vmatprep.subr.bf16.mxu0 0
      %2084 = vmatpush1.bf16.xpose.msra.mxu0 0
      %2085 = vmatprep.subr.bf16.mxu0 0
      %2086 = vmatpush1.bf16.xpose.msra.mxu0 0
      %2087 = vmatprep.subr.bf16.mxu0 0
      %2088 = vmatpush1.bf16.xpose.msra.mxu0 0
      %2089 = vmatprep.subr.bf16.mxu0 0
      %2090 = vmatpush1.bf16.xpose.msra.mxu0 0
      %2091 = vmatprep.subr.bf16.mxu0 0
      %2092 = vmatpush1.bf16.xpose.msra.mxu0 0
      %2093 = vmatprep.subr.bf16.mxu0 0
      %2094 = vmatpush1.bf16.xpose.msra.mxu0 0
      %2095 = vmatprep.subr.bf16.mxu0 0
      %2096 = vmatpush1.bf16.xpose.msra.mxu0 0
      %2097 = vmatprep.subr.bf16.mxu0 0
      %2098 = vmatpush1.bf16.xpose.msra.mxu0 0
      %2099 = vmatprep.subr.bf16.mxu0 0
      %2100 = vmatpush1.bf16.xpose.msra.mxu0 0
      %2101 = vmatprep.mubr.bf16.mxu0 0
      %2102 = vmatmul.mubr.bf16.gmra.mrb[0].mxu0 %v2064
      %v2103 = vpop.f32.mrb[0].mxu0
      %v2104 = vadd.f32 0.0, %v2103
      %v2105 = vpop.f32.mrb[0].mxu0
      %v2106 = vpop.f32.mrb[0].mxu0
      %v2107 = vadd.f32 0.0, %v2106
      %v2108 = vpop.f32.mrb[0].mxu0
      %2109 = vdwg.mxu0
      %2111 = vrot.lane.b32.xlu0 %v540, 120
      %v2112 = vpop.permute.xlu0 %2111
      %v2114 = vsel %vm1962, %v540, 0
      %v2117 = vsel %vm1962, %v2112, 0
      %2119 = vmatprep.subr.bf16.mxu0 0
      %2120 = vmatpush1.bf16.xpose.msra.mxu0 %v2117
      %2121 = vmatprep.subr.bf16.mxu0 0
      %2122 = vmatpush1.bf16.xpose.msra.mxu0 0
      %2123 = vmatprep.subr.bf16.mxu0 0
      %2124 = vmatpush1.bf16.xpose.msra.mxu0 0
      %2125 = vmatprep.subr.bf16.mxu0 0
      %2126 = vmatpush1.bf16.xpose.msra.mxu0 0
      %2127 = vmatprep.subr.bf16.mxu0 0
      %2128 = vmatpush1.bf16.xpose.msra.mxu0 0
      %2129 = vmatprep.subr.bf16.mxu0 0
      %2130 = vmatpush1.bf16.xpose.msra.mxu0 0
      %2131 = vmatprep.subr.bf16.mxu0 0
      %2132 = vmatpush1.bf16.xpose.msra.mxu0 0
      %2133 = vmatprep.subr.bf16.mxu0 0
      %2134 = vmatpush1.bf16.xpose.msra.mxu0 0
      %2135 = vmatprep.subr.bf16.mxu0 0
      %2136 = vmatpush1.bf16.xpose.msra.mxu0 0
      %2137 = vmatprep.subr.bf16.mxu0 0
      %2138 = vmatpush1.bf16.xpose.msra.mxu0 0
      %2139 = vmatprep.subr.bf16.mxu0 0
      %2140 = vmatpush1.bf16.xpose.msra.mxu0 0
      %2141 = vmatprep.subr.bf16.mxu0 0
      %2142 = vmatpush1.bf16.xpose.msra.mxu0 0
      %2143 = vmatprep.subr.bf16.mxu0 0
      %2144 = vmatpush1.bf16.xpose.msra.mxu0 0
      %2145 = vmatprep.subr.bf16.mxu0 0
      %2146 = vmatpush1.bf16.xpose.msra.mxu0 0
      %2147 = vmatprep.subr.bf16.mxu0 0
      %2148 = vmatpush1.bf16.xpose.msra.mxu0 0
      %2149 = vmatprep.subr.bf16.mxu0 0
      %2150 = vmatpush1.bf16.xpose.msra.mxu0 0
      %2151 = vmatprep.mubr.bf16.mxu0 0
      %2152 = vmatmul.mubr.bf16.gmra.mrb[0].mxu0 %v2114
      %v2153 = vpop.f32.mrb[0].mxu0
      %v2154 = vadd.f32 0.0, %v2153
      %v2155 = vpop.f32.mrb[0].mxu0
      %v2156 = vpop.f32.mrb[0].mxu0
      %v2157 = vadd.f32 0.0, %v2156
      %v2158 = vpop.f32.mrb[0].mxu0
      %2159 = vdwg.mxu0
      %2161 = vrot.lane.b32.xlu0 %v541, 120
      %v2162 = vpop.permute.xlu0 %2161
      %v2164 = vsel %vm1962, %v541, 0
      %v2167 = vsel %vm1962, %v2162, 0
      %2169 = vmatprep.subr.bf16.mxu0 0
      %2170 = vmatpush1.bf16.xpose.msra.mxu0 %v2167
      %2171 = vmatprep.subr.bf16.mxu0 0
      %2172 = vmatpush1.bf16.xpose.msra.mxu0 0
      %2173 = vmatprep.subr.bf16.mxu0 0
      %2174 = vmatpush1.bf16.xpose.msra.mxu0 0
      %2175 = vmatprep.subr.bf16.mxu0 0
      %2176 = vmatpush1.bf16.xpose.msra.mxu0 0
      %2177 = vmatprep.subr.bf16.mxu0 0
      %2178 = vmatpush1.bf16.xpose.msra.mxu0 0
      %2179 = vmatprep.subr.bf16.mxu0 0
      %2180 = vmatpush1.bf16.xpose.msra.mxu0 0
      %2181 = vmatprep.subr.bf16.mxu0 0
      %2182 = vmatpush1.bf16.xpose.msra.mxu0 0
      %2183 = vmatprep.subr.bf16.mxu0 0
      %2184 = vmatpush1.bf16.xpose.msra.mxu0 0
      %2185 = vmatprep.subr.bf16.mxu0 0
      %2186 = vmatpush1.bf16.xpose.msra.mxu0 0
      %2187 = vmatprep.subr.bf16.mxu0 0
      %2188 = vmatpush1.bf16.xpose.msra.mxu0 0
      %2189 = vmatprep.subr.bf16.mxu0 0
      %2190 = vmatpush1.bf16.xpose.msra.mxu0 0
      %2191 = vmatprep.subr.bf16.mxu0 0
      %2192 = vmatpush1.bf16.xpose.msra.mxu0 0
      %2193 = vmatprep.subr.bf16.mxu0 0
      %2194 = vmatpush1.bf16.xpose.msra.mxu0 0
      %2195 = vmatprep.subr.bf16.mxu0 0
      %2196 = vmatpush1.bf16.xpose.msra.mxu0 0
      %2197 = vmatprep.subr.bf16.mxu0 0
      %2198 = vmatpush1.bf16.xpose.msra.mxu0 0
      %2199 = vmatprep.subr.bf16.mxu0 0
      %2200 = vmatpush1.bf16.xpose.msra.mxu0 0
      %2201 = vmatprep.mubr.bf16.mxu0 0
      %2202 = vmatmul.mubr.bf16.gmra.mrb[0].mxu0 %v2164
      %v2203 = vpop.f32.mrb[0].mxu0
      %v2204 = vadd.f32 0.0, %v2203
      %v2205 = vpop.f32.mrb[0].mxu0
      %v2206 = vpop.f32.mrb[0].mxu0
      %v2207 = vadd.f32 0.0, %v2206
      %v2208 = vpop.f32.mrb[0].mxu0
      %2209 = vdwg.mxu0
      %2211 = vrot.lane.b32.xlu0 %v542, 120
      %v2212 = vpop.permute.xlu0 %2211
      %v2214 = vsel %vm1962, %v542, 0
      %v2217 = vsel %vm1962, %v2212, 0
      %2219 = vmatprep.subr.bf16.mxu0 0
      %2220 = vmatpush1.bf16.xpose.msra.mxu0 %v2217
      %2221 = vmatprep.subr.bf16.mxu0 0
      %2222 = vmatpush1.bf16.xpose.msra.mxu0 0
      %2223 = vmatprep.subr.bf16.mxu0 0
      %2224 = vmatpush1.bf16.xpose.msra.mxu0 0
      %2225 = vmatprep.subr.bf16.mxu0 0
      %2226 = vmatpush1.bf16.xpose.msra.mxu0 0
      %2227 = vmatprep.subr.bf16.mxu0 0
      %2228 = vmatpush1.bf16.xpose.msra.mxu0 0
      %2229 = vmatprep.subr.bf16.mxu0 0
      %2230 = vmatpush1.bf16.xpose.msra.mxu0 0
      %2231 = vmatprep.subr.bf16.mxu0 0
      %2232 = vmatpush1.bf16.xpose.msra.mxu0 0
      %2233 = vmatprep.subr.bf16.mxu0 0
      %2234 = vmatpush1.bf16.xpose.msra.mxu0 0
      %2235 = vmatprep.subr.bf16.mxu0 0
      %2236 = vmatpush1.bf16.xpose.msra.mxu0 0
      %2237 = vmatprep.subr.bf16.mxu0 0
      %2238 = vmatpush1.bf16.xpose.msra.mxu0 0
      %2239 = vmatprep.subr.bf16.mxu0 0
      %2240 = vmatpush1.bf16.xpose.msra.mxu0 0
      %2241 = vmatprep.subr.bf16.mxu0 0
      %2242 = vmatpush1.bf16.xpose.msra.mxu0 0
      %2243 = vmatprep.subr.bf16.mxu0 0
      %2244 = vmatpush1.bf16.xpose.msra.mxu0 0
      %2245 = vmatprep.subr.bf16.mxu0 0
      %2246 = vmatpush1.bf16.xpose.msra.mxu0 0
      %2247 = vmatprep.subr.bf16.mxu0 0
      %2248 = vmatpush1.bf16.xpose.msra.mxu0 0
      %2249 = vmatprep.subr.bf16.mxu0 0
      %2250 = vmatpush1.bf16.xpose.msra.mxu0 0
      %2251 = vmatprep.mubr.bf16.mxu0 0
      %2252 = vmatmul.mubr.bf16.gmra.mrb[0].mxu0 %v2214
      %v2253 = vpop.f32.mrb[0].mxu0
      %v2254 = vadd.f32 0.0, %v2253
      %v2255 = vpop.f32.mrb[0].mxu0
      %v2256 = vpop.f32.mrb[0].mxu0
      %v2257 = vadd.f32 0.0, %v2256
      %v2258 = vpop.f32.mrb[0].mxu0
      %2259 = vdwg.mxu0
      %2261 = vrot.lane.b32.xlu0 %v543, 120
      %v2262 = vpop.permute.xlu0 %2261
      %v2264 = vsel %vm1962, %v543, 0
      %v2267 = vsel %vm1962, %v2262, 0
      %2269 = vmatprep.subr.bf16.mxu0 0
      %2270 = vmatpush1.bf16.xpose.msra.mxu0 %v2267
      %2271 = vmatprep.subr.bf16.mxu0 0
      %2272 = vmatpush1.bf16.xpose.msra.mxu0 0
      %2273 = vmatprep.subr.bf16.mxu0 0
      %2274 = vmatpush1.bf16.xpose.msra.mxu0 0
      %2275 = vmatprep.subr.bf16.mxu0 0
      %2276 = vmatpush1.bf16.xpose.msra.mxu0 0
      %2277 = vmatprep.subr.bf16.mxu0 0
      %2278 = vmatpush1.bf16.xpose.msra.mxu0 0
      %2279 = vmatprep.subr.bf16.mxu0 0
      %2280 = vmatpush1.bf16.xpose.msra.mxu0 0
      %2281 = vmatprep.subr.bf16.mxu0 0
      %2282 = vmatpush1.bf16.xpose.msra.mxu0 0
      %2283 = vmatprep.subr.bf16.mxu0 0
      %2284 = vmatpush1.bf16.xpose.msra.mxu0 0
      %2285 = vmatprep.subr.bf16.mxu0 0
      %2286 = vmatpush1.bf16.xpose.msra.mxu0 0
      %2287 = vmatprep.subr.bf16.mxu0 0
      %2288 = vmatpush1.bf16.xpose.msra.mxu0 0
      %2289 = vmatprep.subr.bf16.mxu0 0
      %2290 = vmatpush1.bf16.xpose.msra.mxu0 0
      %2291 = vmatprep.subr.bf16.mxu0 0
      %2292 = vmatpush1.bf16.xpose.msra.mxu0 0
      %2293 = vmatprep.subr.bf16.mxu0 0
      %2294 = vmatpush1.bf16.xpose.msra.mxu0 0
      %2295 = vmatprep.subr.bf16.mxu0 0
      %2296 = vmatpush1.bf16.xpose.msra.mxu0 0
      %2297 = vmatprep.subr.bf16.mxu0 0
      %2298 = vmatpush1.bf16.xpose.msra.mxu0 0
      %2299 = vmatprep.subr.bf16.mxu0 0
      %2300 = vmatpush1.bf16.xpose.msra.mxu0 0
      %2301 = vmatprep.mubr.bf16.mxu0 0
      %2302 = vmatmul.mubr.bf16.gmra.mrb[0].mxu0 %v2264
      %v2303 = vpop.f32.mrb[0].mxu0
      %v2304 = vadd.f32 0.0, %v2303
      %v2305 = vpop.f32.mrb[0].mxu0
      %v2306 = vpop.f32.mrb[0].mxu0
      %v2307 = vadd.f32 0.0, %v2306
      %v2308 = vpop.f32.mrb[0].mxu0
      %2309 = vdwg.mxu0
      %2311 = vrot.lane.b32.xlu0 %v544, 120
      %v2312 = vpop.permute.xlu0 %2311
      %v2314 = vsel %vm1962, %v544, 0
      %v2317 = vsel %vm1962, %v2312, 0
      %2319 = vmatprep.subr.bf16.mxu0 0
      %2320 = vmatpush1.bf16.xpose.msra.mxu0 %v2317
      %2321 = vmatprep.subr.bf16.mxu0 0
      %2322 = vmatpush1.bf16.xpose.msra.mxu0 0
      %2323 = vmatprep.subr.bf16.mxu0 0
      %2324 = vmatpush1.bf16.xpose.msra.mxu0 0
      %2325 = vmatprep.subr.bf16.mxu0 0
      %2326 = vmatpush1.bf16.xpose.msra.mxu0 0
      %2327 = vmatprep.subr.bf16.mxu0 0
      %2328 = vmatpush1.bf16.xpose.msra.mxu0 0
      %2329 = vmatprep.subr.bf16.mxu0 0
      %2330 = vmatpush1.bf16.xpose.msra.mxu0 0
      %2331 = vmatprep.subr.bf16.mxu0 0
      %2332 = vmatpush1.bf16.xpose.msra.mxu0 0
      %2333 = vmatprep.subr.bf16.mxu0 0
      %2334 = vmatpush1.bf16.xpose.msra.mxu0 0
      %2335 = vmatprep.subr.bf16.mxu0 0
      %2336 = vmatpush1.bf16.xpose.msra.mxu0 0
      %2337 = vmatprep.subr.bf16.mxu0 0
      %2338 = vmatpush1.bf16.xpose.msra.mxu0 0
      %2339 = vmatprep.subr.bf16.mxu0 0
      %2340 = vmatpush1.bf16.xpose.msra.mxu0 0
      %2341 = vmatprep.subr.bf16.mxu0 0
      %2342 = vmatpush1.bf16.xpose.msra.mxu0 0
      %2343 = vmatprep.subr.bf16.mxu0 0
      %2344 = vmatpush1.bf16.xpose.msra.mxu0 0
      %2345 = vmatprep.subr.bf16.mxu0 0
      %2346 = vmatpush1.bf16.xpose.msra.mxu0 0
      %2347 = vmatprep.subr.bf16.mxu0 0
      %2348 = vmatpush1.bf16.xpose.msra.mxu0 0
      %2349 = vmatprep.subr.bf16.mxu0 0
      %2350 = vmatpush1.bf16.xpose.msra.mxu0 0
      %2351 = vmatprep.mubr.bf16.mxu0 0
      %2352 = vmatmul.mubr.bf16.gmra.mrb[0].mxu0 %v2314
      %v2353 = vpop.f32.mrb[0].mxu0
      %v2354 = vadd.f32 0.0, %v2353
      %v2355 = vpop.f32.mrb[0].mxu0
      %v2356 = vpop.f32.mrb[0].mxu0
      %v2357 = vadd.f32 0.0, %v2356
      %v2358 = vpop.f32.mrb[0].mxu0
      %2359 = vdwg.mxu0
      %2361 = vrot.lane.b32.xlu0 %v545, 120
      %v2362 = vpop.permute.xlu0 %2361
      %v2364 = vsel %vm1962, %v545, 0
      %v2367 = vsel %vm1962, %v2362, 0
      %2369 = vmatprep.subr.bf16.mxu0 0
      %2370 = vmatpush1.bf16.xpose.msra.mxu0 %v2367
      %2371 = vmatprep.subr.bf16.mxu0 0
      %2372 = vmatpush1.bf16.xpose.msra.mxu0 0
      %2373 = vmatprep.subr.bf16.mxu0 0
      %2374 = vmatpush1.bf16.xpose.msra.mxu0 0
      %2375 = vmatprep.subr.bf16.mxu0 0
      %2376 = vmatpush1.bf16.xpose.msra.mxu0 0
      %2377 = vmatprep.subr.bf16.mxu0 0
      %2378 = vmatpush1.bf16.xpose.msra.mxu0 0
      %2379 = vmatprep.subr.bf16.mxu0 0
      %2380 = vmatpush1.bf16.xpose.msra.mxu0 0
      %2381 = vmatprep.subr.bf16.mxu0 0
      %2382 = vmatpush1.bf16.xpose.msra.mxu0 0
      %2383 = vmatprep.subr.bf16.mxu0 0
      %2384 = vmatpush1.bf16.xpose.msra.mxu0 0
      %2385 = vmatprep.subr.bf16.mxu0 0
      %2386 = vmatpush1.bf16.xpose.msra.mxu0 0
      %2387 = vmatprep.subr.bf16.mxu0 0
      %2388 = vmatpush1.bf16.xpose.msra.mxu0 0
      %2389 = vmatprep.subr.bf16.mxu0 0
      %2390 = vmatpush1.bf16.xpose.msra.mxu0 0
      %2391 = vmatprep.subr.bf16.mxu0 0
      %2392 = vmatpush1.bf16.xpose.msra.mxu0 0
      %2393 = vmatprep.subr.bf16.mxu0 0
      %2394 = vmatpush1.bf16.xpose.msra.mxu0 0
      %2395 = vmatprep.subr.bf16.mxu0 0
      %2396 = vmatpush1.bf16.xpose.msra.mxu0 0
      %2397 = vmatprep.subr.bf16.mxu0 0
      %2398 = vmatpush1.bf16.xpose.msra.mxu0 0
      %2399 = vmatprep.subr.bf16.mxu0 0
      %2400 = vmatpush1.bf16.xpose.msra.mxu0 0
      %2401 = vmatprep.mubr.bf16.mxu0 0
      %2402 = vmatmul.mubr.bf16.gmra.mrb[0].mxu0 %v2364
      %v2403 = vpop.f32.mrb[0].mxu0
      %v2404 = vadd.f32 0.0, %v2403
      %v2405 = vpop.f32.mrb[0].mxu0
      %v2406 = vpop.f32.mrb[0].mxu0
      %v2407 = vadd.f32 0.0, %v2406
      %v2408 = vpop.f32.mrb[0].mxu0
      %2409 = vdwg.mxu0
      %2411 = vrot.lane.b32.xlu0 %v546, 120
      %v2412 = vpop.permute.xlu0 %2411
      %v2414 = vsel %vm1962, %v546, 0
      %v2417 = vsel %vm1962, %v2412, 0
      %2419 = vmatprep.subr.bf16.mxu0 0
      %2420 = vmatpush1.bf16.xpose.msra.mxu0 %v2417
      %2421 = vmatprep.subr.bf16.mxu0 0
      %2422 = vmatpush1.bf16.xpose.msra.mxu0 0
      %2423 = vmatprep.subr.bf16.mxu0 0
      %2424 = vmatpush1.bf16.xpose.msra.mxu0 0
      %2425 = vmatprep.subr.bf16.mxu0 0
      %2426 = vmatpush1.bf16.xpose.msra.mxu0 0
      %2427 = vmatprep.subr.bf16.mxu0 0
      %2428 = vmatpush1.bf16.xpose.msra.mxu0 0
      %2429 = vmatprep.subr.bf16.mxu0 0
      %2430 = vmatpush1.bf16.xpose.msra.mxu0 0
      %2431 = vmatprep.subr.bf16.mxu0 0
      %2432 = vmatpush1.bf16.xpose.msra.mxu0 0
      %2433 = vmatprep.subr.bf16.mxu0 0
      %2434 = vmatpush1.bf16.xpose.msra.mxu0 0
      %2435 = vmatprep.subr.bf16.mxu0 0
      %2436 = vmatpush1.bf16.xpose.msra.mxu0 0
      %2437 = vmatprep.subr.bf16.mxu0 0
      %2438 = vmatpush1.bf16.xpose.msra.mxu0 0
      %2439 = vmatprep.subr.bf16.mxu0 0
      %2440 = vmatpush1.bf16.xpose.msra.mxu0 0
      %2441 = vmatprep.subr.bf16.mxu0 0
      %2442 = vmatpush1.bf16.xpose.msra.mxu0 0
      %2443 = vmatprep.subr.bf16.mxu0 0
      %2444 = vmatpush1.bf16.xpose.msra.mxu0 0
      %2445 = vmatprep.subr.bf16.mxu0 0
      %2446 = vmatpush1.bf16.xpose.msra.mxu0 0
      %2447 = vmatprep.subr.bf16.mxu0 0
      %2448 = vmatpush1.bf16.xpose.msra.mxu0 0
      %2449 = vmatprep.subr.bf16.mxu0 0
      %2450 = vmatpush1.bf16.xpose.msra.mxu0 0
      %2451 = vmatprep.mubr.bf16.mxu0 0
      %2452 = vmatmul.mubr.bf16.gmra.mrb[0].mxu0 %v2414
      %v2453 = vpop.f32.mrb[0].mxu0
      %v2454 = vadd.f32 0.0, %v2453
      %v2455 = vpop.f32.mrb[0].mxu0
      %v2456 = vpop.f32.mrb[0].mxu0
      %v2457 = vadd.f32 0.0, %v2456
      %v2458 = vpop.f32.mrb[0].mxu0
      %2459 = vdwg.mxu0
      %2461 = vrot.lane.b32.xlu0 %v547, 120
      %v2462 = vpop.permute.xlu0 %2461
      %v2464 = vsel %vm1962, %v547, 0
      %v2467 = vsel %vm1962, %v2462, 0
      %2469 = vmatprep.subr.bf16.mxu0 0
      %2470 = vmatpush1.bf16.xpose.msra.mxu0 %v2467
      %2471 = vmatprep.subr.bf16.mxu0 0
      %2472 = vmatpush1.bf16.xpose.msra.mxu0 0
      %2473 = vmatprep.subr.bf16.mxu0 0
      %2474 = vmatpush1.bf16.xpose.msra.mxu0 0
      %2475 = vmatprep.subr.bf16.mxu0 0
      %2476 = vmatpush1.bf16.xpose.msra.mxu0 0
      %2477 = vmatprep.subr.bf16.mxu0 0
      %2478 = vmatpush1.bf16.xpose.msra.mxu0 0
      %2479 = vmatprep.subr.bf16.mxu0 0
      %2480 = vmatpush1.bf16.xpose.msra.mxu0 0
      %2481 = vmatprep.subr.bf16.mxu0 0
      %2482 = vmatpush1.bf16.xpose.msra.mxu0 0
      %2483 = vmatprep.subr.bf16.mxu0 0
      %2484 = vmatpush1.bf16.xpose.msra.mxu0 0
      %2485 = vmatprep.subr.bf16.mxu0 0
      %2486 = vmatpush1.bf16.xpose.msra.mxu0 0
      %2487 = vmatprep.subr.bf16.mxu0 0
      %2488 = vmatpush1.bf16.xpose.msra.mxu0 0
      %2489 = vmatprep.subr.bf16.mxu0 0
      %2490 = vmatpush1.bf16.xpose.msra.mxu0 0
      %2491 = vmatprep.subr.bf16.mxu0 0
      %2492 = vmatpush1.bf16.xpose.msra.mxu0 0
      %2493 = vmatprep.subr.bf16.mxu0 0
      %2494 = vmatpush1.bf16.xpose.msra.mxu0 0
      %2495 = vmatprep.subr.bf16.mxu0 0
      %2496 = vmatpush1.bf16.xpose.msra.mxu0 0
      %2497 = vmatprep.subr.bf16.mxu0 0
      %2498 = vmatpush1.bf16.xpose.msra.mxu0 0
      %2499 = vmatprep.subr.bf16.mxu0 0
      %2500 = vmatpush1.bf16.xpose.msra.mxu0 0
      %2501 = vmatprep.mubr.bf16.mxu0 0
      %2502 = vmatmul.mubr.bf16.gmra.mrb[0].mxu0 %v2464
      %v2503 = vpop.f32.mrb[0].mxu0
      %v2504 = vadd.f32 0.0, %v2503
      %v2505 = vpop.f32.mrb[0].mxu0
      %v2506 = vpop.f32.mrb[0].mxu0
      %v2507 = vadd.f32 0.0, %v2506
      %v2508 = vpop.f32.mrb[0].mxu0
      %2509 = vdwg.mxu0
      %2511 = vrot.lane.b32.xlu0 %v548, 120
      %v2512 = vpop.permute.xlu0 %2511
      %v2514 = vsel %vm1962, %v548, 0
      %v2517 = vsel %vm1962, %v2512, 0
      %2519 = vmatprep.subr.bf16.mxu0 0
      %2520 = vmatpush1.bf16.xpose.msra.mxu0 %v2517
      %2521 = vmatprep.subr.bf16.mxu0 0
      %2522 = vmatpush1.bf16.xpose.msra.mxu0 0
      %2523 = vmatprep.subr.bf16.mxu0 0
      %2524 = vmatpush1.bf16.xpose.msra.mxu0 0
      %2525 = vmatprep.subr.bf16.mxu0 0
      %2526 = vmatpush1.bf16.xpose.msra.mxu0 0
      %2527 = vmatprep.subr.bf16.mxu0 0
      %2528 = vmatpush1.bf16.xpose.msra.mxu0 0
      %2529 = vmatprep.subr.bf16.mxu0 0
      %2530 = vmatpush1.bf16.xpose.msra.mxu0 0
      %2531 = vmatprep.subr.bf16.mxu0 0
      %2532 = vmatpush1.bf16.xpose.msra.mxu0 0
      %2533 = vmatprep.subr.bf16.mxu0 0
      %2534 = vmatpush1.bf16.xpose.msra.mxu0 0
      %2535 = vmatprep.subr.bf16.mxu0 0
      %2536 = vmatpush1.bf16.xpose.msra.mxu0 0
      %2537 = vmatprep.subr.bf16.mxu0 0
      %2538 = vmatpush1.bf16.xpose.msra.mxu0 0
      %2539 = vmatprep.subr.bf16.mxu0 0
      %2540 = vmatpush1.bf16.xpose.msra.mxu0 0
      %2541 = vmatprep.subr.bf16.mxu0 0
      %2542 = vmatpush1.bf16.xpose.msra.mxu0 0
      %2543 = vmatprep.subr.bf16.mxu0 0
      %2544 = vmatpush1.bf16.xpose.msra.mxu0 0
      %2545 = vmatprep.subr.bf16.mxu0 0
      %2546 = vmatpush1.bf16.xpose.msra.mxu0 0
      %2547 = vmatprep.subr.bf16.mxu0 0
      %2548 = vmatpush1.bf16.xpose.msra.mxu0 0
      %2549 = vmatprep.subr.bf16.mxu0 0
      %2550 = vmatpush1.bf16.xpose.msra.mxu0 0
      %2551 = vmatprep.mubr.bf16.mxu0 0
      %2552 = vmatmul.mubr.bf16.gmra.mrb[0].mxu0 %v2514
      %v2553 = vpop.f32.mrb[0].mxu0
      %v2554 = vadd.f32 0.0, %v2553
      %v2555 = vpop.f32.mrb[0].mxu0
      %v2556 = vpop.f32.mrb[0].mxu0
      %v2557 = vadd.f32 0.0, %v2556
      %v2558 = vpop.f32.mrb[0].mxu0
      %2559 = vdwg.mxu0
      %2561 = vrot.lane.b32.xlu0 %v549, 120
      %v2562 = vpop.permute.xlu0 %2561
      %v2564 = vsel %vm1962, %v549, 0
      %v2567 = vsel %vm1962, %v2562, 0
      %2569 = vmatprep.subr.bf16.mxu0 0
      %2570 = vmatpush1.bf16.xpose.msra.mxu0 %v2567
      %2571 = vmatprep.subr.bf16.mxu0 0
      %2572 = vmatpush1.bf16.xpose.msra.mxu0 0
      %2573 = vmatprep.subr.bf16.mxu0 0
      %2574 = vmatpush1.bf16.xpose.msra.mxu0 0
      %2575 = vmatprep.subr.bf16.mxu0 0
      %2576 = vmatpush1.bf16.xpose.msra.mxu0 0
      %2577 = vmatprep.subr.bf16.mxu0 0
      %2578 = vmatpush1.bf16.xpose.msra.mxu0 0
      %2579 = vmatprep.subr.bf16.mxu0 0
      %2580 = vmatpush1.bf16.xpose.msra.mxu0 0
      %2581 = vmatprep.subr.bf16.mxu0 0
      %2582 = vmatpush1.bf16.xpose.msra.mxu0 0
      %2583 = vmatprep.subr.bf16.mxu0 0
      %2584 = vmatpush1.bf16.xpose.msra.mxu0 0
      %2585 = vmatprep.subr.bf16.mxu0 0
      %2586 = vmatpush1.bf16.xpose.msra.mxu0 0
      %2587 = vmatprep.subr.bf16.mxu0 0
      %2588 = vmatpush1.bf16.xpose.msra.mxu0 0
      %2589 = vmatprep.subr.bf16.mxu0 0
      %2590 = vmatpush1.bf16.xpose.msra.mxu0 0
      %2591 = vmatprep.subr.bf16.mxu0 0
      %2592 = vmatpush1.bf16.xpose.msra.mxu0 0
      %2593 = vmatprep.subr.bf16.mxu0 0
      %2594 = vmatpush1.bf16.xpose.msra.mxu0 0
      %2595 = vmatprep.subr.bf16.mxu0 0
      %2596 = vmatpush1.bf16.xpose.msra.mxu0 0
      %2597 = vmatprep.subr.bf16.mxu0 0
      %2598 = vmatpush1.bf16.xpose.msra.mxu0 0
      %2599 = vmatprep.subr.bf16.mxu0 0
      %2600 = vmatpush1.bf16.xpose.msra.mxu0 0
      %2601 = vmatprep.mubr.bf16.mxu0 0
      %2602 = vmatmul.mubr.bf16.gmra.mrb[0].mxu0 %v2564
      %v2603 = vpop.f32.mrb[0].mxu0
      %v2604 = vadd.f32 0.0, %v2603
      %v2605 = vpop.f32.mrb[0].mxu0
      %v2606 = vpop.f32.mrb[0].mxu0
      %v2607 = vadd.f32 0.0, %v2606
      %v2608 = vpop.f32.mrb[0].mxu0
      %2609 = vdwg.mxu0
      %2611 = vrot.lane.b32.xlu0 %v550, 120
      %v2612 = vpop.permute.xlu0 %2611
      %v2614 = vsel %vm1962, %v550, 0
      %v2617 = vsel %vm1962, %v2612, 0
      %2619 = vmatprep.subr.bf16.mxu0 0
      %2620 = vmatpush1.bf16.xpose.msra.mxu0 %v2617
      %2621 = vmatprep.subr.bf16.mxu0 0
      %2622 = vmatpush1.bf16.xpose.msra.mxu0 0
      %2623 = vmatprep.subr.bf16.mxu0 0
      %2624 = vmatpush1.bf16.xpose.msra.mxu0 0
      %2625 = vmatprep.subr.bf16.mxu0 0
      %2626 = vmatpush1.bf16.xpose.msra.mxu0 0
      %2627 = vmatprep.subr.bf16.mxu0 0
      %2628 = vmatpush1.bf16.xpose.msra.mxu0 0
      %2629 = vmatprep.subr.bf16.mxu0 0
      %2630 = vmatpush1.bf16.xpose.msra.mxu0 0
      %2631 = vmatprep.subr.bf16.mxu0 0
      %2632 = vmatpush1.bf16.xpose.msra.mxu0 0
      %2633 = vmatprep.subr.bf16.mxu0 0
      %2634 = vmatpush1.bf16.xpose.msra.mxu0 0
      %2635 = vmatprep.subr.bf16.mxu0 0
      %2636 = vmatpush1.bf16.xpose.msra.mxu0 0
      %2637 = vmatprep.subr.bf16.mxu0 0
      %2638 = vmatpush1.bf16.xpose.msra.mxu0 0
      %2639 = vmatprep.subr.bf16.mxu0 0
      %2640 = vmatpush1.bf16.xpose.msra.mxu0 0
      %2641 = vmatprep.subr.bf16.mxu0 0
      %2642 = vmatpush1.bf16.xpose.msra.mxu0 0
      %2643 = vmatprep.subr.bf16.mxu0 0
      %2644 = vmatpush1.bf16.xpose.msra.mxu0 0
      %2645 = vmatprep.subr.bf16.mxu0 0
      %2646 = vmatpush1.bf16.xpose.msra.mxu0 0
      %2647 = vmatprep.subr.bf16.mxu0 0
      %2648 = vmatpush1.bf16.xpose.msra.mxu0 0
      %2649 = vmatprep.subr.bf16.mxu0 0
      %2650 = vmatpush1.bf16.xpose.msra.mxu0 0
      %2651 = vmatprep.mubr.bf16.mxu0 0
      %2652 = vmatmul.mubr.bf16.gmra.mrb[0].mxu0 %v2614
      %v2653 = vpop.f32.mrb[0].mxu0
      %v2654 = vadd.f32 0.0, %v2653
      %v2655 = vpop.f32.mrb[0].mxu0
      %v2656 = vpop.f32.mrb[0].mxu0
      %v2657 = vadd.f32 0.0, %v2656
      %v2658 = vpop.f32.mrb[0].mxu0
      %2659 = vdwg.mxu0
      %2661 = vrot.lane.b32.xlu0 %v551, 120
      %v2662 = vpop.permute.xlu0 %2661
      %v2664 = vsel %vm1962, %v551, 0
      %v2667 = vsel %vm1962, %v2662, 0
      %2669 = vmatprep.subr.bf16.mxu0 0
      %2670 = vmatpush1.bf16.xpose.msra.mxu0 %v2667
      %2671 = vmatprep.subr.bf16.mxu0 0
      %2672 = vmatpush1.bf16.xpose.msra.mxu0 0
      %2673 = vmatprep.subr.bf16.mxu0 0
      %2674 = vmatpush1.bf16.xpose.msra.mxu0 0
      %2675 = vmatprep.subr.bf16.mxu0 0
      %2676 = vmatpush1.bf16.xpose.msra.mxu0 0
      %2677 = vmatprep.subr.bf16.mxu0 0
      %2678 = vmatpush1.bf16.xpose.msra.mxu0 0
      %2679 = vmatprep.subr.bf16.mxu0 0
      %2680 = vmatpush1.bf16.xpose.msra.mxu0 0
      %2681 = vmatprep.subr.bf16.mxu0 0
      %2682 = vmatpush1.bf16.xpose.msra.mxu0 0
      %2683 = vmatprep.subr.bf16.mxu0 0
      %2684 = vmatpush1.bf16.xpose.msra.mxu0 0
      %2685 = vmatprep.subr.bf16.mxu0 0
      %2686 = vmatpush1.bf16.xpose.msra.mxu0 0
      %2687 = vmatprep.subr.bf16.mxu0 0
      %2688 = vmatpush1.bf16.xpose.msra.mxu0 0
      %2689 = vmatprep.subr.bf16.mxu0 0
      %2690 = vmatpush1.bf16.xpose.msra.mxu0 0
      %2691 = vmatprep.subr.bf16.mxu0 0
      %2692 = vmatpush1.bf16.xpose.msra.mxu0 0
      %2693 = vmatprep.subr.bf16.mxu0 0
      %2694 = vmatpush1.bf16.xpose.msra.mxu0 0
      %2695 = vmatprep.subr.bf16.mxu0 0
      %2696 = vmatpush1.bf16.xpose.msra.mxu0 0
      %2697 = vmatprep.subr.bf16.mxu0 0
      %2698 = vmatpush1.bf16.xpose.msra.mxu0 0
      %2699 = vmatprep.subr.bf16.mxu0 0
      %2700 = vmatpush1.bf16.xpose.msra.mxu0 0
      %2701 = vmatprep.mubr.bf16.mxu0 0
      %2702 = vmatmul.mubr.bf16.gmra.mrb[0].mxu0 %v2664
      %v2703 = vpop.f32.mrb[0].mxu0
      %v2704 = vadd.f32 0.0, %v2703
      %v2705 = vpop.f32.mrb[0].mxu0
      %v2706 = vpop.f32.mrb[0].mxu0
      %v2707 = vadd.f32 0.0, %v2706
      %v2708 = vpop.f32.mrb[0].mxu0
      %2709 = vdwg.mxu0
      %2711 = vrot.lane.b32.xlu0 %v552, 120
      %v2712 = vpop.permute.xlu0 %2711
      %v2714 = vsel %vm1962, %v552, 0
      %v2717 = vsel %vm1962, %v2712, 0
      %2719 = vmatprep.subr.bf16.mxu0 0
      %2720 = vmatpush1.bf16.xpose.msra.mxu0 %v2717
      %2721 = vmatprep.subr.bf16.mxu0 0
      %2722 = vmatpush1.bf16.xpose.msra.mxu0 0
      %2723 = vmatprep.subr.bf16.mxu0 0
      %2724 = vmatpush1.bf16.xpose.msra.mxu0 0
      %2725 = vmatprep.subr.bf16.mxu0 0
      %2726 = vmatpush1.bf16.xpose.msra.mxu0 0
      %2727 = vmatprep.subr.bf16.mxu0 0
      %2728 = vmatpush1.bf16.xpose.msra.mxu0 0
      %2729 = vmatprep.subr.bf16.mxu0 0
      %2730 = vmatpush1.bf16.xpose.msra.mxu0 0
      %2731 = vmatprep.subr.bf16.mxu0 0
      %2732 = vmatpush1.bf16.xpose.msra.mxu0 0
      %2733 = vmatprep.subr.bf16.mxu0 0
      %2734 = vmatpush1.bf16.xpose.msra.mxu0 0
      %2735 = vmatprep.subr.bf16.mxu0 0
      %2736 = vmatpush1.bf16.xpose.msra.mxu0 0
      %2737 = vmatprep.subr.bf16.mxu0 0
      %2738 = vmatpush1.bf16.xpose.msra.mxu0 0
      %2739 = vmatprep.subr.bf16.mxu0 0
      %2740 = vmatpush1.bf16.xpose.msra.mxu0 0
      %2741 = vmatprep.subr.bf16.mxu0 0
      %2742 = vmatpush1.bf16.xpose.msra.mxu0 0
      %2743 = vmatprep.subr.bf16.mxu0 0
      %2744 = vmatpush1.bf16.xpose.msra.mxu0 0
      %2745 = vmatprep.subr.bf16.mxu0 0
      %2746 = vmatpush1.bf16.xpose.msra.mxu0 0
      %2747 = vmatprep.subr.bf16.mxu0 0
      %2748 = vmatpush1.bf16.xpose.msra.mxu0 0
      %2749 = vmatprep.subr.bf16.mxu0 0
      %2750 = vmatpush1.bf16.xpose.msra.mxu0 0
      %2751 = vmatprep.mubr.bf16.mxu0 0
      %2752 = vmatmul.mubr.bf16.gmra.mrb[0].mxu0 %v2714
      %v2753 = vpop.f32.mrb[0].mxu0
      %v2754 = vadd.f32 0.0, %v2753
      %v2755 = vpop.f32.mrb[0].mxu0
      %v2756 = vpop.f32.mrb[0].mxu0
      %v2757 = vadd.f32 0.0, %v2756
      %v2758 = vpop.f32.mrb[0].mxu0
      %2759 = vdwg.mxu0
      %v2760 = vsel %vm1364, %v2004, -inf
      %2761 = vmax.xlane.f32.xlu0 %v2760
      %v2762 = vpop.xlane.xlu0 %2761
      %v2763 = vsel %vm1364, %v2007, -inf
      %2764 = vmax.xlane.f32.xlu0 %v2763
      %v2765 = vpop.xlane.xlu0 %2764
      %v2766 = vsel %vm1364, %v2054, -inf
      %2767 = vmax.xlane.f32.xlu0 %v2766
      %v2768 = vpop.xlane.xlu0 %2767
      %v2769 = vsel %vm1364, %v2057, -inf
      %2770 = vmax.xlane.f32.xlu0 %v2769
      %v2771 = vpop.xlane.xlu0 %2770
      %v2772 = vsel %vm1364, %v2104, -inf
      %2773 = vmax.xlane.f32.xlu0 %v2772
      %v2774 = vpop.xlane.xlu0 %2773
      %v2775 = vsel %vm1364, %v2107, -inf
      %2776 = vmax.xlane.f32.xlu0 %v2775
      %v2777 = vpop.xlane.xlu0 %2776
      %v2778 = vsel %vm1364, %v2154, -inf
      %2779 = vmax.xlane.f32.xlu0 %v2778
      %v2780 = vpop.xlane.xlu0 %2779
      %v2781 = vsel %vm1364, %v2157, -inf
      %2782 = vmax.xlane.f32.xlu0 %v2781
      %v2783 = vpop.xlane.xlu0 %2782
      %v2784 = vsel %vm1364, %v2204, -inf
      %2785 = vmax.xlane.f32.xlu0 %v2784
      %v2786 = vpop.xlane.xlu0 %2785
      %v2787 = vsel %vm1364, %v2207, -inf
      %2788 = vmax.xlane.f32.xlu0 %v2787
      %v2789 = vpop.xlane.xlu0 %2788
      %v2790 = vsel %vm1364, %v2254, -inf
      %2791 = vmax.xlane.f32.xlu0 %v2790
      %v2792 = vpop.xlane.xlu0 %2791
      %v2793 = vsel %vm1364, %v2257, -inf
      %2794 = vmax.xlane.f32.xlu0 %v2793
      %v2795 = vpop.xlane.xlu0 %2794
      %v2796 = vsel %vm1364, %v2304, -inf
      %2797 = vmax.xlane.f32.xlu0 %v2796
      %v2798 = vpop.xlane.xlu0 %2797
      %v2799 = vsel %vm1364, %v2307, -inf
      %2800 = vmax.xlane.f32.xlu0 %v2799
      %v2801 = vpop.xlane.xlu0 %2800
      %v2802 = vsel %vm1364, %v2354, -inf
      %2803 = vmax.xlane.f32.xlu0 %v2802
      %v2804 = vpop.xlane.xlu0 %2803
      %v2805 = vsel %vm1364, %v2357, -inf
      %2806 = vmax.xlane.f32.xlu0 %v2805
      %v2807 = vpop.xlane.xlu0 %2806
      %v2808 = vsel %vm1364, %v2404, -inf
      %2809 = vmax.xlane.f32.xlu0 %v2808
      %v2810 = vpop.xlane.xlu0 %2809
      %v2811 = vsel %vm1364, %v2407, -inf
      %2812 = vmax.xlane.f32.xlu0 %v2811
      %v2813 = vpop.xlane.xlu0 %2812
      %v2814 = vsel %vm1364, %v2454, -inf
      %2815 = vmax.xlane.f32.xlu0 %v2814
      %v2816 = vpop.xlane.xlu0 %2815
      %v2817 = vsel %vm1364, %v2457, -inf
      %2818 = vmax.xlane.f32.xlu0 %v2817
      %v2819 = vpop.xlane.xlu0 %2818
      %v2820 = vsel %vm1364, %v2504, -inf
      %2821 = vmax.xlane.f32.xlu0 %v2820
      %v2822 = vpop.xlane.xlu0 %2821
      %v2823 = vsel %vm1364, %v2507, -inf
      %2824 = vmax.xlane.f32.xlu0 %v2823
      %v2825 = vpop.xlane.xlu0 %2824
      %v2826 = vsel %vm1364, %v2554, -inf
      %2827 = vmax.xlane.f32.xlu0 %v2826
      %v2828 = vpop.xlane.xlu0 %2827
      %v2829 = vsel %vm1364, %v2557, -inf
      %2830 = vmax.xlane.f32.xlu0 %v2829
      %v2831 = vpop.xlane.xlu0 %2830
      %v2832 = vsel %vm1364, %v2604, -inf
      %2833 = vmax.xlane.f32.xlu0 %v2832
      %v2834 = vpop.xlane.xlu0 %2833
      %v2835 = vsel %vm1364, %v2607, -inf
      %2836 = vmax.xlane.f32.xlu0 %v2835
      %v2837 = vpop.xlane.xlu0 %2836
      %v2838 = vsel %vm1364, %v2654, -inf
      %2839 = vmax.xlane.f32.xlu0 %v2838
      %v2840 = vpop.xlane.xlu0 %2839
      %v2841 = vsel %vm1364, %v2657, -inf
      %2842 = vmax.xlane.f32.xlu0 %v2841
      %v2843 = vpop.xlane.xlu0 %2842
      %v2844 = vsel %vm1364, %v2704, -inf
      %2845 = vmax.xlane.f32.xlu0 %v2844
      %v2846 = vpop.xlane.xlu0 %2845
      %v2847 = vsel %vm1364, %v2707, -inf
      %2848 = vmax.xlane.f32.xlu0 %v2847
      %v2849 = vpop.xlane.xlu0 %2848
      %v2850 = vsel %vm1364, %v2754, -inf
      %2851 = vmax.xlane.f32.xlu0 %v2850
      %v2852 = vpop.xlane.xlu0 %2851
      %v2853 = vsel %vm1364, %v2757, -inf
      %2854 = vmax.xlane.f32.xlu0 %v2853
      %v2855 = vpop.xlane.xlu0 %2854
      %v2856 = vsub.f32 %v2004, %v2762
      %v2857 = vsub.f32 %v2007, %v2765
      %v2858 = vsub.f32 %v2054, %v2768
      %v2859 = vsub.f32 %v2057, %v2771
      %v2860 = vsub.f32 %v2104, %v2774
      %v2861 = vsub.f32 %v2107, %v2777
      %v2862 = vsub.f32 %v2154, %v2780
      %v2863 = vsub.f32 %v2157, %v2783
      %v2864 = vsub.f32 %v2204, %v2786
      %v2865 = vsub.f32 %v2207, %v2789
      %v2866 = vsub.f32 %v2254, %v2792
      %v2867 = vsub.f32 %v2257, %v2795
      %v2868 = vsub.f32 %v2304, %v2798
      %v2869 = vsub.f32 %v2307, %v2801
      %v2870 = vsub.f32 %v2354, %v2804
      %v2871 = vsub.f32 %v2357, %v2807
      %v2872 = vsub.f32 %v2404, %v2810
      %v2873 = vsub.f32 %v2407, %v2813
      %v2874 = vsub.f32 %v2454, %v2816
      %v2875 = vsub.f32 %v2457, %v2819
      %v2876 = vsub.f32 %v2504, %v2822
      %v2877 = vsub.f32 %v2507, %v2825
      %v2878 = vsub.f32 %v2554, %v2828
      %v2879 = vsub.f32 %v2557, %v2831
      %v2880 = vsub.f32 %v2604, %v2834
      %v2881 = vsub.f32 %v2607, %v2837
      %v2882 = vsub.f32 %v2654, %v2840
      %v2883 = vsub.f32 %v2657, %v2843
      %v2884 = vsub.f32 %v2704, %v2846
      %v2885 = vsub.f32 %v2707, %v2849
      %v2886 = vsub.f32 %v2754, %v2852
      %v2887 = vsub.f32 %v2757, %v2855
      %v2888 = vmul.f32 %v2856, 1.442695
      %v2889 = vpow.pop %v2888
      %v2890 = vmul.f32 %v2857, 1.442695
      %v2891 = vpow.pop %v2890
      %v2892 = vmul.f32 %v2858, 1.442695
      %v2893 = vpow.pop %v2892
      %v2894 = vmul.f32 %v2859, 1.442695
      %v2895 = vpow.pop %v2894
      %v2896 = vmul.f32 %v2860, 1.442695
      %v2897 = vpow.pop %v2896
      %v2898 = vmul.f32 %v2861, 1.442695
      %v2899 = vpow.pop %v2898
      %v2900 = vmul.f32 %v2862, 1.442695
      %v2901 = vpow.pop %v2900
      %v2902 = vmul.f32 %v2863, 1.442695
      %v2903 = vpow.pop %v2902
      %v2904 = vmul.f32 %v2864, 1.442695
      %v2905 = vpow.pop %v2904
      %v2906 = vmul.f32 %v2865, 1.442695
      %v2907 = vpow.pop %v2906
      %v2908 = vmul.f32 %v2866, 1.442695
      %v2909 = vpow.pop %v2908
      %v2910 = vmul.f32 %v2867, 1.442695
      %v2911 = vpow.pop %v2910
      %v2912 = vmul.f32 %v2868, 1.442695
      %v2913 = vpow.pop %v2912
      %v2914 = vmul.f32 %v2869, 1.442695
      %v2915 = vpow.pop %v2914
      %v2916 = vmul.f32 %v2870, 1.442695
      %v2917 = vpow.pop %v2916
      %v2918 = vmul.f32 %v2871, 1.442695
      %v2919 = vpow.pop %v2918
      %v2920 = vmul.f32 %v2872, 1.442695
      %v2921 = vpow.pop %v2920
      %v2922 = vmul.f32 %v2873, 1.442695
      %v2923 = vpow.pop %v2922
      %v2924 = vmul.f32 %v2874, 1.442695
      %v2925 = vpow.pop %v2924
      %v2926 = vmul.f32 %v2875, 1.442695
      %v2927 = vpow.pop %v2926
      %v2928 = vmul.f32 %v2876, 1.442695
      %v2929 = vpow.pop %v2928
      %v2930 = vmul.f32 %v2877, 1.442695
      %v2931 = vpow.pop %v2930
      %v2932 = vmul.f32 %v2878, 1.442695
      %v2933 = vpow.pop %v2932
      %v2934 = vmul.f32 %v2879, 1.442695
      %v2935 = vpow.pop %v2934
      %v2936 = vmul.f32 %v2880, 1.442695
      %v2937 = vpow.pop %v2936
      %v2938 = vmul.f32 %v2881, 1.442695
      %v2939 = vpow.pop %v2938
      %v2940 = vmul.f32 %v2882, 1.442695
      %v2941 = vpow.pop %v2940
      %v2942 = vmul.f32 %v2883, 1.442695
      %v2943 = vpow.pop %v2942
      %v2944 = vmul.f32 %v2884, 1.442695
      %v2945 = vpow.pop %v2944
      %v2946 = vmul.f32 %v2885, 1.442695
      %v2947 = vpow.pop %v2946
      %v2948 = vmul.f32 %v2886, 1.442695
      %v2949 = vpow.pop %v2948
      %v2950 = vmul.f32 %v2887, 1.442695
      %v2951 = vpow.pop %v2950
      %v2952 = vsel %vm1364, %v2889, 0.0
      %2953 = vadd.xlane.f32.xlu0 %v2952
      %v2954 = vpop.xlane.xlu0 %2953
      %v2955 = vsel %vm1364, %v2891, 0.0
      %2956 = vadd.xlane.f32.xlu0 %v2955
      %v2957 = vpop.xlane.xlu0 %2956
      %v2958 = vsel %vm1364, %v2893, 0.0
      %2959 = vadd.xlane.f32.xlu0 %v2958
      %v2960 = vpop.xlane.xlu0 %2959
      %v2961 = vsel %vm1364, %v2895, 0.0
      %2962 = vadd.xlane.f32.xlu0 %v2961
      %v2963 = vpop.xlane.xlu0 %2962
      %v2964 = vsel %vm1364, %v2897, 0.0
      %2965 = vadd.xlane.f32.xlu0 %v2964
      %v2966 = vpop.xlane.xlu0 %2965
      %v2967 = vsel %vm1364, %v2899, 0.0
      %2968 = vadd.xlane.f32.xlu0 %v2967
      %v2969 = vpop.xlane.xlu0 %2968
      %v2970 = vsel %vm1364, %v2901, 0.0
      %2971 = vadd.xlane.f32.xlu0 %v2970
      %v2972 = vpop.xlane.xlu0 %2971
      %v2973 = vsel %vm1364, %v2903, 0.0
      %2974 = vadd.xlane.f32.xlu0 %v2973
      %v2975 = vpop.xlane.xlu0 %2974
      %v2976 = vsel %vm1364, %v2905, 0.0
      %2977 = vadd.xlane.f32.xlu0 %v2976
      %v2978 = vpop.xlane.xlu0 %2977
      %v2979 = vsel %vm1364, %v2907, 0.0
      %2980 = vadd.xlane.f32.xlu0 %v2979
      %v2981 = vpop.xlane.xlu0 %2980
      %v2982 = vsel %vm1364, %v2909, 0.0
      %2983 = vadd.xlane.f32.xlu0 %v2982
      %v2984 = vpop.xlane.xlu0 %2983
      %v2985 = vsel %vm1364, %v2911, 0.0
      %2986 = vadd.xlane.f32.xlu0 %v2985
      %v2987 = vpop.xlane.xlu0 %2986
      %v2988 = vsel %vm1364, %v2913, 0.0
      %2989 = vadd.xlane.f32.xlu0 %v2988
      %v2990 = vpop.xlane.xlu0 %2989
      %v2991 = vsel %vm1364, %v2915, 0.0
      %2992 = vadd.xlane.f32.xlu0 %v2991
      %v2993 = vpop.xlane.xlu0 %2992
      %v2994 = vsel %vm1364, %v2917, 0.0
      %2995 = vadd.xlane.f32.xlu0 %v2994
      %v2996 = vpop.xlane.xlu0 %2995
      %v2997 = vsel %vm1364, %v2919, 0.0
      %2998 = vadd.xlane.f32.xlu0 %v2997
      %v2999 = vpop.xlane.xlu0 %2998
      %v3000 = vsel %vm1364, %v2921, 0.0
      %3001 = vadd.xlane.f32.xlu0 %v3000
      %v3002 = vpop.xlane.xlu0 %3001
      %v3003 = vsel %vm1364, %v2923, 0.0
      %3004 = vadd.xlane.f32.xlu0 %v3003
      %v3005 = vpop.xlane.xlu0 %3004
      %v3006 = vsel %vm1364, %v2925, 0.0
      %3007 = vadd.xlane.f32.xlu0 %v3006
      %v3008 = vpop.xlane.xlu0 %3007
      %v3009 = vsel %vm1364, %v2927, 0.0
      %3010 = vadd.xlane.f32.xlu0 %v3009
      %v3011 = vpop.xlane.xlu0 %3010
      %v3012 = vsel %vm1364, %v2929, 0.0
      %3013 = vadd.xlane.f32.xlu0 %v3012
      %v3014 = vpop.xlane.xlu0 %3013
      %v3015 = vsel %vm1364, %v2931, 0.0
      %3016 = vadd.xlane.f32.xlu0 %v3015
      %v3017 = vpop.xlane.xlu0 %3016
      %v3018 = vsel %vm1364, %v2933, 0.0
      %3019 = vadd.xlane.f32.xlu0 %v3018
      %v3020 = vpop.xlane.xlu0 %3019
      %v3021 = vsel %vm1364, %v2935, 0.0
      %3022 = vadd.xlane.f32.xlu0 %v3021
      %v3023 = vpop.xlane.xlu0 %3022
      %v3024 = vsel %vm1364, %v2937, 0.0
      %3025 = vadd.xlane.f32.xlu0 %v3024
      %v3026 = vpop.xlane.xlu0 %3025
      %v3027 = vsel %vm1364, %v2939, 0.0
      %3028 = vadd.xlane.f32.xlu0 %v3027
      %v3029 = vpop.xlane.xlu0 %3028
      %v3030 = vsel %vm1364, %v2941, 0.0
      %3031 = vadd.xlane.f32.xlu0 %v3030
      %v3032 = vpop.xlane.xlu0 %3031
      %v3033 = vsel %vm1364, %v2943, 0.0
      %3034 = vadd.xlane.f32.xlu0 %v3033
      %v3035 = vpop.xlane.xlu0 %3034
      %v3036 = vsel %vm1364, %v2945, 0.0
      %3037 = vadd.xlane.f32.xlu0 %v3036
      %v3038 = vpop.xlane.xlu0 %3037
      %v3039 = vsel %vm1364, %v2947, 0.0
      %3040 = vadd.xlane.f32.xlu0 %v3039
      %v3041 = vpop.xlane.xlu0 %3040
      %v3042 = vsel %vm1364, %v2949, 0.0
      %3043 = vadd.xlane.f32.xlu0 %v3042
      %v3044 = vpop.xlane.xlu0 %3043
      %v3045 = vsel %vm1364, %v2951, 0.0
      %3046 = vadd.xlane.f32.xlu0 %v3045
      %v3047 = vpop.xlane.xlu0 %3046
      %v3048 = vrcp.pop %v2954
      %v3049 = vrcp.pop %v2957
      %v3050 = vrcp.pop %v2960
      %v3051 = vrcp.pop %v2963
      %v3052 = vrcp.pop %v2966
      %v3053 = vrcp.pop %v2969
      %v3054 = vrcp.pop %v2972
      %v3055 = vrcp.pop %v2975
      %v3056 = vrcp.pop %v2978
      %v3057 = vrcp.pop %v2981
      %v3058 = vrcp.pop %v2984
      %v3059 = vrcp.pop %v2987
      %v3060 = vrcp.pop %v2990
      %v3061 = vrcp.pop %v2993
      %v3062 = vrcp.pop %v2996
      %v3063 = vrcp.pop %v2999
      %v3064 = vrcp.pop %v3002
      %v3065 = vrcp.pop %v3005
      %v3066 = vrcp.pop %v3008
      %v3067 = vrcp.pop %v3011
      %v3068 = vrcp.pop %v3014
      %v3069 = vrcp.pop %v3017
      %v3070 = vrcp.pop %v3020
      %v3071 = vrcp.pop %v3023
      %v3072 = vrcp.pop %v3026
      %v3073 = vrcp.pop %v3029
      %v3074 = vrcp.pop %v3032
      %v3075 = vrcp.pop %v3035
      %v3076 = vrcp.pop %v3038
      %v3077 = vrcp.pop %v3041
      %v3078 = vrcp.pop %v3044
      %v3079 = vrcp.pop %v3047
      %v3080 = vmul.f32 %v2889, %v3048
      %v3081 = vmul.f32 %v2891, %v3049
      %v3082 = vmul.f32 %v2893, %v3050
      %v3083 = vmul.f32 %v2895, %v3051
      %v3084 = vmul.f32 %v2897, %v3052
      %v3085 = vmul.f32 %v2899, %v3053
      %v3086 = vmul.f32 %v2901, %v3054
      %v3087 = vmul.f32 %v2903, %v3055
      %v3088 = vmul.f32 %v2905, %v3056
      %v3089 = vmul.f32 %v2907, %v3057
      %v3090 = vmul.f32 %v2909, %v3058
      %v3091 = vmul.f32 %v2911, %v3059
      %v3092 = vmul.f32 %v2913, %v3060
      %v3093 = vmul.f32 %v2915, %v3061
      %v3094 = vmul.f32 %v2917, %v3062
      %v3095 = vmul.f32 %v2919, %v3063
      %v3096 = vmul.f32 %v2921, %v3064
      %v3097 = vmul.f32 %v2923, %v3065
      %v3098 = vmul.f32 %v2925, %v3066
      %v3099 = vmul.f32 %v2927, %v3067
      %v3100 = vmul.f32 %v2929, %v3068
      %v3101 = vmul.f32 %v2931, %v3069
      %v3102 = vmul.f32 %v2933, %v3070
      %v3103 = vmul.f32 %v2935, %v3071
      %v3104 = vmul.f32 %v2937, %v3072
      %v3105 = vmul.f32 %v2939, %v3073
      %v3106 = vmul.f32 %v2941, %v3074
      %v3107 = vmul.f32 %v2943, %v3075
      %v3108 = vmul.f32 %v2945, %v3076
      %v3109 = vmul.f32 %v2947, %v3077
      %v3110 = vmul.f32 %v2949, %v3078
      %v3111 = vmul.f32 %v2951, %v3079
      %v3112 = vpack.c.bf16 %v3081, %v3080
      %v3113 = vpack.c.bf16 %v3083, %v3082
      %v3114 = vpack.c.bf16 %v3085, %v3084
      %v3115 = vpack.c.bf16 %v3087, %v3086
      %v3116 = vpack.c.bf16 %v3089, %v3088
      %v3117 = vpack.c.bf16 %v3091, %v3090
      %v3118 = vpack.c.bf16 %v3093, %v3092
      %v3119 = vpack.c.bf16 %v3095, %v3094
      %v3120 = vpack.c.bf16 %v3097, %v3096
      %v3121 = vpack.c.bf16 %v3099, %v3098
      %v3122 = vpack.c.bf16 %v3101, %v3100
      %v3123 = vpack.c.bf16 %v3103, %v3102
      %v3124 = vpack.c.bf16 %v3105, %v3104
      %v3125 = vpack.c.bf16 %v3107, %v3106
      %v3126 = vpack.c.bf16 %v3109, %v3108
      %v3127 = vpack.c.bf16 %v3111, %v3110
      %3128 = vrot.lane.b32.xlu0 %v537, 112
      %v3129 = vpop.permute.xlu0 %3128
      %v3132 = vsel %vm1364, %v3112, 0
      %3134 = vmatprep.subr.bf16.mxu0 0
      %3135 = vmatpush1.bf16.msra.mxu0 %v3129
      %3136 = vmatprep.subr.bf16.mxu0 0
      %3137 = vmatpush1.bf16.msra.mxu0 0
      %3138 = vmatprep.subr.bf16.mxu0 0
      %3139 = vmatpush1.bf16.msra.mxu0 0
      %3140 = vmatprep.subr.bf16.mxu0 0
      %3141 = vmatpush1.bf16.msra.mxu0 0
      %3142 = vmatprep.subr.bf16.mxu0 0
      %3143 = vmatpush1.bf16.msra.mxu0 0
      %3144 = vmatprep.subr.bf16.mxu0 0
      %3145 = vmatpush1.bf16.msra.mxu0 0
      %3146 = vmatprep.subr.bf16.mxu0 0
      %3147 = vmatpush1.bf16.msra.mxu0 0
      %3148 = vmatprep.subr.bf16.mxu0 0
      %3149 = vmatpush1.bf16.msra.mxu0 0
      %3150 = vmatprep.subr.bf16.mxu0 0
      %3151 = vmatpush1.bf16.msra.mxu0 0
      %3152 = vmatprep.subr.bf16.mxu0 0
      %3153 = vmatpush1.bf16.msra.mxu0 0
      %3154 = vmatprep.subr.bf16.mxu0 0
      %3155 = vmatpush1.bf16.msra.mxu0 0
      %3156 = vmatprep.subr.bf16.mxu0 0
      %3157 = vmatpush1.bf16.msra.mxu0 0
      %3158 = vmatprep.subr.bf16.mxu0 0
      %3159 = vmatpush1.bf16.msra.mxu0 0
      %3160 = vmatprep.subr.bf16.mxu0 0
      %3161 = vmatpush1.bf16.msra.mxu0 0
      %3162 = vmatprep.subr.bf16.mxu0 0
      %3163 = vmatpush1.bf16.msra.mxu0 0
      %3164 = vmatprep.subr.bf16.mxu0 0
      %3165 = vmatpush1.bf16.msra.mxu0 0
      %3166 = vmatprep.mubr.bf16.mxu0 0
      %3167 = vmatmul.mubr.bf16.gmra.mrb[0].mxu0 %v3132
      %v3168 = vpop.f32.mrb[0].mxu0
      %v3169 = vadd.f32 0.0, %v3168
      %v3170 = vpop.f32.mrb[0].mxu0
      %v3171 = vpop.f32.mrb[0].mxu0
      %v3172 = vadd.f32 0.0, %v3171
      %v3173 = vpop.f32.mrb[0].mxu0
      %3174 = vdwg.mxu0
      %3175 = vrot.lane.b32.xlu0 %v538, 112
      %v3176 = vpop.permute.xlu0 %3175
      %v3179 = vsel %vm1364, %v3113, 0
      %3181 = vmatprep.subr.bf16.mxu0 0
      %3182 = vmatpush1.bf16.msra.mxu0 %v3176
      %3183 = vmatprep.subr.bf16.mxu0 0
      %3184 = vmatpush1.bf16.msra.mxu0 0
      %3185 = vmatprep.subr.bf16.mxu0 0
      %3186 = vmatpush1.bf16.msra.mxu0 0
      %3187 = vmatprep.subr.bf16.mxu0 0
      %3188 = vmatpush1.bf16.msra.mxu0 0
      %3189 = vmatprep.subr.bf16.mxu0 0
      %3190 = vmatpush1.bf16.msra.mxu0 0
      %3191 = vmatprep.subr.bf16.mxu0 0
      %3192 = vmatpush1.bf16.msra.mxu0 0
      %3193 = vmatprep.subr.bf16.mxu0 0
      %3194 = vmatpush1.bf16.msra.mxu0 0
      %3195 = vmatprep.subr.bf16.mxu0 0
      %3196 = vmatpush1.bf16.msra.mxu0 0
      %3197 = vmatprep.subr.bf16.mxu0 0
      %3198 = vmatpush1.bf16.msra.mxu0 0
      %3199 = vmatprep.subr.bf16.mxu0 0
      %3200 = vmatpush1.bf16.msra.mxu0 0
      %3201 = vmatprep.subr.bf16.mxu0 0
      %3202 = vmatpush1.bf16.msra.mxu0 0
      %3203 = vmatprep.subr.bf16.mxu0 0
      %3204 = vmatpush1.bf16.msra.mxu0 0
      %3205 = vmatprep.subr.bf16.mxu0 0
      %3206 = vmatpush1.bf16.msra.mxu0 0
      %3207 = vmatprep.subr.bf16.mxu0 0
      %3208 = vmatpush1.bf16.msra.mxu0 0
      %3209 = vmatprep.subr.bf16.mxu0 0
      %3210 = vmatpush1.bf16.msra.mxu0 0
      %3211 = vmatprep.subr.bf16.mxu0 0
      %3212 = vmatpush1.bf16.msra.mxu0 0
      %3213 = vmatprep.mubr.bf16.mxu0 0
      %3214 = vmatmul.mubr.bf16.gmra.mrb[0].mxu0 %v3179
      %v3215 = vpop.f32.mrb[0].mxu0
      %v3216 = vadd.f32 0.0, %v3215
      %v3217 = vpop.f32.mrb[0].mxu0
      %v3218 = vpop.f32.mrb[0].mxu0
      %v3219 = vadd.f32 0.0, %v3218
      %v3220 = vpop.f32.mrb[0].mxu0
      %3221 = vdwg.mxu0
      %3222 = vrot.lane.b32.xlu0 %v539, 112
      %v3223 = vpop.permute.xlu0 %3222
      %v3226 = vsel %vm1364, %v3114, 0
      %3228 = vmatprep.subr.bf16.mxu0 0
      %3229 = vmatpush1.bf16.msra.mxu0 %v3223
      %3230 = vmatprep.subr.bf16.mxu0 0
      %3231 = vmatpush1.bf16.msra.mxu0 0
      %3232 = vmatprep.subr.bf16.mxu0 0
      %3233 = vmatpush1.bf16.msra.mxu0 0
      %3234 = vmatprep.subr.bf16.mxu0 0
      %3235 = vmatpush1.bf16.msra.mxu0 0
      %3236 = vmatprep.subr.bf16.mxu0 0
      %3237 = vmatpush1.bf16.msra.mxu0 0
      %3238 = vmatprep.subr.bf16.mxu0 0
      %3239 = vmatpush1.bf16.msra.mxu0 0
      %3240 = vmatprep.subr.bf16.mxu0 0
      %3241 = vmatpush1.bf16.msra.mxu0 0
      %3242 = vmatprep.subr.bf16.mxu0 0
      %3243 = vmatpush1.bf16.msra.mxu0 0
      %3244 = vmatprep.subr.bf16.mxu0 0
      %3245 = vmatpush1.bf16.msra.mxu0 0
      %3246 = vmatprep.subr.bf16.mxu0 0
      %3247 = vmatpush1.bf16.msra.mxu0 0
      %3248 = vmatprep.subr.bf16.mxu0 0
      %3249 = vmatpush1.bf16.msra.mxu0 0
      %3250 = vmatprep.subr.bf16.mxu0 0
      %3251 = vmatpush1.bf16.msra.mxu0 0
      %3252 = vmatprep.subr.bf16.mxu0 0
      %3253 = vmatpush1.bf16.msra.mxu0 0
      %3254 = vmatprep.subr.bf16.mxu0 0
      %3255 = vmatpush1.bf16.msra.mxu0 0
      %3256 = vmatprep.subr.bf16.mxu0 0
      %3257 = vmatpush1.bf16.msra.mxu0 0
      %3258 = vmatprep.subr.bf16.mxu0 0
      %3259 = vmatpush1.bf16.msra.mxu0 0
      %3260 = vmatprep.mubr.bf16.mxu0 0
      %3261 = vmatmul.mubr.bf16.gmra.mrb[0].mxu0 %v3226
      %v3262 = vpop.f32.mrb[0].mxu0
      %v3263 = vadd.f32 0.0, %v3262
      %v3264 = vpop.f32.mrb[0].mxu0
      %v3265 = vpop.f32.mrb[0].mxu0
      %v3266 = vadd.f32 0.0, %v3265
      %v3267 = vpop.f32.mrb[0].mxu0
      %3268 = vdwg.mxu0
      %3269 = vrot.lane.b32.xlu0 %v540, 112
      %v3270 = vpop.permute.xlu0 %3269
      %v3273 = vsel %vm1364, %v3115, 0
      %3275 = vmatprep.subr.bf16.mxu0 0
      %3276 = vmatpush1.bf16.msra.mxu0 %v3270
      %3277 = vmatprep.subr.bf16.mxu0 0
      %3278 = vmatpush1.bf16.msra.mxu0 0
      %3279 = vmatprep.subr.bf16.mxu0 0
      %3280 = vmatpush1.bf16.msra.mxu0 0
      %3281 = vmatprep.subr.bf16.mxu0 0
      %3282 = vmatpush1.bf16.msra.mxu0 0
      %3283 = vmatprep.subr.bf16.mxu0 0
      %3284 = vmatpush1.bf16.msra.mxu0 0
      %3285 = vmatprep.subr.bf16.mxu0 0
      %3286 = vmatpush1.bf16.msra.mxu0 0
      %3287 = vmatprep.subr.bf16.mxu0 0
      %3288 = vmatpush1.bf16.msra.mxu0 0
      %3289 = vmatprep.subr.bf16.mxu0 0
      %3290 = vmatpush1.bf16.msra.mxu0 0
      %3291 = vmatprep.subr.bf16.mxu0 0
      %3292 = vmatpush1.bf16.msra.mxu0 0
      %3293 = vmatprep.subr.bf16.mxu0 0
      %3294 = vmatpush1.bf16.msra.mxu0 0
      %3295 = vmatprep.subr.bf16.mxu0 0
      %3296 = vmatpush1.bf16.msra.mxu0 0
      %3297 = vmatprep.subr.bf16.mxu0 0
      %3298 = vmatpush1.bf16.msra.mxu0 0
      %3299 = vmatprep.subr.bf16.mxu0 0
      %3300 = vmatpush1.bf16.msra.mxu0 0
      %3301 = vmatprep.subr.bf16.mxu0 0
      %3302 = vmatpush1.bf16.msra.mxu0 0
      %3303 = vmatprep.subr.bf16.mxu0 0
      %3304 = vmatpush1.bf16.msra.mxu0 0
      %3305 = vmatprep.subr.bf16.mxu0 0
      %3306 = vmatpush1.bf16.msra.mxu0 0
      %3307 = vmatprep.mubr.bf16.mxu0 0
      %3308 = vmatmul.mubr.bf16.gmra.mrb[0].mxu0 %v3273
      %v3309 = vpop.f32.mrb[0].mxu0
      %v3310 = vadd.f32 0.0, %v3309
      %v3311 = vpop.f32.mrb[0].mxu0
      %v3312 = vpop.f32.mrb[0].mxu0
      %v3313 = vadd.f32 0.0, %v3312
      %v3314 = vpop.f32.mrb[0].mxu0
      %3315 = vdwg.mxu0
      %3316 = vrot.lane.b32.xlu0 %v541, 112
      %v3317 = vpop.permute.xlu0 %3316
      %v3320 = vsel %vm1364, %v3116, 0
      %3322 = vmatprep.subr.bf16.mxu0 0
      %3323 = vmatpush1.bf16.msra.mxu0 %v3317
      %3324 = vmatprep.subr.bf16.mxu0 0
      %3325 = vmatpush1.bf16.msra.mxu0 0
      %3326 = vmatprep.subr.bf16.mxu0 0
      %3327 = vmatpush1.bf16.msra.mxu0 0
      %3328 = vmatprep.subr.bf16.mxu0 0
      %3329 = vmatpush1.bf16.msra.mxu0 0
      %3330 = vmatprep.subr.bf16.mxu0 0
      %3331 = vmatpush1.bf16.msra.mxu0 0
      %3332 = vmatprep.subr.bf16.mxu0 0
      %3333 = vmatpush1.bf16.msra.mxu0 0
      %3334 = vmatprep.subr.bf16.mxu0 0
      %3335 = vmatpush1.bf16.msra.mxu0 0
      %3336 = vmatprep.subr.bf16.mxu0 0
      %3337 = vmatpush1.bf16.msra.mxu0 0
      %3338 = vmatprep.subr.bf16.mxu0 0
      %3339 = vmatpush1.bf16.msra.mxu0 0
      %3340 = vmatprep.subr.bf16.mxu0 0
      %3341 = vmatpush1.bf16.msra.mxu0 0
      %3342 = vmatprep.subr.bf16.mxu0 0
      %3343 = vmatpush1.bf16.msra.mxu0 0
      %3344 = vmatprep.subr.bf16.mxu0 0
      %3345 = vmatpush1.bf16.msra.mxu0 0
      %3346 = vmatprep.subr.bf16.mxu0 0
      %3347 = vmatpush1.bf16.msra.mxu0 0
      %3348 = vmatprep.subr.bf16.mxu0 0
      %3349 = vmatpush1.bf16.msra.mxu0 0
      %3350 = vmatprep.subr.bf16.mxu0 0
      %3351 = vmatpush1.bf16.msra.mxu0 0
      %3352 = vmatprep.subr.bf16.mxu0 0
      %3353 = vmatpush1.bf16.msra.mxu0 0
      %3354 = vmatprep.mubr.bf16.mxu0 0
      %3355 = vmatmul.mubr.bf16.gmra.mrb[0].mxu0 %v3320
      %v3356 = vpop.f32.mrb[0].mxu0
      %v3357 = vadd.f32 0.0, %v3356
      %v3358 = vpop.f32.mrb[0].mxu0
      %v3359 = vpop.f32.mrb[0].mxu0
      %v3360 = vadd.f32 0.0, %v3359
      %v3361 = vpop.f32.mrb[0].mxu0
      %3362 = vdwg.mxu0
      %3363 = vrot.lane.b32.xlu0 %v542, 112
      %v3364 = vpop.permute.xlu0 %3363
      %v3367 = vsel %vm1364, %v3117, 0
      %3369 = vmatprep.subr.bf16.mxu0 0
      %3370 = vmatpush1.bf16.msra.mxu0 %v3364
      %3371 = vmatprep.subr.bf16.mxu0 0
      %3372 = vmatpush1.bf16.msra.mxu0 0
      %3373 = vmatprep.subr.bf16.mxu0 0
      %3374 = vmatpush1.bf16.msra.mxu0 0
      %3375 = vmatprep.subr.bf16.mxu0 0
      %3376 = vmatpush1.bf16.msra.mxu0 0
      %3377 = vmatprep.subr.bf16.mxu0 0
      %3378 = vmatpush1.bf16.msra.mxu0 0
      %3379 = vmatprep.subr.bf16.mxu0 0
      %3380 = vmatpush1.bf16.msra.mxu0 0
      %3381 = vmatprep.subr.bf16.mxu0 0
      %3382 = vmatpush1.bf16.msra.mxu0 0
      %3383 = vmatprep.subr.bf16.mxu0 0
      %3384 = vmatpush1.bf16.msra.mxu0 0
      %3385 = vmatprep.subr.bf16.mxu0 0
      %3386 = vmatpush1.bf16.msra.mxu0 0
      %3387 = vmatprep.subr.bf16.mxu0 0
      %3388 = vmatpush1.bf16.msra.mxu0 0
      %3389 = vmatprep.subr.bf16.mxu0 0
      %3390 = vmatpush1.bf16.msra.mxu0 0
      %3391 = vmatprep.subr.bf16.mxu0 0
      %3392 = vmatpush1.bf16.msra.mxu0 0
      %3393 = vmatprep.subr.bf16.mxu0 0
      %3394 = vmatpush1.bf16.msra.mxu0 0
      %3395 = vmatprep.subr.bf16.mxu0 0
      %3396 = vmatpush1.bf16.msra.mxu0 0
      %3397 = vmatprep.subr.bf16.mxu0 0
      %3398 = vmatpush1.bf16.msra.mxu0 0
      %3399 = vmatprep.subr.bf16.mxu0 0
      %3400 = vmatpush1.bf16.msra.mxu0 0
      %3401 = vmatprep.mubr.bf16.mxu0 0
      %3402 = vmatmul.mubr.bf16.gmra.mrb[0].mxu0 %v3367
      %v3403 = vpop.f32.mrb[0].mxu0
      %v3404 = vadd.f32 0.0, %v3403
      %v3405 = vpop.f32.mrb[0].mxu0
      %v3406 = vpop.f32.mrb[0].mxu0
      %v3407 = vadd.f32 0.0, %v3406
      %v3408 = vpop.f32.mrb[0].mxu0
      %3409 = vdwg.mxu0
      %3410 = vrot.lane.b32.xlu0 %v543, 112
      %v3411 = vpop.permute.xlu0 %3410
      %v3414 = vsel %vm1364, %v3118, 0
      %3416 = vmatprep.subr.bf16.mxu0 0
      %3417 = vmatpush1.bf16.msra.mxu0 %v3411
      %3418 = vmatprep.subr.bf16.mxu0 0
      %3419 = vmatpush1.bf16.msra.mxu0 0
      %3420 = vmatprep.subr.bf16.mxu0 0
      %3421 = vmatpush1.bf16.msra.mxu0 0
      %3422 = vmatprep.subr.bf16.mxu0 0
      %3423 = vmatpush1.bf16.msra.mxu0 0
      %3424 = vmatprep.subr.bf16.mxu0 0
      %3425 = vmatpush1.bf16.msra.mxu0 0
      %3426 = vmatprep.subr.bf16.mxu0 0
      %3427 = vmatpush1.bf16.msra.mxu0 0
      %3428 = vmatprep.subr.bf16.mxu0 0
      %3429 = vmatpush1.bf16.msra.mxu0 0
      %3430 = vmatprep.subr.bf16.mxu0 0
      %3431 = vmatpush1.bf16.msra.mxu0 0
      %3432 = vmatprep.subr.bf16.mxu0 0
      %3433 = vmatpush1.bf16.msra.mxu0 0
      %3434 = vmatprep.subr.bf16.mxu0 0
      %3435 = vmatpush1.bf16.msra.mxu0 0
      %3436 = vmatprep.subr.bf16.mxu0 0
      %3437 = vmatpush1.bf16.msra.mxu0 0
      %3438 = vmatprep.subr.bf16.mxu0 0
      %3439 = vmatpush1.bf16.msra.mxu0 0
      %3440 = vmatprep.subr.bf16.mxu0 0
      %3441 = vmatpush1.bf16.msra.mxu0 0
      %3442 = vmatprep.subr.bf16.mxu0 0
      %3443 = vmatpush1.bf16.msra.mxu0 0
      %3444 = vmatprep.subr.bf16.mxu0 0
      %3445 = vmatpush1.bf16.msra.mxu0 0
      %3446 = vmatprep.subr.bf16.mxu0 0
      %3447 = vmatpush1.bf16.msra.mxu0 0
      %3448 = vmatprep.mubr.bf16.mxu0 0
      %3449 = vmatmul.mubr.bf16.gmra.mrb[0].mxu0 %v3414
      %v3450 = vpop.f32.mrb[0].mxu0
      %v3451 = vadd.f32 0.0, %v3450
      %v3452 = vpop.f32.mrb[0].mxu0
      %v3453 = vpop.f32.mrb[0].mxu0
      %v3454 = vadd.f32 0.0, %v3453
      %v3455 = vpop.f32.mrb[0].mxu0
      %3456 = vdwg.mxu0
      %3457 = vrot.lane.b32.xlu0 %v544, 112
      %v3458 = vpop.permute.xlu0 %3457
      %v3461 = vsel %vm1364, %v3119, 0
      %3463 = vmatprep.subr.bf16.mxu0 0
      %3464 = vmatpush1.bf16.msra.mxu0 %v3458
      %3465 = vmatprep.subr.bf16.mxu0 0
      %3466 = vmatpush1.bf16.msra.mxu0 0
      %3467 = vmatprep.subr.bf16.mxu0 0
      %3468 = vmatpush1.bf16.msra.mxu0 0
      %3469 = vmatprep.subr.bf16.mxu0 0
      %3470 = vmatpush1.bf16.msra.mxu0 0
      %3471 = vmatprep.subr.bf16.mxu0 0
      %3472 = vmatpush1.bf16.msra.mxu0 0
      %3473 = vmatprep.subr.bf16.mxu0 0
      %3474 = vmatpush1.bf16.msra.mxu0 0
      %3475 = vmatprep.subr.bf16.mxu0 0
      %3476 = vmatpush1.bf16.msra.mxu0 0
      %3477 = vmatprep.subr.bf16.mxu0 0
      %3478 = vmatpush1.bf16.msra.mxu0 0
      %3479 = vmatprep.subr.bf16.mxu0 0
      %3480 = vmatpush1.bf16.msra.mxu0 0
      %3481 = vmatprep.subr.bf16.mxu0 0
      %3482 = vmatpush1.bf16.msra.mxu0 0
      %3483 = vmatprep.subr.bf16.mxu0 0
      %3484 = vmatpush1.bf16.msra.mxu0 0
      %3485 = vmatprep.subr.bf16.mxu0 0
      %3486 = vmatpush1.bf16.msra.mxu0 0
      %3487 = vmatprep.subr.bf16.mxu0 0
      %3488 = vmatpush1.bf16.msra.mxu0 0
      %3489 = vmatprep.subr.bf16.mxu0 0
      %3490 = vmatpush1.bf16.msra.mxu0 0
      %3491 = vmatprep.subr.bf16.mxu0 0
      %3492 = vmatpush1.bf16.msra.mxu0 0
      %3493 = vmatprep.subr.bf16.mxu0 0
      %3494 = vmatpush1.bf16.msra.mxu0 0
      %3495 = vmatprep.mubr.bf16.mxu0 0
      %3496 = vmatmul.mubr.bf16.gmra.mrb[0].mxu0 %v3461
      %v3497 = vpop.f32.mrb[0].mxu0
      %v3498 = vadd.f32 0.0, %v3497
      %v3499 = vpop.f32.mrb[0].mxu0
      %v3500 = vpop.f32.mrb[0].mxu0
      %v3501 = vadd.f32 0.0, %v3500
      %v3502 = vpop.f32.mrb[0].mxu0
      %3503 = vdwg.mxu0
      %3504 = vrot.lane.b32.xlu0 %v545, 112
      %v3505 = vpop.permute.xlu0 %3504
      %v3508 = vsel %vm1364, %v3120, 0
      %3510 = vmatprep.subr.bf16.mxu0 0
      %3511 = vmatpush1.bf16.msra.mxu0 %v3505
      %3512 = vmatprep.subr.bf16.mxu0 0
      %3513 = vmatpush1.bf16.msra.mxu0 0
      %3514 = vmatprep.subr.bf16.mxu0 0
      %3515 = vmatpush1.bf16.msra.mxu0 0
      %3516 = vmatprep.subr.bf16.mxu0 0
      %3517 = vmatpush1.bf16.msra.mxu0 0
      %3518 = vmatprep.subr.bf16.mxu0 0
      %3519 = vmatpush1.bf16.msra.mxu0 0
      %3520 = vmatprep.subr.bf16.mxu0 0
      %3521 = vmatpush1.bf16.msra.mxu0 0
      %3522 = vmatprep.subr.bf16.mxu0 0
      %3523 = vmatpush1.bf16.msra.mxu0 0
      %3524 = vmatprep.subr.bf16.mxu0 0
      %3525 = vmatpush1.bf16.msra.mxu0 0
      %3526 = vmatprep.subr.bf16.mxu0 0
      %3527 = vmatpush1.bf16.msra.mxu0 0
      %3528 = vmatprep.subr.bf16.mxu0 0
      %3529 = vmatpush1.bf16.msra.mxu0 0
      %3530 = vmatprep.subr.bf16.mxu0 0
      %3531 = vmatpush1.bf16.msra.mxu0 0
      %3532 = vmatprep.subr.bf16.mxu0 0
      %3533 = vmatpush1.bf16.msra.mxu0 0
      %3534 = vmatprep.subr.bf16.mxu0 0
      %3535 = vmatpush1.bf16.msra.mxu0 0
      %3536 = vmatprep.subr.bf16.mxu0 0
      %3537 = vmatpush1.bf16.msra.mxu0 0
      %3538 = vmatprep.subr.bf16.mxu0 0
      %3539 = vmatpush1.bf16.msra.mxu0 0
      %3540 = vmatprep.subr.bf16.mxu0 0
      %3541 = vmatpush1.bf16.msra.mxu0 0
      %3542 = vmatprep.mubr.bf16.mxu0 0
      %3543 = vmatmul.mubr.bf16.gmra.mrb[0].mxu0 %v3508
      %v3544 = vpop.f32.mrb[0].mxu0
      %v3545 = vadd.f32 0.0, %v3544
      %v3546 = vpop.f32.mrb[0].mxu0
      %v3547 = vpop.f32.mrb[0].mxu0
      %v3548 = vadd.f32 0.0, %v3547
      %v3549 = vpop.f32.mrb[0].mxu0
      %3550 = vdwg.mxu0
      %3551 = vrot.lane.b32.xlu0 %v546, 112
      %v3552 = vpop.permute.xlu0 %3551
      %v3555 = vsel %vm1364, %v3121, 0
      %3557 = vmatprep.subr.bf16.mxu0 0
      %3558 = vmatpush1.bf16.msra.mxu0 %v3552
      %3559 = vmatprep.subr.bf16.mxu0 0
      %3560 = vmatpush1.bf16.msra.mxu0 0
      %3561 = vmatprep.subr.bf16.mxu0 0
      %3562 = vmatpush1.bf16.msra.mxu0 0
      %3563 = vmatprep.subr.bf16.mxu0 0
      %3564 = vmatpush1.bf16.msra.mxu0 0
      %3565 = vmatprep.subr.bf16.mxu0 0
      %3566 = vmatpush1.bf16.msra.mxu0 0
      %3567 = vmatprep.subr.bf16.mxu0 0
      %3568 = vmatpush1.bf16.msra.mxu0 0
      %3569 = vmatprep.subr.bf16.mxu0 0
      %3570 = vmatpush1.bf16.msra.mxu0 0
      %3571 = vmatprep.subr.bf16.mxu0 0
      %3572 = vmatpush1.bf16.msra.mxu0 0
      %3573 = vmatprep.subr.bf16.mxu0 0
      %3574 = vmatpush1.bf16.msra.mxu0 0
      %3575 = vmatprep.subr.bf16.mxu0 0
      %3576 = vmatpush1.bf16.msra.mxu0 0
      %3577 = vmatprep.subr.bf16.mxu0 0
      %3578 = vmatpush1.bf16.msra.mxu0 0
      %3579 = vmatprep.subr.bf16.mxu0 0
      %3580 = vmatpush1.bf16.msra.mxu0 0
      %3581 = vmatprep.subr.bf16.mxu0 0
      %3582 = vmatpush1.bf16.msra.mxu0 0
      %3583 = vmatprep.subr.bf16.mxu0 0
      %3584 = vmatpush1.bf16.msra.mxu0 0
      %3585 = vmatprep.subr.bf16.mxu0 0
      %3586 = vmatpush1.bf16.msra.mxu0 0
      %3587 = vmatprep.subr.bf16.mxu0 0
      %3588 = vmatpush1.bf16.msra.mxu0 0
      %3589 = vmatprep.mubr.bf16.mxu0 0
      %3590 = vmatmul.mubr.bf16.gmra.mrb[0].mxu0 %v3555
      %v3591 = vpop.f32.mrb[0].mxu0
      %v3592 = vadd.f32 0.0, %v3591
      %v3593 = vpop.f32.mrb[0].mxu0
      %v3594 = vpop.f32.mrb[0].mxu0
      %v3595 = vadd.f32 0.0, %v3594
      %v3596 = vpop.f32.mrb[0].mxu0
      %3597 = vdwg.mxu0
      %3598 = vrot.lane.b32.xlu0 %v547, 112
      %v3599 = vpop.permute.xlu0 %3598
      %v3602 = vsel %vm1364, %v3122, 0
      %3604 = vmatprep.subr.bf16.mxu0 0
      %3605 = vmatpush1.bf16.msra.mxu0 %v3599
      %3606 = vmatprep.subr.bf16.mxu0 0
      %3607 = vmatpush1.bf16.msra.mxu0 0
      %3608 = vmatprep.subr.bf16.mxu0 0
      %3609 = vmatpush1.bf16.msra.mxu0 0
      %3610 = vmatprep.subr.bf16.mxu0 0
      %3611 = vmatpush1.bf16.msra.mxu0 0
      %3612 = vmatprep.subr.bf16.mxu0 0
      %3613 = vmatpush1.bf16.msra.mxu0 0
      %3614 = vmatprep.subr.bf16.mxu0 0
      %3615 = vmatpush1.bf16.msra.mxu0 0
      %3616 = vmatprep.subr.bf16.mxu0 0
      %3617 = vmatpush1.bf16.msra.mxu0 0
      %3618 = vmatprep.subr.bf16.mxu0 0
      %3619 = vmatpush1.bf16.msra.mxu0 0
      %3620 = vmatprep.subr.bf16.mxu0 0
      %3621 = vmatpush1.bf16.msra.mxu0 0
      %3622 = vmatprep.subr.bf16.mxu0 0
      %3623 = vmatpush1.bf16.msra.mxu0 0
      %3624 = vmatprep.subr.bf16.mxu0 0
      %3625 = vmatpush1.bf16.msra.mxu0 0
      %3626 = vmatprep.subr.bf16.mxu0 0
      %3627 = vmatpush1.bf16.msra.mxu0 0
      %3628 = vmatprep.subr.bf16.mxu0 0
      %3629 = vmatpush1.bf16.msra.mxu0 0
      %3630 = vmatprep.subr.bf16.mxu0 0
      %3631 = vmatpush1.bf16.msra.mxu0 0
      %3632 = vmatprep.subr.bf16.mxu0 0
      %3633 = vmatpush1.bf16.msra.mxu0 0
      %3634 = vmatprep.subr.bf16.mxu0 0
      %3635 = vmatpush1.bf16.msra.mxu0 0
      %3636 = vmatprep.mubr.bf16.mxu0 0
      %3637 = vmatmul.mubr.bf16.gmra.mrb[0].mxu0 %v3602
      %v3638 = vpop.f32.mrb[0].mxu0
      %v3639 = vadd.f32 0.0, %v3638
      %v3640 = vpop.f32.mrb[0].mxu0
      %v3641 = vpop.f32.mrb[0].mxu0
      %v3642 = vadd.f32 0.0, %v3641
      %v3643 = vpop.f32.mrb[0].mxu0
      %3644 = vdwg.mxu0
      %3645 = vrot.lane.b32.xlu0 %v548, 112
      %v3646 = vpop.permute.xlu0 %3645
      %v3649 = vsel %vm1364, %v3123, 0
      %3651 = vmatprep.subr.bf16.mxu0 0
      %3652 = vmatpush1.bf16.msra.mxu0 %v3646
      %3653 = vmatprep.subr.bf16.mxu0 0
      %3654 = vmatpush1.bf16.msra.mxu0 0
      %3655 = vmatprep.subr.bf16.mxu0 0
      %3656 = vmatpush1.bf16.msra.mxu0 0
      %3657 = vmatprep.subr.bf16.mxu0 0
      %3658 = vmatpush1.bf16.msra.mxu0 0
      %3659 = vmatprep.subr.bf16.mxu0 0
      %3660 = vmatpush1.bf16.msra.mxu0 0
      %3661 = vmatprep.subr.bf16.mxu0 0
      %3662 = vmatpush1.bf16.msra.mxu0 0
      %3663 = vmatprep.subr.bf16.mxu0 0
      %3664 = vmatpush1.bf16.msra.mxu0 0
      %3665 = vmatprep.subr.bf16.mxu0 0
      %3666 = vmatpush1.bf16.msra.mxu0 0
      %3667 = vmatprep.subr.bf16.mxu0 0
      %3668 = vmatpush1.bf16.msra.mxu0 0
      %3669 = vmatprep.subr.bf16.mxu0 0
      %3670 = vmatpush1.bf16.msra.mxu0 0
      %3671 = vmatprep.subr.bf16.mxu0 0
      %3672 = vmatpush1.bf16.msra.mxu0 0
      %3673 = vmatprep.subr.bf16.mxu0 0
      %3674 = vmatpush1.bf16.msra.mxu0 0
      %3675 = vmatprep.subr.bf16.mxu0 0
      %3676 = vmatpush1.bf16.msra.mxu0 0
      %3677 = vmatprep.subr.bf16.mxu0 0
      %3678 = vmatpush1.bf16.msra.mxu0 0
      %3679 = vmatprep.subr.bf16.mxu0 0
      %3680 = vmatpush1.bf16.msra.mxu0 0
      %3681 = vmatprep.subr.bf16.mxu0 0
      %3682 = vmatpush1.bf16.msra.mxu0 0
      %3683 = vmatprep.mubr.bf16.mxu0 0
      %3684 = vmatmul.mubr.bf16.gmra.mrb[0].mxu0 %v3649
      %v3685 = vpop.f32.mrb[0].mxu0
      %v3686 = vadd.f32 0.0, %v3685
      %v3687 = vpop.f32.mrb[0].mxu0
      %v3688 = vpop.f32.mrb[0].mxu0
      %v3689 = vadd.f32 0.0, %v3688
      %v3690 = vpop.f32.mrb[0].mxu0
      %3691 = vdwg.mxu0
      %3692 = vrot.lane.b32.xlu0 %v549, 112
      %v3693 = vpop.permute.xlu0 %3692
      %v3696 = vsel %vm1364, %v3124, 0
      %3698 = vmatprep.subr.bf16.mxu0 0
      %3699 = vmatpush1.bf16.msra.mxu0 %v3693
      %3700 = vmatprep.subr.bf16.mxu0 0
      %3701 = vmatpush1.bf16.msra.mxu0 0
      %3702 = vmatprep.subr.bf16.mxu0 0
      %3703 = vmatpush1.bf16.msra.mxu0 0
      %3704 = vmatprep.subr.bf16.mxu0 0
      %3705 = vmatpush1.bf16.msra.mxu0 0
      %3706 = vmatprep.subr.bf16.mxu0 0
      %3707 = vmatpush1.bf16.msra.mxu0 0
      %3708 = vmatprep.subr.bf16.mxu0 0
      %3709 = vmatpush1.bf16.msra.mxu0 0
      %3710 = vmatprep.subr.bf16.mxu0 0
      %3711 = vmatpush1.bf16.msra.mxu0 0
      %3712 = vmatprep.subr.bf16.mxu0 0
      %3713 = vmatpush1.bf16.msra.mxu0 0
      %3714 = vmatprep.subr.bf16.mxu0 0
      %3715 = vmatpush1.bf16.msra.mxu0 0
      %3716 = vmatprep.subr.bf16.mxu0 0
      %3717 = vmatpush1.bf16.msra.mxu0 0
      %3718 = vmatprep.subr.bf16.mxu0 0
      %3719 = vmatpush1.bf16.msra.mxu0 0
      %3720 = vmatprep.subr.bf16.mxu0 0
      %3721 = vmatpush1.bf16.msra.mxu0 0
      %3722 = vmatprep.subr.bf16.mxu0 0
      %3723 = vmatpush1.bf16.msra.mxu0 0
      %3724 = vmatprep.subr.bf16.mxu0 0
      %3725 = vmatpush1.bf16.msra.mxu0 0
      %3726 = vmatprep.subr.bf16.mxu0 0
      %3727 = vmatpush1.bf16.msra.mxu0 0
      %3728 = vmatprep.subr.bf16.mxu0 0
      %3729 = vmatpush1.bf16.msra.mxu0 0
      %3730 = vmatprep.mubr.bf16.mxu0 0
      %3731 = vmatmul.mubr.bf16.gmra.mrb[0].mxu0 %v3696
      %v3732 = vpop.f32.mrb[0].mxu0
      %v3733 = vadd.f32 0.0, %v3732
      %v3734 = vpop.f32.mrb[0].mxu0
      %v3735 = vpop.f32.mrb[0].mxu0
      %v3736 = vadd.f32 0.0, %v3735
      %v3737 = vpop.f32.mrb[0].mxu0
      %3738 = vdwg.mxu0
      %3739 = vrot.lane.b32.xlu0 %v550, 112
      %v3740 = vpop.permute.xlu0 %3739
      %v3743 = vsel %vm1364, %v3125, 0
      %3745 = vmatprep.subr.bf16.mxu0 0
      %3746 = vmatpush1.bf16.msra.mxu0 %v3740
      %3747 = vmatprep.subr.bf16.mxu0 0
      %3748 = vmatpush1.bf16.msra.mxu0 0
      %3749 = vmatprep.subr.bf16.mxu0 0
      %3750 = vmatpush1.bf16.msra.mxu0 0
      %3751 = vmatprep.subr.bf16.mxu0 0
      %3752 = vmatpush1.bf16.msra.mxu0 0
      %3753 = vmatprep.subr.bf16.mxu0 0
      %3754 = vmatpush1.bf16.msra.mxu0 0
      %3755 = vmatprep.subr.bf16.mxu0 0
      %3756 = vmatpush1.bf16.msra.mxu0 0
      %3757 = vmatprep.subr.bf16.mxu0 0
      %3758 = vmatpush1.bf16.msra.mxu0 0
      %3759 = vmatprep.subr.bf16.mxu0 0
      %3760 = vmatpush1.bf16.msra.mxu0 0
      %3761 = vmatprep.subr.bf16.mxu0 0
      %3762 = vmatpush1.bf16.msra.mxu0 0
      %3763 = vmatprep.subr.bf16.mxu0 0
      %3764 = vmatpush1.bf16.msra.mxu0 0
      %3765 = vmatprep.subr.bf16.mxu0 0
      %3766 = vmatpush1.bf16.msra.mxu0 0
      %3767 = vmatprep.subr.bf16.mxu0 0
      %3768 = vmatpush1.bf16.msra.mxu0 0
      %3769 = vmatprep.subr.bf16.mxu0 0
      %3770 = vmatpush1.bf16.msra.mxu0 0
      %3771 = vmatprep.subr.bf16.mxu0 0
      %3772 = vmatpush1.bf16.msra.mxu0 0
      %3773 = vmatprep.subr.bf16.mxu0 0
      %3774 = vmatpush1.bf16.msra.mxu0 0
      %3775 = vmatprep.subr.bf16.mxu0 0
      %3776 = vmatpush1.bf16.msra.mxu0 0
      %3777 = vmatprep.mubr.bf16.mxu0 0
      %3778 = vmatmul.mubr.bf16.gmra.mrb[0].mxu0 %v3743
      %v3779 = vpop.f32.mrb[0].mxu0
      %v3780 = vadd.f32 0.0, %v3779
      %v3781 = vpop.f32.mrb[0].mxu0
      %v3782 = vpop.f32.mrb[0].mxu0
      %v3783 = vadd.f32 0.0, %v3782
      %v3784 = vpop.f32.mrb[0].mxu0
      %3785 = vdwg.mxu0
      %3786 = vrot.lane.b32.xlu0 %v551, 112
      %v3787 = vpop.permute.xlu0 %3786
      %v3790 = vsel %vm1364, %v3126, 0
      %3792 = vmatprep.subr.bf16.mxu0 0
      %3793 = vmatpush1.bf16.msra.mxu0 %v3787
      %3794 = vmatprep.subr.bf16.mxu0 0
      %3795 = vmatpush1.bf16.msra.mxu0 0
      %3796 = vmatprep.subr.bf16.mxu0 0
      %3797 = vmatpush1.bf16.msra.mxu0 0
      %3798 = vmatprep.subr.bf16.mxu0 0
      %3799 = vmatpush1.bf16.msra.mxu0 0
      %3800 = vmatprep.subr.bf16.mxu0 0
      %3801 = vmatpush1.bf16.msra.mxu0 0
      %3802 = vmatprep.subr.bf16.mxu0 0
      %3803 = vmatpush1.bf16.msra.mxu0 0
      %3804 = vmatprep.subr.bf16.mxu0 0
      %3805 = vmatpush1.bf16.msra.mxu0 0
      %3806 = vmatprep.subr.bf16.mxu0 0
      %3807 = vmatpush1.bf16.msra.mxu0 0
      %3808 = vmatprep.subr.bf16.mxu0 0
      %3809 = vmatpush1.bf16.msra.mxu0 0
      %3810 = vmatprep.subr.bf16.mxu0 0
      %3811 = vmatpush1.bf16.msra.mxu0 0
      %3812 = vmatprep.subr.bf16.mxu0 0
      %3813 = vmatpush1.bf16.msra.mxu0 0
      %3814 = vmatprep.subr.bf16.mxu0 0
      %3815 = vmatpush1.bf16.msra.mxu0 0
      %3816 = vmatprep.subr.bf16.mxu0 0
      %3817 = vmatpush1.bf16.msra.mxu0 0
      %3818 = vmatprep.subr.bf16.mxu0 0
      %3819 = vmatpush1.bf16.msra.mxu0 0
      %3820 = vmatprep.subr.bf16.mxu0 0
      %3821 = vmatpush1.bf16.msra.mxu0 0
      %3822 = vmatprep.subr.bf16.mxu0 0
      %3823 = vmatpush1.bf16.msra.mxu0 0
      %3824 = vmatprep.mubr.bf16.mxu0 0
      %3825 = vmatmul.mubr.bf16.gmra.mrb[0].mxu0 %v3790
      %v3826 = vpop.f32.mrb[0].mxu0
      %v3827 = vadd.f32 0.0, %v3826
      %v3828 = vpop.f32.mrb[0].mxu0
      %v3829 = vpop.f32.mrb[0].mxu0
      %v3830 = vadd.f32 0.0, %v3829
      %v3831 = vpop.f32.mrb[0].mxu0
      %3832 = vdwg.mxu0
      %3833 = vrot.lane.b32.xlu0 %v552, 112
      %v3834 = vpop.permute.xlu0 %3833
      %v3837 = vsel %vm1364, %v3127, 0
      %3839 = vmatprep.subr.bf16.mxu0 0
      %3840 = vmatpush1.bf16.msra.mxu0 %v3834
      %3841 = vmatprep.subr.bf16.mxu0 0
      %3842 = vmatpush1.bf16.msra.mxu0 0
      %3843 = vmatprep.subr.bf16.mxu0 0
      %3844 = vmatpush1.bf16.msra.mxu0 0
      %3845 = vmatprep.subr.bf16.mxu0 0
      %3846 = vmatpush1.bf16.msra.mxu0 0
      %3847 = vmatprep.subr.bf16.mxu0 0
      %3848 = vmatpush1.bf16.msra.mxu0 0
      %3849 = vmatprep.subr.bf16.mxu0 0
      %3850 = vmatpush1.bf16.msra.mxu0 0
      %3851 = vmatprep.subr.bf16.mxu0 0
      %3852 = vmatpush1.bf16.msra.mxu0 0
      %3853 = vmatprep.subr.bf16.mxu0 0
      %3854 = vmatpush1.bf16.msra.mxu0 0
      %3855 = vmatprep.subr.bf16.mxu0 0
      %3856 = vmatpush1.bf16.msra.mxu0 0
      %3857 = vmatprep.subr.bf16.mxu0 0
      %3858 = vmatpush1.bf16.msra.mxu0 0
      %3859 = vmatprep.subr.bf16.mxu0 0
      %3860 = vmatpush1.bf16.msra.mxu0 0
      %3861 = vmatprep.subr.bf16.mxu0 0
      %3862 = vmatpush1.bf16.msra.mxu0 0
      %3863 = vmatprep.subr.bf16.mxu0 0
      %3864 = vmatpush1.bf16.msra.mxu0 0
      %3865 = vmatprep.subr.bf16.mxu0 0
      %3866 = vmatpush1.bf16.msra.mxu0 0
      %3867 = vmatprep.subr.bf16.mxu0 0
      %3868 = vmatpush1.bf16.msra.mxu0 0
      %3869 = vmatprep.subr.bf16.mxu0 0
      %3870 = vmatpush1.bf16.msra.mxu0 0
      %3871 = vmatprep.mubr.bf16.mxu0 0
      %3872 = vmatmul.mubr.bf16.gmra.mrb[0].mxu0 %v3837
      %v3873 = vpop.f32.mrb[0].mxu0
      %v3874 = vadd.f32 0.0, %v3873
      %v3875 = vpop.f32.mrb[0].mxu0
      %v3876 = vpop.f32.mrb[0].mxu0
      %v3877 = vadd.f32 0.0, %v3876
      %v3878 = vpop.f32.mrb[0].mxu0
      %3879 = vdwg.mxu0
      %3880 = vrot.lane.b32.xlu0 %v537, 124
      %v3881 = vpop.permute.xlu0 %3880
      %3882 = vrot.lane.b32.xlu0 %v537, 116
      %v3883 = vpop.permute.xlu0 %3882
      %v3885 = vsel %vm1962, %v3881, 0
      %v3888 = vsel %vm1962, %v3883, 0
      %3890 = vmatprep.subr.bf16.mxu0 0
      %3891 = vmatpush1.bf16.xpose.msra.mxu0 %v3888
      %3892 = vmatprep.subr.bf16.mxu0 0
      %3893 = vmatpush1.bf16.xpose.msra.mxu0 0
      %3894 = vmatprep.subr.bf16.mxu0 0
      %3895 = vmatpush1.bf16.xpose.msra.mxu0 0
      %3896 = vmatprep.subr.bf16.mxu0 0
      %3897 = vmatpush1.bf16.xpose.msra.mxu0 0
      %3898 = vmatprep.subr.bf16.mxu0 0
      %3899 = vmatpush1.bf16.xpose.msra.mxu0 0
      %3900 = vmatprep.subr.bf16.mxu0 0
      %3901 = vmatpush1.bf16.xpose.msra.mxu0 0
      %3902 = vmatprep.subr.bf16.mxu0 0
      %3903 = vmatpush1.bf16.xpose.msra.mxu0 0
      %3904 = vmatprep.subr.bf16.mxu0 0
      %3905 = vmatpush1.bf16.xpose.msra.mxu0 0
      %3906 = vmatprep.subr.bf16.mxu0 0
      %3907 = vmatpush1.bf16.xpose.msra.mxu0 0
      %3908 = vmatprep.subr.bf16.mxu0 0
      %3909 = vmatpush1.bf16.xpose.msra.mxu0 0
      %3910 = vmatprep.subr.bf16.mxu0 0
      %3911 = vmatpush1.bf16.xpose.msra.mxu0 0
      %3912 = vmatprep.subr.bf16.mxu0 0
      %3913 = vmatpush1.bf16.xpose.msra.mxu0 0
      %3914 = vmatprep.subr.bf16.mxu0 0
      %3915 = vmatpush1.bf16.xpose.msra.mxu0 0
      %3916 = vmatprep.subr.bf16.mxu0 0
      %3917 = vmatpush1.bf16.xpose.msra.mxu0 0
      %3918 = vmatprep.subr.bf16.mxu0 0
      %3919 = vmatpush1.bf16.xpose.msra.mxu0 0
      %3920 = vmatprep.subr.bf16.mxu0 0
      %3921 = vmatpush1.bf16.xpose.msra.mxu0 0
      %3922 = vmatprep.mubr.bf16.mxu0 0
      %3923 = vmatmul.mubr.bf16.gmra.mrb[0].mxu0 %v3885
      %v3924 = vpop.f32.mrb[0].mxu0
      %v3925 = vadd.f32 0.0, %v3924
      %v3926 = vpop.f32.mrb[0].mxu0
      %v3927 = vpop.f32.mrb[0].mxu0
      %v3928 = vadd.f32 0.0, %v3927
      %v3929 = vpop.f32.mrb[0].mxu0
      %3930 = vdwg.mxu0
      %3931 = vrot.lane.b32.xlu0 %v538, 124
      %v3932 = vpop.permute.xlu0 %3931
      %3933 = vrot.lane.b32.xlu0 %v538, 116
      %v3934 = vpop.permute.xlu0 %3933
      %v3936 = vsel %vm1962, %v3932, 0
      %v3939 = vsel %vm1962, %v3934, 0
      %3941 = vmatprep.subr.bf16.mxu0 0
      %3942 = vmatpush1.bf16.xpose.msra.mxu0 %v3939
      %3943 = vmatprep.subr.bf16.mxu0 0
      %3944 = vmatpush1.bf16.xpose.msra.mxu0 0
      %3945 = vmatprep.subr.bf16.mxu0 0
      %3946 = vmatpush1.bf16.xpose.msra.mxu0 0
      %3947 = vmatprep.subr.bf16.mxu0 0
      %3948 = vmatpush1.bf16.xpose.msra.mxu0 0
      %3949 = vmatprep.subr.bf16.mxu0 0
      %3950 = vmatpush1.bf16.xpose.msra.mxu0 0
      %3951 = vmatprep.subr.bf16.mxu0 0
      %3952 = vmatpush1.bf16.xpose.msra.mxu0 0
      %3953 = vmatprep.subr.bf16.mxu0 0
      %3954 = vmatpush1.bf16.xpose.msra.mxu0 0
      %3955 = vmatprep.subr.bf16.mxu0 0
      %3956 = vmatpush1.bf16.xpose.msra.mxu0 0
      %3957 = vmatprep.subr.bf16.mxu0 0
      %3958 = vmatpush1.bf16.xpose.msra.mxu0 0
      %3959 = vmatprep.subr.bf16.mxu0 0
      %3960 = vmatpush1.bf16.xpose.msra.mxu0 0
      %3961 = vmatprep.subr.bf16.mxu0 0
      %3962 = vmatpush1.bf16.xpose.msra.mxu0 0
      %3963 = vmatprep.subr.bf16.mxu0 0
      %3964 = vmatpush1.bf16.xpose.msra.mxu0 0
      %3965 = vmatprep.subr.bf16.mxu0 0
      %3966 = vmatpush1.bf16.xpose.msra.mxu0 0
      %3967 = vmatprep.subr.bf16.mxu0 0
      %3968 = vmatpush1.bf16.xpose.msra.mxu0 0
      %3969 = vmatprep.subr.bf16.mxu0 0
      %3970 = vmatpush1.bf16.xpose.msra.mxu0 0
      %3971 = vmatprep.subr.bf16.mxu0 0
      %3972 = vmatpush1.bf16.xpose.msra.mxu0 0
      %3973 = vmatprep.mubr.bf16.mxu0 0
      %3974 = vmatmul.mubr.bf16.gmra.mrb[0].mxu0 %v3936
      %v3975 = vpop.f32.mrb[0].mxu0
      %v3976 = vadd.f32 0.0, %v3975
      %v3977 = vpop.f32.mrb[0].mxu0
      %v3978 = vpop.f32.mrb[0].mxu0
      %v3979 = vadd.f32 0.0, %v3978
      %v3980 = vpop.f32.mrb[0].mxu0
      %3981 = vdwg.mxu0
      %3982 = vrot.lane.b32.xlu0 %v539, 124
      %v3983 = vpop.permute.xlu0 %3982
      %3984 = vrot.lane.b32.xlu0 %v539, 116
      %v3985 = vpop.permute.xlu0 %3984
      %v3987 = vsel %vm1962, %v3983, 0
      %v3990 = vsel %vm1962, %v3985, 0
      %3992 = vmatprep.subr.bf16.mxu0 0
      %3993 = vmatpush1.bf16.xpose.msra.mxu0 %v3990
      %3994 = vmatprep.subr.bf16.mxu0 0
      %3995 = vmatpush1.bf16.xpose.msra.mxu0 0
      %3996 = vmatprep.subr.bf16.mxu0 0
      %3997 = vmatpush1.bf16.xpose.msra.mxu0 0
      %3998 = vmatprep.subr.bf16.mxu0 0
      %3999 = vmatpush1.bf16.xpose.msra.mxu0 0
      %4000 = vmatprep.subr.bf16.mxu0 0
      %4001 = vmatpush1.bf16.xpose.msra.mxu0 0
      %4002 = vmatprep.subr.bf16.mxu0 0
      %4003 = vmatpush1.bf16.xpose.msra.mxu0 0
      %4004 = vmatprep.subr.bf16.mxu0 0
      %4005 = vmatpush1.bf16.xpose.msra.mxu0 0
      %4006 = vmatprep.subr.bf16.mxu0 0
      %4007 = vmatpush1.bf16.xpose.msra.mxu0 0
      %4008 = vmatprep.subr.bf16.mxu0 0
      %4009 = vmatpush1.bf16.xpose.msra.mxu0 0
      %4010 = vmatprep.subr.bf16.mxu0 0
      %4011 = vmatpush1.bf16.xpose.msra.mxu0 0
      %4012 = vmatprep.subr.bf16.mxu0 0
      %4013 = vmatpush1.bf16.xpose.msra.mxu0 0
      %4014 = vmatprep.subr.bf16.mxu0 0
      %4015 = vmatpush1.bf16.xpose.msra.mxu0 0
      %4016 = vmatprep.subr.bf16.mxu0 0
      %4017 = vmatpush1.bf16.xpose.msra.mxu0 0
      %4018 = vmatprep.subr.bf16.mxu0 0
      %4019 = vmatpush1.bf16.xpose.msra.mxu0 0
      %4020 = vmatprep.subr.bf16.mxu0 0
      %4021 = vmatpush1.bf16.xpose.msra.mxu0 0
      %4022 = vmatprep.subr.bf16.mxu0 0
      %4023 = vmatpush1.bf16.xpose.msra.mxu0 0
      %4024 = vmatprep.mubr.bf16.mxu0 0
      %4025 = vmatmul.mubr.bf16.gmra.mrb[0].mxu0 %v3987
      %v4026 = vpop.f32.mrb[0].mxu0
      %v4027 = vadd.f32 0.0, %v4026
      %v4028 = vpop.f32.mrb[0].mxu0
      %v4029 = vpop.f32.mrb[0].mxu0
      %v4030 = vadd.f32 0.0, %v4029
      %v4031 = vpop.f32.mrb[0].mxu0
      %4032 = vdwg.mxu0
      %4033 = vrot.lane.b32.xlu0 %v540, 124
      %v4034 = vpop.permute.xlu0 %4033
      %4035 = vrot.lane.b32.xlu0 %v540, 116
      %v4036 = vpop.permute.xlu0 %4035
      %v4038 = vsel %vm1962, %v4034, 0
      %v4041 = vsel %vm1962, %v4036, 0
      %4043 = vmatprep.subr.bf16.mxu0 0
      %4044 = vmatpush1.bf16.xpose.msra.mxu0 %v4041
      %4045 = vmatprep.subr.bf16.mxu0 0
      %4046 = vmatpush1.bf16.xpose.msra.mxu0 0
      %4047 = vmatprep.subr.bf16.mxu0 0
      %4048 = vmatpush1.bf16.xpose.msra.mxu0 0
      %4049 = vmatprep.subr.bf16.mxu0 0
      %4050 = vmatpush1.bf16.xpose.msra.mxu0 0
      %4051 = vmatprep.subr.bf16.mxu0 0
      %4052 = vmatpush1.bf16.xpose.msra.mxu0 0
      %4053 = vmatprep.subr.bf16.mxu0 0
      %4054 = vmatpush1.bf16.xpose.msra.mxu0 0
      %4055 = vmatprep.subr.bf16.mxu0 0
      %4056 = vmatpush1.bf16.xpose.msra.mxu0 0
      %4057 = vmatprep.subr.bf16.mxu0 0
      %4058 = vmatpush1.bf16.xpose.msra.mxu0 0
      %4059 = vmatprep.subr.bf16.mxu0 0
      %4060 = vmatpush1.bf16.xpose.msra.mxu0 0
      %4061 = vmatprep.subr.bf16.mxu0 0
      %4062 = vmatpush1.bf16.xpose.msra.mxu0 0
      %4063 = vmatprep.subr.bf16.mxu0 0
      %4064 = vmatpush1.bf16.xpose.msra.mxu0 0
      %4065 = vmatprep.subr.bf16.mxu0 0
      %4066 = vmatpush1.bf16.xpose.msra.mxu0 0
      %4067 = vmatprep.subr.bf16.mxu0 0
      %4068 = vmatpush1.bf16.xpose.msra.mxu0 0
      %4069 = vmatprep.subr.bf16.mxu0 0
      %4070 = vmatpush1.bf16.xpose.msra.mxu0 0
      %4071 = vmatprep.subr.bf16.mxu0 0
      %4072 = vmatpush1.bf16.xpose.msra.mxu0 0
      %4073 = vmatprep.subr.bf16.mxu0 0
      %4074 = vmatpush1.bf16.xpose.msra.mxu0 0
      %4075 = vmatprep.mubr.bf16.mxu0 0
      %4076 = vmatmul.mubr.bf16.gmra.mrb[0].mxu0 %v4038
      %v4077 = vpop.f32.mrb[0].mxu0
      %v4078 = vadd.f32 0.0, %v4077
      %v4079 = vpop.f32.mrb[0].mxu0
      %v4080 = vpop.f32.mrb[0].mxu0
      %v4081 = vadd.f32 0.0, %v4080
      %v4082 = vpop.f32.mrb[0].mxu0
      %4083 = vdwg.mxu0
      %4084 = vrot.lane.b32.xlu0 %v541, 124
      %v4085 = vpop.permute.xlu0 %4084
      %4086 = vrot.lane.b32.xlu0 %v541, 116
      %v4087 = vpop.permute.xlu0 %4086
      %v4089 = vsel %vm1962, %v4085, 0
      %v4092 = vsel %vm1962, %v4087, 0
      %4094 = vmatprep.subr.bf16.mxu0 0
      %4095 = vmatpush1.bf16.xpose.msra.mxu0 %v4092
      %4096 = vmatprep.subr.bf16.mxu0 0
      %4097 = vmatpush1.bf16.xpose.msra.mxu0 0
      %4098 = vmatprep.subr.bf16.mxu0 0
      %4099 = vmatpush1.bf16.xpose.msra.mxu0 0
      %4100 = vmatprep.subr.bf16.mxu0 0
      %4101 = vmatpush1.bf16.xpose.msra.mxu0 0
      %4102 = vmatprep.subr.bf16.mxu0 0
      %4103 = vmatpush1.bf16.xpose.msra.mxu0 0
      %4104 = vmatprep.subr.bf16.mxu0 0
      %4105 = vmatpush1.bf16.xpose.msra.mxu0 0
      %4106 = vmatprep.subr.bf16.mxu0 0
      %4107 = vmatpush1.bf16.xpose.msra.mxu0 0
      %4108 = vmatprep.subr.bf16.mxu0 0
      %4109 = vmatpush1.bf16.xpose.msra.mxu0 0
      %4110 = vmatprep.subr.bf16.mxu0 0
      %4111 = vmatpush1.bf16.xpose.msra.mxu0 0
      %4112 = vmatprep.subr.bf16.mxu0 0
      %4113 = vmatpush1.bf16.xpose.msra.mxu0 0
      %4114 = vmatprep.subr.bf16.mxu0 0
      %4115 = vmatpush1.bf16.xpose.msra.mxu0 0
      %4116 = vmatprep.subr.bf16.mxu0 0
      %4117 = vmatpush1.bf16.xpose.msra.mxu0 0
      %4118 = vmatprep.subr.bf16.mxu0 0
      %4119 = vmatpush1.bf16.xpose.msra.mxu0 0
      %4120 = vmatprep.subr.bf16.mxu0 0
      %4121 = vmatpush1.bf16.xpose.msra.mxu0 0
      %4122 = vmatprep.subr.bf16.mxu0 0
      %4123 = vmatpush1.bf16.xpose.msra.mxu0 0
      %4124 = vmatprep.subr.bf16.mxu0 0
      %4125 = vmatpush1.bf16.xpose.msra.mxu0 0
      %4126 = vmatprep.mubr.bf16.mxu0 0
      %4127 = vmatmul.mubr.bf16.gmra.mrb[0].mxu0 %v4089
      %v4128 = vpop.f32.mrb[0].mxu0
      %v4129 = vadd.f32 0.0, %v4128
      %v4130 = vpop.f32.mrb[0].mxu0
      %v4131 = vpop.f32.mrb[0].mxu0
      %v4132 = vadd.f32 0.0, %v4131
      %v4133 = vpop.f32.mrb[0].mxu0
      %4134 = vdwg.mxu0
      %4135 = vrot.lane.b32.xlu0 %v542, 124
      %v4136 = vpop.permute.xlu0 %4135
      %4137 = vrot.lane.b32.xlu0 %v542, 116
      %v4138 = vpop.permute.xlu0 %4137
      %v4140 = vsel %vm1962, %v4136, 0
      %v4143 = vsel %vm1962, %v4138, 0
      %4145 = vmatprep.subr.bf16.mxu0 0
      %4146 = vmatpush1.bf16.xpose.msra.mxu0 %v4143
      %4147 = vmatprep.subr.bf16.mxu0 0
      %4148 = vmatpush1.bf16.xpose.msra.mxu0 0
      %4149 = vmatprep.subr.bf16.mxu0 0
      %4150 = vmatpush1.bf16.xpose.msra.mxu0 0
      %4151 = vmatprep.subr.bf16.mxu0 0
      %4152 = vmatpush1.bf16.xpose.msra.mxu0 0
      %4153 = vmatprep.subr.bf16.mxu0 0
      %4154 = vmatpush1.bf16.xpose.msra.mxu0 0
      %4155 = vmatprep.subr.bf16.mxu0 0
      %4156 = vmatpush1.bf16.xpose.msra.mxu0 0
      %4157 = vmatprep.subr.bf16.mxu0 0
      %4158 = vmatpush1.bf16.xpose.msra.mxu0 0
      %4159 = vmatprep.subr.bf16.mxu0 0
      %4160 = vmatpush1.bf16.xpose.msra.mxu0 0
      %4161 = vmatprep.subr.bf16.mxu0 0
      %4162 = vmatpush1.bf16.xpose.msra.mxu0 0
      %4163 = vmatprep.subr.bf16.mxu0 0
      %4164 = vmatpush1.bf16.xpose.msra.mxu0 0
      %4165 = vmatprep.subr.bf16.mxu0 0
      %4166 = vmatpush1.bf16.xpose.msra.mxu0 0
      %4167 = vmatprep.subr.bf16.mxu0 0
      %4168 = vmatpush1.bf16.xpose.msra.mxu0 0
      %4169 = vmatprep.subr.bf16.mxu0 0
      %4170 = vmatpush1.bf16.xpose.msra.mxu0 0
      %4171 = vmatprep.subr.bf16.mxu0 0
      %4172 = vmatpush1.bf16.xpose.msra.mxu0 0
      %4173 = vmatprep.subr.bf16.mxu0 0
      %4174 = vmatpush1.bf16.xpose.msra.mxu0 0
      %4175 = vmatprep.subr.bf16.mxu0 0
      %4176 = vmatpush1.bf16.xpose.msra.mxu0 0
      %4177 = vmatprep.mubr.bf16.mxu0 0
      %4178 = vmatmul.mubr.bf16.gmra.mrb[0].mxu0 %v4140
      %v4179 = vpop.f32.mrb[0].mxu0
      %v4180 = vadd.f32 0.0, %v4179
      %v4181 = vpop.f32.mrb[0].mxu0
      %v4182 = vpop.f32.mrb[0].mxu0
      %v4183 = vadd.f32 0.0, %v4182
      %v4184 = vpop.f32.mrb[0].mxu0
      %4185 = vdwg.mxu0
      %4186 = vrot.lane.b32.xlu0 %v543, 124
      %v4187 = vpop.permute.xlu0 %4186
      %4188 = vrot.lane.b32.xlu0 %v543, 116
      %v4189 = vpop.permute.xlu0 %4188
      %v4191 = vsel %vm1962, %v4187, 0
      %v4194 = vsel %vm1962, %v4189, 0
      %4196 = vmatprep.subr.bf16.mxu0 0
      %4197 = vmatpush1.bf16.xpose.msra.mxu0 %v4194
      %4198 = vmatprep.subr.bf16.mxu0 0
      %4199 = vmatpush1.bf16.xpose.msra.mxu0 0
      %4200 = vmatprep.subr.bf16.mxu0 0
      %4201 = vmatpush1.bf16.xpose.msra.mxu0 0
      %4202 = vmatprep.subr.bf16.mxu0 0
      %4203 = vmatpush1.bf16.xpose.msra.mxu0 0
      %4204 = vmatprep.subr.bf16.mxu0 0
      %4205 = vmatpush1.bf16.xpose.msra.mxu0 0
      %4206 = vmatprep.subr.bf16.mxu0 0
      %4207 = vmatpush1.bf16.xpose.msra.mxu0 0
      %4208 = vmatprep.subr.bf16.mxu0 0
      %4209 = vmatpush1.bf16.xpose.msra.mxu0 0
      %4210 = vmatprep.subr.bf16.mxu0 0
      %4211 = vmatpush1.bf16.xpose.msra.mxu0 0
      %4212 = vmatprep.subr.bf16.mxu0 0
      %4213 = vmatpush1.bf16.xpose.msra.mxu0 0
      %4214 = vmatprep.subr.bf16.mxu0 0
      %4215 = vmatpush1.bf16.xpose.msra.mxu0 0
      %4216 = vmatprep.subr.bf16.mxu0 0
      %4217 = vmatpush1.bf16.xpose.msra.mxu0 0
      %4218 = vmatprep.subr.bf16.mxu0 0
      %4219 = vmatpush1.bf16.xpose.msra.mxu0 0
      %4220 = vmatprep.subr.bf16.mxu0 0
      %4221 = vmatpush1.bf16.xpose.msra.mxu0 0
      %4222 = vmatprep.subr.bf16.mxu0 0
      %4223 = vmatpush1.bf16.xpose.msra.mxu0 0
      %4224 = vmatprep.subr.bf16.mxu0 0
      %4225 = vmatpush1.bf16.xpose.msra.mxu0 0
      %4226 = vmatprep.subr.bf16.mxu0 0
      %4227 = vmatpush1.bf16.xpose.msra.mxu0 0
      %4228 = vmatprep.mubr.bf16.mxu0 0
      %4229 = vmatmul.mubr.bf16.gmra.mrb[0].mxu0 %v4191
      %v4230 = vpop.f32.mrb[0].mxu0
      %v4231 = vadd.f32 0.0, %v4230
      %v4232 = vpop.f32.mrb[0].mxu0
      %v4233 = vpop.f32.mrb[0].mxu0
      %v4234 = vadd.f32 0.0, %v4233
      %v4235 = vpop.f32.mrb[0].mxu0
      %4236 = vdwg.mxu0
      %4237 = vrot.lane.b32.xlu0 %v544, 124
      %v4238 = vpop.permute.xlu0 %4237
      %4239 = vrot.lane.b32.xlu0 %v544, 116
      %v4240 = vpop.permute.xlu0 %4239
      %v4242 = vsel %vm1962, %v4238, 0
      %v4245 = vsel %vm1962, %v4240, 0
      %4247 = vmatprep.subr.bf16.mxu0 0
      %4248 = vmatpush1.bf16.xpose.msra.mxu0 %v4245
      %4249 = vmatprep.subr.bf16.mxu0 0
      %4250 = vmatpush1.bf16.xpose.msra.mxu0 0
      %4251 = vmatprep.subr.bf16.mxu0 0
      %4252 = vmatpush1.bf16.xpose.msra.mxu0 0
      %4253 = vmatprep.subr.bf16.mxu0 0
      %4254 = vmatpush1.bf16.xpose.msra.mxu0 0
      %4255 = vmatprep.subr.bf16.mxu0 0
      %4256 = vmatpush1.bf16.xpose.msra.mxu0 0
      %4257 = vmatprep.subr.bf16.mxu0 0
      %4258 = vmatpush1.bf16.xpose.msra.mxu0 0
      %4259 = vmatprep.subr.bf16.mxu0 0
      %4260 = vmatpush1.bf16.xpose.msra.mxu0 0
      %4261 = vmatprep.subr.bf16.mxu0 0
      %4262 = vmatpush1.bf16.xpose.msra.mxu0 0
      %4263 = vmatprep.subr.bf16.mxu0 0
      %4264 = vmatpush1.bf16.xpose.msra.mxu0 0
      %4265 = vmatprep.subr.bf16.mxu0 0
      %4266 = vmatpush1.bf16.xpose.msra.mxu0 0
      %4267 = vmatprep.subr.bf16.mxu0 0
      %4268 = vmatpush1.bf16.xpose.msra.mxu0 0
      %4269 = vmatprep.subr.bf16.mxu0 0
      %4270 = vmatpush1.bf16.xpose.msra.mxu0 0
      %4271 = vmatprep.subr.bf16.mxu0 0
      %4272 = vmatpush1.bf16.xpose.msra.mxu0 0
      %4273 = vmatprep.subr.bf16.mxu0 0
      %4274 = vmatpush1.bf16.xpose.msra.mxu0 0
      %4275 = vmatprep.subr.bf16.mxu0 0
      %4276 = vmatpush1.bf16.xpose.msra.mxu0 0
      %4277 = vmatprep.subr.bf16.mxu0 0
      %4278 = vmatpush1.bf16.xpose.msra.mxu0 0
      %4279 = vmatprep.mubr.bf16.mxu0 0
      %4280 = vmatmul.mubr.bf16.gmra.mrb[0].mxu0 %v4242
      %v4281 = vpop.f32.mrb[0].mxu0
      %v4282 = vadd.f32 0.0, %v4281
      %v4283 = vpop.f32.mrb[0].mxu0
      %v4284 = vpop.f32.mrb[0].mxu0
      %v4285 = vadd.f32 0.0, %v4284
      %v4286 = vpop.f32.mrb[0].mxu0
      %4287 = vdwg.mxu0
      %4288 = vrot.lane.b32.xlu0 %v545, 124
      %v4289 = vpop.permute.xlu0 %4288
      %4290 = vrot.lane.b32.xlu0 %v545, 116
      %v4291 = vpop.permute.xlu0 %4290
      %v4293 = vsel %vm1962, %v4289, 0
      %v4296 = vsel %vm1962, %v4291, 0
      %4298 = vmatprep.subr.bf16.mxu0 0
      %4299 = vmatpush1.bf16.xpose.msra.mxu0 %v4296
      %4300 = vmatprep.subr.bf16.mxu0 0
      %4301 = vmatpush1.bf16.xpose.msra.mxu0 0
      %4302 = vmatprep.subr.bf16.mxu0 0
      %4303 = vmatpush1.bf16.xpose.msra.mxu0 0
      %4304 = vmatprep.subr.bf16.mxu0 0
      %4305 = vmatpush1.bf16.xpose.msra.mxu0 0
      %4306 = vmatprep.subr.bf16.mxu0 0
      %4307 = vmatpush1.bf16.xpose.msra.mxu0 0
      %4308 = vmatprep.subr.bf16.mxu0 0
      %4309 = vmatpush1.bf16.xpose.msra.mxu0 0
      %4310 = vmatprep.subr.bf16.mxu0 0
      %4311 = vmatpush1.bf16.xpose.msra.mxu0 0
      %4312 = vmatprep.subr.bf16.mxu0 0
      %4313 = vmatpush1.bf16.xpose.msra.mxu0 0
      %4314 = vmatprep.subr.bf16.mxu0 0
      %4315 = vmatpush1.bf16.xpose.msra.mxu0 0
      %4316 = vmatprep.subr.bf16.mxu0 0
      %4317 = vmatpush1.bf16.xpose.msra.mxu0 0
      %4318 = vmatprep.subr.bf16.mxu0 0
      %4319 = vmatpush1.bf16.xpose.msra.mxu0 0
      %4320 = vmatprep.subr.bf16.mxu0 0
      %4321 = vmatpush1.bf16.xpose.msra.mxu0 0
      %4322 = vmatprep.subr.bf16.mxu0 0
      %4323 = vmatpush1.bf16.xpose.msra.mxu0 0
      %4324 = vmatprep.subr.bf16.mxu0 0
      %4325 = vmatpush1.bf16.xpose.msra.mxu0 0
      %4326 = vmatprep.subr.bf16.mxu0 0
      %4327 = vmatpush1.bf16.xpose.msra.mxu0 0
      %4328 = vmatprep.subr.bf16.mxu0 0
      %4329 = vmatpush1.bf16.xpose.msra.mxu0 0
      %4330 = vmatprep.mubr.bf16.mxu0 0
      %4331 = vmatmul.mubr.bf16.gmra.mrb[0].mxu0 %v4293
      %v4332 = vpop.f32.mrb[0].mxu0
      %v4333 = vadd.f32 0.0, %v4332
      %v4334 = vpop.f32.mrb[0].mxu0
      %v4335 = vpop.f32.mrb[0].mxu0
      %v4336 = vadd.f32 0.0, %v4335
      %v4337 = vpop.f32.mrb[0].mxu0
      %4338 = vdwg.mxu0
      %4339 = vrot.lane.b32.xlu0 %v546, 124
      %v4340 = vpop.permute.xlu0 %4339
      %4341 = vrot.lane.b32.xlu0 %v546, 116
      %v4342 = vpop.permute.xlu0 %4341
      %v4344 = vsel %vm1962, %v4340, 0
      %v4347 = vsel %vm1962, %v4342, 0
      %4349 = vmatprep.subr.bf16.mxu0 0
      %4350 = vmatpush1.bf16.xpose.msra.mxu0 %v4347
      %4351 = vmatprep.subr.bf16.mxu0 0
      %4352 = vmatpush1.bf16.xpose.msra.mxu0 0
      %4353 = vmatprep.subr.bf16.mxu0 0
      %4354 = vmatpush1.bf16.xpose.msra.mxu0 0
      %4355 = vmatprep.subr.bf16.mxu0 0
      %4356 = vmatpush1.bf16.xpose.msra.mxu0 0
      %4357 = vmatprep.subr.bf16.mxu0 0
      %4358 = vmatpush1.bf16.xpose.msra.mxu0 0
      %4359 = vmatprep.subr.bf16.mxu0 0
      %4360 = vmatpush1.bf16.xpose.msra.mxu0 0
      %4361 = vmatprep.subr.bf16.mxu0 0
      %4362 = vmatpush1.bf16.xpose.msra.mxu0 0
      %4363 = vmatprep.subr.bf16.mxu0 0
      %4364 = vmatpush1.bf16.xpose.msra.mxu0 0
      %4365 = vmatprep.subr.bf16.mxu0 0
      %4366 = vmatpush1.bf16.xpose.msra.mxu0 0
      %4367 = vmatprep.subr.bf16.mxu0 0
      %4368 = vmatpush1.bf16.xpose.msra.mxu0 0
      %4369 = vmatprep.subr.bf16.mxu0 0
      %4370 = vmatpush1.bf16.xpose.msra.mxu0 0
      %4371 = vmatprep.subr.bf16.mxu0 0
      %4372 = vmatpush1.bf16.xpose.msra.mxu0 0
      %4373 = vmatprep.subr.bf16.mxu0 0
      %4374 = vmatpush1.bf16.xpose.msra.mxu0 0
      %4375 = vmatprep.subr.bf16.mxu0 0
      %4376 = vmatpush1.bf16.xpose.msra.mxu0 0
      %4377 = vmatprep.subr.bf16.mxu0 0
      %4378 = vmatpush1.bf16.xpose.msra.mxu0 0
      %4379 = vmatprep.subr.bf16.mxu0 0
      %4380 = vmatpush1.bf16.xpose.msra.mxu0 0
      %4381 = vmatprep.mubr.bf16.mxu0 0
      %4382 = vmatmul.mubr.bf16.gmra.mrb[0].mxu0 %v4344
      %v4383 = vpop.f32.mrb[0].mxu0
      %v4384 = vadd.f32 0.0, %v4383
      %v4385 = vpop.f32.mrb[0].mxu0
      %v4386 = vpop.f32.mrb[0].mxu0
      %v4387 = vadd.f32 0.0, %v4386
      %v4388 = vpop.f32.mrb[0].mxu0
      %4389 = vdwg.mxu0
      %4390 = vrot.lane.b32.xlu0 %v547, 124
      %v4391 = vpop.permute.xlu0 %4390
      %4392 = vrot.lane.b32.xlu0 %v547, 116
      %v4393 = vpop.permute.xlu0 %4392
      %v4395 = vsel %vm1962, %v4391, 0
      %v4398 = vsel %vm1962, %v4393, 0
      %4400 = vmatprep.subr.bf16.mxu0 0
      %4401 = vmatpush1.bf16.xpose.msra.mxu0 %v4398
      %4402 = vmatprep.subr.bf16.mxu0 0
      %4403 = vmatpush1.bf16.xpose.msra.mxu0 0
      %4404 = vmatprep.subr.bf16.mxu0 0
      %4405 = vmatpush1.bf16.xpose.msra.mxu0 0
      %4406 = vmatprep.subr.bf16.mxu0 0
      %4407 = vmatpush1.bf16.xpose.msra.mxu0 0
      %4408 = vmatprep.subr.bf16.mxu0 0
      %4409 = vmatpush1.bf16.xpose.msra.mxu0 0
      %4410 = vmatprep.subr.bf16.mxu0 0
      %4411 = vmatpush1.bf16.xpose.msra.mxu0 0
      %4412 = vmatprep.subr.bf16.mxu0 0
      %4413 = vmatpush1.bf16.xpose.msra.mxu0 0
      %4414 = vmatprep.subr.bf16.mxu0 0
      %4415 = vmatpush1.bf16.xpose.msra.mxu0 0
      %4416 = vmatprep.subr.bf16.mxu0 0
      %4417 = vmatpush1.bf16.xpose.msra.mxu0 0
      %4418 = vmatprep.subr.bf16.mxu0 0
      %4419 = vmatpush1.bf16.xpose.msra.mxu0 0
      %4420 = vmatprep.subr.bf16.mxu0 0
      %4421 = vmatpush1.bf16.xpose.msra.mxu0 0
      %4422 = vmatprep.subr.bf16.mxu0 0
      %4423 = vmatpush1.bf16.xpose.msra.mxu0 0
      %4424 = vmatprep.subr.bf16.mxu0 0
      %4425 = vmatpush1.bf16.xpose.msra.mxu0 0
      %4426 = vmatprep.subr.bf16.mxu0 0
      %4427 = vmatpush1.bf16.xpose.msra.mxu0 0
      %4428 = vmatprep.subr.bf16.mxu0 0
      %4429 = vmatpush1.bf16.xpose.msra.mxu0 0
      %4430 = vmatprep.subr.bf16.mxu0 0
      %4431 = vmatpush1.bf16.xpose.msra.mxu0 0
      %4432 = vmatprep.mubr.bf16.mxu0 0
      %4433 = vmatmul.mubr.bf16.gmra.mrb[0].mxu0 %v4395
      %v4434 = vpop.f32.mrb[0].mxu0
      %v4435 = vadd.f32 0.0, %v4434
      %v4436 = vpop.f32.mrb[0].mxu0
      %v4437 = vpop.f32.mrb[0].mxu0
      %v4438 = vadd.f32 0.0, %v4437
      %v4439 = vpop.f32.mrb[0].mxu0
      %4440 = vdwg.mxu0
      %4441 = vrot.lane.b32.xlu0 %v548, 124
      %v4442 = vpop.permute.xlu0 %4441
      %4443 = vrot.lane.b32.xlu0 %v548, 116
      %v4444 = vpop.permute.xlu0 %4443
      %v4446 = vsel %vm1962, %v4442, 0
      %v4449 = vsel %vm1962, %v4444, 0
      %4451 = vmatprep.subr.bf16.mxu0 0
      %4452 = vmatpush1.bf16.xpose.msra.mxu0 %v4449
      %4453 = vmatprep.subr.bf16.mxu0 0
      %4454 = vmatpush1.bf16.xpose.msra.mxu0 0
      %4455 = vmatprep.subr.bf16.mxu0 0
      %4456 = vmatpush1.bf16.xpose.msra.mxu0 0
      %4457 = vmatprep.subr.bf16.mxu0 0
      %4458 = vmatpush1.bf16.xpose.msra.mxu0 0
      %4459 = vmatprep.subr.bf16.mxu0 0
      %4460 = vmatpush1.bf16.xpose.msra.mxu0 0
      %4461 = vmatprep.subr.bf16.mxu0 0
      %4462 = vmatpush1.bf16.xpose.msra.mxu0 0
      %4463 = vmatprep.subr.bf16.mxu0 0
      %4464 = vmatpush1.bf16.xpose.msra.mxu0 0
      %4465 = vmatprep.subr.bf16.mxu0 0
      %4466 = vmatpush1.bf16.xpose.msra.mxu0 0
      %4467 = vmatprep.subr.bf16.mxu0 0
      %4468 = vmatpush1.bf16.xpose.msra.mxu0 0
      %4469 = vmatprep.subr.bf16.mxu0 0
      %4470 = vmatpush1.bf16.xpose.msra.mxu0 0
      %4471 = vmatprep.subr.bf16.mxu0 0
      %4472 = vmatpush1.bf16.xpose.msra.mxu0 0
      %4473 = vmatprep.subr.bf16.mxu0 0
      %4474 = vmatpush1.bf16.xpose.msra.mxu0 0
      %4475 = vmatprep.subr.bf16.mxu0 0
      %4476 = vmatpush1.bf16.xpose.msra.mxu0 0
      %4477 = vmatprep.subr.bf16.mxu0 0
      %4478 = vmatpush1.bf16.xpose.msra.mxu0 0
      %4479 = vmatprep.subr.bf16.mxu0 0
      %4480 = vmatpush1.bf16.xpose.msra.mxu0 0
      %4481 = vmatprep.subr.bf16.mxu0 0
      %4482 = vmatpush1.bf16.xpose.msra.mxu0 0
      %4483 = vmatprep.mubr.bf16.mxu0 0
      %4484 = vmatmul.mubr.bf16.gmra.mrb[0].mxu0 %v4446
      %v4485 = vpop.f32.mrb[0].mxu0
      %v4486 = vadd.f32 0.0, %v4485
      %v4487 = vpop.f32.mrb[0].mxu0
      %v4488 = vpop.f32.mrb[0].mxu0
      %v4489 = vadd.f32 0.0, %v4488
      %v4490 = vpop.f32.mrb[0].mxu0
      %4491 = vdwg.mxu0
      %4492 = vrot.lane.b32.xlu0 %v549, 124
      %v4493 = vpop.permute.xlu0 %4492
      %4494 = vrot.lane.b32.xlu0 %v549, 116
      %v4495 = vpop.permute.xlu0 %4494
      %v4497 = vsel %vm1962, %v4493, 0
      %v4500 = vsel %vm1962, %v4495, 0
      %4502 = vmatprep.subr.bf16.mxu0 0
      %4503 = vmatpush1.bf16.xpose.msra.mxu0 %v4500
      %4504 = vmatprep.subr.bf16.mxu0 0
      %4505 = vmatpush1.bf16.xpose.msra.mxu0 0
      %4506 = vmatprep.subr.bf16.mxu0 0
      %4507 = vmatpush1.bf16.xpose.msra.mxu0 0
      %4508 = vmatprep.subr.bf16.mxu0 0
      %4509 = vmatpush1.bf16.xpose.msra.mxu0 0
      %4510 = vmatprep.subr.bf16.mxu0 0
      %4511 = vmatpush1.bf16.xpose.msra.mxu0 0
      %4512 = vmatprep.subr.bf16.mxu0 0
      %4513 = vmatpush1.bf16.xpose.msra.mxu0 0
      %4514 = vmatprep.subr.bf16.mxu0 0
      %4515 = vmatpush1.bf16.xpose.msra.mxu0 0
      %4516 = vmatprep.subr.bf16.mxu0 0
      %4517 = vmatpush1.bf16.xpose.msra.mxu0 0
      %4518 = vmatprep.subr.bf16.mxu0 0
      %4519 = vmatpush1.bf16.xpose.msra.mxu0 0
      %4520 = vmatprep.subr.bf16.mxu0 0
      %4521 = vmatpush1.bf16.xpose.msra.mxu0 0
      %4522 = vmatprep.subr.bf16.mxu0 0
      %4523 = vmatpush1.bf16.xpose.msra.mxu0 0
      %4524 = vmatprep.subr.bf16.mxu0 0
      %4525 = vmatpush1.bf16.xpose.msra.mxu0 0
      %4526 = vmatprep.subr.bf16.mxu0 0
      %4527 = vmatpush1.bf16.xpose.msra.mxu0 0
      %4528 = vmatprep.subr.bf16.mxu0 0
      %4529 = vmatpush1.bf16.xpose.msra.mxu0 0
      %4530 = vmatprep.subr.bf16.mxu0 0
      %4531 = vmatpush1.bf16.xpose.msra.mxu0 0
      %4532 = vmatprep.subr.bf16.mxu0 0
      %4533 = vmatpush1.bf16.xpose.msra.mxu0 0
      %4534 = vmatprep.mubr.bf16.mxu0 0
      %4535 = vmatmul.mubr.bf16.gmra.mrb[0].mxu0 %v4497
      %v4536 = vpop.f32.mrb[0].mxu0
      %v4537 = vadd.f32 0.0, %v4536
      %v4538 = vpop.f32.mrb[0].mxu0
      %v4539 = vpop.f32.mrb[0].mxu0
      %v4540 = vadd.f32 0.0, %v4539
      %v4541 = vpop.f32.mrb[0].mxu0
      %4542 = vdwg.mxu0
      %4543 = vrot.lane.b32.xlu0 %v550, 124
      %v4544 = vpop.permute.xlu0 %4543
      %4545 = vrot.lane.b32.xlu0 %v550, 116
      %v4546 = vpop.permute.xlu0 %4545
      %v4548 = vsel %vm1962, %v4544, 0
      %v4551 = vsel %vm1962, %v4546, 0
      %4553 = vmatprep.subr.bf16.mxu0 0
      %4554 = vmatpush1.bf16.xpose.msra.mxu0 %v4551
      %4555 = vmatprep.subr.bf16.mxu0 0
      %4556 = vmatpush1.bf16.xpose.msra.mxu0 0
      %4557 = vmatprep.subr.bf16.mxu0 0
      %4558 = vmatpush1.bf16.xpose.msra.mxu0 0
      %4559 = vmatprep.subr.bf16.mxu0 0
      %4560 = vmatpush1.bf16.xpose.msra.mxu0 0
      %4561 = vmatprep.subr.bf16.mxu0 0
      %4562 = vmatpush1.bf16.xpose.msra.mxu0 0
      %4563 = vmatprep.subr.bf16.mxu0 0
      %4564 = vmatpush1.bf16.xpose.msra.mxu0 0
      %4565 = vmatprep.subr.bf16.mxu0 0
      %4566 = vmatpush1.bf16.xpose.msra.mxu0 0
      %4567 = vmatprep.subr.bf16.mxu0 0
      %4568 = vmatpush1.bf16.xpose.msra.mxu0 0
      %4569 = vmatprep.subr.bf16.mxu0 0
      %4570 = vmatpush1.bf16.xpose.msra.mxu0 0
      %4571 = vmatprep.subr.bf16.mxu0 0
      %4572 = vmatpush1.bf16.xpose.msra.mxu0 0
      %4573 = vmatprep.subr.bf16.mxu0 0
      %4574 = vmatpush1.bf16.xpose.msra.mxu0 0
      %4575 = vmatprep.subr.bf16.mxu0 0
      %4576 = vmatpush1.bf16.xpose.msra.mxu0 0
      %4577 = vmatprep.subr.bf16.mxu0 0
      %4578 = vmatpush1.bf16.xpose.msra.mxu0 0
      %4579 = vmatprep.subr.bf16.mxu0 0
      %4580 = vmatpush1.bf16.xpose.msra.mxu0 0
      %4581 = vmatprep.subr.bf16.mxu0 0
      %4582 = vmatpush1.bf16.xpose.msra.mxu0 0
      %4583 = vmatprep.subr.bf16.mxu0 0
      %4584 = vmatpush1.bf16.xpose.msra.mxu0 0
      %4585 = vmatprep.mubr.bf16.mxu0 0
      %4586 = vmatmul.mubr.bf16.gmra.mrb[0].mxu0 %v4548
      %v4587 = vpop.f32.mrb[0].mxu0
      %v4588 = vadd.f32 0.0, %v4587
      %v4589 = vpop.f32.mrb[0].mxu0
      %v4590 = vpop.f32.mrb[0].mxu0
      %v4591 = vadd.f32 0.0, %v4590
      %v4592 = vpop.f32.mrb[0].mxu0
      %4593 = vdwg.mxu0
      %4594 = vrot.lane.b32.xlu0 %v551, 124
      %v4595 = vpop.permute.xlu0 %4594
      %4596 = vrot.lane.b32.xlu0 %v551, 116
      %v4597 = vpop.permute.xlu0 %4596
      %v4599 = vsel %vm1962, %v4595, 0
      %v4602 = vsel %vm1962, %v4597, 0
      %4604 = vmatprep.subr.bf16.mxu0 0
      %4605 = vmatpush1.bf16.xpose.msra.mxu0 %v4602
      %4606 = vmatprep.subr.bf16.mxu0 0
      %4607 = vmatpush1.bf16.xpose.msra.mxu0 0
      %4608 = vmatprep.subr.bf16.mxu0 0
      %4609 = vmatpush1.bf16.xpose.msra.mxu0 0
      %4610 = vmatprep.subr.bf16.mxu0 0
      %4611 = vmatpush1.bf16.xpose.msra.mxu0 0
      %4612 = vmatprep.subr.bf16.mxu0 0
      %4613 = vmatpush1.bf16.xpose.msra.mxu0 0
      %4614 = vmatprep.subr.bf16.mxu0 0
      %4615 = vmatpush1.bf16.xpose.msra.mxu0 0
      %4616 = vmatprep.subr.bf16.mxu0 0
      %4617 = vmatpush1.bf16.xpose.msra.mxu0 0
      %4618 = vmatprep.subr.bf16.mxu0 0
      %4619 = vmatpush1.bf16.xpose.msra.mxu0 0
      %4620 = vmatprep.subr.bf16.mxu0 0
      %4621 = vmatpush1.bf16.xpose.msra.mxu0 0
      %4622 = vmatprep.subr.bf16.mxu0 0
      %4623 = vmatpush1.bf16.xpose.msra.mxu0 0
      %4624 = vmatprep.subr.bf16.mxu0 0
      %4625 = vmatpush1.bf16.xpose.msra.mxu0 0
      %4626 = vmatprep.subr.bf16.mxu0 0
      %4627 = vmatpush1.bf16.xpose.msra.mxu0 0
      %4628 = vmatprep.subr.bf16.mxu0 0
      %4629 = vmatpush1.bf16.xpose.msra.mxu0 0
      %4630 = vmatprep.subr.bf16.mxu0 0
      %4631 = vmatpush1.bf16.xpose.msra.mxu0 0
      %4632 = vmatprep.subr.bf16.mxu0 0
      %4633 = vmatpush1.bf16.xpose.msra.mxu0 0
      %4634 = vmatprep.subr.bf16.mxu0 0
      %4635 = vmatpush1.bf16.xpose.msra.mxu0 0
      %4636 = vmatprep.mubr.bf16.mxu0 0
      %4637 = vmatmul.mubr.bf16.gmra.mrb[0].mxu0 %v4599
      %v4638 = vpop.f32.mrb[0].mxu0
      %v4639 = vadd.f32 0.0, %v4638
      %v4640 = vpop.f32.mrb[0].mxu0
      %v4641 = vpop.f32.mrb[0].mxu0
      %v4642 = vadd.f32 0.0, %v4641
      %v4643 = vpop.f32.mrb[0].mxu0
      %4644 = vdwg.mxu0
      %4645 = vrot.lane.b32.xlu0 %v552, 124
      %v4646 = vpop.permute.xlu0 %4645
      %4647 = vrot.lane.b32.xlu0 %v552, 116
      %v4648 = vpop.permute.xlu0 %4647
      %v4650 = vsel %vm1962, %v4646, 0
      %v4653 = vsel %vm1962, %v4648, 0
      %4655 = vmatprep.subr.bf16.mxu0 0
      %4656 = vmatpush1.bf16.xpose.msra.mxu0 %v4653
      %4657 = vmatprep.subr.bf16.mxu0 0
      %4658 = vmatpush1.bf16.xpose.msra.mxu0 0
      %4659 = vmatprep.subr.bf16.mxu0 0
      %4660 = vmatpush1.bf16.xpose.msra.mxu0 0
      %4661 = vmatprep.subr.bf16.mxu0 0
      %4662 = vmatpush1.bf16.xpose.msra.mxu0 0
      %4663 = vmatprep.subr.bf16.mxu0 0
      %4664 = vmatpush1.bf16.xpose.msra.mxu0 0
      %4665 = vmatprep.subr.bf16.mxu0 0
      %4666 = vmatpush1.bf16.xpose.msra.mxu0 0
      %4667 = vmatprep.subr.bf16.mxu0 0
      %4668 = vmatpush1.bf16.xpose.msra.mxu0 0
      %4669 = vmatprep.subr.bf16.mxu0 0
      %4670 = vmatpush1.bf16.xpose.msra.mxu0 0
      %4671 = vmatprep.subr.bf16.mxu0 0
      %4672 = vmatpush1.bf16.xpose.msra.mxu0 0
      %4673 = vmatprep.subr.bf16.mxu0 0
      %4674 = vmatpush1.bf16.xpose.msra.mxu0 0
      %4675 = vmatprep.subr.bf16.mxu0 0
      %4676 = vmatpush1.bf16.xpose.msra.mxu0 0
      %4677 = vmatprep.subr.bf16.mxu0 0
      %4678 = vmatpush1.bf16.xpose.msra.mxu0 0
      %4679 = vmatprep.subr.bf16.mxu0 0
      %4680 = vmatpush1.bf16.xpose.msra.mxu0 0
      %4681 = vmatprep.subr.bf16.mxu0 0
      %4682 = vmatpush1.bf16.xpose.msra.mxu0 0
      %4683 = vmatprep.subr.bf16.mxu0 0
      %4684 = vmatpush1.bf16.xpose.msra.mxu0 0
      %4685 = vmatprep.subr.bf16.mxu0 0
      %4686 = vmatpush1.bf16.xpose.msra.mxu0 0
      %4687 = vmatprep.mubr.bf16.mxu0 0
      %4688 = vmatmul.mubr.bf16.gmra.mrb[0].mxu0 %v4650
      %v4689 = vpop.f32.mrb[0].mxu0
      %v4690 = vadd.f32 0.0, %v4689
      %v4691 = vpop.f32.mrb[0].mxu0
      %v4692 = vpop.f32.mrb[0].mxu0
      %v4693 = vadd.f32 0.0, %v4692
      %v4694 = vpop.f32.mrb[0].mxu0
      %4695 = vdwg.mxu0
      %v4696 = vsel %vm1364, %v3925, -inf
      %4697 = vmax.xlane.f32.xlu0 %v4696
      %v4698 = vpop.xlane.xlu0 %4697
      %v4699 = vsel %vm1364, %v3928, -inf
      %4700 = vmax.xlane.f32.xlu0 %v4699
      %v4701 = vpop.xlane.xlu0 %4700
      %v4702 = vsel %vm1364, %v3976, -inf
      %4703 = vmax.xlane.f32.xlu0 %v4702
      %v4704 = vpop.xlane.xlu0 %4703
      %v4705 = vsel %vm1364, %v3979, -inf
      %4706 = vmax.xlane.f32.xlu0 %v4705
      %v4707 = vpop.xlane.xlu0 %4706
      %v4708 = vsel %vm1364, %v4027, -inf
      %4709 = vmax.xlane.f32.xlu0 %v4708
      %v4710 = vpop.xlane.xlu0 %4709
      %v4711 = vsel %vm1364, %v4030, -inf
      %4712 = vmax.xlane.f32.xlu0 %v4711
      %v4713 = vpop.xlane.xlu0 %4712
      %v4714 = vsel %vm1364, %v4078, -inf
      %4715 = vmax.xlane.f32.xlu0 %v4714
      %v4716 = vpop.xlane.xlu0 %4715
      %v4717 = vsel %vm1364, %v4081, -inf
      %4718 = vmax.xlane.f32.xlu0 %v4717
      %v4719 = vpop.xlane.xlu0 %4718
      %v4720 = vsel %vm1364, %v4129, -inf
      %4721 = vmax.xlane.f32.xlu0 %v4720
      %v4722 = vpop.xlane.xlu0 %4721
      %v4723 = vsel %vm1364, %v4132, -inf
      %4724 = vmax.xlane.f32.xlu0 %v4723
      %v4725 = vpop.xlane.xlu0 %4724
      %v4726 = vsel %vm1364, %v4180, -inf
      %4727 = vmax.xlane.f32.xlu0 %v4726
      %v4728 = vpop.xlane.xlu0 %4727
      %v4729 = vsel %vm1364, %v4183, -inf
      %4730 = vmax.xlane.f32.xlu0 %v4729
      %v4731 = vpop.xlane.xlu0 %4730
      %v4732 = vsel %vm1364, %v4231, -inf
      %4733 = vmax.xlane.f32.xlu0 %v4732
      %v4734 = vpop.xlane.xlu0 %4733
      %v4735 = vsel %vm1364, %v4234, -inf
      %4736 = vmax.xlane.f32.xlu0 %v4735
      %v4737 = vpop.xlane.xlu0 %4736
      %v4738 = vsel %vm1364, %v4282, -inf
      %4739 = vmax.xlane.f32.xlu0 %v4738
      %v4740 = vpop.xlane.xlu0 %4739
      %v4741 = vsel %vm1364, %v4285, -inf
      %4742 = vmax.xlane.f32.xlu0 %v4741
      %v4743 = vpop.xlane.xlu0 %4742
      %v4744 = vsel %vm1364, %v4333, -inf
      %4745 = vmax.xlane.f32.xlu0 %v4744
      %v4746 = vpop.xlane.xlu0 %4745
      %v4747 = vsel %vm1364, %v4336, -inf
      %4748 = vmax.xlane.f32.xlu0 %v4747
      %v4749 = vpop.xlane.xlu0 %4748
      %v4750 = vsel %vm1364, %v4384, -inf
      %4751 = vmax.xlane.f32.xlu0 %v4750
      %v4752 = vpop.xlane.xlu0 %4751
      %v4753 = vsel %vm1364, %v4387, -inf
      %4754 = vmax.xlane.f32.xlu0 %v4753
      %v4755 = vpop.xlane.xlu0 %4754
      %v4756 = vsel %vm1364, %v4435, -inf
      %4757 = vmax.xlane.f32.xlu0 %v4756
      %v4758 = vpop.xlane.xlu0 %4757
      %v4759 = vsel %vm1364, %v4438, -inf
      %4760 = vmax.xlane.f32.xlu0 %v4759
      %v4761 = vpop.xlane.xlu0 %4760
      %v4762 = vsel %vm1364, %v4486, -inf
      %4763 = vmax.xlane.f32.xlu0 %v4762
      %v4764 = vpop.xlane.xlu0 %4763
      %v4765 = vsel %vm1364, %v4489, -inf
      %4766 = vmax.xlane.f32.xlu0 %v4765
      %v4767 = vpop.xlane.xlu0 %4766
      %v4768 = vsel %vm1364, %v4537, -inf
      %4769 = vmax.xlane.f32.xlu0 %v4768
      %v4770 = vpop.xlane.xlu0 %4769
      %v4771 = vsel %vm1364, %v4540, -inf
      %4772 = vmax.xlane.f32.xlu0 %v4771
      %v4773 = vpop.xlane.xlu0 %4772
      %v4774 = vsel %vm1364, %v4588, -inf
      %4775 = vmax.xlane.f32.xlu0 %v4774
      %v4776 = vpop.xlane.xlu0 %4775
      %v4777 = vsel %vm1364, %v4591, -inf
      %4778 = vmax.xlane.f32.xlu0 %v4777
      %v4779 = vpop.xlane.xlu0 %4778
      %v4780 = vsel %vm1364, %v4639, -inf
      %4781 = vmax.xlane.f32.xlu0 %v4780
      %v4782 = vpop.xlane.xlu0 %4781
      %v4783 = vsel %vm1364, %v4642, -inf
      %4784 = vmax.xlane.f32.xlu0 %v4783
      %v4785 = vpop.xlane.xlu0 %4784
      %v4786 = vsel %vm1364, %v4690, -inf
      %4787 = vmax.xlane.f32.xlu0 %v4786
      %v4788 = vpop.xlane.xlu0 %4787
      %v4789 = vsel %vm1364, %v4693, -inf
      %4790 = vmax.xlane.f32.xlu0 %v4789
      %v4791 = vpop.xlane.xlu0 %4790
      %v4792 = vsub.f32 %v3925, %v4698
      %v4793 = vsub.f32 %v3928, %v4701
      %v4794 = vsub.f32 %v3976, %v4704
      %v4795 = vsub.f32 %v3979, %v4707
      %v4796 = vsub.f32 %v4027, %v4710
      %v4797 = vsub.f32 %v4030, %v4713
      %v4798 = vsub.f32 %v4078, %v4716
      %v4799 = vsub.f32 %v4081, %v4719
      %v4800 = vsub.f32 %v4129, %v4722
      %v4801 = vsub.f32 %v4132, %v4725
      %v4802 = vsub.f32 %v4180, %v4728
      %v4803 = vsub.f32 %v4183, %v4731
      %v4804 = vsub.f32 %v4231, %v4734
      %v4805 = vsub.f32 %v4234, %v4737
      %v4806 = vsub.f32 %v4282, %v4740
      %v4807 = vsub.f32 %v4285, %v4743
      %v4808 = vsub.f32 %v4333, %v4746
      %v4809 = vsub.f32 %v4336, %v4749
      %v4810 = vsub.f32 %v4384, %v4752
      %v4811 = vsub.f32 %v4387, %v4755
      %v4812 = vsub.f32 %v4435, %v4758
      %v4813 = vsub.f32 %v4438, %v4761
      %v4814 = vsub.f32 %v4486, %v4764
      %v4815 = vsub.f32 %v4489, %v4767
      %v4816 = vsub.f32 %v4537, %v4770
      %v4817 = vsub.f32 %v4540, %v4773
      %v4818 = vsub.f32 %v4588, %v4776
      %v4819 = vsub.f32 %v4591, %v4779
      %v4820 = vsub.f32 %v4639, %v4782
      %v4821 = vsub.f32 %v4642, %v4785
      %v4822 = vsub.f32 %v4690, %v4788
      %v4823 = vsub.f32 %v4693, %v4791
      %v4824 = vmul.f32 %v4792, 1.442695
      %v4825 = vpow.pop %v4824
      %v4826 = vmul.f32 %v4793, 1.442695
      %v4827 = vpow.pop %v4826
      %v4828 = vmul.f32 %v4794, 1.442695
      %v4829 = vpow.pop %v4828
      %v4830 = vmul.f32 %v4795, 1.442695
      %v4831 = vpow.pop %v4830
      %v4832 = vmul.f32 %v4796, 1.442695
      %v4833 = vpow.pop %v4832
      %v4834 = vmul.f32 %v4797, 1.442695
      %v4835 = vpow.pop %v4834
      %v4836 = vmul.f32 %v4798, 1.442695
      %v4837 = vpow.pop %v4836
      %v4838 = vmul.f32 %v4799, 1.442695
      %v4839 = vpow.pop %v4838
      %v4840 = vmul.f32 %v4800, 1.442695
      %v4841 = vpow.pop %v4840
      %v4842 = vmul.f32 %v4801, 1.442695
      %v4843 = vpow.pop %v4842
      %v4844 = vmul.f32 %v4802, 1.442695
      %v4845 = vpow.pop %v4844
      %v4846 = vmul.f32 %v4803, 1.442695
      %v4847 = vpow.pop %v4846
      %v4848 = vmul.f32 %v4804, 1.442695
      %v4849 = vpow.pop %v4848
      %v4850 = vmul.f32 %v4805, 1.442695
      %v4851 = vpow.pop %v4850
      %v4852 = vmul.f32 %v4806, 1.442695
      %v4853 = vpow.pop %v4852
      %v4854 = vmul.f32 %v4807, 1.442695
      %v4855 = vpow.pop %v4854
      %v4856 = vmul.f32 %v4808, 1.442695
      %v4857 = vpow.pop %v4856
      %v4858 = vmul.f32 %v4809, 1.442695
      %v4859 = vpow.pop %v4858
      %v4860 = vmul.f32 %v4810, 1.442695
      %v4861 = vpow.pop %v4860
      %v4862 = vmul.f32 %v4811, 1.442695
      %v4863 = vpow.pop %v4862
      %v4864 = vmul.f32 %v4812, 1.442695
      %v4865 = vpow.pop %v4864
      %v4866 = vmul.f32 %v4813, 1.442695
      %v4867 = vpow.pop %v4866
      %v4868 = vmul.f32 %v4814, 1.442695
      %v4869 = vpow.pop %v4868
      %v4870 = vmul.f32 %v4815, 1.442695
      %v4871 = vpow.pop %v4870
      %v4872 = vmul.f32 %v4816, 1.442695
      %v4873 = vpow.pop %v4872
      %v4874 = vmul.f32 %v4817, 1.442695
      %v4875 = vpow.pop %v4874
      %v4876 = vmul.f32 %v4818, 1.442695
      %v4877 = vpow.pop %v4876
      %v4878 = vmul.f32 %v4819, 1.442695
      %v4879 = vpow.pop %v4878
      %v4880 = vmul.f32 %v4820, 1.442695
      %v4881 = vpow.pop %v4880
      %v4882 = vmul.f32 %v4821, 1.442695
      %v4883 = vpow.pop %v4882
      %v4884 = vmul.f32 %v4822, 1.442695
      %v4885 = vpow.pop %v4884
      %v4886 = vmul.f32 %v4823, 1.442695
      %v4887 = vpow.pop %v4886
      %v4888 = vsel %vm1364, %v4825, 0.0
      %4889 = vadd.xlane.f32.xlu0 %v4888
      %v4890 = vpop.xlane.xlu0 %4889
      %v4891 = vsel %vm1364, %v4827, 0.0
      %4892 = vadd.xlane.f32.xlu0 %v4891
      %v4893 = vpop.xlane.xlu0 %4892
      %v4894 = vsel %vm1364, %v4829, 0.0
      %4895 = vadd.xlane.f32.xlu0 %v4894
      %v4896 = vpop.xlane.xlu0 %4895
      %v4897 = vsel %vm1364, %v4831, 0.0
      %4898 = vadd.xlane.f32.xlu0 %v4897
      %v4899 = vpop.xlane.xlu0 %4898
      %v4900 = vsel %vm1364, %v4833, 0.0
      %4901 = vadd.xlane.f32.xlu0 %v4900
      %v4902 = vpop.xlane.xlu0 %4901
      %v4903 = vsel %vm1364, %v4835, 0.0
      %4904 = vadd.xlane.f32.xlu0 %v4903
      %v4905 = vpop.xlane.xlu0 %4904
      %v4906 = vsel %vm1364, %v4837, 0.0
      %4907 = vadd.xlane.f32.xlu0 %v4906
      %v4908 = vpop.xlane.xlu0 %4907
      %v4909 = vsel %vm1364, %v4839, 0.0
      %4910 = vadd.xlane.f32.xlu0 %v4909
      %v4911 = vpop.xlane.xlu0 %4910
      %v4912 = vsel %vm1364, %v4841, 0.0
      %4913 = vadd.xlane.f32.xlu0 %v4912
      %v4914 = vpop.xlane.xlu0 %4913
      %v4915 = vsel %vm1364, %v4843, 0.0
      %4916 = vadd.xlane.f32.xlu0 %v4915
      %v4917 = vpop.xlane.xlu0 %4916
      %v4918 = vsel %vm1364, %v4845, 0.0
      %4919 = vadd.xlane.f32.xlu0 %v4918
      %v4920 = vpop.xlane.xlu0 %4919
      %v4921 = vsel %vm1364, %v4847, 0.0
      %4922 = vadd.xlane.f32.xlu0 %v4921
      %v4923 = vpop.xlane.xlu0 %4922
      %v4924 = vsel %vm1364, %v4849, 0.0
      %4925 = vadd.xlane.f32.xlu0 %v4924
      %v4926 = vpop.xlane.xlu0 %4925
      %v4927 = vsel %vm1364, %v4851, 0.0
      %4928 = vadd.xlane.f32.xlu0 %v4927
      %v4929 = vpop.xlane.xlu0 %4928
      %v4930 = vsel %vm1364, %v4853, 0.0
      %4931 = vadd.xlane.f32.xlu0 %v4930
      %v4932 = vpop.xlane.xlu0 %4931
      %v4933 = vsel %vm1364, %v4855, 0.0
      %4934 = vadd.xlane.f32.xlu0 %v4933
      %v4935 = vpop.xlane.xlu0 %4934
      %v4936 = vsel %vm1364, %v4857, 0.0
      %4937 = vadd.xlane.f32.xlu0 %v4936
      %v4938 = vpop.xlane.xlu0 %4937
      %v4939 = vsel %vm1364, %v4859, 0.0
      %4940 = vadd.xlane.f32.xlu0 %v4939
      %v4941 = vpop.xlane.xlu0 %4940
      %v4942 = vsel %vm1364, %v4861, 0.0
      %4943 = vadd.xlane.f32.xlu0 %v4942
      %v4944 = vpop.xlane.xlu0 %4943
      %v4945 = vsel %vm1364, %v4863, 0.0
      %4946 = vadd.xlane.f32.xlu0 %v4945
      %v4947 = vpop.xlane.xlu0 %4946
      %v4948 = vsel %vm1364, %v4865, 0.0
      %4949 = vadd.xlane.f32.xlu0 %v4948
      %v4950 = vpop.xlane.xlu0 %4949
      %v4951 = vsel %vm1364, %v4867, 0.0
      %4952 = vadd.xlane.f32.xlu0 %v4951
      %v4953 = vpop.xlane.xlu0 %4952
      %v4954 = vsel %vm1364, %v4869, 0.0
      %4955 = vadd.xlane.f32.xlu0 %v4954
      %v4956 = vpop.xlane.xlu0 %4955
      %v4957 = vsel %vm1364, %v4871, 0.0
      %4958 = vadd.xlane.f32.xlu0 %v4957
      %v4959 = vpop.xlane.xlu0 %4958
      %v4960 = vsel %vm1364, %v4873, 0.0
      %4961 = vadd.xlane.f32.xlu0 %v4960
      %v4962 = vpop.xlane.xlu0 %4961
      %v4963 = vsel %vm1364, %v4875, 0.0
      %4964 = vadd.xlane.f32.xlu0 %v4963
      %v4965 = vpop.xlane.xlu0 %4964
      %v4966 = vsel %vm1364, %v4877, 0.0
      %4967 = vadd.xlane.f32.xlu0 %v4966
      %v4968 = vpop.xlane.xlu0 %4967
      %v4969 = vsel %vm1364, %v4879, 0.0
      %4970 = vadd.xlane.f32.xlu0 %v4969
      %v4971 = vpop.xlane.xlu0 %4970
      %v4972 = vsel %vm1364, %v4881, 0.0
      %4973 = vadd.xlane.f32.xlu0 %v4972
      %v4974 = vpop.xlane.xlu0 %4973
      %v4975 = vsel %vm1364, %v4883, 0.0
      %4976 = vadd.xlane.f32.xlu0 %v4975
      %v4977 = vpop.xlane.xlu0 %4976
      %v4978 = vsel %vm1364, %v4885, 0.0
      %4979 = vadd.xlane.f32.xlu0 %v4978
      %v4980 = vpop.xlane.xlu0 %4979
      %v4981 = vsel %vm1364, %v4887, 0.0
      %4982 = vadd.xlane.f32.xlu0 %v4981
      %v4983 = vpop.xlane.xlu0 %4982
      %v4984 = vrcp.pop %v4890
      %v4985 = vrcp.pop %v4893
      %v4986 = vrcp.pop %v4896
      %v4987 = vrcp.pop %v4899
      %v4988 = vrcp.pop %v4902
      %v4989 = vrcp.pop %v4905
      %v4990 = vrcp.pop %v4908
      %v4991 = vrcp.pop %v4911
      %v4992 = vrcp.pop %v4914
      %v4993 = vrcp.pop %v4917
      %v4994 = vrcp.pop %v4920
      %v4995 = vrcp.pop %v4923
      %v4996 = vrcp.pop %v4926
      %v4997 = vrcp.pop %v4929
      %v4998 = vrcp.pop %v4932
      %v4999 = vrcp.pop %v4935
      %v5000 = vrcp.pop %v4938
      %v5001 = vrcp.pop %v4941
      %v5002 = vrcp.pop %v4944
      %v5003 = vrcp.pop %v4947
      %v5004 = vrcp.pop %v4950
      %v5005 = vrcp.pop %v4953
      %v5006 = vrcp.pop %v4956
      %v5007 = vrcp.pop %v4959
      %v5008 = vrcp.pop %v4962
      %v5009 = vrcp.pop %v4965
      %v5010 = vrcp.pop %v4968
      %v5011 = vrcp.pop %v4971
      %v5012 = vrcp.pop %v4974
      %v5013 = vrcp.pop %v4977
      %v5014 = vrcp.pop %v4980
      %v5015 = vrcp.pop %v4983
      %v5016 = vmul.f32 %v4825, %v4984
      %v5017 = vmul.f32 %v4827, %v4985
      %v5018 = vmul.f32 %v4829, %v4986
      %v5019 = vmul.f32 %v4831, %v4987
      %v5020 = vmul.f32 %v4833, %v4988
      %v5021 = vmul.f32 %v4835, %v4989
      %v5022 = vmul.f32 %v4837, %v4990
      %v5023 = vmul.f32 %v4839, %v4991
      %v5024 = vmul.f32 %v4841, %v4992
      %v5025 = vmul.f32 %v4843, %v4993
      %v5026 = vmul.f32 %v4845, %v4994
      %v5027 = vmul.f32 %v4847, %v4995
      %v5028 = vmul.f32 %v4849, %v4996
      %v5029 = vmul.f32 %v4851, %v4997
      %v5030 = vmul.f32 %v4853, %v4998
      %v5031 = vmul.f32 %v4855, %v4999
      %v5032 = vmul.f32 %v4857, %v5000
      %v5033 = vmul.f32 %v4859, %v5001
      %v5034 = vmul.f32 %v4861, %v5002
      %v5035 = vmul.f32 %v4863, %v5003
      %v5036 = vmul.f32 %v4865, %v5004
      %v5037 = vmul.f32 %v4867, %v5005
      %v5038 = vmul.f32 %v4869, %v5006
      %v5039 = vmul.f32 %v4871, %v5007
      %v5040 = vmul.f32 %v4873, %v5008
      %v5041 = vmul.f32 %v4875, %v5009
      %v5042 = vmul.f32 %v4877, %v5010
      %v5043 = vmul.f32 %v4879, %v5011
      %v5044 = vmul.f32 %v4881, %v5012
      %v5045 = vmul.f32 %v4883, %v5013
      %v5046 = vmul.f32 %v4885, %v5014
      %v5047 = vmul.f32 %v4887, %v5015
      %v5048 = vpack.c.bf16 %v5017, %v5016
      %v5049 = vpack.c.bf16 %v5019, %v5018
      %v5050 = vpack.c.bf16 %v5021, %v5020
      %v5051 = vpack.c.bf16 %v5023, %v5022
      %v5052 = vpack.c.bf16 %v5025, %v5024
      %v5053 = vpack.c.bf16 %v5027, %v5026
      %v5054 = vpack.c.bf16 %v5029, %v5028
      %v5055 = vpack.c.bf16 %v5031, %v5030
      %v5056 = vpack.c.bf16 %v5033, %v5032
      %v5057 = vpack.c.bf16 %v5035, %v5034
      %v5058 = vpack.c.bf16 %v5037, %v5036
      %v5059 = vpack.c.bf16 %v5039, %v5038
      %v5060 = vpack.c.bf16 %v5041, %v5040
      %v5061 = vpack.c.bf16 %v5043, %v5042
      %v5062 = vpack.c.bf16 %v5045, %v5044
      %v5063 = vpack.c.bf16 %v5047, %v5046
      %5064 = vrot.lane.b32.xlu0 %v537, 108
      %v5065 = vpop.permute.xlu0 %5064
      %v5068 = vsel %vm1364, %v5048, 0
      %5070 = vmatprep.subr.bf16.mxu0 0
      %5071 = vmatpush1.bf16.msra.mxu0 %v5065
      %5072 = vmatprep.subr.bf16.mxu0 0
      %5073 = vmatpush1.bf16.msra.mxu0 0
      %5074 = vmatprep.subr.bf16.mxu0 0
      %5075 = vmatpush1.bf16.msra.mxu0 0
      %5076 = vmatprep.subr.bf16.mxu0 0
      %5077 = vmatpush1.bf16.msra.mxu0 0
      %5078 = vmatprep.subr.bf16.mxu0 0
      %5079 = vmatpush1.bf16.msra.mxu0 0
      %5080 = vmatprep.subr.bf16.mxu0 0
      %5081 = vmatpush1.bf16.msra.mxu0 0
      %5082 = vmatprep.subr.bf16.mxu0 0
      %5083 = vmatpush1.bf16.msra.mxu0 0
      %5084 = vmatprep.subr.bf16.mxu0 0
      %5085 = vmatpush1.bf16.msra.mxu0 0
      %5086 = vmatprep.subr.bf16.mxu0 0
      %5087 = vmatpush1.bf16.msra.mxu0 0
      %5088 = vmatprep.subr.bf16.mxu0 0
      %5089 = vmatpush1.bf16.msra.mxu0 0
      %5090 = vmatprep.subr.bf16.mxu0 0
      %5091 = vmatpush1.bf16.msra.mxu0 0
      %5092 = vmatprep.subr.bf16.mxu0 0
      %5093 = vmatpush1.bf16.msra.mxu0 0
      %5094 = vmatprep.subr.bf16.mxu0 0
      %5095 = vmatpush1.bf16.msra.mxu0 0
      %5096 = vmatprep.subr.bf16.mxu0 0
      %5097 = vmatpush1.bf16.msra.mxu0 0
      %5098 = vmatprep.subr.bf16.mxu0 0
      %5099 = vmatpush1.bf16.msra.mxu0 0
      %5100 = vmatprep.subr.bf16.mxu0 0
      %5101 = vmatpush1.bf16.msra.mxu0 0
      %5102 = vmatprep.mubr.bf16.mxu0 0
      %5103 = vmatmul.mubr.bf16.gmra.mrb[0].mxu0 %v5068
      %v5104 = vpop.f32.mrb[0].mxu0
      %v5105 = vadd.f32 0.0, %v5104
      %v5106 = vpop.f32.mrb[0].mxu0
      %v5107 = vpop.f32.mrb[0].mxu0
      %v5108 = vadd.f32 0.0, %v5107
      %v5109 = vpop.f32.mrb[0].mxu0
      %5110 = vdwg.mxu0
      %5111 = vrot.lane.b32.xlu0 %v538, 108
      %v5112 = vpop.permute.xlu0 %5111
      %v5115 = vsel %vm1364, %v5049, 0
      %5117 = vmatprep.subr.bf16.mxu0 0
      %5118 = vmatpush1.bf16.msra.mxu0 %v5112
      %5119 = vmatprep.subr.bf16.mxu0 0
      %5120 = vmatpush1.bf16.msra.mxu0 0
      %5121 = vmatprep.subr.bf16.mxu0 0
      %5122 = vmatpush1.bf16.msra.mxu0 0
      %5123 = vmatprep.subr.bf16.mxu0 0
      %5124 = vmatpush1.bf16.msra.mxu0 0
      %5125 = vmatprep.subr.bf16.mxu0 0
      %5126 = vmatpush1.bf16.msra.mxu0 0
      %5127 = vmatprep.subr.bf16.mxu0 0
      %5128 = vmatpush1.bf16.msra.mxu0 0
      %5129 = vmatprep.subr.bf16.mxu0 0
      %5130 = vmatpush1.bf16.msra.mxu0 0
      %5131 = vmatprep.subr.bf16.mxu0 0
      %5132 = vmatpush1.bf16.msra.mxu0 0
      %5133 = vmatprep.subr.bf16.mxu0 0
      %5134 = vmatpush1.bf16.msra.mxu0 0
      %5135 = vmatprep.subr.bf16.mxu0 0
      %5136 = vmatpush1.bf16.msra.mxu0 0
      %5137 = vmatprep.subr.bf16.mxu0 0
      %5138 = vmatpush1.bf16.msra.mxu0 0
      %5139 = vmatprep.subr.bf16.mxu0 0
      %5140 = vmatpush1.bf16.msra.mxu0 0
      %5141 = vmatprep.subr.bf16.mxu0 0
      %5142 = vmatpush1.bf16.msra.mxu0 0
      %5143 = vmatprep.subr.bf16.mxu0 0
      %5144 = vmatpush1.bf16.msra.mxu0 0
      %5145 = vmatprep.subr.bf16.mxu0 0
      %5146 = vmatpush1.bf16.msra.mxu0 0
      %5147 = vmatprep.subr.bf16.mxu0 0
      %5148 = vmatpush1.bf16.msra.mxu0 0
      %5149 = vmatprep.mubr.bf16.mxu0 0
      %5150 = vmatmul.mubr.bf16.gmra.mrb[0].mxu0 %v5115
      %v5151 = vpop.f32.mrb[0].mxu0
      %v5152 = vadd.f32 0.0, %v5151
      %v5153 = vpop.f32.mrb[0].mxu0
      %v5154 = vpop.f32.mrb[0].mxu0
      %v5155 = vadd.f32 0.0, %v5154
      %v5156 = vpop.f32.mrb[0].mxu0
      %5157 = vdwg.mxu0
      %5158 = vrot.lane.b32.xlu0 %v539, 108
      %v5159 = vpop.permute.xlu0 %5158
      %v5162 = vsel %vm1364, %v5050, 0
      %5164 = vmatprep.subr.bf16.mxu0 0
      %5165 = vmatpush1.bf16.msra.mxu0 %v5159
      %5166 = vmatprep.subr.bf16.mxu0 0
      %5167 = vmatpush1.bf16.msra.mxu0 0
      %5168 = vmatprep.subr.bf16.mxu0 0
      %5169 = vmatpush1.bf16.msra.mxu0 0
      %5170 = vmatprep.subr.bf16.mxu0 0
      %5171 = vmatpush1.bf16.msra.mxu0 0
      %5172 = vmatprep.subr.bf16.mxu0 0
      %5173 = vmatpush1.bf16.msra.mxu0 0
      %5174 = vmatprep.subr.bf16.mxu0 0
      %5175 = vmatpush1.bf16.msra.mxu0 0
      %5176 = vmatprep.subr.bf16.mxu0 0
      %5177 = vmatpush1.bf16.msra.mxu0 0
      %5178 = vmatprep.subr.bf16.mxu0 0
      %5179 = vmatpush1.bf16.msra.mxu0 0
      %5180 = vmatprep.subr.bf16.mxu0 0
      %5181 = vmatpush1.bf16.msra.mxu0 0
      %5182 = vmatprep.subr.bf16.mxu0 0
      %5183 = vmatpush1.bf16.msra.mxu0 0
      %5184 = vmatprep.subr.bf16.mxu0 0
      %5185 = vmatpush1.bf16.msra.mxu0 0
      %5186 = vmatprep.subr.bf16.mxu0 0
      %5187 = vmatpush1.bf16.msra.mxu0 0
      %5188 = vmatprep.subr.bf16.mxu0 0
      %5189 = vmatpush1.bf16.msra.mxu0 0
      %5190 = vmatprep.subr.bf16.mxu0 0
      %5191 = vmatpush1.bf16.msra.mxu0 0
      %5192 = vmatprep.subr.bf16.mxu0 0
      %5193 = vmatpush1.bf16.msra.mxu0 0
      %5194 = vmatprep.subr.bf16.mxu0 0
      %5195 = vmatpush1.bf16.msra.mxu0 0
      %5196 = vmatprep.mubr.bf16.mxu0 0
      %5197 = vmatmul.mubr.bf16.gmra.mrb[0].mxu0 %v5162
      %v5198 = vpop.f32.mrb[0].mxu0
      %v5199 = vadd.f32 0.0, %v5198
      %v5200 = vpop.f32.mrb[0].mxu0
      %v5201 = vpop.f32.mrb[0].mxu0
      %v5202 = vadd.f32 0.0, %v5201
      %v5203 = vpop.f32.mrb[0].mxu0
      %5204 = vdwg.mxu0
      %5205 = vrot.lane.b32.xlu0 %v540, 108
      %v5206 = vpop.permute.xlu0 %5205
      %v5209 = vsel %vm1364, %v5051, 0
      %5211 = vmatprep.subr.bf16.mxu0 0
      %5212 = vmatpush1.bf16.msra.mxu0 %v5206
      %5213 = vmatprep.subr.bf16.mxu0 0
      %5214 = vmatpush1.bf16.msra.mxu0 0
      %5215 = vmatprep.subr.bf16.mxu0 0
      %5216 = vmatpush1.bf16.msra.mxu0 0
      %5217 = vmatprep.subr.bf16.mxu0 0
      %5218 = vmatpush1.bf16.msra.mxu0 0
      %5219 = vmatprep.subr.bf16.mxu0 0
      %5220 = vmatpush1.bf16.msra.mxu0 0
      %5221 = vmatprep.subr.bf16.mxu0 0
      %5222 = vmatpush1.bf16.msra.mxu0 0
      %5223 = vmatprep.subr.bf16.mxu0 0
      %5224 = vmatpush1.bf16.msra.mxu0 0
      %5225 = vmatprep.subr.bf16.mxu0 0
      %5226 = vmatpush1.bf16.msra.mxu0 0
      %5227 = vmatprep.subr.bf16.mxu0 0
      %5228 = vmatpush1.bf16.msra.mxu0 0
      %5229 = vmatprep.subr.bf16.mxu0 0
      %5230 = vmatpush1.bf16.msra.mxu0 0
      %5231 = vmatprep.subr.bf16.mxu0 0
      %5232 = vmatpush1.bf16.msra.mxu0 0
      %5233 = vmatprep.subr.bf16.mxu0 0
      %5234 = vmatpush1.bf16.msra.mxu0 0
      %5235 = vmatprep.subr.bf16.mxu0 0
      %5236 = vmatpush1.bf16.msra.mxu0 0
      %5237 = vmatprep.subr.bf16.mxu0 0
      %5238 = vmatpush1.bf16.msra.mxu0 0
      %5239 = vmatprep.subr.bf16.mxu0 0
      %5240 = vmatpush1.bf16.msra.mxu0 0
      %5241 = vmatprep.subr.bf16.mxu0 0
      %5242 = vmatpush1.bf16.msra.mxu0 0
      %5243 = vmatprep.mubr.bf16.mxu0 0
      %5244 = vmatmul.mubr.bf16.gmra.mrb[0].mxu0 %v5209
      %v5245 = vpop.f32.mrb[0].mxu0
      %v5246 = vadd.f32 0.0, %v5245
      %v5247 = vpop.f32.mrb[0].mxu0
      %v5248 = vpop.f32.mrb[0].mxu0
      %v5249 = vadd.f32 0.0, %v5248
      %v5250 = vpop.f32.mrb[0].mxu0
      %5251 = vdwg.mxu0
      %5252 = vrot.lane.b32.xlu0 %v541, 108
      %v5253 = vpop.permute.xlu0 %5252
      %v5256 = vsel %vm1364, %v5052, 0
      %5258 = vmatprep.subr.bf16.mxu0 0
      %5259 = vmatpush1.bf16.msra.mxu0 %v5253
      %5260 = vmatprep.subr.bf16.mxu0 0
      %5261 = vmatpush1.bf16.msra.mxu0 0
      %5262 = vmatprep.subr.bf16.mxu0 0
      %5263 = vmatpush1.bf16.msra.mxu0 0
      %5264 = vmatprep.subr.bf16.mxu0 0
      %5265 = vmatpush1.bf16.msra.mxu0 0
      %5266 = vmatprep.subr.bf16.mxu0 0
      %5267 = vmatpush1.bf16.msra.mxu0 0
      %5268 = vmatprep.subr.bf16.mxu0 0
      %5269 = vmatpush1.bf16.msra.mxu0 0
      %5270 = vmatprep.subr.bf16.mxu0 0
      %5271 = vmatpush1.bf16.msra.mxu0 0
      %5272 = vmatprep.subr.bf16.mxu0 0
      %5273 = vmatpush1.bf16.msra.mxu0 0
      %5274 = vmatprep.subr.bf16.mxu0 0
      %5275 = vmatpush1.bf16.msra.mxu0 0
      %5276 = vmatprep.subr.bf16.mxu0 0
      %5277 = vmatpush1.bf16.msra.mxu0 0
      %5278 = vmatprep.subr.bf16.mxu0 0
      %5279 = vmatpush1.bf16.msra.mxu0 0
      %5280 = vmatprep.subr.bf16.mxu0 0
      %5281 = vmatpush1.bf16.msra.mxu0 0
      %5282 = vmatprep.subr.bf16.mxu0 0
      %5283 = vmatpush1.bf16.msra.mxu0 0
      %5284 = vmatprep.subr.bf16.mxu0 0
      %5285 = vmatpush1.bf16.msra.mxu0 0
      %5286 = vmatprep.subr.bf16.mxu0 0
      %5287 = vmatpush1.bf16.msra.mxu0 0
      %5288 = vmatprep.subr.bf16.mxu0 0
      %5289 = vmatpush1.bf16.msra.mxu0 0
      %5290 = vmatprep.mubr.bf16.mxu0 0
      %5291 = vmatmul.mubr.bf16.gmra.mrb[0].mxu0 %v5256
      %v5292 = vpop.f32.mrb[0].mxu0
      %v5293 = vadd.f32 0.0, %v5292
      %v5294 = vpop.f32.mrb[0].mxu0
      %v5295 = vpop.f32.mrb[0].mxu0
      %v5296 = vadd.f32 0.0, %v5295
      %v5297 = vpop.f32.mrb[0].mxu0
      %5298 = vdwg.mxu0
      %5299 = vrot.lane.b32.xlu0 %v542, 108
      %v5300 = vpop.permute.xlu0 %5299
      %v5303 = vsel %vm1364, %v5053, 0
      %5305 = vmatprep.subr.bf16.mxu0 0
      %5306 = vmatpush1.bf16.msra.mxu0 %v5300
      %5307 = vmatprep.subr.bf16.mxu0 0
      %5308 = vmatpush1.bf16.msra.mxu0 0
      %5309 = vmatprep.subr.bf16.mxu0 0
      %5310 = vmatpush1.bf16.msra.mxu0 0
      %5311 = vmatprep.subr.bf16.mxu0 0
      %5312 = vmatpush1.bf16.msra.mxu0 0
      %5313 = vmatprep.subr.bf16.mxu0 0
      %5314 = vmatpush1.bf16.msra.mxu0 0
      %5315 = vmatprep.subr.bf16.mxu0 0
      %5316 = vmatpush1.bf16.msra.mxu0 0
      %5317 = vmatprep.subr.bf16.mxu0 0
      %5318 = vmatpush1.bf16.msra.mxu0 0
      %5319 = vmatprep.subr.bf16.mxu0 0
      %5320 = vmatpush1.bf16.msra.mxu0 0
      %5321 = vmatprep.subr.bf16.mxu0 0
      %5322 = vmatpush1.bf16.msra.mxu0 0
      %5323 = vmatprep.subr.bf16.mxu0 0
      %5324 = vmatpush1.bf16.msra.mxu0 0
      %5325 = vmatprep.subr.bf16.mxu0 0
      %5326 = vmatpush1.bf16.msra.mxu0 0
      %5327 = vmatprep.subr.bf16.mxu0 0
      %5328 = vmatpush1.bf16.msra.mxu0 0
      %5329 = vmatprep.subr.bf16.mxu0 0
      %5330 = vmatpush1.bf16.msra.mxu0 0
      %5331 = vmatprep.subr.bf16.mxu0 0
      %5332 = vmatpush1.bf16.msra.mxu0 0
      %5333 = vmatprep.subr.bf16.mxu0 0
      %5334 = vmatpush1.bf16.msra.mxu0 0
      %5335 = vmatprep.subr.bf16.mxu0 0
      %5336 = vmatpush1.bf16.msra.mxu0 0
      %5337 = vmatprep.mubr.bf16.mxu0 0
      %5338 = vmatmul.mubr.bf16.gmra.mrb[0].mxu0 %v5303
      %v5339 = vpop.f32.mrb[0].mxu0
      %v5340 = vadd.f32 0.0, %v5339
      %v5341 = vpop.f32.mrb[0].mxu0
      %v5342 = vpop.f32.mrb[0].mxu0
      %v5343 = vadd.f32 0.0, %v5342
      %v5344 = vpop.f32.mrb[0].mxu0
      %5345 = vdwg.mxu0
      %5346 = vrot.lane.b32.xlu0 %v543, 108
      %v5347 = vpop.permute.xlu0 %5346
      %v5350 = vsel %vm1364, %v5054, 0
      %5352 = vmatprep.subr.bf16.mxu0 0
      %5353 = vmatpush1.bf16.msra.mxu0 %v5347
      %5354 = vmatprep.subr.bf16.mxu0 0
      %5355 = vmatpush1.bf16.msra.mxu0 0
      %5356 = vmatprep.subr.bf16.mxu0 0
      %5357 = vmatpush1.bf16.msra.mxu0 0
      %5358 = vmatprep.subr.bf16.mxu0 0
      %5359 = vmatpush1.bf16.msra.mxu0 0
      %5360 = vmatprep.subr.bf16.mxu0 0
      %5361 = vmatpush1.bf16.msra.mxu0 0
      %5362 = vmatprep.subr.bf16.mxu0 0
      %5363 = vmatpush1.bf16.msra.mxu0 0
      %5364 = vmatprep.subr.bf16.mxu0 0
      %5365 = vmatpush1.bf16.msra.mxu0 0
      %5366 = vmatprep.subr.bf16.mxu0 0
      %5367 = vmatpush1.bf16.msra.mxu0 0
      %5368 = vmatprep.subr.bf16.mxu0 0
      %5369 = vmatpush1.bf16.msra.mxu0 0
      %5370 = vmatprep.subr.bf16.mxu0 0
      %5371 = vmatpush1.bf16.msra.mxu0 0
      %5372 = vmatprep.subr.bf16.mxu0 0
      %5373 = vmatpush1.bf16.msra.mxu0 0
      %5374 = vmatprep.subr.bf16.mxu0 0
      %5375 = vmatpush1.bf16.msra.mxu0 0
      %5376 = vmatprep.subr.bf16.mxu0 0
      %5377 = vmatpush1.bf16.msra.mxu0 0
      %5378 = vmatprep.subr.bf16.mxu0 0
      %5379 = vmatpush1.bf16.msra.mxu0 0
      %5380 = vmatprep.subr.bf16.mxu0 0
      %5381 = vmatpush1.bf16.msra.mxu0 0
      %5382 = vmatprep.subr.bf16.mxu0 0
      %5383 = vmatpush1.bf16.msra.mxu0 0
      %5384 = vmatprep.mubr.bf16.mxu0 0
      %5385 = vmatmul.mubr.bf16.gmra.mrb[0].mxu0 %v5350
      %v5386 = vpop.f32.mrb[0].mxu0
      %v5387 = vadd.f32 0.0, %v5386
      %v5388 = vpop.f32.mrb[0].mxu0
      %v5389 = vpop.f32.mrb[0].mxu0
      %v5390 = vadd.f32 0.0, %v5389
      %v5391 = vpop.f32.mrb[0].mxu0
      %5392 = vdwg.mxu0
      %5393 = vrot.lane.b32.xlu0 %v544, 108
      %v5394 = vpop.permute.xlu0 %5393
      %v5397 = vsel %vm1364, %v5055, 0
      %5399 = vmatprep.subr.bf16.mxu0 0
      %5400 = vmatpush1.bf16.msra.mxu0 %v5394
      %5401 = vmatprep.subr.bf16.mxu0 0
      %5402 = vmatpush1.bf16.msra.mxu0 0
      %5403 = vmatprep.subr.bf16.mxu0 0
      %5404 = vmatpush1.bf16.msra.mxu0 0
      %5405 = vmatprep.subr.bf16.mxu0 0
      %5406 = vmatpush1.bf16.msra.mxu0 0
      %5407 = vmatprep.subr.bf16.mxu0 0
      %5408 = vmatpush1.bf16.msra.mxu0 0
      %5409 = vmatprep.subr.bf16.mxu0 0
      %5410 = vmatpush1.bf16.msra.mxu0 0
      %5411 = vmatprep.subr.bf16.mxu0 0
      %5412 = vmatpush1.bf16.msra.mxu0 0
      %5413 = vmatprep.subr.bf16.mxu0 0
      %5414 = vmatpush1.bf16.msra.mxu0 0
      %5415 = vmatprep.subr.bf16.mxu0 0
      %5416 = vmatpush1.bf16.msra.mxu0 0
      %5417 = vmatprep.subr.bf16.mxu0 0
      %5418 = vmatpush1.bf16.msra.mxu0 0
      %5419 = vmatprep.subr.bf16.mxu0 0
      %5420 = vmatpush1.bf16.msra.mxu0 0
      %5421 = vmatprep.subr.bf16.mxu0 0
      %5422 = vmatpush1.bf16.msra.mxu0 0
      %5423 = vmatprep.subr.bf16.mxu0 0
      %5424 = vmatpush1.bf16.msra.mxu0 0
      %5425 = vmatprep.subr.bf16.mxu0 0
      %5426 = vmatpush1.bf16.msra.mxu0 0
      %5427 = vmatprep.subr.bf16.mxu0 0
      %5428 = vmatpush1.bf16.msra.mxu0 0
      %5429 = vmatprep.subr.bf16.mxu0 0
      %5430 = vmatpush1.bf16.msra.mxu0 0
      %5431 = vmatprep.mubr.bf16.mxu0 0
      %5432 = vmatmul.mubr.bf16.gmra.mrb[0].mxu0 %v5397
      %v5433 = vpop.f32.mrb[0].mxu0
      %v5434 = vadd.f32 0.0, %v5433
      %v5435 = vpop.f32.mrb[0].mxu0
      %v5436 = vpop.f32.mrb[0].mxu0
      %v5437 = vadd.f32 0.0, %v5436
      %v5438 = vpop.f32.mrb[0].mxu0
      %5439 = vdwg.mxu0
      %5440 = vrot.lane.b32.xlu0 %v545, 108
      %v5441 = vpop.permute.xlu0 %5440
      %v5444 = vsel %vm1364, %v5056, 0
      %5446 = vmatprep.subr.bf16.mxu0 0
      %5447 = vmatpush1.bf16.msra.mxu0 %v5441
      %5448 = vmatprep.subr.bf16.mxu0 0
      %5449 = vmatpush1.bf16.msra.mxu0 0
      %5450 = vmatprep.subr.bf16.mxu0 0
      %5451 = vmatpush1.bf16.msra.mxu0 0
      %5452 = vmatprep.subr.bf16.mxu0 0
      %5453 = vmatpush1.bf16.msra.mxu0 0
      %5454 = vmatprep.subr.bf16.mxu0 0
      %5455 = vmatpush1.bf16.msra.mxu0 0
      %5456 = vmatprep.subr.bf16.mxu0 0
      %5457 = vmatpush1.bf16.msra.mxu0 0
      %5458 = vmatprep.subr.bf16.mxu0 0
      %5459 = vmatpush1.bf16.msra.mxu0 0
      %5460 = vmatprep.subr.bf16.mxu0 0
      %5461 = vmatpush1.bf16.msra.mxu0 0
      %5462 = vmatprep.subr.bf16.mxu0 0
      %5463 = vmatpush1.bf16.msra.mxu0 0
      %5464 = vmatprep.subr.bf16.mxu0 0
      %5465 = vmatpush1.bf16.msra.mxu0 0
      %5466 = vmatprep.subr.bf16.mxu0 0
      %5467 = vmatpush1.bf16.msra.mxu0 0
      %5468 = vmatprep.subr.bf16.mxu0 0
      %5469 = vmatpush1.bf16.msra.mxu0 0
      %5470 = vmatprep.subr.bf16.mxu0 0
      %5471 = vmatpush1.bf16.msra.mxu0 0
      %5472 = vmatprep.subr.bf16.mxu0 0
      %5473 = vmatpush1.bf16.msra.mxu0 0
      %5474 = vmatprep.subr.bf16.mxu0 0
      %5475 = vmatpush1.bf16.msra.mxu0 0
      %5476 = vmatprep.subr.bf16.mxu0 0
      %5477 = vmatpush1.bf16.msra.mxu0 0
      %5478 = vmatprep.mubr.bf16.mxu0 0
      %5479 = vmatmul.mubr.bf16.gmra.mrb[0].mxu0 %v5444
      %v5480 = vpop.f32.mrb[0].mxu0
      %v5481 = vadd.f32 0.0, %v5480
      %v5482 = vpop.f32.mrb[0].mxu0
      %v5483 = vpop.f32.mrb[0].mxu0
      %v5484 = vadd.f32 0.0, %v5483
      %v5485 = vpop.f32.mrb[0].mxu0
      %5486 = vdwg.mxu0
      %5487 = vrot.lane.b32.xlu0 %v546, 108
      %v5488 = vpop.permute.xlu0 %5487
      %v5491 = vsel %vm1364, %v5057, 0
      %5493 = vmatprep.subr.bf16.mxu0 0
      %5494 = vmatpush1.bf16.msra.mxu0 %v5488
      %5495 = vmatprep.subr.bf16.mxu0 0
      %5496 = vmatpush1.bf16.msra.mxu0 0
      %5497 = vmatprep.subr.bf16.mxu0 0
      %5498 = vmatpush1.bf16.msra.mxu0 0
      %5499 = vmatprep.subr.bf16.mxu0 0
      %5500 = vmatpush1.bf16.msra.mxu0 0
      %5501 = vmatprep.subr.bf16.mxu0 0
      %5502 = vmatpush1.bf16.msra.mxu0 0
      %5503 = vmatprep.subr.bf16.mxu0 0
      %5504 = vmatpush1.bf16.msra.mxu0 0
      %5505 = vmatprep.subr.bf16.mxu0 0
      %5506 = vmatpush1.bf16.msra.mxu0 0
      %5507 = vmatprep.subr.bf16.mxu0 0
      %5508 = vmatpush1.bf16.msra.mxu0 0
      %5509 = vmatprep.subr.bf16.mxu0 0
      %5510 = vmatpush1.bf16.msra.mxu0 0
      %5511 = vmatprep.subr.bf16.mxu0 0
      %5512 = vmatpush1.bf16.msra.mxu0 0
      %5513 = vmatprep.subr.bf16.mxu0 0
      %5514 = vmatpush1.bf16.msra.mxu0 0
      %5515 = vmatprep.subr.bf16.mxu0 0
      %5516 = vmatpush1.bf16.msra.mxu0 0
      %5517 = vmatprep.subr.bf16.mxu0 0
      %5518 = vmatpush1.bf16.msra.mxu0 0
      %5519 = vmatprep.subr.bf16.mxu0 0
      %5520 = vmatpush1.bf16.msra.mxu0 0
      %5521 = vmatprep.subr.bf16.mxu0 0
      %5522 = vmatpush1.bf16.msra.mxu0 0
      %5523 = vmatprep.subr.bf16.mxu0 0
      %5524 = vmatpush1.bf16.msra.mxu0 0
      %5525 = vmatprep.mubr.bf16.mxu0 0
      %5526 = vmatmul.mubr.bf16.gmra.mrb[0].mxu0 %v5491
      %v5527 = vpop.f32.mrb[0].mxu0
      %v5528 = vadd.f32 0.0, %v5527
      %v5529 = vpop.f32.mrb[0].mxu0
      %v5530 = vpop.f32.mrb[0].mxu0
      %v5531 = vadd.f32 0.0, %v5530
      %v5532 = vpop.f32.mrb[0].mxu0
      %5533 = vdwg.mxu0
      %5534 = vrot.lane.b32.xlu0 %v547, 108
      %v5535 = vpop.permute.xlu0 %5534
      %v5538 = vsel %vm1364, %v5058, 0
      %5540 = vmatprep.subr.bf16.mxu0 0
      %5541 = vmatpush1.bf16.msra.mxu0 %v5535
      %5542 = vmatprep.subr.bf16.mxu0 0
      %5543 = vmatpush1.bf16.msra.mxu0 0
      %5544 = vmatprep.subr.bf16.mxu0 0
      %5545 = vmatpush1.bf16.msra.mxu0 0
      %5546 = vmatprep.subr.bf16.mxu0 0
      %5547 = vmatpush1.bf16.msra.mxu0 0
      %5548 = vmatprep.subr.bf16.mxu0 0
      %5549 = vmatpush1.bf16.msra.mxu0 0
      %5550 = vmatprep.subr.bf16.mxu0 0
      %5551 = vmatpush1.bf16.msra.mxu0 0
      %5552 = vmatprep.subr.bf16.mxu0 0
      %5553 = vmatpush1.bf16.msra.mxu0 0
      %5554 = vmatprep.subr.bf16.mxu0 0
      %5555 = vmatpush1.bf16.msra.mxu0 0
      %5556 = vmatprep.subr.bf16.mxu0 0
      %5557 = vmatpush1.bf16.msra.mxu0 0
      %5558 = vmatprep.subr.bf16.mxu0 0
      %5559 = vmatpush1.bf16.msra.mxu0 0
      %5560 = vmatprep.subr.bf16.mxu0 0
      %5561 = vmatpush1.bf16.msra.mxu0 0
      %5562 = vmatprep.subr.bf16.mxu0 0
      %5563 = vmatpush1.bf16.msra.mxu0 0
      %5564 = vmatprep.subr.bf16.mxu0 0
      %5565 = vmatpush1.bf16.msra.mxu0 0
      %5566 = vmatprep.subr.bf16.mxu0 0
      %5567 = vmatpush1.bf16.msra.mxu0 0
      %5568 = vmatprep.subr.bf16.mxu0 0
      %5569 = vmatpush1.bf16.msra.mxu0 0
      %5570 = vmatprep.subr.bf16.mxu0 0
      %5571 = vmatpush1.bf16.msra.mxu0 0
      %5572 = vmatprep.mubr.bf16.mxu0 0
      %5573 = vmatmul.mubr.bf16.gmra.mrb[0].mxu0 %v5538
      %v5574 = vpop.f32.mrb[0].mxu0
      %v5575 = vadd.f32 0.0, %v5574
      %v5576 = vpop.f32.mrb[0].mxu0
      %v5577 = vpop.f32.mrb[0].mxu0
      %v5578 = vadd.f32 0.0, %v5577
      %v5579 = vpop.f32.mrb[0].mxu0
      %5580 = vdwg.mxu0
      %5581 = vrot.lane.b32.xlu0 %v548, 108
      %v5582 = vpop.permute.xlu0 %5581
      %v5585 = vsel %vm1364, %v5059, 0
      %5587 = vmatprep.subr.bf16.mxu0 0
      %5588 = vmatpush1.bf16.msra.mxu0 %v5582
      %5589 = vmatprep.subr.bf16.mxu0 0
      %5590 = vmatpush1.bf16.msra.mxu0 0
      %5591 = vmatprep.subr.bf16.mxu0 0
      %5592 = vmatpush1.bf16.msra.mxu0 0
      %5593 = vmatprep.subr.bf16.mxu0 0
      %5594 = vmatpush1.bf16.msra.mxu0 0
      %5595 = vmatprep.subr.bf16.mxu0 0
      %5596 = vmatpush1.bf16.msra.mxu0 0
      %5597 = vmatprep.subr.bf16.mxu0 0
      %5598 = vmatpush1.bf16.msra.mxu0 0
      %5599 = vmatprep.subr.bf16.mxu0 0
      %5600 = vmatpush1.bf16.msra.mxu0 0
      %5601 = vmatprep.subr.bf16.mxu0 0
      %5602 = vmatpush1.bf16.msra.mxu0 0
      %5603 = vmatprep.subr.bf16.mxu0 0
      %5604 = vmatpush1.bf16.msra.mxu0 0
      %5605 = vmatprep.subr.bf16.mxu0 0
      %5606 = vmatpush1.bf16.msra.mxu0 0
      %5607 = vmatprep.subr.bf16.mxu0 0
      %5608 = vmatpush1.bf16.msra.mxu0 0
      %5609 = vmatprep.subr.bf16.mxu0 0
      %5610 = vmatpush1.bf16.msra.mxu0 0
      %5611 = vmatprep.subr.bf16.mxu0 0
      %5612 = vmatpush1.bf16.msra.mxu0 0
      %5613 = vmatprep.subr.bf16.mxu0 0
      %5614 = vmatpush1.bf16.msra.mxu0 0
      %5615 = vmatprep.subr.bf16.mxu0 0
      %5616 = vmatpush1.bf16.msra.mxu0 0
      %5617 = vmatprep.subr.bf16.mxu0 0
      %5618 = vmatpush1.bf16.msra.mxu0 0
      %5619 = vmatprep.mubr.bf16.mxu0 0
      %5620 = vmatmul.mubr.bf16.gmra.mrb[0].mxu0 %v5585
      %v5621 = vpop.f32.mrb[0].mxu0
      %v5622 = vadd.f32 0.0, %v5621
      %v5623 = vpop.f32.mrb[0].mxu0
      %v5624 = vpop.f32.mrb[0].mxu0
      %v5625 = vadd.f32 0.0, %v5624
      %v5626 = vpop.f32.mrb[0].mxu0
      %5627 = vdwg.mxu0
      %5628 = vrot.lane.b32.xlu0 %v549, 108
      %v5629 = vpop.permute.xlu0 %5628
      %v5632 = vsel %vm1364, %v5060, 0
      %5634 = vmatprep.subr.bf16.mxu0 0
      %5635 = vmatpush1.bf16.msra.mxu0 %v5629
      %5636 = vmatprep.subr.bf16.mxu0 0
      %5637 = vmatpush1.bf16.msra.mxu0 0
      %5638 = vmatprep.subr.bf16.mxu0 0
      %5639 = vmatpush1.bf16.msra.mxu0 0
      %5640 = vmatprep.subr.bf16.mxu0 0
      %5641 = vmatpush1.bf16.msra.mxu0 0
      %5642 = vmatprep.subr.bf16.mxu0 0
      %5643 = vmatpush1.bf16.msra.mxu0 0
      %5644 = vmatprep.subr.bf16.mxu0 0
      %5645 = vmatpush1.bf16.msra.mxu0 0
      %5646 = vmatprep.subr.bf16.mxu0 0
      %5647 = vmatpush1.bf16.msra.mxu0 0
      %5648 = vmatprep.subr.bf16.mxu0 0
      %5649 = vmatpush1.bf16.msra.mxu0 0
      %5650 = vmatprep.subr.bf16.mxu0 0
      %5651 = vmatpush1.bf16.msra.mxu0 0
      %5652 = vmatprep.subr.bf16.mxu0 0
      %5653 = vmatpush1.bf16.msra.mxu0 0
      %5654 = vmatprep.subr.bf16.mxu0 0
      %5655 = vmatpush1.bf16.msra.mxu0 0
      %5656 = vmatprep.subr.bf16.mxu0 0
      %5657 = vmatpush1.bf16.msra.mxu0 0
      %5658 = vmatprep.subr.bf16.mxu0 0
      %5659 = vmatpush1.bf16.msra.mxu0 0
      %5660 = vmatprep.subr.bf16.mxu0 0
      %5661 = vmatpush1.bf16.msra.mxu0 0
      %5662 = vmatprep.subr.bf16.mxu0 0
      %5663 = vmatpush1.bf16.msra.mxu0 0
      %5664 = vmatprep.subr.bf16.mxu0 0
      %5665 = vmatpush1.bf16.msra.mxu0 0
      %5666 = vmatprep.mubr.bf16.mxu0 0
      %5667 = vmatmul.mubr.bf16.gmra.mrb[0].mxu0 %v5632
      %v5668 = vpop.f32.mrb[0].mxu0
      %v5669 = vadd.f32 0.0, %v5668
      %v5670 = vpop.f32.mrb[0].mxu0
      %v5671 = vpop.f32.mrb[0].mxu0
      %v5672 = vadd.f32 0.0, %v5671
      %v5673 = vpop.f32.mrb[0].mxu0
      %5674 = vdwg.mxu0
      %5675 = vrot.lane.b32.xlu0 %v550, 108
      %v5676 = vpop.permute.xlu0 %5675
      %v5679 = vsel %vm1364, %v5061, 0
      %5681 = vmatprep.subr.bf16.mxu0 0
      %5682 = vmatpush1.bf16.msra.mxu0 %v5676
      %5683 = vmatprep.subr.bf16.mxu0 0
      %5684 = vmatpush1.bf16.msra.mxu0 0
      %5685 = vmatprep.subr.bf16.mxu0 0
      %5686 = vmatpush1.bf16.msra.mxu0 0
      %5687 = vmatprep.subr.bf16.mxu0 0
      %5688 = vmatpush1.bf16.msra.mxu0 0
      %5689 = vmatprep.subr.bf16.mxu0 0
      %5690 = vmatpush1.bf16.msra.mxu0 0
      %5691 = vmatprep.subr.bf16.mxu0 0
      %5692 = vmatpush1.bf16.msra.mxu0 0
      %5693 = vmatprep.subr.bf16.mxu0 0
      %5694 = vmatpush1.bf16.msra.mxu0 0
      %5695 = vmatprep.subr.bf16.mxu0 0
      %5696 = vmatpush1.bf16.msra.mxu0 0
      %5697 = vmatprep.subr.bf16.mxu0 0
      %5698 = vmatpush1.bf16.msra.mxu0 0
      %5699 = vmatprep.subr.bf16.mxu0 0
      %5700 = vmatpush1.bf16.msra.mxu0 0
      %5701 = vmatprep.subr.bf16.mxu0 0
      %5702 = vmatpush1.bf16.msra.mxu0 0
      %5703 = vmatprep.subr.bf16.mxu0 0
      %5704 = vmatpush1.bf16.msra.mxu0 0
      %5705 = vmatprep.subr.bf16.mxu0 0
      %5706 = vmatpush1.bf16.msra.mxu0 0
      %5707 = vmatprep.subr.bf16.mxu0 0
      %5708 = vmatpush1.bf16.msra.mxu0 0
      %5709 = vmatprep.subr.bf16.mxu0 0
      %5710 = vmatpush1.bf16.msra.mxu0 0
      %5711 = vmatprep.subr.bf16.mxu0 0
      %5712 = vmatpush1.bf16.msra.mxu0 0
      %5713 = vmatprep.mubr.bf16.mxu0 0
      %5714 = vmatmul.mubr.bf16.gmra.mrb[0].mxu0 %v5679
      %v5715 = vpop.f32.mrb[0].mxu0
      %v5716 = vadd.f32 0.0, %v5715
      %v5717 = vpop.f32.mrb[0].mxu0
      %v5718 = vpop.f32.mrb[0].mxu0
      %v5719 = vadd.f32 0.0, %v5718
      %v5720 = vpop.f32.mrb[0].mxu0
      %5721 = vdwg.mxu0
      %5722 = vrot.lane.b32.xlu0 %v551, 108
      %v5723 = vpop.permute.xlu0 %5722
      %v5726 = vsel %vm1364, %v5062, 0
      %5728 = vmatprep.subr.bf16.mxu0 0
      %5729 = vmatpush1.bf16.msra.mxu0 %v5723
      %5730 = vmatprep.subr.bf16.mxu0 0
      %5731 = vmatpush1.bf16.msra.mxu0 0
      %5732 = vmatprep.subr.bf16.mxu0 0
      %5733 = vmatpush1.bf16.msra.mxu0 0
      %5734 = vmatprep.subr.bf16.mxu0 0
      %5735 = vmatpush1.bf16.msra.mxu0 0
      %5736 = vmatprep.subr.bf16.mxu0 0
      %5737 = vmatpush1.bf16.msra.mxu0 0
      %5738 = vmatprep.subr.bf16.mxu0 0
      %5739 = vmatpush1.bf16.msra.mxu0 0
      %5740 = vmatprep.subr.bf16.mxu0 0
      %5741 = vmatpush1.bf16.msra.mxu0 0
      %5742 = vmatprep.subr.bf16.mxu0 0
      %5743 = vmatpush1.bf16.msra.mxu0 0
      %5744 = vmatprep.subr.bf16.mxu0 0
      %5745 = vmatpush1.bf16.msra.mxu0 0
      %5746 = vmatprep.subr.bf16.mxu0 0
      %5747 = vmatpush1.bf16.msra.mxu0 0
      %5748 = vmatprep.subr.bf16.mxu0 0
      %5749 = vmatpush1.bf16.msra.mxu0 0
      %5750 = vmatprep.subr.bf16.mxu0 0
      %5751 = vmatpush1.bf16.msra.mxu0 0
      %5752 = vmatprep.subr.bf16.mxu0 0
      %5753 = vmatpush1.bf16.msra.mxu0 0
      %5754 = vmatprep.subr.bf16.mxu0 0
      %5755 = vmatpush1.bf16.msra.mxu0 0
      %5756 = vmatprep.subr.bf16.mxu0 0
      %5757 = vmatpush1.bf16.msra.mxu0 0
      %5758 = vmatprep.subr.bf16.mxu0 0
      %5759 = vmatpush1.bf16.msra.mxu0 0
      %5760 = vmatprep.mubr.bf16.mxu0 0
      %5761 = vmatmul.mubr.bf16.gmra.mrb[0].mxu0 %v5726
      %v5762 = vpop.f32.mrb[0].mxu0
      %v5763 = vadd.f32 0.0, %v5762
      %v5764 = vpop.f32.mrb[0].mxu0
      %v5765 = vpop.f32.mrb[0].mxu0
      %v5766 = vadd.f32 0.0, %v5765
      %v5767 = vpop.f32.mrb[0].mxu0
      %5768 = vdwg.mxu0
      %5769 = vrot.lane.b32.xlu0 %v552, 108
      %v5770 = vpop.permute.xlu0 %5769
      %v5773 = vsel %vm1364, %v5063, 0
      %5775 = vmatprep.subr.bf16.mxu0 0
      %5776 = vmatpush1.bf16.msra.mxu0 %v5770
      %5777 = vmatprep.subr.bf16.mxu0 0
      %5778 = vmatpush1.bf16.msra.mxu0 0
      %5779 = vmatprep.subr.bf16.mxu0 0
      %5780 = vmatpush1.bf16.msra.mxu0 0
      %5781 = vmatprep.subr.bf16.mxu0 0
      %5782 = vmatpush1.bf16.msra.mxu0 0
      %5783 = vmatprep.subr.bf16.mxu0 0
      %5784 = vmatpush1.bf16.msra.mxu0 0
      %5785 = vmatprep.subr.bf16.mxu0 0
      %5786 = vmatpush1.bf16.msra.mxu0 0
      %5787 = vmatprep.subr.bf16.mxu0 0
      %5788 = vmatpush1.bf16.msra.mxu0 0
      %5789 = vmatprep.subr.bf16.mxu0 0
      %5790 = vmatpush1.bf16.msra.mxu0 0
      %5791 = vmatprep.subr.bf16.mxu0 0
      %5792 = vmatpush1.bf16.msra.mxu0 0
      %5793 = vmatprep.subr.bf16.mxu0 0
      %5794 = vmatpush1.bf16.msra.mxu0 0
      %5795 = vmatprep.subr.bf16.mxu0 0
      %5796 = vmatpush1.bf16.msra.mxu0 0
      %5797 = vmatprep.subr.bf16.mxu0 0
      %5798 = vmatpush1.bf16.msra.mxu0 0
      %5799 = vmatprep.subr.bf16.mxu0 0
      %5800 = vmatpush1.bf16.msra.mxu0 0
      %5801 = vmatprep.subr.bf16.mxu0 0
      %5802 = vmatpush1.bf16.msra.mxu0 0
      %5803 = vmatprep.subr.bf16.mxu0 0
      %5804 = vmatpush1.bf16.msra.mxu0 0
      %5805 = vmatprep.subr.bf16.mxu0 0
      %5806 = vmatpush1.bf16.msra.mxu0 0
      %5807 = vmatprep.mubr.bf16.mxu0 0
      %5808 = vmatmul.mubr.bf16.gmra.mrb[0].mxu0 %v5773
      %v5809 = vpop.f32.mrb[0].mxu0
      %v5810 = vadd.f32 0.0, %v5809
      %v5811 = vpop.f32.mrb[0].mxu0
      %v5812 = vpop.f32.mrb[0].mxu0
      %v5813 = vadd.f32 0.0, %v5812
      %v5814 = vpop.f32.mrb[0].mxu0
      %5815 = vdwg.mxu0
      %5848 = vrot.lane.b32.xlu0 %v5105, 4
      %v5849 = vpop.permute.xlu0 %5848
      %5850 = vrot.lane.b32.xlu0 %v5108, 4
      %v5851 = vpop.permute.xlu0 %5850
      %5852 = vrot.lane.b32.xlu0 %v5152, 4
      %v5853 = vpop.permute.xlu0 %5852
      %5854 = vrot.lane.b32.xlu0 %v5155, 4
      %v5855 = vpop.permute.xlu0 %5854
      %5856 = vrot.lane.b32.xlu0 %v5199, 4
      %v5857 = vpop.permute.xlu0 %5856
      %5858 = vrot.lane.b32.xlu0 %v5202, 4
      %v5859 = vpop.permute.xlu0 %5858
      %5860 = vrot.lane.b32.xlu0 %v5246, 4
      %v5861 = vpop.permute.xlu0 %5860
      %5862 = vrot.lane.b32.xlu0 %v5249, 4
      %v5863 = vpop.permute.xlu0 %5862
      %5864 = vrot.lane.b32.xlu0 %v5293, 4
      %v5865 = vpop.permute.xlu0 %5864
      %5866 = vrot.lane.b32.xlu0 %v5296, 4
      %v5867 = vpop.permute.xlu0 %5866
      %5868 = vrot.lane.b32.xlu0 %v5340, 4
      %v5869 = vpop.permute.xlu0 %5868
      %5870 = vrot.lane.b32.xlu0 %v5343, 4
      %v5871 = vpop.permute.xlu0 %5870
      %5872 = vrot.lane.b32.xlu0 %v5387, 4
      %v5873 = vpop.permute.xlu0 %5872
      %5874 = vrot.lane.b32.xlu0 %v5390, 4
      %v5875 = vpop.permute.xlu0 %5874
      %5876 = vrot.lane.b32.xlu0 %v5434, 4
      %v5877 = vpop.permute.xlu0 %5876
      %5878 = vrot.lane.b32.xlu0 %v5437, 4
      %v5879 = vpop.permute.xlu0 %5878
      %5880 = vrot.lane.b32.xlu0 %v5481, 4
      %v5881 = vpop.permute.xlu0 %5880
      %5882 = vrot.lane.b32.xlu0 %v5484, 4
      %v5883 = vpop.permute.xlu0 %5882
      %5884 = vrot.lane.b32.xlu0 %v5528, 4
      %v5885 = vpop.permute.xlu0 %5884
      %5886 = vrot.lane.b32.xlu0 %v5531, 4
      %v5887 = vpop.permute.xlu0 %5886
      %5888 = vrot.lane.b32.xlu0 %v5575, 4
      %v5889 = vpop.permute.xlu0 %5888
      %5890 = vrot.lane.b32.xlu0 %v5578, 4
      %v5891 = vpop.permute.xlu0 %5890
      %5892 = vrot.lane.b32.xlu0 %v5622, 4
      %v5893 = vpop.permute.xlu0 %5892
      %5894 = vrot.lane.b32.xlu0 %v5625, 4
      %v5895 = vpop.permute.xlu0 %5894
      %5896 = vrot.lane.b32.xlu0 %v5669, 4
      %v5897 = vpop.permute.xlu0 %5896
      %5898 = vrot.lane.b32.xlu0 %v5672, 4
      %v5899 = vpop.permute.xlu0 %5898
      %5900 = vrot.lane.b32.xlu0 %v5716, 4
      %v5901 = vpop.permute.xlu0 %5900
      %5902 = vrot.lane.b32.xlu0 %v5719, 4
      %v5903 = vpop.permute.xlu0 %5902
      %5904 = vrot.lane.b32.xlu0 %v5763, 4
      %v5905 = vpop.permute.xlu0 %5904
      %5906 = vrot.lane.b32.xlu0 %v5766, 4
      %v5907 = vpop.permute.xlu0 %5906
      %5908 = vrot.lane.b32.xlu0 %v5810, 4
      %v5909 = vpop.permute.xlu0 %5908
      %5910 = vrot.lane.b32.xlu0 %v5813, 4
      %v5911 = vpop.permute.xlu0 %5910
      %v5944 = vsel %vm1962, %v3169, %v5849
      %v5945 = vsel %vm1962, %v3172, %v5851
      %v5946 = vsel %vm1962, %v3216, %v5853
      %v5947 = vsel %vm1962, %v3219, %v5855
      %v5948 = vsel %vm1962, %v3263, %v5857
      %v5949 = vsel %vm1962, %v3266, %v5859
      %v5950 = vsel %vm1962, %v3310, %v5861
      %v5951 = vsel %vm1962, %v3313, %v5863
      %v5952 = vsel %vm1962, %v3357, %v5865
      %v5953 = vsel %vm1962, %v3360, %v5867
      %v5954 = vsel %vm1962, %v3404, %v5869
      %v5955 = vsel %vm1962, %v3407, %v5871
      %v5956 = vsel %vm1962, %v3451, %v5873
      %v5957 = vsel %vm1962, %v3454, %v5875
      %v5958 = vsel %vm1962, %v3498, %v5877
      %v5959 = vsel %vm1962, %v3501, %v5879
      %v5960 = vsel %vm1962, %v3545, %v5881
      %v5961 = vsel %vm1962, %v3548, %v5883
      %v5962 = vsel %vm1962, %v3592, %v5885
      %v5963 = vsel %vm1962, %v3595, %v5887
      %v5964 = vsel %vm1962, %v3639, %v5889
      %v5965 = vsel %vm1962, %v3642, %v5891
      %v5966 = vsel %vm1962, %v3686, %v5893
      %v5967 = vsel %vm1962, %v3689, %v5895
      %v5968 = vsel %vm1962, %v3733, %v5897
      %v5969 = vsel %vm1962, %v3736, %v5899
      %v5970 = vsel %vm1962, %v3780, %v5901
      %v5971 = vsel %vm1962, %v3783, %v5903
      %v5972 = vsel %vm1962, %v3827, %v5905
      %v5973 = vsel %vm1962, %v3830, %v5907
      %v5974 = vsel %vm1962, %v3874, %v5909
      %v5975 = vsel %vm1962, %v3877, %v5911
      %5977 = vrot.lane.b32.xlu0 %v1943, 120
      %v5978 = vpop.permute.xlu0 %5977
      %v5980 = vsel %vm1962, %v1943, 0
      %v5983 = vsel %vm1962, %v5978, 0
      %5985 = vmatprep.subr.bf16.mxu0 0
      %5986 = vmatpush1.bf16.xpose.msra.mxu0 %v5983
      %5987 = vmatprep.subr.bf16.mxu0 0
      %5988 = vmatpush1.bf16.xpose.msra.mxu0 0
      %5989 = vmatprep.subr.bf16.mxu0 0
      %5990 = vmatpush1.bf16.xpose.msra.mxu0 0
      %5991 = vmatprep.subr.bf16.mxu0 0
      %5992 = vmatpush1.bf16.xpose.msra.mxu0 0
      %5993 = vmatprep.subr.bf16.mxu0 0
      %5994 = vmatpush1.bf16.xpose.msra.mxu0 0
      %5995 = vmatprep.subr.bf16.mxu0 0
      %5996 = vmatpush1.bf16.xpose.msra.mxu0 0
      %5997 = vmatprep.subr.bf16.mxu0 0
      %5998 = vmatpush1.bf16.xpose.msra.mxu0 0
      %5999 = vmatprep.subr.bf16.mxu0 0
      %6000 = vmatpush1.bf16.xpose.msra.mxu0 0
      %6001 = vmatprep.subr.bf16.mxu0 0
      %6002 = vmatpush1.bf16.xpose.msra.mxu0 0
      %6003 = vmatprep.subr.bf16.mxu0 0
      %6004 = vmatpush1.bf16.xpose.msra.mxu0 0
      %6005 = vmatprep.subr.bf16.mxu0 0
      %6006 = vmatpush1.bf16.xpose.msra.mxu0 0
      %6007 = vmatprep.subr.bf16.mxu0 0
      %6008 = vmatpush1.bf16.xpose.msra.mxu0 0
      %6009 = vmatprep.subr.bf16.mxu0 0
      %6010 = vmatpush1.bf16.xpose.msra.mxu0 0
      %6011 = vmatprep.subr.bf16.mxu0 0
      %6012 = vmatpush1.bf16.xpose.msra.mxu0 0
      %6013 = vmatprep.subr.bf16.mxu0 0
      %6014 = vmatpush1.bf16.xpose.msra.mxu0 0
      %6015 = vmatprep.subr.bf16.mxu0 0
      %6016 = vmatpush1.bf16.xpose.msra.mxu0 0
      %6017 = vmatprep.mubr.bf16.mxu0 0
      %6018 = vmatmul.mubr.bf16.gmra.mrb[0].mxu0 %v5980
      %v6019 = vpop.f32.mrb[0].mxu0
      %v6020 = vadd.f32 0.0, %v6019
      %v6021 = vpop.f32.mrb[0].mxu0
      %v6022 = vpop.f32.mrb[0].mxu0
      %v6023 = vadd.f32 0.0, %v6022
      %v6024 = vpop.f32.mrb[0].mxu0
      %6025 = vdwg.mxu0
      %6027 = vrot.lane.b32.xlu0 %v1944, 120
      %v6028 = vpop.permute.xlu0 %6027
      %v6030 = vsel %vm1962, %v1944, 0
      %v6033 = vsel %vm1962, %v6028, 0
      %6035 = vmatprep.subr.bf16.mxu0 0
      %6036 = vmatpush1.bf16.xpose.msra.mxu0 %v6033
      %6037 = vmatprep.subr.bf16.mxu0 0
      %6038 = vmatpush1.bf16.xpose.msra.mxu0 0
      %6039 = vmatprep.subr.bf16.mxu0 0
      %6040 = vmatpush1.bf16.xpose.msra.mxu0 0
      %6041 = vmatprep.subr.bf16.mxu0 0
      %6042 = vmatpush1.bf16.xpose.msra.mxu0 0
      %6043 = vmatprep.subr.bf16.mxu0 0
      %6044 = vmatpush1.bf16.xpose.msra.mxu0 0
      %6045 = vmatprep.subr.bf16.mxu0 0
      %6046 = vmatpush1.bf16.xpose.msra.mxu0 0
      %6047 = vmatprep.subr.bf16.mxu0 0
      %6048 = vmatpush1.bf16.xpose.msra.mxu0 0
      %6049 = vmatprep.subr.bf16.mxu0 0
      %6050 = vmatpush1.bf16.xpose.msra.mxu0 0
      %6051 = vmatprep.subr.bf16.mxu0 0
      %6052 = vmatpush1.bf16.xpose.msra.mxu0 0
      %6053 = vmatprep.subr.bf16.mxu0 0
      %6054 = vmatpush1.bf16.xpose.msra.mxu0 0
      %6055 = vmatprep.subr.bf16.mxu0 0
      %6056 = vmatpush1.bf16.xpose.msra.mxu0 0
      %6057 = vmatprep.subr.bf16.mxu0 0
      %6058 = vmatpush1.bf16.xpose.msra.mxu0 0
      %6059 = vmatprep.subr.bf16.mxu0 0
      %6060 = vmatpush1.bf16.xpose.msra.mxu0 0
      %6061 = vmatprep.subr.bf16.mxu0 0
      %6062 = vmatpush1.bf16.xpose.msra.mxu0 0
      %6063 = vmatprep.subr.bf16.mxu0 0
      %6064 = vmatpush1.bf16.xpose.msra.mxu0 0
      %6065 = vmatprep.subr.bf16.mxu0 0
      %6066 = vmatpush1.bf16.xpose.msra.mxu0 0
      %6067 = vmatprep.mubr.bf16.mxu0 0
      %6068 = vmatmul.mubr.bf16.gmra.mrb[0].mxu0 %v6030
      %v6069 = vpop.f32.mrb[0].mxu0
      %v6070 = vadd.f32 0.0, %v6069
      %v6071 = vpop.f32.mrb[0].mxu0
      %v6072 = vpop.f32.mrb[0].mxu0
      %v6073 = vadd.f32 0.0, %v6072
      %v6074 = vpop.f32.mrb[0].mxu0
      %6075 = vdwg.mxu0
      %6077 = vrot.lane.b32.xlu0 %v1945, 120
      %v6078 = vpop.permute.xlu0 %6077
      %v6080 = vsel %vm1962, %v1945, 0
      %v6083 = vsel %vm1962, %v6078, 0
      %6085 = vmatprep.subr.bf16.mxu0 0
      %6086 = vmatpush1.bf16.xpose.msra.mxu0 %v6083
      %6087 = vmatprep.subr.bf16.mxu0 0
      %6088 = vmatpush1.bf16.xpose.msra.mxu0 0
      %6089 = vmatprep.subr.bf16.mxu0 0
      %6090 = vmatpush1.bf16.xpose.msra.mxu0 0
      %6091 = vmatprep.subr.bf16.mxu0 0
      %6092 = vmatpush1.bf16.xpose.msra.mxu0 0
      %6093 = vmatprep.subr.bf16.mxu0 0
      %6094 = vmatpush1.bf16.xpose.msra.mxu0 0
      %6095 = vmatprep.subr.bf16.mxu0 0
      %6096 = vmatpush1.bf16.xpose.msra.mxu0 0
      %6097 = vmatprep.subr.bf16.mxu0 0
      %6098 = vmatpush1.bf16.xpose.msra.mxu0 0
      %6099 = vmatprep.subr.bf16.mxu0 0
      %6100 = vmatpush1.bf16.xpose.msra.mxu0 0
      %6101 = vmatprep.subr.bf16.mxu0 0
      %6102 = vmatpush1.bf16.xpose.msra.mxu0 0
      %6103 = vmatprep.subr.bf16.mxu0 0
      %6104 = vmatpush1.bf16.xpose.msra.mxu0 0
      %6105 = vmatprep.subr.bf16.mxu0 0
      %6106 = vmatpush1.bf16.xpose.msra.mxu0 0
      %6107 = vmatprep.subr.bf16.mxu0 0
      %6108 = vmatpush1.bf16.xpose.msra.mxu0 0
      %6109 = vmatprep.subr.bf16.mxu0 0
      %6110 = vmatpush1.bf16.xpose.msra.mxu0 0
      %6111 = vmatprep.subr.bf16.mxu0 0
      %6112 = vmatpush1.bf16.xpose.msra.mxu0 0
      %6113 = vmatprep.subr.bf16.mxu0 0
      %6114 = vmatpush1.bf16.xpose.msra.mxu0 0
      %6115 = vmatprep.subr.bf16.mxu0 0
      %6116 = vmatpush1.bf16.xpose.msra.mxu0 0
      %6117 = vmatprep.mubr.bf16.mxu0 0
      %6118 = vmatmul.mubr.bf16.gmra.mrb[0].mxu0 %v6080
      %v6119 = vpop.f32.mrb[0].mxu0
      %v6120 = vadd.f32 0.0, %v6119
      %v6121 = vpop.f32.mrb[0].mxu0
      %v6122 = vpop.f32.mrb[0].mxu0
      %v6123 = vadd.f32 0.0, %v6122
      %v6124 = vpop.f32.mrb[0].mxu0
      %6125 = vdwg.mxu0
      %6127 = vrot.lane.b32.xlu0 %v1946, 120
      %v6128 = vpop.permute.xlu0 %6127
      %v6130 = vsel %vm1962, %v1946, 0
      %v6133 = vsel %vm1962, %v6128, 0
      %6135 = vmatprep.subr.bf16.mxu0 0
      %6136 = vmatpush1.bf16.xpose.msra.mxu0 %v6133
      %6137 = vmatprep.subr.bf16.mxu0 0
      %6138 = vmatpush1.bf16.xpose.msra.mxu0 0
      %6139 = vmatprep.subr.bf16.mxu0 0
      %6140 = vmatpush1.bf16.xpose.msra.mxu0 0
      %6141 = vmatprep.subr.bf16.mxu0 0
      %6142 = vmatpush1.bf16.xpose.msra.mxu0 0
      %6143 = vmatprep.subr.bf16.mxu0 0
      %6144 = vmatpush1.bf16.xpose.msra.mxu0 0
      %6145 = vmatprep.subr.bf16.mxu0 0
      %6146 = vmatpush1.bf16.xpose.msra.mxu0 0
      %6147 = vmatprep.subr.bf16.mxu0 0
      %6148 = vmatpush1.bf16.xpose.msra.mxu0 0
      %6149 = vmatprep.subr.bf16.mxu0 0
      %6150 = vmatpush1.bf16.xpose.msra.mxu0 0
      %6151 = vmatprep.subr.bf16.mxu0 0
      %6152 = vmatpush1.bf16.xpose.msra.mxu0 0
      %6153 = vmatprep.subr.bf16.mxu0 0
      %6154 = vmatpush1.bf16.xpose.msra.mxu0 0
      %6155 = vmatprep.subr.bf16.mxu0 0
      %6156 = vmatpush1.bf16.xpose.msra.mxu0 0
      %6157 = vmatprep.subr.bf16.mxu0 0
      %6158 = vmatpush1.bf16.xpose.msra.mxu0 0
      %6159 = vmatprep.subr.bf16.mxu0 0
      %6160 = vmatpush1.bf16.xpose.msra.mxu0 0
      %6161 = vmatprep.subr.bf16.mxu0 0
      %6162 = vmatpush1.bf16.xpose.msra.mxu0 0
      %6163 = vmatprep.subr.bf16.mxu0 0
      %6164 = vmatpush1.bf16.xpose.msra.mxu0 0
      %6165 = vmatprep.subr.bf16.mxu0 0
      %6166 = vmatpush1.bf16.xpose.msra.mxu0 0
      %6167 = vmatprep.mubr.bf16.mxu0 0
      %6168 = vmatmul.mubr.bf16.gmra.mrb[0].mxu0 %v6130
      %v6169 = vpop.f32.mrb[0].mxu0
      %v6170 = vadd.f32 0.0, %v6169
      %v6171 = vpop.f32.mrb[0].mxu0
      %v6172 = vpop.f32.mrb[0].mxu0
      %v6173 = vadd.f32 0.0, %v6172
      %v6174 = vpop.f32.mrb[0].mxu0
      %6175 = vdwg.mxu0
      %6177 = vrot.lane.b32.xlu0 %v1947, 120
      %v6178 = vpop.permute.xlu0 %6177
      %v6180 = vsel %vm1962, %v1947, 0
      %v6183 = vsel %vm1962, %v6178, 0
      %6185 = vmatprep.subr.bf16.mxu0 0
      %6186 = vmatpush1.bf16.xpose.msra.mxu0 %v6183
      %6187 = vmatprep.subr.bf16.mxu0 0
      %6188 = vmatpush1.bf16.xpose.msra.mxu0 0
      %6189 = vmatprep.subr.bf16.mxu0 0
      %6190 = vmatpush1.bf16.xpose.msra.mxu0 0
      %6191 = vmatprep.subr.bf16.mxu0 0
      %6192 = vmatpush1.bf16.xpose.msra.mxu0 0
      %6193 = vmatprep.subr.bf16.mxu0 0
      %6194 = vmatpush1.bf16.xpose.msra.mxu0 0
      %6195 = vmatprep.subr.bf16.mxu0 0
      %6196 = vmatpush1.bf16.xpose.msra.mxu0 0
      %6197 = vmatprep.subr.bf16.mxu0 0
      %6198 = vmatpush1.bf16.xpose.msra.mxu0 0
      %6199 = vmatprep.subr.bf16.mxu0 0
      %6200 = vmatpush1.bf16.xpose.msra.mxu0 0
      %6201 = vmatprep.subr.bf16.mxu0 0
      %6202 = vmatpush1.bf16.xpose.msra.mxu0 0
      %6203 = vmatprep.subr.bf16.mxu0 0
      %6204 = vmatpush1.bf16.xpose.msra.mxu0 0
      %6205 = vmatprep.subr.bf16.mxu0 0
      %6206 = vmatpush1.bf16.xpose.msra.mxu0 0
      %6207 = vmatprep.subr.bf16.mxu0 0
      %6208 = vmatpush1.bf16.xpose.msra.mxu0 0
      %6209 = vmatprep.subr.bf16.mxu0 0
      %6210 = vmatpush1.bf16.xpose.msra.mxu0 0
      %6211 = vmatprep.subr.bf16.mxu0 0
      %6212 = vmatpush1.bf16.xpose.msra.mxu0 0
      %6213 = vmatprep.subr.bf16.mxu0 0
      %6214 = vmatpush1.bf16.xpose.msra.mxu0 0
      %6215 = vmatprep.subr.bf16.mxu0 0
      %6216 = vmatpush1.bf16.xpose.msra.mxu0 0
      %6217 = vmatprep.mubr.bf16.mxu0 0
      %6218 = vmatmul.mubr.bf16.gmra.mrb[0].mxu0 %v6180
      %v6219 = vpop.f32.mrb[0].mxu0
      %v6220 = vadd.f32 0.0, %v6219
      %v6221 = vpop.f32.mrb[0].mxu0
      %v6222 = vpop.f32.mrb[0].mxu0
      %v6223 = vadd.f32 0.0, %v6222
      %v6224 = vpop.f32.mrb[0].mxu0
      %6225 = vdwg.mxu0
      %6227 = vrot.lane.b32.xlu0 %v1948, 120
      %v6228 = vpop.permute.xlu0 %6227
      %v6230 = vsel %vm1962, %v1948, 0
      %v6233 = vsel %vm1962, %v6228, 0
      %6235 = vmatprep.subr.bf16.mxu0 0
      %6236 = vmatpush1.bf16.xpose.msra.mxu0 %v6233
      %6237 = vmatprep.subr.bf16.mxu0 0
      %6238 = vmatpush1.bf16.xpose.msra.mxu0 0
      %6239 = vmatprep.subr.bf16.mxu0 0
      %6240 = vmatpush1.bf16.xpose.msra.mxu0 0
      %6241 = vmatprep.subr.bf16.mxu0 0
      %6242 = vmatpush1.bf16.xpose.msra.mxu0 0
      %6243 = vmatprep.subr.bf16.mxu0 0
      %6244 = vmatpush1.bf16.xpose.msra.mxu0 0
      %6245 = vmatprep.subr.bf16.mxu0 0
      %6246 = vmatpush1.bf16.xpose.msra.mxu0 0
      %6247 = vmatprep.subr.bf16.mxu0 0
      %6248 = vmatpush1.bf16.xpose.msra.mxu0 0
      %6249 = vmatprep.subr.bf16.mxu0 0
      %6250 = vmatpush1.bf16.xpose.msra.mxu0 0
      %6251 = vmatprep.subr.bf16.mxu0 0
      %6252 = vmatpush1.bf16.xpose.msra.mxu0 0
      %6253 = vmatprep.subr.bf16.mxu0 0
      %6254 = vmatpush1.bf16.xpose.msra.mxu0 0
      %6255 = vmatprep.subr.bf16.mxu0 0
      %6256 = vmatpush1.bf16.xpose.msra.mxu0 0
      %6257 = vmatprep.subr.bf16.mxu0 0
      %6258 = vmatpush1.bf16.xpose.msra.mxu0 0
      %6259 = vmatprep.subr.bf16.mxu0 0
      %6260 = vmatpush1.bf16.xpose.msra.mxu0 0
      %6261 = vmatprep.subr.bf16.mxu0 0
      %6262 = vmatpush1.bf16.xpose.msra.mxu0 0
      %6263 = vmatprep.subr.bf16.mxu0 0
      %6264 = vmatpush1.bf16.xpose.msra.mxu0 0
      %6265 = vmatprep.subr.bf16.mxu0 0
      %6266 = vmatpush1.bf16.xpose.msra.mxu0 0
      %6267 = vmatprep.mubr.bf16.mxu0 0
      %6268 = vmatmul.mubr.bf16.gmra.mrb[0].mxu0 %v6230
      %v6269 = vpop.f32.mrb[0].mxu0
      %v6270 = vadd.f32 0.0, %v6269
      %v6271 = vpop.f32.mrb[0].mxu0
      %v6272 = vpop.f32.mrb[0].mxu0
      %v6273 = vadd.f32 0.0, %v6272
      %v6274 = vpop.f32.mrb[0].mxu0
      %6275 = vdwg.mxu0
      %6277 = vrot.lane.b32.xlu0 %v1949, 120
      %v6278 = vpop.permute.xlu0 %6277
      %v6280 = vsel %vm1962, %v1949, 0
      %v6283 = vsel %vm1962, %v6278, 0
      %6285 = vmatprep.subr.bf16.mxu0 0
      %6286 = vmatpush1.bf16.xpose.msra.mxu0 %v6283
      %6287 = vmatprep.subr.bf16.mxu0 0
      %6288 = vmatpush1.bf16.xpose.msra.mxu0 0
      %6289 = vmatprep.subr.bf16.mxu0 0
      %6290 = vmatpush1.bf16.xpose.msra.mxu0 0
      %6291 = vmatprep.subr.bf16.mxu0 0
      %6292 = vmatpush1.bf16.xpose.msra.mxu0 0
      %6293 = vmatprep.subr.bf16.mxu0 0
      %6294 = vmatpush1.bf16.xpose.msra.mxu0 0
      %6295 = vmatprep.subr.bf16.mxu0 0
      %6296 = vmatpush1.bf16.xpose.msra.mxu0 0
      %6297 = vmatprep.subr.bf16.mxu0 0
      %6298 = vmatpush1.bf16.xpose.msra.mxu0 0
      %6299 = vmatprep.subr.bf16.mxu0 0
      %6300 = vmatpush1.bf16.xpose.msra.mxu0 0
      %6301 = vmatprep.subr.bf16.mxu0 0
      %6302 = vmatpush1.bf16.xpose.msra.mxu0 0
      %6303 = vmatprep.subr.bf16.mxu0 0
      %6304 = vmatpush1.bf16.xpose.msra.mxu0 0
      %6305 = vmatprep.subr.bf16.mxu0 0
      %6306 = vmatpush1.bf16.xpose.msra.mxu0 0
      %6307 = vmatprep.subr.bf16.mxu0 0
      %6308 = vmatpush1.bf16.xpose.msra.mxu0 0
      %6309 = vmatprep.subr.bf16.mxu0 0
      %6310 = vmatpush1.bf16.xpose.msra.mxu0 0
      %6311 = vmatprep.subr.bf16.mxu0 0
      %6312 = vmatpush1.bf16.xpose.msra.mxu0 0
      %6313 = vmatprep.subr.bf16.mxu0 0
      %6314 = vmatpush1.bf16.xpose.msra.mxu0 0
      %6315 = vmatprep.subr.bf16.mxu0 0
      %6316 = vmatpush1.bf16.xpose.msra.mxu0 0
      %6317 = vmatprep.mubr.bf16.mxu0 0
      %6318 = vmatmul.mubr.bf16.gmra.mrb[0].mxu0 %v6280
      %v6319 = vpop.f32.mrb[0].mxu0
      %v6320 = vadd.f32 0.0, %v6319
      %v6321 = vpop.f32.mrb[0].mxu0
      %v6322 = vpop.f32.mrb[0].mxu0
      %v6323 = vadd.f32 0.0, %v6322
      %v6324 = vpop.f32.mrb[0].mxu0
      %6325 = vdwg.mxu0
      %6327 = vrot.lane.b32.xlu0 %v1950, 120
      %v6328 = vpop.permute.xlu0 %6327
      %v6330 = vsel %vm1962, %v1950, 0
      %v6333 = vsel %vm1962, %v6328, 0
      %6335 = vmatprep.subr.bf16.mxu0 0
      %6336 = vmatpush1.bf16.xpose.msra.mxu0 %v6333
      %6337 = vmatprep.subr.bf16.mxu0 0
      %6338 = vmatpush1.bf16.xpose.msra.mxu0 0
      %6339 = vmatprep.subr.bf16.mxu0 0
      %6340 = vmatpush1.bf16.xpose.msra.mxu0 0
      %6341 = vmatprep.subr.bf16.mxu0 0
      %6342 = vmatpush1.bf16.xpose.msra.mxu0 0
      %6343 = vmatprep.subr.bf16.mxu0 0
      %6344 = vmatpush1.bf16.xpose.msra.mxu0 0
      %6345 = vmatprep.subr.bf16.mxu0 0
      %6346 = vmatpush1.bf16.xpose.msra.mxu0 0
      %6347 = vmatprep.subr.bf16.mxu0 0
      %6348 = vmatpush1.bf16.xpose.msra.mxu0 0
      %6349 = vmatprep.subr.bf16.mxu0 0
      %6350 = vmatpush1.bf16.xpose.msra.mxu0 0
      %6351 = vmatprep.subr.bf16.mxu0 0
      %6352 = vmatpush1.bf16.xpose.msra.mxu0 0
      %6353 = vmatprep.subr.bf16.mxu0 0
      %6354 = vmatpush1.bf16.xpose.msra.mxu0 0
      %6355 = vmatprep.subr.bf16.mxu0 0
      %6356 = vmatpush1.bf16.xpose.msra.mxu0 0
      %6357 = vmatprep.subr.bf16.mxu0 0
      %6358 = vmatpush1.bf16.xpose.msra.mxu0 0
      %6359 = vmatprep.subr.bf16.mxu0 0
      %6360 = vmatpush1.bf16.xpose.msra.mxu0 0
      %6361 = vmatprep.subr.bf16.mxu0 0
      %6362 = vmatpush1.bf16.xpose.msra.mxu0 0
      %6363 = vmatprep.subr.bf16.mxu0 0
      %6364 = vmatpush1.bf16.xpose.msra.mxu0 0
      %6365 = vmatprep.subr.bf16.mxu0 0
      %6366 = vmatpush1.bf16.xpose.msra.mxu0 0
      %6367 = vmatprep.mubr.bf16.mxu0 0
      %6368 = vmatmul.mubr.bf16.gmra.mrb[0].mxu0 %v6330
      %v6369 = vpop.f32.mrb[0].mxu0
      %v6370 = vadd.f32 0.0, %v6369
      %v6371 = vpop.f32.mrb[0].mxu0
      %v6372 = vpop.f32.mrb[0].mxu0
      %v6373 = vadd.f32 0.0, %v6372
      %v6374 = vpop.f32.mrb[0].mxu0
      %6375 = vdwg.mxu0
      %6377 = vrot.lane.b32.xlu0 %v1951, 120
      %v6378 = vpop.permute.xlu0 %6377
      %v6380 = vsel %vm1962, %v1951, 0
      %v6383 = vsel %vm1962, %v6378, 0
      %6385 = vmatprep.subr.bf16.mxu0 0
      %6386 = vmatpush1.bf16.xpose.msra.mxu0 %v6383
      %6387 = vmatprep.subr.bf16.mxu0 0
      %6388 = vmatpush1.bf16.xpose.msra.mxu0 0
      %6389 = vmatprep.subr.bf16.mxu0 0
      %6390 = vmatpush1.bf16.xpose.msra.mxu0 0
      %6391 = vmatprep.subr.bf16.mxu0 0
      %6392 = vmatpush1.bf16.xpose.msra.mxu0 0
      %6393 = vmatprep.subr.bf16.mxu0 0
      %6394 = vmatpush1.bf16.xpose.msra.mxu0 0
      %6395 = vmatprep.subr.bf16.mxu0 0
      %6396 = vmatpush1.bf16.xpose.msra.mxu0 0
      %6397 = vmatprep.subr.bf16.mxu0 0
      %6398 = vmatpush1.bf16.xpose.msra.mxu0 0
      %6399 = vmatprep.subr.bf16.mxu0 0
      %6400 = vmatpush1.bf16.xpose.msra.mxu0 0
      %6401 = vmatprep.subr.bf16.mxu0 0
      %6402 = vmatpush1.bf16.xpose.msra.mxu0 0
      %6403 = vmatprep.subr.bf16.mxu0 0
      %6404 = vmatpush1.bf16.xpose.msra.mxu0 0
      %6405 = vmatprep.subr.bf16.mxu0 0
      %6406 = vmatpush1.bf16.xpose.msra.mxu0 0
      %6407 = vmatprep.subr.bf16.mxu0 0
      %6408 = vmatpush1.bf16.xpose.msra.mxu0 0
      %6409 = vmatprep.subr.bf16.mxu0 0
      %6410 = vmatpush1.bf16.xpose.msra.mxu0 0
      %6411 = vmatprep.subr.bf16.mxu0 0
      %6412 = vmatpush1.bf16.xpose.msra.mxu0 0
      %6413 = vmatprep.subr.bf16.mxu0 0
      %6414 = vmatpush1.bf16.xpose.msra.mxu0 0
      %6415 = vmatprep.subr.bf16.mxu0 0
      %6416 = vmatpush1.bf16.xpose.msra.mxu0 0
      %6417 = vmatprep.mubr.bf16.mxu0 0
      %6418 = vmatmul.mubr.bf16.gmra.mrb[0].mxu0 %v6380
      %v6419 = vpop.f32.mrb[0].mxu0
      %v6420 = vadd.f32 0.0, %v6419
      %v6421 = vpop.f32.mrb[0].mxu0
      %v6422 = vpop.f32.mrb[0].mxu0
      %v6423 = vadd.f32 0.0, %v6422
      %v6424 = vpop.f32.mrb[0].mxu0
      %6425 = vdwg.mxu0
      %6427 = vrot.lane.b32.xlu0 %v1952, 120
      %v6428 = vpop.permute.xlu0 %6427
      %v6430 = vsel %vm1962, %v1952, 0
      %v6433 = vsel %vm1962, %v6428, 0
      %6435 = vmatprep.subr.bf16.mxu0 0
      %6436 = vmatpush1.bf16.xpose.msra.mxu0 %v6433
      %6437 = vmatprep.subr.bf16.mxu0 0
      %6438 = vmatpush1.bf16.xpose.msra.mxu0 0
      %6439 = vmatprep.subr.bf16.mxu0 0
      %6440 = vmatpush1.bf16.xpose.msra.mxu0 0
      %6441 = vmatprep.subr.bf16.mxu0 0
      %6442 = vmatpush1.bf16.xpose.msra.mxu0 0
      %6443 = vmatprep.subr.bf16.mxu0 0
      %6444 = vmatpush1.bf16.xpose.msra.mxu0 0
      %6445 = vmatprep.subr.bf16.mxu0 0
      %6446 = vmatpush1.bf16.xpose.msra.mxu0 0
      %6447 = vmatprep.subr.bf16.mxu0 0
      %6448 = vmatpush1.bf16.xpose.msra.mxu0 0
      %6449 = vmatprep.subr.bf16.mxu0 0
      %6450 = vmatpush1.bf16.xpose.msra.mxu0 0
      %6451 = vmatprep.subr.bf16.mxu0 0
      %6452 = vmatpush1.bf16.xpose.msra.mxu0 0
      %6453 = vmatprep.subr.bf16.mxu0 0
      %6454 = vmatpush1.bf16.xpose.msra.mxu0 0
      %6455 = vmatprep.subr.bf16.mxu0 0
      %6456 = vmatpush1.bf16.xpose.msra.mxu0 0
      %6457 = vmatprep.subr.bf16.mxu0 0
      %6458 = vmatpush1.bf16.xpose.msra.mxu0 0
      %6459 = vmatprep.subr.bf16.mxu0 0
      %6460 = vmatpush1.bf16.xpose.msra.mxu0 0
      %6461 = vmatprep.subr.bf16.mxu0 0
      %6462 = vmatpush1.bf16.xpose.msra.mxu0 0
      %6463 = vmatprep.subr.bf16.mxu0 0
      %6464 = vmatpush1.bf16.xpose.msra.mxu0 0
      %6465 = vmatprep.subr.bf16.mxu0 0
      %6466 = vmatpush1.bf16.xpose.msra.mxu0 0
      %6467 = vmatprep.mubr.bf16.mxu0 0
      %6468 = vmatmul.mubr.bf16.gmra.mrb[0].mxu0 %v6430
      %v6469 = vpop.f32.mrb[0].mxu0
      %v6470 = vadd.f32 0.0, %v6469
      %v6471 = vpop.f32.mrb[0].mxu0
      %v6472 = vpop.f32.mrb[0].mxu0
      %v6473 = vadd.f32 0.0, %v6472
      %v6474 = vpop.f32.mrb[0].mxu0
      %6475 = vdwg.mxu0
      %6477 = vrot.lane.b32.xlu0 %v1953, 120
      %v6478 = vpop.permute.xlu0 %6477
      %v6480 = vsel %vm1962, %v1953, 0
      %v6483 = vsel %vm1962, %v6478, 0
      %6485 = vmatprep.subr.bf16.mxu0 0
      %6486 = vmatpush1.bf16.xpose.msra.mxu0 %v6483
      %6487 = vmatprep.subr.bf16.mxu0 0
      %6488 = vmatpush1.bf16.xpose.msra.mxu0 0
      %6489 = vmatprep.subr.bf16.mxu0 0
      %6490 = vmatpush1.bf16.xpose.msra.mxu0 0
      %6491 = vmatprep.subr.bf16.mxu0 0
      %6492 = vmatpush1.bf16.xpose.msra.mxu0 0
      %6493 = vmatprep.subr.bf16.mxu0 0
      %6494 = vmatpush1.bf16.xpose.msra.mxu0 0
      %6495 = vmatprep.subr.bf16.mxu0 0
      %6496 = vmatpush1.bf16.xpose.msra.mxu0 0
      %6497 = vmatprep.subr.bf16.mxu0 0
      %6498 = vmatpush1.bf16.xpose.msra.mxu0 0
      %6499 = vmatprep.subr.bf16.mxu0 0
      %6500 = vmatpush1.bf16.xpose.msra.mxu0 0
      %6501 = vmatprep.subr.bf16.mxu0 0
      %6502 = vmatpush1.bf16.xpose.msra.mxu0 0
      %6503 = vmatprep.subr.bf16.mxu0 0
      %6504 = vmatpush1.bf16.xpose.msra.mxu0 0
      %6505 = vmatprep.subr.bf16.mxu0 0
      %6506 = vmatpush1.bf16.xpose.msra.mxu0 0
      %6507 = vmatprep.subr.bf16.mxu0 0
      %6508 = vmatpush1.bf16.xpose.msra.mxu0 0
      %6509 = vmatprep.subr.bf16.mxu0 0
      %6510 = vmatpush1.bf16.xpose.msra.mxu0 0
      %6511 = vmatprep.subr.bf16.mxu0 0
      %6512 = vmatpush1.bf16.xpose.msra.mxu0 0
      %6513 = vmatprep.subr.bf16.mxu0 0
      %6514 = vmatpush1.bf16.xpose.msra.mxu0 0
      %6515 = vmatprep.subr.bf16.mxu0 0
      %6516 = vmatpush1.bf16.xpose.msra.mxu0 0
      %6517 = vmatprep.mubr.bf16.mxu0 0
      %6518 = vmatmul.mubr.bf16.gmra.mrb[0].mxu0 %v6480
      %v6519 = vpop.f32.mrb[0].mxu0
      %v6520 = vadd.f32 0.0, %v6519
      %v6521 = vpop.f32.mrb[0].mxu0
      %v6522 = vpop.f32.mrb[0].mxu0
      %v6523 = vadd.f32 0.0, %v6522
      %v6524 = vpop.f32.mrb[0].mxu0
      %6525 = vdwg.mxu0
      %6527 = vrot.lane.b32.xlu0 %v1954, 120
      %v6528 = vpop.permute.xlu0 %6527
      %v6530 = vsel %vm1962, %v1954, 0
      %v6533 = vsel %vm1962, %v6528, 0
      %6535 = vmatprep.subr.bf16.mxu0 0
      %6536 = vmatpush1.bf16.xpose.msra.mxu0 %v6533
      %6537 = vmatprep.subr.bf16.mxu0 0
      %6538 = vmatpush1.bf16.xpose.msra.mxu0 0
      %6539 = vmatprep.subr.bf16.mxu0 0
      %6540 = vmatpush1.bf16.xpose.msra.mxu0 0
      %6541 = vmatprep.subr.bf16.mxu0 0
      %6542 = vmatpush1.bf16.xpose.msra.mxu0 0
      %6543 = vmatprep.subr.bf16.mxu0 0
      %6544 = vmatpush1.bf16.xpose.msra.mxu0 0
      %6545 = vmatprep.subr.bf16.mxu0 0
      %6546 = vmatpush1.bf16.xpose.msra.mxu0 0
      %6547 = vmatprep.subr.bf16.mxu0 0
      %6548 = vmatpush1.bf16.xpose.msra.mxu0 0
      %6549 = vmatprep.subr.bf16.mxu0 0
      %6550 = vmatpush1.bf16.xpose.msra.mxu0 0
      %6551 = vmatprep.subr.bf16.mxu0 0
      %6552 = vmatpush1.bf16.xpose.msra.mxu0 0
      %6553 = vmatprep.subr.bf16.mxu0 0
      %6554 = vmatpush1.bf16.xpose.msra.mxu0 0
      %6555 = vmatprep.subr.bf16.mxu0 0
      %6556 = vmatpush1.bf16.xpose.msra.mxu0 0
      %6557 = vmatprep.subr.bf16.mxu0 0
      %6558 = vmatpush1.bf16.xpose.msra.mxu0 0
      %6559 = vmatprep.subr.bf16.mxu0 0
      %6560 = vmatpush1.bf16.xpose.msra.mxu0 0
      %6561 = vmatprep.subr.bf16.mxu0 0
      %6562 = vmatpush1.bf16.xpose.msra.mxu0 0
      %6563 = vmatprep.subr.bf16.mxu0 0
      %6564 = vmatpush1.bf16.xpose.msra.mxu0 0
      %6565 = vmatprep.subr.bf16.mxu0 0
      %6566 = vmatpush1.bf16.xpose.msra.mxu0 0
      %6567 = vmatprep.mubr.bf16.mxu0 0
      %6568 = vmatmul.mubr.bf16.gmra.mrb[0].mxu0 %v6530
      %v6569 = vpop.f32.mrb[0].mxu0
      %v6570 = vadd.f32 0.0, %v6569
      %v6571 = vpop.f32.mrb[0].mxu0
      %v6572 = vpop.f32.mrb[0].mxu0
      %v6573 = vadd.f32 0.0, %v6572
      %v6574 = vpop.f32.mrb[0].mxu0
      %6575 = vdwg.mxu0
      %6577 = vrot.lane.b32.xlu0 %v1955, 120
      %v6578 = vpop.permute.xlu0 %6577
      %v6580 = vsel %vm1962, %v1955, 0
      %v6583 = vsel %vm1962, %v6578, 0
      %6585 = vmatprep.subr.bf16.mxu0 0
      %6586 = vmatpush1.bf16.xpose.msra.mxu0 %v6583
      %6587 = vmatprep.subr.bf16.mxu0 0
      %6588 = vmatpush1.bf16.xpose.msra.mxu0 0
      %6589 = vmatprep.subr.bf16.mxu0 0
      %6590 = vmatpush1.bf16.xpose.msra.mxu0 0
      %6591 = vmatprep.subr.bf16.mxu0 0
      %6592 = vmatpush1.bf16.xpose.msra.mxu0 0
      %6593 = vmatprep.subr.bf16.mxu0 0
      %6594 = vmatpush1.bf16.xpose.msra.mxu0 0
      %6595 = vmatprep.subr.bf16.mxu0 0
      %6596 = vmatpush1.bf16.xpose.msra.mxu0 0
      %6597 = vmatprep.subr.bf16.mxu0 0
      %6598 = vmatpush1.bf16.xpose.msra.mxu0 0
      %6599 = vmatprep.subr.bf16.mxu0 0
      %6600 = vmatpush1.bf16.xpose.msra.mxu0 0
      %6601 = vmatprep.subr.bf16.mxu0 0
      %6602 = vmatpush1.bf16.xpose.msra.mxu0 0
      %6603 = vmatprep.subr.bf16.mxu0 0
      %6604 = vmatpush1.bf16.xpose.msra.mxu0 0
      %6605 = vmatprep.subr.bf16.mxu0 0
      %6606 = vmatpush1.bf16.xpose.msra.mxu0 0
      %6607 = vmatprep.subr.bf16.mxu0 0
      %6608 = vmatpush1.bf16.xpose.msra.mxu0 0
      %6609 = vmatprep.subr.bf16.mxu0 0
      %6610 = vmatpush1.bf16.xpose.msra.mxu0 0
      %6611 = vmatprep.subr.bf16.mxu0 0
      %6612 = vmatpush1.bf16.xpose.msra.mxu0 0
      %6613 = vmatprep.subr.bf16.mxu0 0
      %6614 = vmatpush1.bf16.xpose.msra.mxu0 0
      %6615 = vmatprep.subr.bf16.mxu0 0
      %6616 = vmatpush1.bf16.xpose.msra.mxu0 0
      %6617 = vmatprep.mubr.bf16.mxu0 0
      %6618 = vmatmul.mubr.bf16.gmra.mrb[0].mxu0 %v6580
      %v6619 = vpop.f32.mrb[0].mxu0
      %v6620 = vadd.f32 0.0, %v6619
      %v6621 = vpop.f32.mrb[0].mxu0
      %v6622 = vpop.f32.mrb[0].mxu0
      %v6623 = vadd.f32 0.0, %v6622
      %v6624 = vpop.f32.mrb[0].mxu0
      %6625 = vdwg.mxu0
      %6627 = vrot.lane.b32.xlu0 %v1956, 120
      %v6628 = vpop.permute.xlu0 %6627
      %v6630 = vsel %vm1962, %v1956, 0
      %v6633 = vsel %vm1962, %v6628, 0
      %6635 = vmatprep.subr.bf16.mxu0 0
      %6636 = vmatpush1.bf16.xpose.msra.mxu0 %v6633
      %6637 = vmatprep.subr.bf16.mxu0 0
      %6638 = vmatpush1.bf16.xpose.msra.mxu0 0
      %6639 = vmatprep.subr.bf16.mxu0 0
      %6640 = vmatpush1.bf16.xpose.msra.mxu0 0
      %6641 = vmatprep.subr.bf16.mxu0 0
      %6642 = vmatpush1.bf16.xpose.msra.mxu0 0
      %6643 = vmatprep.subr.bf16.mxu0 0
      %6644 = vmatpush1.bf16.xpose.msra.mxu0 0
      %6645 = vmatprep.subr.bf16.mxu0 0
      %6646 = vmatpush1.bf16.xpose.msra.mxu0 0
      %6647 = vmatprep.subr.bf16.mxu0 0
      %6648 = vmatpush1.bf16.xpose.msra.mxu0 0
      %6649 = vmatprep.subr.bf16.mxu0 0
      %6650 = vmatpush1.bf16.xpose.msra.mxu0 0
      %6651 = vmatprep.subr.bf16.mxu0 0
      %6652 = vmatpush1.bf16.xpose.msra.mxu0 0
      %6653 = vmatprep.subr.bf16.mxu0 0
      %6654 = vmatpush1.bf16.xpose.msra.mxu0 0
      %6655 = vmatprep.subr.bf16.mxu0 0
      %6656 = vmatpush1.bf16.xpose.msra.mxu0 0
      %6657 = vmatprep.subr.bf16.mxu0 0
      %6658 = vmatpush1.bf16.xpose.msra.mxu0 0
      %6659 = vmatprep.subr.bf16.mxu0 0
      %6660 = vmatpush1.bf16.xpose.msra.mxu0 0
      %6661 = vmatprep.subr.bf16.mxu0 0
      %6662 = vmatpush1.bf16.xpose.msra.mxu0 0
      %6663 = vmatprep.subr.bf16.mxu0 0
      %6664 = vmatpush1.bf16.xpose.msra.mxu0 0
      %6665 = vmatprep.subr.bf16.mxu0 0
      %6666 = vmatpush1.bf16.xpose.msra.mxu0 0
      %6667 = vmatprep.mubr.bf16.mxu0 0
      %6668 = vmatmul.mubr.bf16.gmra.mrb[0].mxu0 %v6630
      %v6669 = vpop.f32.mrb[0].mxu0
      %v6670 = vadd.f32 0.0, %v6669
      %v6671 = vpop.f32.mrb[0].mxu0
      %v6672 = vpop.f32.mrb[0].mxu0
      %v6673 = vadd.f32 0.0, %v6672
      %v6674 = vpop.f32.mrb[0].mxu0
      %6675 = vdwg.mxu0
      %6677 = vrot.lane.b32.xlu0 %v1957, 120
      %v6678 = vpop.permute.xlu0 %6677
      %v6680 = vsel %vm1962, %v1957, 0
      %v6683 = vsel %vm1962, %v6678, 0
      %6685 = vmatprep.subr.bf16.mxu0 0
      %6686 = vmatpush1.bf16.xpose.msra.mxu0 %v6683
      %6687 = vmatprep.subr.bf16.mxu0 0
      %6688 = vmatpush1.bf16.xpose.msra.mxu0 0
      %6689 = vmatprep.subr.bf16.mxu0 0
      %6690 = vmatpush1.bf16.xpose.msra.mxu0 0
      %6691 = vmatprep.subr.bf16.mxu0 0
      %6692 = vmatpush1.bf16.xpose.msra.mxu0 0
      %6693 = vmatprep.subr.bf16.mxu0 0
      %6694 = vmatpush1.bf16.xpose.msra.mxu0 0
      %6695 = vmatprep.subr.bf16.mxu0 0
      %6696 = vmatpush1.bf16.xpose.msra.mxu0 0
      %6697 = vmatprep.subr.bf16.mxu0 0
      %6698 = vmatpush1.bf16.xpose.msra.mxu0 0
      %6699 = vmatprep.subr.bf16.mxu0 0
      %6700 = vmatpush1.bf16.xpose.msra.mxu0 0
      %6701 = vmatprep.subr.bf16.mxu0 0
      %6702 = vmatpush1.bf16.xpose.msra.mxu0 0
      %6703 = vmatprep.subr.bf16.mxu0 0
      %6704 = vmatpush1.bf16.xpose.msra.mxu0 0
      %6705 = vmatprep.subr.bf16.mxu0 0
      %6706 = vmatpush1.bf16.xpose.msra.mxu0 0
      %6707 = vmatprep.subr.bf16.mxu0 0
      %6708 = vmatpush1.bf16.xpose.msra.mxu0 0
      %6709 = vmatprep.subr.bf16.mxu0 0
      %6710 = vmatpush1.bf16.xpose.msra.mxu0 0
      %6711 = vmatprep.subr.bf16.mxu0 0
      %6712 = vmatpush1.bf16.xpose.msra.mxu0 0
      %6713 = vmatprep.subr.bf16.mxu0 0
      %6714 = vmatpush1.bf16.xpose.msra.mxu0 0
      %6715 = vmatprep.subr.bf16.mxu0 0
      %6716 = vmatpush1.bf16.xpose.msra.mxu0 0
      %6717 = vmatprep.mubr.bf16.mxu0 0
      %6718 = vmatmul.mubr.bf16.gmra.mrb[0].mxu0 %v6680
      %v6719 = vpop.f32.mrb[0].mxu0
      %v6720 = vadd.f32 0.0, %v6719
      %v6721 = vpop.f32.mrb[0].mxu0
      %v6722 = vpop.f32.mrb[0].mxu0
      %v6723 = vadd.f32 0.0, %v6722
      %v6724 = vpop.f32.mrb[0].mxu0
      %6725 = vdwg.mxu0
      %6727 = vrot.lane.b32.xlu0 %v1958, 120
      %v6728 = vpop.permute.xlu0 %6727
      %v6730 = vsel %vm1962, %v1958, 0
      %v6733 = vsel %vm1962, %v6728, 0
      %6735 = vmatprep.subr.bf16.mxu0 0
      %6736 = vmatpush1.bf16.xpose.msra.mxu0 %v6733
      %6737 = vmatprep.subr.bf16.mxu0 0
      %6738 = vmatpush1.bf16.xpose.msra.mxu0 0
      %6739 = vmatprep.subr.bf16.mxu0 0
      %6740 = vmatpush1.bf16.xpose.msra.mxu0 0
      %6741 = vmatprep.subr.bf16.mxu0 0
      %6742 = vmatpush1.bf16.xpose.msra.mxu0 0
      %6743 = vmatprep.subr.bf16.mxu0 0
      %6744 = vmatpush1.bf16.xpose.msra.mxu0 0
      %6745 = vmatprep.subr.bf16.mxu0 0
      %6746 = vmatpush1.bf16.xpose.msra.mxu0 0
      %6747 = vmatprep.subr.bf16.mxu0 0
      %6748 = vmatpush1.bf16.xpose.msra.mxu0 0
      %6749 = vmatprep.subr.bf16.mxu0 0
      %6750 = vmatpush1.bf16.xpose.msra.mxu0 0
      %6751 = vmatprep.subr.bf16.mxu0 0
      %6752 = vmatpush1.bf16.xpose.msra.mxu0 0
      %6753 = vmatprep.subr.bf16.mxu0 0
      %6754 = vmatpush1.bf16.xpose.msra.mxu0 0
      %6755 = vmatprep.subr.bf16.mxu0 0
      %6756 = vmatpush1.bf16.xpose.msra.mxu0 0
      %6757 = vmatprep.subr.bf16.mxu0 0
      %6758 = vmatpush1.bf16.xpose.msra.mxu0 0
      %6759 = vmatprep.subr.bf16.mxu0 0
      %6760 = vmatpush1.bf16.xpose.msra.mxu0 0
      %6761 = vmatprep.subr.bf16.mxu0 0
      %6762 = vmatpush1.bf16.xpose.msra.mxu0 0
      %6763 = vmatprep.subr.bf16.mxu0 0
      %6764 = vmatpush1.bf16.xpose.msra.mxu0 0
      %6765 = vmatprep.subr.bf16.mxu0 0
      %6766 = vmatpush1.bf16.xpose.msra.mxu0 0
      %6767 = vmatprep.mubr.bf16.mxu0 0
      %6768 = vmatmul.mubr.bf16.gmra.mrb[0].mxu0 %v6730
      %v6769 = vpop.f32.mrb[0].mxu0
      %v6770 = vadd.f32 0.0, %v6769
      %v6771 = vpop.f32.mrb[0].mxu0
      %v6772 = vpop.f32.mrb[0].mxu0
      %v6773 = vadd.f32 0.0, %v6772
      %v6774 = vpop.f32.mrb[0].mxu0
      %6775 = vdwg.mxu0
      %v6776 = vsel %vm1364, %v6020, -inf
      %6777 = vmax.xlane.f32.xlu0 %v6776
      %v6778 = vpop.xlane.xlu0 %6777
      %v6779 = vsel %vm1364, %v6023, -inf
      %6780 = vmax.xlane.f32.xlu0 %v6779
      %v6781 = vpop.xlane.xlu0 %6780
      %v6782 = vsel %vm1364, %v6070, -inf
      %6783 = vmax.xlane.f32.xlu0 %v6782
      %v6784 = vpop.xlane.xlu0 %6783
      %v6785 = vsel %vm1364, %v6073, -inf
      %6786 = vmax.xlane.f32.xlu0 %v6785
      %v6787 = vpop.xlane.xlu0 %6786
      %v6788 = vsel %vm1364, %v6120, -inf
      %6789 = vmax.xlane.f32.xlu0 %v6788
      %v6790 = vpop.xlane.xlu0 %6789
      %v6791 = vsel %vm1364, %v6123, -inf
      %6792 = vmax.xlane.f32.xlu0 %v6791
      %v6793 = vpop.xlane.xlu0 %6792
      %v6794 = vsel %vm1364, %v6170, -inf
      %6795 = vmax.xlane.f32.xlu0 %v6794
      %v6796 = vpop.xlane.xlu0 %6795
      %v6797 = vsel %vm1364, %v6173, -inf
      %6798 = vmax.xlane.f32.xlu0 %v6797
      %v6799 = vpop.xlane.xlu0 %6798
      %v6800 = vsel %vm1364, %v6220, -inf
      %6801 = vmax.xlane.f32.xlu0 %v6800
      %v6802 = vpop.xlane.xlu0 %6801
      %v6803 = vsel %vm1364, %v6223, -inf
      %6804 = vmax.xlane.f32.xlu0 %v6803
      %v6805 = vpop.xlane.xlu0 %6804
      %v6806 = vsel %vm1364, %v6270, -inf
      %6807 = vmax.xlane.f32.xlu0 %v6806
      %v6808 = vpop.xlane.xlu0 %6807
      %v6809 = vsel %vm1364, %v6273, -inf
      %6810 = vmax.xlane.f32.xlu0 %v6809
      %v6811 = vpop.xlane.xlu0 %6810
      %v6812 = vsel %vm1364, %v6320, -inf
      %6813 = vmax.xlane.f32.xlu0 %v6812
      %v6814 = vpop.xlane.xlu0 %6813
      %v6815 = vsel %vm1364, %v6323, -inf
      %6816 = vmax.xlane.f32.xlu0 %v6815
      %v6817 = vpop.xlane.xlu0 %6816
      %v6818 = vsel %vm1364, %v6370, -inf
      %6819 = vmax.xlane.f32.xlu0 %v6818
      %v6820 = vpop.xlane.xlu0 %6819
      %v6821 = vsel %vm1364, %v6373, -inf
      %6822 = vmax.xlane.f32.xlu0 %v6821
      %v6823 = vpop.xlane.xlu0 %6822
      %v6824 = vsel %vm1364, %v6420, -inf
      %6825 = vmax.xlane.f32.xlu0 %v6824
      %v6826 = vpop.xlane.xlu0 %6825
      %v6827 = vsel %vm1364, %v6423, -inf
      %6828 = vmax.xlane.f32.xlu0 %v6827
      %v6829 = vpop.xlane.xlu0 %6828
      %v6830 = vsel %vm1364, %v6470, -inf
      %6831 = vmax.xlane.f32.xlu0 %v6830
      %v6832 = vpop.xlane.xlu0 %6831
      %v6833 = vsel %vm1364, %v6473, -inf
      %6834 = vmax.xlane.f32.xlu0 %v6833
      %v6835 = vpop.xlane.xlu0 %6834
      %v6836 = vsel %vm1364, %v6520, -inf
      %6837 = vmax.xlane.f32.xlu0 %v6836
      %v6838 = vpop.xlane.xlu0 %6837
      %v6839 = vsel %vm1364, %v6523, -inf
      %6840 = vmax.xlane.f32.xlu0 %v6839
      %v6841 = vpop.xlane.xlu0 %6840
      %v6842 = vsel %vm1364, %v6570, -inf
      %6843 = vmax.xlane.f32.xlu0 %v6842
      %v6844 = vpop.xlane.xlu0 %6843
      %v6845 = vsel %vm1364, %v6573, -inf
      %6846 = vmax.xlane.f32.xlu0 %v6845
      %v6847 = vpop.xlane.xlu0 %6846
      %v6848 = vsel %vm1364, %v6620, -inf
      %6849 = vmax.xlane.f32.xlu0 %v6848
      %v6850 = vpop.xlane.xlu0 %6849
      %v6851 = vsel %vm1364, %v6623, -inf
      %6852 = vmax.xlane.f32.xlu0 %v6851
      %v6853 = vpop.xlane.xlu0 %6852
      %v6854 = vsel %vm1364, %v6670, -inf
      %6855 = vmax.xlane.f32.xlu0 %v6854
      %v6856 = vpop.xlane.xlu0 %6855
      %v6857 = vsel %vm1364, %v6673, -inf
      %6858 = vmax.xlane.f32.xlu0 %v6857
      %v6859 = vpop.xlane.xlu0 %6858
      %v6860 = vsel %vm1364, %v6720, -inf
      %6861 = vmax.xlane.f32.xlu0 %v6860
      %v6862 = vpop.xlane.xlu0 %6861
      %v6863 = vsel %vm1364, %v6723, -inf
      %6864 = vmax.xlane.f32.xlu0 %v6863
      %v6865 = vpop.xlane.xlu0 %6864
      %v6866 = vsel %vm1364, %v6770, -inf
      %6867 = vmax.xlane.f32.xlu0 %v6866
      %v6868 = vpop.xlane.xlu0 %6867
      %v6869 = vsel %vm1364, %v6773, -inf
      %6870 = vmax.xlane.f32.xlu0 %v6869
      %v6871 = vpop.xlane.xlu0 %6870
      %v6872 = vsub.f32 %v6020, %v6778
      %v6873 = vsub.f32 %v6023, %v6781
      %v6874 = vsub.f32 %v6070, %v6784
      %v6875 = vsub.f32 %v6073, %v6787
      %v6876 = vsub.f32 %v6120, %v6790
      %v6877 = vsub.f32 %v6123, %v6793
      %v6878 = vsub.f32 %v6170, %v6796
      %v6879 = vsub.f32 %v6173, %v6799
      %v6880 = vsub.f32 %v6220, %v6802
      %v6881 = vsub.f32 %v6223, %v6805
      %v6882 = vsub.f32 %v6270, %v6808
      %v6883 = vsub.f32 %v6273, %v6811
      %v6884 = vsub.f32 %v6320, %v6814
      %v6885 = vsub.f32 %v6323, %v6817
      %v6886 = vsub.f32 %v6370, %v6820
      %v6887 = vsub.f32 %v6373, %v6823
      %v6888 = vsub.f32 %v6420, %v6826
      %v6889 = vsub.f32 %v6423, %v6829
      %v6890 = vsub.f32 %v6470, %v6832
      %v6891 = vsub.f32 %v6473, %v6835
      %v6892 = vsub.f32 %v6520, %v6838
      %v6893 = vsub.f32 %v6523, %v6841
      %v6894 = vsub.f32 %v6570, %v6844
      %v6895 = vsub.f32 %v6573, %v6847
      %v6896 = vsub.f32 %v6620, %v6850
      %v6897 = vsub.f32 %v6623, %v6853
      %v6898 = vsub.f32 %v6670, %v6856
      %v6899 = vsub.f32 %v6673, %v6859
      %v6900 = vsub.f32 %v6720, %v6862
      %v6901 = vsub.f32 %v6723, %v6865
      %v6902 = vsub.f32 %v6770, %v6868
      %v6903 = vsub.f32 %v6773, %v6871
      %v6904 = vmul.f32 %v6872, 1.442695
      %v6905 = vpow.pop %v6904
      %v6906 = vmul.f32 %v6873, 1.442695
      %v6907 = vpow.pop %v6906
      %v6908 = vmul.f32 %v6874, 1.442695
      %v6909 = vpow.pop %v6908
      %v6910 = vmul.f32 %v6875, 1.442695
      %v6911 = vpow.pop %v6910
      %v6912 = vmul.f32 %v6876, 1.442695
      %v6913 = vpow.pop %v6912
      %v6914 = vmul.f32 %v6877, 1.442695
      %v6915 = vpow.pop %v6914
      %v6916 = vmul.f32 %v6878, 1.442695
      %v6917 = vpow.pop %v6916
      %v6918 = vmul.f32 %v6879, 1.442695
      %v6919 = vpow.pop %v6918
      %v6920 = vmul.f32 %v6880, 1.442695
      %v6921 = vpow.pop %v6920
      %v6922 = vmul.f32 %v6881, 1.442695
      %v6923 = vpow.pop %v6922
      %v6924 = vmul.f32 %v6882, 1.442695
      %v6925 = vpow.pop %v6924
      %v6926 = vmul.f32 %v6883, 1.442695
      %v6927 = vpow.pop %v6926
      %v6928 = vmul.f32 %v6884, 1.442695
      %v6929 = vpow.pop %v6928
      %v6930 = vmul.f32 %v6885, 1.442695
      %v6931 = vpow.pop %v6930
      %v6932 = vmul.f32 %v6886, 1.442695
      %v6933 = vpow.pop %v6932
      %v6934 = vmul.f32 %v6887, 1.442695
      %v6935 = vpow.pop %v6934
      %v6936 = vmul.f32 %v6888, 1.442695
      %v6937 = vpow.pop %v6936
      %v6938 = vmul.f32 %v6889, 1.442695
      %v6939 = vpow.pop %v6938
      %v6940 = vmul.f32 %v6890, 1.442695
      %v6941 = vpow.pop %v6940
      %v6942 = vmul.f32 %v6891, 1.442695
      %v6943 = vpow.pop %v6942
      %v6944 = vmul.f32 %v6892, 1.442695
      %v6945 = vpow.pop %v6944
      %v6946 = vmul.f32 %v6893, 1.442695
      %v6947 = vpow.pop %v6946
      %v6948 = vmul.f32 %v6894, 1.442695
      %v6949 = vpow.pop %v6948
      %v6950 = vmul.f32 %v6895, 1.442695
      %v6951 = vpow.pop %v6950
      %v6952 = vmul.f32 %v6896, 1.442695
      %v6953 = vpow.pop %v6952
      %v6954 = vmul.f32 %v6897, 1.442695
      %v6955 = vpow.pop %v6954
      %v6956 = vmul.f32 %v6898, 1.442695
      %v6957 = vpow.pop %v6956
      %v6958 = vmul.f32 %v6899, 1.442695
      %v6959 = vpow.pop %v6958
      %v6960 = vmul.f32 %v6900, 1.442695
      %v6961 = vpow.pop %v6960
      %v6962 = vmul.f32 %v6901, 1.442695
      %v6963 = vpow.pop %v6962
      %v6964 = vmul.f32 %v6902, 1.442695
      %v6965 = vpow.pop %v6964
      %v6966 = vmul.f32 %v6903, 1.442695
      %v6967 = vpow.pop %v6966
      %v6968 = vsel %vm1364, %v6905, 0.0
      %6969 = vadd.xlane.f32.xlu0 %v6968
      %v6970 = vpop.xlane.xlu0 %6969
      %v6971 = vsel %vm1364, %v6907, 0.0
      %6972 = vadd.xlane.f32.xlu0 %v6971
      %v6973 = vpop.xlane.xlu0 %6972
      %v6974 = vsel %vm1364, %v6909, 0.0
      %6975 = vadd.xlane.f32.xlu0 %v6974
      %v6976 = vpop.xlane.xlu0 %6975
      %v6977 = vsel %vm1364, %v6911, 0.0
      %6978 = vadd.xlane.f32.xlu0 %v6977
      %v6979 = vpop.xlane.xlu0 %6978
      %v6980 = vsel %vm1364, %v6913, 0.0
      %6981 = vadd.xlane.f32.xlu0 %v6980
      %v6982 = vpop.xlane.xlu0 %6981
      %v6983 = vsel %vm1364, %v6915, 0.0
      %6984 = vadd.xlane.f32.xlu0 %v6983
      %v6985 = vpop.xlane.xlu0 %6984
      %v6986 = vsel %vm1364, %v6917, 0.0
      %6987 = vadd.xlane.f32.xlu0 %v6986
      %v6988 = vpop.xlane.xlu0 %6987
      %v6989 = vsel %vm1364, %v6919, 0.0
      %6990 = vadd.xlane.f32.xlu0 %v6989
      %v6991 = vpop.xlane.xlu0 %6990
      %v6992 = vsel %vm1364, %v6921, 0.0
      %6993 = vadd.xlane.f32.xlu0 %v6992
      %v6994 = vpop.xlane.xlu0 %6993
      %v6995 = vsel %vm1364, %v6923, 0.0
      %6996 = vadd.xlane.f32.xlu0 %v6995
      %v6997 = vpop.xlane.xlu0 %6996
      %v6998 = vsel %vm1364, %v6925, 0.0
      %6999 = vadd.xlane.f32.xlu0 %v6998
      %v7000 = vpop.xlane.xlu0 %6999
      %v7001 = vsel %vm1364, %v6927, 0.0
      %7002 = vadd.xlane.f32.xlu0 %v7001
      %v7003 = vpop.xlane.xlu0 %7002
      %v7004 = vsel %vm1364, %v6929, 0.0
      %7005 = vadd.xlane.f32.xlu0 %v7004
      %v7006 = vpop.xlane.xlu0 %7005
      %v7007 = vsel %vm1364, %v6931, 0.0
      %7008 = vadd.xlane.f32.xlu0 %v7007
      %v7009 = vpop.xlane.xlu0 %7008
      %v7010 = vsel %vm1364, %v6933, 0.0
      %7011 = vadd.xlane.f32.xlu0 %v7010
      %v7012 = vpop.xlane.xlu0 %7011
      %v7013 = vsel %vm1364, %v6935, 0.0
      %7014 = vadd.xlane.f32.xlu0 %v7013
      %v7015 = vpop.xlane.xlu0 %7014
      %v7016 = vsel %vm1364, %v6937, 0.0
      %7017 = vadd.xlane.f32.xlu0 %v7016
      %v7018 = vpop.xlane.xlu0 %7017
      %v7019 = vsel %vm1364, %v6939, 0.0
      %7020 = vadd.xlane.f32.xlu0 %v7019
      %v7021 = vpop.xlane.xlu0 %7020
      %v7022 = vsel %vm1364, %v6941, 0.0
      %7023 = vadd.xlane.f32.xlu0 %v7022
      %v7024 = vpop.xlane.xlu0 %7023
      %v7025 = vsel %vm1364, %v6943, 0.0
      %7026 = vadd.xlane.f32.xlu0 %v7025
      %v7027 = vpop.xlane.xlu0 %7026
      %v7028 = vsel %vm1364, %v6945, 0.0
      %7029 = vadd.xlane.f32.xlu0 %v7028
      %v7030 = vpop.xlane.xlu0 %7029
      %v7031 = vsel %vm1364, %v6947, 0.0
      %7032 = vadd.xlane.f32.xlu0 %v7031
      %v7033 = vpop.xlane.xlu0 %7032
      %v7034 = vsel %vm1364, %v6949, 0.0
      %7035 = vadd.xlane.f32.xlu0 %v7034
      %v7036 = vpop.xlane.xlu0 %7035
      %v7037 = vsel %vm1364, %v6951, 0.0
      %7038 = vadd.xlane.f32.xlu0 %v7037
      %v7039 = vpop.xlane.xlu0 %7038
      %v7040 = vsel %vm1364, %v6953, 0.0
      %7041 = vadd.xlane.f32.xlu0 %v7040
      %v7042 = vpop.xlane.xlu0 %7041
      %v7043 = vsel %vm1364, %v6955, 0.0
      %7044 = vadd.xlane.f32.xlu0 %v7043
      %v7045 = vpop.xlane.xlu0 %7044
      %v7046 = vsel %vm1364, %v6957, 0.0
      %7047 = vadd.xlane.f32.xlu0 %v7046
      %v7048 = vpop.xlane.xlu0 %7047
      %v7049 = vsel %vm1364, %v6959, 0.0
      %7050 = vadd.xlane.f32.xlu0 %v7049
      %v7051 = vpop.xlane.xlu0 %7050
      %v7052 = vsel %vm1364, %v6961, 0.0
      %7053 = vadd.xlane.f32.xlu0 %v7052
      %v7054 = vpop.xlane.xlu0 %7053
      %v7055 = vsel %vm1364, %v6963, 0.0
      %7056 = vadd.xlane.f32.xlu0 %v7055
      %v7057 = vpop.xlane.xlu0 %7056
      %v7058 = vsel %vm1364, %v6965, 0.0
      %7059 = vadd.xlane.f32.xlu0 %v7058
      %v7060 = vpop.xlane.xlu0 %7059
      %v7061 = vsel %vm1364, %v6967, 0.0
      %7062 = vadd.xlane.f32.xlu0 %v7061
      %v7063 = vpop.xlane.xlu0 %7062
      %v7064 = vrcp.pop %v6970
      %v7065 = vrcp.pop %v6973
      %v7066 = vrcp.pop %v6976
      %v7067 = vrcp.pop %v6979
      %v7068 = vrcp.pop %v6982
      %v7069 = vrcp.pop %v6985
      %v7070 = vrcp.pop %v6988
      %v7071 = vrcp.pop %v6991
      %v7072 = vrcp.pop %v6994
      %v7073 = vrcp.pop %v6997
      %v7074 = vrcp.pop %v7000
      %v7075 = vrcp.pop %v7003
      %v7076 = vrcp.pop %v7006
      %v7077 = vrcp.pop %v7009
      %v7078 = vrcp.pop %v7012
      %v7079 = vrcp.pop %v7015
      %v7080 = vrcp.pop %v7018
      %v7081 = vrcp.pop %v7021
      %v7082 = vrcp.pop %v7024
      %v7083 = vrcp.pop %v7027
      %v7084 = vrcp.pop %v7030
      %v7085 = vrcp.pop %v7033
      %v7086 = vrcp.pop %v7036
      %v7087 = vrcp.pop %v7039
      %v7088 = vrcp.pop %v7042
      %v7089 = vrcp.pop %v7045
      %v7090 = vrcp.pop %v7048
      %v7091 = vrcp.pop %v7051
      %v7092 = vrcp.pop %v7054
      %v7093 = vrcp.pop %v7057
      %v7094 = vrcp.pop %v7060
      %v7095 = vrcp.pop %v7063
      %v7096 = vmul.f32 %v6905, %v7064
      %v7097 = vmul.f32 %v6907, %v7065
      %v7098 = vmul.f32 %v6909, %v7066
      %v7099 = vmul.f32 %v6911, %v7067
      %v7100 = vmul.f32 %v6913, %v7068
      %v7101 = vmul.f32 %v6915, %v7069
      %v7102 = vmul.f32 %v6917, %v7070
      %v7103 = vmul.f32 %v6919, %v7071
      %v7104 = vmul.f32 %v6921, %v7072
      %v7105 = vmul.f32 %v6923, %v7073
      %v7106 = vmul.f32 %v6925, %v7074
      %v7107 = vmul.f32 %v6927, %v7075
      %v7108 = vmul.f32 %v6929, %v7076
      %v7109 = vmul.f32 %v6931, %v7077
      %v7110 = vmul.f32 %v6933, %v7078
      %v7111 = vmul.f32 %v6935, %v7079
      %v7112 = vmul.f32 %v6937, %v7080
      %v7113 = vmul.f32 %v6939, %v7081
      %v7114 = vmul.f32 %v6941, %v7082
      %v7115 = vmul.f32 %v6943, %v7083
      %v7116 = vmul.f32 %v6945, %v7084
      %v7117 = vmul.f32 %v6947, %v7085
      %v7118 = vmul.f32 %v6949, %v7086
      %v7119 = vmul.f32 %v6951, %v7087
      %v7120 = vmul.f32 %v6953, %v7088
      %v7121 = vmul.f32 %v6955, %v7089
      %v7122 = vmul.f32 %v6957, %v7090
      %v7123 = vmul.f32 %v6959, %v7091
      %v7124 = vmul.f32 %v6961, %v7092
      %v7125 = vmul.f32 %v6963, %v7093
      %v7126 = vmul.f32 %v6965, %v7094
      %v7127 = vmul.f32 %v6967, %v7095
      %v7128 = vpack.c.bf16 %v7097, %v7096
      %v7129 = vpack.c.bf16 %v7099, %v7098
      %v7130 = vpack.c.bf16 %v7101, %v7100
      %v7131 = vpack.c.bf16 %v7103, %v7102
      %v7132 = vpack.c.bf16 %v7105, %v7104
      %v7133 = vpack.c.bf16 %v7107, %v7106
      %v7134 = vpack.c.bf16 %v7109, %v7108
      %v7135 = vpack.c.bf16 %v7111, %v7110
      %v7136 = vpack.c.bf16 %v7113, %v7112
      %v7137 = vpack.c.bf16 %v7115, %v7114
      %v7138 = vpack.c.bf16 %v7117, %v7116
      %v7139 = vpack.c.bf16 %v7119, %v7118
      %v7140 = vpack.c.bf16 %v7121, %v7120
      %v7141 = vpack.c.bf16 %v7123, %v7122
      %v7142 = vpack.c.bf16 %v7125, %v7124
      %v7143 = vpack.c.bf16 %v7127, %v7126
      %7144 = vrot.lane.b32.xlu0 %v1943, 112
      %v7145 = vpop.permute.xlu0 %7144
      %v7148 = vsel %vm1364, %v7128, 0
      %7150 = vmatprep.subr.bf16.mxu0 0
      %7151 = vmatpush1.bf16.msra.mxu0 %v7145
      %7152 = vmatprep.subr.bf16.mxu0 0
      %7153 = vmatpush1.bf16.msra.mxu0 0
      %7154 = vmatprep.subr.bf16.mxu0 0
      %7155 = vmatpush1.bf16.msra.mxu0 0
      %7156 = vmatprep.subr.bf16.mxu0 0
      %7157 = vmatpush1.bf16.msra.mxu0 0
      %7158 = vmatprep.subr.bf16.mxu0 0
      %7159 = vmatpush1.bf16.msra.mxu0 0
      %7160 = vmatprep.subr.bf16.mxu0 0
      %7161 = vmatpush1.bf16.msra.mxu0 0
      %7162 = vmatprep.subr.bf16.mxu0 0
      %7163 = vmatpush1.bf16.msra.mxu0 0
      %7164 = vmatprep.subr.bf16.mxu0 0
      %7165 = vmatpush1.bf16.msra.mxu0 0
      %7166 = vmatprep.subr.bf16.mxu0 0
      %7167 = vmatpush1.bf16.msra.mxu0 0
      %7168 = vmatprep.subr.bf16.mxu0 0
      %7169 = vmatpush1.bf16.msra.mxu0 0
      %7170 = vmatprep.subr.bf16.mxu0 0
      %7171 = vmatpush1.bf16.msra.mxu0 0
      %7172 = vmatprep.subr.bf16.mxu0 0
      %7173 = vmatpush1.bf16.msra.mxu0 0
      %7174 = vmatprep.subr.bf16.mxu0 0
      %7175 = vmatpush1.bf16.msra.mxu0 0
      %7176 = vmatprep.subr.bf16.mxu0 0
      %7177 = vmatpush1.bf16.msra.mxu0 0
      %7178 = vmatprep.subr.bf16.mxu0 0
      %7179 = vmatpush1.bf16.msra.mxu0 0
      %7180 = vmatprep.subr.bf16.mxu0 0
      %7181 = vmatpush1.bf16.msra.mxu0 0
      %7182 = vmatprep.mubr.bf16.mxu0 0
      %7183 = vmatmul.mubr.bf16.gmra.mrb[0].mxu0 %v7148
      %v7184 = vpop.f32.mrb[0].mxu0
      %v7185 = vadd.f32 0.0, %v7184
      %v7186 = vpop.f32.mrb[0].mxu0
      %v7187 = vpop.f32.mrb[0].mxu0
      %v7188 = vadd.f32 0.0, %v7187
      %v7189 = vpop.f32.mrb[0].mxu0
      %7190 = vdwg.mxu0
      %7191 = vrot.lane.b32.xlu0 %v1944, 112
      %v7192 = vpop.permute.xlu0 %7191
      %v7195 = vsel %vm1364, %v7129, 0
      %7197 = vmatprep.subr.bf16.mxu0 0
      %7198 = vmatpush1.bf16.msra.mxu0 %v7192
      %7199 = vmatprep.subr.bf16.mxu0 0
      %7200 = vmatpush1.bf16.msra.mxu0 0
      %7201 = vmatprep.subr.bf16.mxu0 0
      %7202 = vmatpush1.bf16.msra.mxu0 0
      %7203 = vmatprep.subr.bf16.mxu0 0
      %7204 = vmatpush1.bf16.msra.mxu0 0
      %7205 = vmatprep.subr.bf16.mxu0 0
      %7206 = vmatpush1.bf16.msra.mxu0 0
      %7207 = vmatprep.subr.bf16.mxu0 0
      %7208 = vmatpush1.bf16.msra.mxu0 0
      %7209 = vmatprep.subr.bf16.mxu0 0
      %7210 = vmatpush1.bf16.msra.mxu0 0
      %7211 = vmatprep.subr.bf16.mxu0 0
      %7212 = vmatpush1.bf16.msra.mxu0 0
      %7213 = vmatprep.subr.bf16.mxu0 0
      %7214 = vmatpush1.bf16.msra.mxu0 0
      %7215 = vmatprep.subr.bf16.mxu0 0
      %7216 = vmatpush1.bf16.msra.mxu0 0
      %7217 = vmatprep.subr.bf16.mxu0 0
      %7218 = vmatpush1.bf16.msra.mxu0 0
      %7219 = vmatprep.subr.bf16.mxu0 0
      %7220 = vmatpush1.bf16.msra.mxu0 0
      %7221 = vmatprep.subr.bf16.mxu0 0
      %7222 = vmatpush1.bf16.msra.mxu0 0
      %7223 = vmatprep.subr.bf16.mxu0 0
      %7224 = vmatpush1.bf16.msra.mxu0 0
      %7225 = vmatprep.subr.bf16.mxu0 0
      %7226 = vmatpush1.bf16.msra.mxu0 0
      %7227 = vmatprep.subr.bf16.mxu0 0
      %7228 = vmatpush1.bf16.msra.mxu0 0
      %7229 = vmatprep.mubr.bf16.mxu0 0
      %7230 = vmatmul.mubr.bf16.gmra.mrb[0].mxu0 %v7195
      %v7231 = vpop.f32.mrb[0].mxu0
      %v7232 = vadd.f32 0.0, %v7231
      %v7233 = vpop.f32.mrb[0].mxu0
      %v7234 = vpop.f32.mrb[0].mxu0
      %v7235 = vadd.f32 0.0, %v7234
      %v7236 = vpop.f32.mrb[0].mxu0
      %7237 = vdwg.mxu0
      %7238 = vrot.lane.b32.xlu0 %v1945, 112
      %v7239 = vpop.permute.xlu0 %7238
      %v7242 = vsel %vm1364, %v7130, 0
      %7244 = vmatprep.subr.bf16.mxu0 0
      %7245 = vmatpush1.bf16.msra.mxu0 %v7239
      %7246 = vmatprep.subr.bf16.mxu0 0
      %7247 = vmatpush1.bf16.msra.mxu0 0
      %7248 = vmatprep.subr.bf16.mxu0 0
      %7249 = vmatpush1.bf16.msra.mxu0 0
      %7250 = vmatprep.subr.bf16.mxu0 0
      %7251 = vmatpush1.bf16.msra.mxu0 0
      %7252 = vmatprep.subr.bf16.mxu0 0
      %7253 = vmatpush1.bf16.msra.mxu0 0
      %7254 = vmatprep.subr.bf16.mxu0 0
      %7255 = vmatpush1.bf16.msra.mxu0 0
      %7256 = vmatprep.subr.bf16.mxu0 0
      %7257 = vmatpush1.bf16.msra.mxu0 0
      %7258 = vmatprep.subr.bf16.mxu0 0
      %7259 = vmatpush1.bf16.msra.mxu0 0
      %7260 = vmatprep.subr.bf16.mxu0 0
      %7261 = vmatpush1.bf16.msra.mxu0 0
      %7262 = vmatprep.subr.bf16.mxu0 0
      %7263 = vmatpush1.bf16.msra.mxu0 0
      %7264 = vmatprep.subr.bf16.mxu0 0
      %7265 = vmatpush1.bf16.msra.mxu0 0
      %7266 = vmatprep.subr.bf16.mxu0 0
      %7267 = vmatpush1.bf16.msra.mxu0 0
      %7268 = vmatprep.subr.bf16.mxu0 0
      %7269 = vmatpush1.bf16.msra.mxu0 0
      %7270 = vmatprep.subr.bf16.mxu0 0
      %7271 = vmatpush1.bf16.msra.mxu0 0
      %7272 = vmatprep.subr.bf16.mxu0 0
      %7273 = vmatpush1.bf16.msra.mxu0 0
      %7274 = vmatprep.subr.bf16.mxu0 0
      %7275 = vmatpush1.bf16.msra.mxu0 0
      %7276 = vmatprep.mubr.bf16.mxu0 0
      %7277 = vmatmul.mubr.bf16.gmra.mrb[0].mxu0 %v7242
      %v7278 = vpop.f32.mrb[0].mxu0
      %v7279 = vadd.f32 0.0, %v7278
      %v7280 = vpop.f32.mrb[0].mxu0
      %v7281 = vpop.f32.mrb[0].mxu0
      %v7282 = vadd.f32 0.0, %v7281
      %v7283 = vpop.f32.mrb[0].mxu0
      %7284 = vdwg.mxu0
      %7285 = vrot.lane.b32.xlu0 %v1946, 112
      %v7286 = vpop.permute.xlu0 %7285
      %v7289 = vsel %vm1364, %v7131, 0
      %7291 = vmatprep.subr.bf16.mxu0 0
      %7292 = vmatpush1.bf16.msra.mxu0 %v7286
      %7293 = vmatprep.subr.bf16.mxu0 0
      %7294 = vmatpush1.bf16.msra.mxu0 0
      %7295 = vmatprep.subr.bf16.mxu0 0
      %7296 = vmatpush1.bf16.msra.mxu0 0
      %7297 = vmatprep.subr.bf16.mxu0 0
      %7298 = vmatpush1.bf16.msra.mxu0 0
      %7299 = vmatprep.subr.bf16.mxu0 0
      %7300 = vmatpush1.bf16.msra.mxu0 0
      %7301 = vmatprep.subr.bf16.mxu0 0
      %7302 = vmatpush1.bf16.msra.mxu0 0
      %7303 = vmatprep.subr.bf16.mxu0 0
      %7304 = vmatpush1.bf16.msra.mxu0 0
      %7305 = vmatprep.subr.bf16.mxu0 0
      %7306 = vmatpush1.bf16.msra.mxu0 0
      %7307 = vmatprep.subr.bf16.mxu0 0
      %7308 = vmatpush1.bf16.msra.mxu0 0
      %7309 = vmatprep.subr.bf16.mxu0 0
      %7310 = vmatpush1.bf16.msra.mxu0 0
      %7311 = vmatprep.subr.bf16.mxu0 0
      %7312 = vmatpush1.bf16.msra.mxu0 0
      %7313 = vmatprep.subr.bf16.mxu0 0
      %7314 = vmatpush1.bf16.msra.mxu0 0
      %7315 = vmatprep.subr.bf16.mxu0 0
      %7316 = vmatpush1.bf16.msra.mxu0 0
      %7317 = vmatprep.subr.bf16.mxu0 0
      %7318 = vmatpush1.bf16.msra.mxu0 0
      %7319 = vmatprep.subr.bf16.mxu0 0
      %7320 = vmatpush1.bf16.msra.mxu0 0
      %7321 = vmatprep.subr.bf16.mxu0 0
      %7322 = vmatpush1.bf16.msra.mxu0 0
      %7323 = vmatprep.mubr.bf16.mxu0 0
      %7324 = vmatmul.mubr.bf16.gmra.mrb[0].mxu0 %v7289
      %v7325 = vpop.f32.mrb[0].mxu0
      %v7326 = vadd.f32 0.0, %v7325
      %v7327 = vpop.f32.mrb[0].mxu0
      %v7328 = vpop.f32.mrb[0].mxu0
      %v7329 = vadd.f32 0.0, %v7328
      %v7330 = vpop.f32.mrb[0].mxu0
      %7331 = vdwg.mxu0
      %7332 = vrot.lane.b32.xlu0 %v1947, 112
      %v7333 = vpop.permute.xlu0 %7332
      %v7336 = vsel %vm1364, %v7132, 0
      %7338 = vmatprep.subr.bf16.mxu0 0
      %7339 = vmatpush1.bf16.msra.mxu0 %v7333
      %7340 = vmatprep.subr.bf16.mxu0 0
      %7341 = vmatpush1.bf16.msra.mxu0 0
      %7342 = vmatprep.subr.bf16.mxu0 0
      %7343 = vmatpush1.bf16.msra.mxu0 0
      %7344 = vmatprep.subr.bf16.mxu0 0
      %7345 = vmatpush1.bf16.msra.mxu0 0
      %7346 = vmatprep.subr.bf16.mxu0 0
      %7347 = vmatpush1.bf16.msra.mxu0 0
      %7348 = vmatprep.subr.bf16.mxu0 0
      %7349 = vmatpush1.bf16.msra.mxu0 0
      %7350 = vmatprep.subr.bf16.mxu0 0
      %7351 = vmatpush1.bf16.msra.mxu0 0
      %7352 = vmatprep.subr.bf16.mxu0 0
      %7353 = vmatpush1.bf16.msra.mxu0 0
      %7354 = vmatprep.subr.bf16.mxu0 0
      %7355 = vmatpush1.bf16.msra.mxu0 0
      %7356 = vmatprep.subr.bf16.mxu0 0
      %7357 = vmatpush1.bf16.msra.mxu0 0
      %7358 = vmatprep.subr.bf16.mxu0 0
      %7359 = vmatpush1.bf16.msra.mxu0 0
      %7360 = vmatprep.subr.bf16.mxu0 0
      %7361 = vmatpush1.bf16.msra.mxu0 0
      %7362 = vmatprep.subr.bf16.mxu0 0
      %7363 = vmatpush1.bf16.msra.mxu0 0
      %7364 = vmatprep.subr.bf16.mxu0 0
      %7365 = vmatpush1.bf16.msra.mxu0 0
      %7366 = vmatprep.subr.bf16.mxu0 0
      %7367 = vmatpush1.bf16.msra.mxu0 0
      %7368 = vmatprep.subr.bf16.mxu0 0
      %7369 = vmatpush1.bf16.msra.mxu0 0
      %7370 = vmatprep.mubr.bf16.mxu0 0
      %7371 = vmatmul.mubr.bf16.gmra.mrb[0].mxu0 %v7336
      %v7372 = vpop.f32.mrb[0].mxu0
      %v7373 = vadd.f32 0.0, %v7372
      %v7374 = vpop.f32.mrb[0].mxu0
      %v7375 = vpop.f32.mrb[0].mxu0
      %v7376 = vadd.f32 0.0, %v7375
      %v7377 = vpop.f32.mrb[0].mxu0
      %7378 = vdwg.mxu0
      %7379 = vrot.lane.b32.xlu0 %v1948, 112
      %v7380 = vpop.permute.xlu0 %7379
      %v7383 = vsel %vm1364, %v7133, 0
      %7385 = vmatprep.subr.bf16.mxu0 0
      %7386 = vmatpush1.bf16.msra.mxu0 %v7380
      %7387 = vmatprep.subr.bf16.mxu0 0
      %7388 = vmatpush1.bf16.msra.mxu0 0
      %7389 = vmatprep.subr.bf16.mxu0 0
      %7390 = vmatpush1.bf16.msra.mxu0 0
      %7391 = vmatprep.subr.bf16.mxu0 0
      %7392 = vmatpush1.bf16.msra.mxu0 0
      %7393 = vmatprep.subr.bf16.mxu0 0
      %7394 = vmatpush1.bf16.msra.mxu0 0
      %7395 = vmatprep.subr.bf16.mxu0 0
      %7396 = vmatpush1.bf16.msra.mxu0 0
      %7397 = vmatprep.subr.bf16.mxu0 0
      %7398 = vmatpush1.bf16.msra.mxu0 0
      %7399 = vmatprep.subr.bf16.mxu0 0
      %7400 = vmatpush1.bf16.msra.mxu0 0
      %7401 = vmatprep.subr.bf16.mxu0 0
      %7402 = vmatpush1.bf16.msra.mxu0 0
      %7403 = vmatprep.subr.bf16.mxu0 0
      %7404 = vmatpush1.bf16.msra.mxu0 0
      %7405 = vmatprep.subr.bf16.mxu0 0
      %7406 = vmatpush1.bf16.msra.mxu0 0
      %7407 = vmatprep.subr.bf16.mxu0 0
      %7408 = vmatpush1.bf16.msra.mxu0 0
      %7409 = vmatprep.subr.bf16.mxu0 0
      %7410 = vmatpush1.bf16.msra.mxu0 0
      %7411 = vmatprep.subr.bf16.mxu0 0
      %7412 = vmatpush1.bf16.msra.mxu0 0
      %7413 = vmatprep.subr.bf16.mxu0 0
      %7414 = vmatpush1.bf16.msra.mxu0 0
      %7415 = vmatprep.subr.bf16.mxu0 0
      %7416 = vmatpush1.bf16.msra.mxu0 0
      %7417 = vmatprep.mubr.bf16.mxu0 0
      %7418 = vmatmul.mubr.bf16.gmra.mrb[0].mxu0 %v7383
      %v7419 = vpop.f32.mrb[0].mxu0
      %v7420 = vadd.f32 0.0, %v7419
      %v7421 = vpop.f32.mrb[0].mxu0
      %v7422 = vpop.f32.mrb[0].mxu0
      %v7423 = vadd.f32 0.0, %v7422
      %v7424 = vpop.f32.mrb[0].mxu0
      %7425 = vdwg.mxu0
      %7426 = vrot.lane.b32.xlu0 %v1949, 112
      %v7427 = vpop.permute.xlu0 %7426
      %v7430 = vsel %vm1364, %v7134, 0
      %7432 = vmatprep.subr.bf16.mxu0 0
      %7433 = vmatpush1.bf16.msra.mxu0 %v7427
      %7434 = vmatprep.subr.bf16.mxu0 0
      %7435 = vmatpush1.bf16.msra.mxu0 0
      %7436 = vmatprep.subr.bf16.mxu0 0
      %7437 = vmatpush1.bf16.msra.mxu0 0
      %7438 = vmatprep.subr.bf16.mxu0 0
      %7439 = vmatpush1.bf16.msra.mxu0 0
      %7440 = vmatprep.subr.bf16.mxu0 0
      %7441 = vmatpush1.bf16.msra.mxu0 0
      %7442 = vmatprep.subr.bf16.mxu0 0
      %7443 = vmatpush1.bf16.msra.mxu0 0
      %7444 = vmatprep.subr.bf16.mxu0 0
      %7445 = vmatpush1.bf16.msra.mxu0 0
      %7446 = vmatprep.subr.bf16.mxu0 0
      %7447 = vmatpush1.bf16.msra.mxu0 0
      %7448 = vmatprep.subr.bf16.mxu0 0
      %7449 = vmatpush1.bf16.msra.mxu0 0
      %7450 = vmatprep.subr.bf16.mxu0 0
      %7451 = vmatpush1.bf16.msra.mxu0 0
      %7452 = vmatprep.subr.bf16.mxu0 0
      %7453 = vmatpush1.bf16.msra.mxu0 0
      %7454 = vmatprep.subr.bf16.mxu0 0
      %7455 = vmatpush1.bf16.msra.mxu0 0
      %7456 = vmatprep.subr.bf16.mxu0 0
      %7457 = vmatpush1.bf16.msra.mxu0 0
      %7458 = vmatprep.subr.bf16.mxu0 0
      %7459 = vmatpush1.bf16.msra.mxu0 0
      %7460 = vmatprep.subr.bf16.mxu0 0
      %7461 = vmatpush1.bf16.msra.mxu0 0
      %7462 = vmatprep.subr.bf16.mxu0 0
      %7463 = vmatpush1.bf16.msra.mxu0 0
      %7464 = vmatprep.mubr.bf16.mxu0 0
      %7465 = vmatmul.mubr.bf16.gmra.mrb[0].mxu0 %v7430
      %v7466 = vpop.f32.mrb[0].mxu0
      %v7467 = vadd.f32 0.0, %v7466
      %v7468 = vpop.f32.mrb[0].mxu0
      %v7469 = vpop.f32.mrb[0].mxu0
      %v7470 = vadd.f32 0.0, %v7469
      %v7471 = vpop.f32.mrb[0].mxu0
      %7472 = vdwg.mxu0
      %7473 = vrot.lane.b32.xlu0 %v1950, 112
      %v7474 = vpop.permute.xlu0 %7473
      %v7477 = vsel %vm1364, %v7135, 0
      %7479 = vmatprep.subr.bf16.mxu0 0
      %7480 = vmatpush1.bf16.msra.mxu0 %v7474
      %7481 = vmatprep.subr.bf16.mxu0 0
      %7482 = vmatpush1.bf16.msra.mxu0 0
      %7483 = vmatprep.subr.bf16.mxu0 0
      %7484 = vmatpush1.bf16.msra.mxu0 0
      %7485 = vmatprep.subr.bf16.mxu0 0
      %7486 = vmatpush1.bf16.msra.mxu0 0
      %7487 = vmatprep.subr.bf16.mxu0 0
      %7488 = vmatpush1.bf16.msra.mxu0 0
      %7489 = vmatprep.subr.bf16.mxu0 0
      %7490 = vmatpush1.bf16.msra.mxu0 0
      %7491 = vmatprep.subr.bf16.mxu0 0
      %7492 = vmatpush1.bf16.msra.mxu0 0
      %7493 = vmatprep.subr.bf16.mxu0 0
      %7494 = vmatpush1.bf16.msra.mxu0 0
      %7495 = vmatprep.subr.bf16.mxu0 0
      %7496 = vmatpush1.bf16.msra.mxu0 0
      %7497 = vmatprep.subr.bf16.mxu0 0
      %7498 = vmatpush1.bf16.msra.mxu0 0
      %7499 = vmatprep.subr.bf16.mxu0 0
      %7500 = vmatpush1.bf16.msra.mxu0 0
      %7501 = vmatprep.subr.bf16.mxu0 0
      %7502 = vmatpush1.bf16.msra.mxu0 0
      %7503 = vmatprep.subr.bf16.mxu0 0
      %7504 = vmatpush1.bf16.msra.mxu0 0
      %7505 = vmatprep.subr.bf16.mxu0 0
      %7506 = vmatpush1.bf16.msra.mxu0 0
      %7507 = vmatprep.subr.bf16.mxu0 0
      %7508 = vmatpush1.bf16.msra.mxu0 0
      %7509 = vmatprep.subr.bf16.mxu0 0
      %7510 = vmatpush1.bf16.msra.mxu0 0
      %7511 = vmatprep.mubr.bf16.mxu0 0
      %7512 = vmatmul.mubr.bf16.gmra.mrb[0].mxu0 %v7477
      %v7513 = vpop.f32.mrb[0].mxu0
      %v7514 = vadd.f32 0.0, %v7513
      %v7515 = vpop.f32.mrb[0].mxu0
      %v7516 = vpop.f32.mrb[0].mxu0
      %v7517 = vadd.f32 0.0, %v7516
      %v7518 = vpop.f32.mrb[0].mxu0
      %7519 = vdwg.mxu0
      %7520 = vrot.lane.b32.xlu0 %v1951, 112
      %v7521 = vpop.permute.xlu0 %7520
      %v7524 = vsel %vm1364, %v7136, 0
      %7526 = vmatprep.subr.bf16.mxu0 0
      %7527 = vmatpush1.bf16.msra.mxu0 %v7521
      %7528 = vmatprep.subr.bf16.mxu0 0
      %7529 = vmatpush1.bf16.msra.mxu0 0
      %7530 = vmatprep.subr.bf16.mxu0 0
      %7531 = vmatpush1.bf16.msra.mxu0 0
      %7532 = vmatprep.subr.bf16.mxu0 0
      %7533 = vmatpush1.bf16.msra.mxu0 0
      %7534 = vmatprep.subr.bf16.mxu0 0
      %7535 = vmatpush1.bf16.msra.mxu0 0
      %7536 = vmatprep.subr.bf16.mxu0 0
      %7537 = vmatpush1.bf16.msra.mxu0 0
      %7538 = vmatprep.subr.bf16.mxu0 0
      %7539 = vmatpush1.bf16.msra.mxu0 0
      %7540 = vmatprep.subr.bf16.mxu0 0
      %7541 = vmatpush1.bf16.msra.mxu0 0
      %7542 = vmatprep.subr.bf16.mxu0 0
      %7543 = vmatpush1.bf16.msra.mxu0 0
      %7544 = vmatprep.subr.bf16.mxu0 0
      %7545 = vmatpush1.bf16.msra.mxu0 0
      %7546 = vmatprep.subr.bf16.mxu0 0
      %7547 = vmatpush1.bf16.msra.mxu0 0
      %7548 = vmatprep.subr.bf16.mxu0 0
      %7549 = vmatpush1.bf16.msra.mxu0 0
      %7550 = vmatprep.subr.bf16.mxu0 0
      %7551 = vmatpush1.bf16.msra.mxu0 0
      %7552 = vmatprep.subr.bf16.mxu0 0
      %7553 = vmatpush1.bf16.msra.mxu0 0
      %7554 = vmatprep.subr.bf16.mxu0 0
      %7555 = vmatpush1.bf16.msra.mxu0 0
      %7556 = vmatprep.subr.bf16.mxu0 0
      %7557 = vmatpush1.bf16.msra.mxu0 0
      %7558 = vmatprep.mubr.bf16.mxu0 0
      %7559 = vmatmul.mubr.bf16.gmra.mrb[0].mxu0 %v7524
      %v7560 = vpop.f32.mrb[0].mxu0
      %v7561 = vadd.f32 0.0, %v7560
      %v7562 = vpop.f32.mrb[0].mxu0
      %v7563 = vpop.f32.mrb[0].mxu0
      %v7564 = vadd.f32 0.0, %v7563
      %v7565 = vpop.f32.mrb[0].mxu0
      %7566 = vdwg.mxu0
      %7567 = vrot.lane.b32.xlu0 %v1952, 112
      %v7568 = vpop.permute.xlu0 %7567
      %v7571 = vsel %vm1364, %v7137, 0
      %7573 = vmatprep.subr.bf16.mxu0 0
      %7574 = vmatpush1.bf16.msra.mxu0 %v7568
      %7575 = vmatprep.subr.bf16.mxu0 0
      %7576 = vmatpush1.bf16.msra.mxu0 0
      %7577 = vmatprep.subr.bf16.mxu0 0
      %7578 = vmatpush1.bf16.msra.mxu0 0
      %7579 = vmatprep.subr.bf16.mxu0 0
      %7580 = vmatpush1.bf16.msra.mxu0 0
      %7581 = vmatprep.subr.bf16.mxu0 0
      %7582 = vmatpush1.bf16.msra.mxu0 0
      %7583 = vmatprep.subr.bf16.mxu0 0
      %7584 = vmatpush1.bf16.msra.mxu0 0
      %7585 = vmatprep.subr.bf16.mxu0 0
      %7586 = vmatpush1.bf16.msra.mxu0 0
      %7587 = vmatprep.subr.bf16.mxu0 0
      %7588 = vmatpush1.bf16.msra.mxu0 0
      %7589 = vmatprep.subr.bf16.mxu0 0
      %7590 = vmatpush1.bf16.msra.mxu0 0
      %7591 = vmatprep.subr.bf16.mxu0 0
      %7592 = vmatpush1.bf16.msra.mxu0 0
      %7593 = vmatprep.subr.bf16.mxu0 0
      %7594 = vmatpush1.bf16.msra.mxu0 0
      %7595 = vmatprep.subr.bf16.mxu0 0
      %7596 = vmatpush1.bf16.msra.mxu0 0
      %7597 = vmatprep.subr.bf16.mxu0 0
      %7598 = vmatpush1.bf16.msra.mxu0 0
      %7599 = vmatprep.subr.bf16.mxu0 0
      %7600 = vmatpush1.bf16.msra.mxu0 0
      %7601 = vmatprep.subr.bf16.mxu0 0
      %7602 = vmatpush1.bf16.msra.mxu0 0
      %7603 = vmatprep.subr.bf16.mxu0 0
      %7604 = vmatpush1.bf16.msra.mxu0 0
      %7605 = vmatprep.mubr.bf16.mxu0 0
      %7606 = vmatmul.mubr.bf16.gmra.mrb[0].mxu0 %v7571
      %v7607 = vpop.f32.mrb[0].mxu0
      %v7608 = vadd.f32 0.0, %v7607
      %v7609 = vpop.f32.mrb[0].mxu0
      %v7610 = vpop.f32.mrb[0].mxu0
      %v7611 = vadd.f32 0.0, %v7610
      %v7612 = vpop.f32.mrb[0].mxu0
      %7613 = vdwg.mxu0
      %7614 = vrot.lane.b32.xlu0 %v1953, 112
      %v7615 = vpop.permute.xlu0 %7614
      %v7618 = vsel %vm1364, %v7138, 0
      %7620 = vmatprep.subr.bf16.mxu0 0
      %7621 = vmatpush1.bf16.msra.mxu0 %v7615
      %7622 = vmatprep.subr.bf16.mxu0 0
      %7623 = vmatpush1.bf16.msra.mxu0 0
      %7624 = vmatprep.subr.bf16.mxu0 0
      %7625 = vmatpush1.bf16.msra.mxu0 0
      %7626 = vmatprep.subr.bf16.mxu0 0
      %7627 = vmatpush1.bf16.msra.mxu0 0
      %7628 = vmatprep.subr.bf16.mxu0 0
      %7629 = vmatpush1.bf16.msra.mxu0 0
      %7630 = vmatprep.subr.bf16.mxu0 0
      %7631 = vmatpush1.bf16.msra.mxu0 0
      %7632 = vmatprep.subr.bf16.mxu0 0
      %7633 = vmatpush1.bf16.msra.mxu0 0
      %7634 = vmatprep.subr.bf16.mxu0 0
      %7635 = vmatpush1.bf16.msra.mxu0 0
      %7636 = vmatprep.subr.bf16.mxu0 0
      %7637 = vmatpush1.bf16.msra.mxu0 0
      %7638 = vmatprep.subr.bf16.mxu0 0
      %7639 = vmatpush1.bf16.msra.mxu0 0
      %7640 = vmatprep.subr.bf16.mxu0 0
      %7641 = vmatpush1.bf16.msra.mxu0 0
      %7642 = vmatprep.subr.bf16.mxu0 0
      %7643 = vmatpush1.bf16.msra.mxu0 0
      %7644 = vmatprep.subr.bf16.mxu0 0
      %7645 = vmatpush1.bf16.msra.mxu0 0
      %7646 = vmatprep.subr.bf16.mxu0 0
      %7647 = vmatpush1.bf16.msra.mxu0 0
      %7648 = vmatprep.subr.bf16.mxu0 0
      %7649 = vmatpush1.bf16.msra.mxu0 0
      %7650 = vmatprep.subr.bf16.mxu0 0
      %7651 = vmatpush1.bf16.msra.mxu0 0
      %7652 = vmatprep.mubr.bf16.mxu0 0
      %7653 = vmatmul.mubr.bf16.gmra.mrb[0].mxu0 %v7618
      %v7654 = vpop.f32.mrb[0].mxu0
      %v7655 = vadd.f32 0.0, %v7654
      %v7656 = vpop.f32.mrb[0].mxu0
      %v7657 = vpop.f32.mrb[0].mxu0
      %v7658 = vadd.f32 0.0, %v7657
      %v7659 = vpop.f32.mrb[0].mxu0
      %7660 = vdwg.mxu0
      %7661 = vrot.lane.b32.xlu0 %v1954, 112
      %v7662 = vpop.permute.xlu0 %7661
      %v7665 = vsel %vm1364, %v7139, 0
      %7667 = vmatprep.subr.bf16.mxu0 0
      %7668 = vmatpush1.bf16.msra.mxu0 %v7662
      %7669 = vmatprep.subr.bf16.mxu0 0
      %7670 = vmatpush1.bf16.msra.mxu0 0
      %7671 = vmatprep.subr.bf16.mxu0 0
      %7672 = vmatpush1.bf16.msra.mxu0 0
      %7673 = vmatprep.subr.bf16.mxu0 0
      %7674 = vmatpush1.bf16.msra.mxu0 0
      %7675 = vmatprep.subr.bf16.mxu0 0
      %7676 = vmatpush1.bf16.msra.mxu0 0
      %7677 = vmatprep.subr.bf16.mxu0 0
      %7678 = vmatpush1.bf16.msra.mxu0 0
      %7679 = vmatprep.subr.bf16.mxu0 0
      %7680 = vmatpush1.bf16.msra.mxu0 0
      %7681 = vmatprep.subr.bf16.mxu0 0
      %7682 = vmatpush1.bf16.msra.mxu0 0
      %7683 = vmatprep.subr.bf16.mxu0 0
      %7684 = vmatpush1.bf16.msra.mxu0 0
      %7685 = vmatprep.subr.bf16.mxu0 0
      %7686 = vmatpush1.bf16.msra.mxu0 0
      %7687 = vmatprep.subr.bf16.mxu0 0
      %7688 = vmatpush1.bf16.msra.mxu0 0
      %7689 = vmatprep.subr.bf16.mxu0 0
      %7690 = vmatpush1.bf16.msra.mxu0 0
      %7691 = vmatprep.subr.bf16.mxu0 0
      %7692 = vmatpush1.bf16.msra.mxu0 0
      %7693 = vmatprep.subr.bf16.mxu0 0
      %7694 = vmatpush1.bf16.msra.mxu0 0
      %7695 = vmatprep.subr.bf16.mxu0 0
      %7696 = vmatpush1.bf16.msra.mxu0 0
      %7697 = vmatprep.subr.bf16.mxu0 0
      %7698 = vmatpush1.bf16.msra.mxu0 0
      %7699 = vmatprep.mubr.bf16.mxu0 0
      %7700 = vmatmul.mubr.bf16.gmra.mrb[0].mxu0 %v7665
      %v7701 = vpop.f32.mrb[0].mxu0
      %v7702 = vadd.f32 0.0, %v7701
      %v7703 = vpop.f32.mrb[0].mxu0
      %v7704 = vpop.f32.mrb[0].mxu0
      %v7705 = vadd.f32 0.0, %v7704
      %v7706 = vpop.f32.mrb[0].mxu0
      %7707 = vdwg.mxu0
      %7708 = vrot.lane.b32.xlu0 %v1955, 112
      %v7709 = vpop.permute.xlu0 %7708
      %v7712 = vsel %vm1364, %v7140, 0
      %7714 = vmatprep.subr.bf16.mxu0 0
      %7715 = vmatpush1.bf16.msra.mxu0 %v7709
      %7716 = vmatprep.subr.bf16.mxu0 0
      %7717 = vmatpush1.bf16.msra.mxu0 0
      %7718 = vmatprep.subr.bf16.mxu0 0
      %7719 = vmatpush1.bf16.msra.mxu0 0
      %7720 = vmatprep.subr.bf16.mxu0 0
      %7721 = vmatpush1.bf16.msra.mxu0 0
      %7722 = vmatprep.subr.bf16.mxu0 0
      %7723 = vmatpush1.bf16.msra.mxu0 0
      %7724 = vmatprep.subr.bf16.mxu0 0
      %7725 = vmatpush1.bf16.msra.mxu0 0
      %7726 = vmatprep.subr.bf16.mxu0 0
      %7727 = vmatpush1.bf16.msra.mxu0 0
      %7728 = vmatprep.subr.bf16.mxu0 0
      %7729 = vmatpush1.bf16.msra.mxu0 0
      %7730 = vmatprep.subr.bf16.mxu0 0
      %7731 = vmatpush1.bf16.msra.mxu0 0
      %7732 = vmatprep.subr.bf16.mxu0 0
      %7733 = vmatpush1.bf16.msra.mxu0 0
      %7734 = vmatprep.subr.bf16.mxu0 0
      %7735 = vmatpush1.bf16.msra.mxu0 0
      %7736 = vmatprep.subr.bf16.mxu0 0
      %7737 = vmatpush1.bf16.msra.mxu0 0
      %7738 = vmatprep.subr.bf16.mxu0 0
      %7739 = vmatpush1.bf16.msra.mxu0 0
      %7740 = vmatprep.subr.bf16.mxu0 0
      %7741 = vmatpush1.bf16.msra.mxu0 0
      %7742 = vmatprep.subr.bf16.mxu0 0
      %7743 = vmatpush1.bf16.msra.mxu0 0
      %7744 = vmatprep.subr.bf16.mxu0 0
      %7745 = vmatpush1.bf16.msra.mxu0 0
      %7746 = vmatprep.mubr.bf16.mxu0 0
      %7747 = vmatmul.mubr.bf16.gmra.mrb[0].mxu0 %v7712
      %v7748 = vpop.f32.mrb[0].mxu0
      %v7749 = vadd.f32 0.0, %v7748
      %v7750 = vpop.f32.mrb[0].mxu0
      %v7751 = vpop.f32.mrb[0].mxu0
      %v7752 = vadd.f32 0.0, %v7751
      %v7753 = vpop.f32.mrb[0].mxu0
      %7754 = vdwg.mxu0
      %7755 = vrot.lane.b32.xlu0 %v1956, 112
      %v7756 = vpop.permute.xlu0 %7755
      %v7759 = vsel %vm1364, %v7141, 0
      %7761 = vmatprep.subr.bf16.mxu0 0
      %7762 = vmatpush1.bf16.msra.mxu0 %v7756
      %7763 = vmatprep.subr.bf16.mxu0 0
      %7764 = vmatpush1.bf16.msra.mxu0 0
      %7765 = vmatprep.subr.bf16.mxu0 0
      %7766 = vmatpush1.bf16.msra.mxu0 0
      %7767 = vmatprep.subr.bf16.mxu0 0
      %7768 = vmatpush1.bf16.msra.mxu0 0
      %7769 = vmatprep.subr.bf16.mxu0 0
      %7770 = vmatpush1.bf16.msra.mxu0 0
      %7771 = vmatprep.subr.bf16.mxu0 0
      %7772 = vmatpush1.bf16.msra.mxu0 0
      %7773 = vmatprep.subr.bf16.mxu0 0
      %7774 = vmatpush1.bf16.msra.mxu0 0
      %7775 = vmatprep.subr.bf16.mxu0 0
      %7776 = vmatpush1.bf16.msra.mxu0 0
      %7777 = vmatprep.subr.bf16.mxu0 0
      %7778 = vmatpush1.bf16.msra.mxu0 0
      %7779 = vmatprep.subr.bf16.mxu0 0
      %7780 = vmatpush1.bf16.msra.mxu0 0
      %7781 = vmatprep.subr.bf16.mxu0 0
      %7782 = vmatpush1.bf16.msra.mxu0 0
      %7783 = vmatprep.subr.bf16.mxu0 0
      %7784 = vmatpush1.bf16.msra.mxu0 0
      %7785 = vmatprep.subr.bf16.mxu0 0
      %7786 = vmatpush1.bf16.msra.mxu0 0
      %7787 = vmatprep.subr.bf16.mxu0 0
      %7788 = vmatpush1.bf16.msra.mxu0 0
      %7789 = vmatprep.subr.bf16.mxu0 0
      %7790 = vmatpush1.bf16.msra.mxu0 0
      %7791 = vmatprep.subr.bf16.mxu0 0
      %7792 = vmatpush1.bf16.msra.mxu0 0
      %7793 = vmatprep.mubr.bf16.mxu0 0
      %7794 = vmatmul.mubr.bf16.gmra.mrb[0].mxu0 %v7759
      %v7795 = vpop.f32.mrb[0].mxu0
      %v7796 = vadd.f32 0.0, %v7795
      %v7797 = vpop.f32.mrb[0].mxu0
      %v7798 = vpop.f32.mrb[0].mxu0
      %v7799 = vadd.f32 0.0, %v7798
      %v7800 = vpop.f32.mrb[0].mxu0
      %7801 = vdwg.mxu0
      %7802 = vrot.lane.b32.xlu0 %v1957, 112
      %v7803 = vpop.permute.xlu0 %7802
      %v7806 = vsel %vm1364, %v7142, 0
      %7808 = vmatprep.subr.bf16.mxu0 0
      %7809 = vmatpush1.bf16.msra.mxu0 %v7803
      %7810 = vmatprep.subr.bf16.mxu0 0
      %7811 = vmatpush1.bf16.msra.mxu0 0
      %7812 = vmatprep.subr.bf16.mxu0 0
      %7813 = vmatpush1.bf16.msra.mxu0 0
      %7814 = vmatprep.subr.bf16.mxu0 0
      %7815 = vmatpush1.bf16.msra.mxu0 0
      %7816 = vmatprep.subr.bf16.mxu0 0
      %7817 = vmatpush1.bf16.msra.mxu0 0
      %7818 = vmatprep.subr.bf16.mxu0 0
      %7819 = vmatpush1.bf16.msra.mxu0 0
      %7820 = vmatprep.subr.bf16.mxu0 0
      %7821 = vmatpush1.bf16.msra.mxu0 0
      %7822 = vmatprep.subr.bf16.mxu0 0
      %7823 = vmatpush1.bf16.msra.mxu0 0
      %7824 = vmatprep.subr.bf16.mxu0 0
      %7825 = vmatpush1.bf16.msra.mxu0 0
      %7826 = vmatprep.subr.bf16.mxu0 0
      %7827 = vmatpush1.bf16.msra.mxu0 0
      %7828 = vmatprep.subr.bf16.mxu0 0
      %7829 = vmatpush1.bf16.msra.mxu0 0
      %7830 = vmatprep.subr.bf16.mxu0 0
      %7831 = vmatpush1.bf16.msra.mxu0 0
      %7832 = vmatprep.subr.bf16.mxu0 0
      %7833 = vmatpush1.bf16.msra.mxu0 0
      %7834 = vmatprep.subr.bf16.mxu0 0
      %7835 = vmatpush1.bf16.msra.mxu0 0
      %7836 = vmatprep.subr.bf16.mxu0 0
      %7837 = vmatpush1.bf16.msra.mxu0 0
      %7838 = vmatprep.subr.bf16.mxu0 0
      %7839 = vmatpush1.bf16.msra.mxu0 0
      %7840 = vmatprep.mubr.bf16.mxu0 0
      %7841 = vmatmul.mubr.bf16.gmra.mrb[0].mxu0 %v7806
      %v7842 = vpop.f32.mrb[0].mxu0
      %v7843 = vadd.f32 0.0, %v7842
      %v7844 = vpop.f32.mrb[0].mxu0
      %v7845 = vpop.f32.mrb[0].mxu0
      %v7846 = vadd.f32 0.0, %v7845
      %v7847 = vpop.f32.mrb[0].mxu0
      %7848 = vdwg.mxu0
      %7849 = vrot.lane.b32.xlu0 %v1958, 112
      %v7850 = vpop.permute.xlu0 %7849
      %v7853 = vsel %vm1364, %v7143, 0
      %7855 = vmatprep.subr.bf16.mxu0 0
      %7856 = vmatpush1.bf16.msra.mxu0 %v7850
      %7857 = vmatprep.subr.bf16.mxu0 0
      %7858 = vmatpush1.bf16.msra.mxu0 0
      %7859 = vmatprep.subr.bf16.mxu0 0
      %7860 = vmatpush1.bf16.msra.mxu0 0
      %7861 = vmatprep.subr.bf16.mxu0 0
      %7862 = vmatpush1.bf16.msra.mxu0 0
      %7863 = vmatprep.subr.bf16.mxu0 0
      %7864 = vmatpush1.bf16.msra.mxu0 0
      %7865 = vmatprep.subr.bf16.mxu0 0
      %7866 = vmatpush1.bf16.msra.mxu0 0
      %7867 = vmatprep.subr.bf16.mxu0 0
      %7868 = vmatpush1.bf16.msra.mxu0 0
      %7869 = vmatprep.subr.bf16.mxu0 0
      %7870 = vmatpush1.bf16.msra.mxu0 0
      %7871 = vmatprep.subr.bf16.mxu0 0
      %7872 = vmatpush1.bf16.msra.mxu0 0
      %7873 = vmatprep.subr.bf16.mxu0 0
      %7874 = vmatpush1.bf16.msra.mxu0 0
      %7875 = vmatprep.subr.bf16.mxu0 0
      %7876 = vmatpush1.bf16.msra.mxu0 0
      %7877 = vmatprep.subr.bf16.mxu0 0
      %7878 = vmatpush1.bf16.msra.mxu0 0
      %7879 = vmatprep.subr.bf16.mxu0 0
      %7880 = vmatpush1.bf16.msra.mxu0 0
      %7881 = vmatprep.subr.bf16.mxu0 0
      %7882 = vmatpush1.bf16.msra.mxu0 0
      %7883 = vmatprep.subr.bf16.mxu0 0
      %7884 = vmatpush1.bf16.msra.mxu0 0
      %7885 = vmatprep.subr.bf16.mxu0 0
      %7886 = vmatpush1.bf16.msra.mxu0 0
      %7887 = vmatprep.mubr.bf16.mxu0 0
      %7888 = vmatmul.mubr.bf16.gmra.mrb[0].mxu0 %v7853
      %v7889 = vpop.f32.mrb[0].mxu0
      %v7890 = vadd.f32 0.0, %v7889
      %v7891 = vpop.f32.mrb[0].mxu0
      %v7892 = vpop.f32.mrb[0].mxu0
      %v7893 = vadd.f32 0.0, %v7892
      %v7894 = vpop.f32.mrb[0].mxu0
      %7895 = vdwg.mxu0
      %7896 = vrot.lane.b32.xlu0 %v1943, 124
      %v7897 = vpop.permute.xlu0 %7896
      %7898 = vrot.lane.b32.xlu0 %v1943, 116
      %v7899 = vpop.permute.xlu0 %7898
      %v7901 = vsel %vm1962, %v7897, 0
      %v7904 = vsel %vm1962, %v7899, 0
      %7906 = vmatprep.subr.bf16.mxu0 0
      %7907 = vmatpush1.bf16.xpose.msra.mxu0 %v7904
      %7908 = vmatprep.subr.bf16.mxu0 0
      %7909 = vmatpush1.bf16.xpose.msra.mxu0 0
      %7910 = vmatprep.subr.bf16.mxu0 0
      %7911 = vmatpush1.bf16.xpose.msra.mxu0 0
      %7912 = vmatprep.subr.bf16.mxu0 0
      %7913 = vmatpush1.bf16.xpose.msra.mxu0 0
      %7914 = vmatprep.subr.bf16.mxu0 0
      %7915 = vmatpush1.bf16.xpose.msra.mxu0 0
      %7916 = vmatprep.subr.bf16.mxu0 0
      %7917 = vmatpush1.bf16.xpose.msra.mxu0 0
      %7918 = vmatprep.subr.bf16.mxu0 0
      %7919 = vmatpush1.bf16.xpose.msra.mxu0 0
      %7920 = vmatprep.subr.bf16.mxu0 0
      %7921 = vmatpush1.bf16.xpose.msra.mxu0 0
      %7922 = vmatprep.subr.bf16.mxu0 0
      %7923 = vmatpush1.bf16.xpose.msra.mxu0 0
      %7924 = vmatprep.subr.bf16.mxu0 0
      %7925 = vmatpush1.bf16.xpose.msra.mxu0 0
      %7926 = vmatprep.subr.bf16.mxu0 0
      %7927 = vmatpush1.bf16.xpose.msra.mxu0 0
      %7928 = vmatprep.subr.bf16.mxu0 0
      %7929 = vmatpush1.bf16.xpose.msra.mxu0 0
      %7930 = vmatprep.subr.bf16.mxu0 0
      %7931 = vmatpush1.bf16.xpose.msra.mxu0 0
      %7932 = vmatprep.subr.bf16.mxu0 0
      %7933 = vmatpush1.bf16.xpose.msra.mxu0 0
      %7934 = vmatprep.subr.bf16.mxu0 0
      %7935 = vmatpush1.bf16.xpose.msra.mxu0 0
      %7936 = vmatprep.subr.bf16.mxu0 0
      %7937 = vmatpush1.bf16.xpose.msra.mxu0 0
      %7938 = vmatprep.mubr.bf16.mxu0 0
      %7939 = vmatmul.mubr.bf16.gmra.mrb[0].mxu0 %v7901
      %v7940 = vpop.f32.mrb[0].mxu0
      %v7941 = vadd.f32 0.0, %v7940
      %v7942 = vpop.f32.mrb[0].mxu0
      %v7943 = vpop.f32.mrb[0].mxu0
      %v7944 = vadd.f32 0.0, %v7943
      %v7945 = vpop.f32.mrb[0].mxu0
      %7946 = vdwg.mxu0
      %7947 = vrot.lane.b32.xlu0 %v1944, 124
      %v7948 = vpop.permute.xlu0 %7947
      %7949 = vrot.lane.b32.xlu0 %v1944, 116
      %v7950 = vpop.permute.xlu0 %7949
      %v7952 = vsel %vm1962, %v7948, 0
      %v7955 = vsel %vm1962, %v7950, 0
      %7957 = vmatprep.subr.bf16.mxu0 0
      %7958 = vmatpush1.bf16.xpose.msra.mxu0 %v7955
      %7959 = vmatprep.subr.bf16.mxu0 0
      %7960 = vmatpush1.bf16.xpose.msra.mxu0 0
      %7961 = vmatprep.subr.bf16.mxu0 0
      %7962 = vmatpush1.bf16.xpose.msra.mxu0 0
      %7963 = vmatprep.subr.bf16.mxu0 0
      %7964 = vmatpush1.bf16.xpose.msra.mxu0 0
      %7965 = vmatprep.subr.bf16.mxu0 0
      %7966 = vmatpush1.bf16.xpose.msra.mxu0 0
      %7967 = vmatprep.subr.bf16.mxu0 0
      %7968 = vmatpush1.bf16.xpose.msra.mxu0 0
      %7969 = vmatprep.subr.bf16.mxu0 0
      %7970 = vmatpush1.bf16.xpose.msra.mxu0 0
      %7971 = vmatprep.subr.bf16.mxu0 0
      %7972 = vmatpush1.bf16.xpose.msra.mxu0 0
      %7973 = vmatprep.subr.bf16.mxu0 0
      %7974 = vmatpush1.bf16.xpose.msra.mxu0 0
      %7975 = vmatprep.subr.bf16.mxu0 0
      %7976 = vmatpush1.bf16.xpose.msra.mxu0 0
      %7977 = vmatprep.subr.bf16.mxu0 0
      %7978 = vmatpush1.bf16.xpose.msra.mxu0 0
      %7979 = vmatprep.subr.bf16.mxu0 0
      %7980 = vmatpush1.bf16.xpose.msra.mxu0 0
      %7981 = vmatprep.subr.bf16.mxu0 0
      %7982 = vmatpush1.bf16.xpose.msra.mxu0 0
      %7983 = vmatprep.subr.bf16.mxu0 0
      %7984 = vmatpush1.bf16.xpose.msra.mxu0 0
      %7985 = vmatprep.subr.bf16.mxu0 0
      %7986 = vmatpush1.bf16.xpose.msra.mxu0 0
      %7987 = vmatprep.subr.bf16.mxu0 0
      %7988 = vmatpush1.bf16.xpose.msra.mxu0 0
      %7989 = vmatprep.mubr.bf16.mxu0 0
      %7990 = vmatmul.mubr.bf16.gmra.mrb[0].mxu0 %v7952
      %v7991 = vpop.f32.mrb[0].mxu0
      %v7992 = vadd.f32 0.0, %v7991
      %v7993 = vpop.f32.mrb[0].mxu0
      %v7994 = vpop.f32.mrb[0].mxu0
      %v7995 = vadd.f32 0.0, %v7994
      %v7996 = vpop.f32.mrb[0].mxu0
      %7997 = vdwg.mxu0
      %7998 = vrot.lane.b32.xlu0 %v1945, 124
      %v7999 = vpop.permute.xlu0 %7998
      %8000 = vrot.lane.b32.xlu0 %v1945, 116
      %v8001 = vpop.permute.xlu0 %8000
      %v8003 = vsel %vm1962, %v7999, 0
      %v8006 = vsel %vm1962, %v8001, 0
      %8008 = vmatprep.subr.bf16.mxu0 0
      %8009 = vmatpush1.bf16.xpose.msra.mxu0 %v8006
      %8010 = vmatprep.subr.bf16.mxu0 0
      %8011 = vmatpush1.bf16.xpose.msra.mxu0 0
      %8012 = vmatprep.subr.bf16.mxu0 0
      %8013 = vmatpush1.bf16.xpose.msra.mxu0 0
      %8014 = vmatprep.subr.bf16.mxu0 0
      %8015 = vmatpush1.bf16.xpose.msra.mxu0 0
      %8016 = vmatprep.subr.bf16.mxu0 0
      %8017 = vmatpush1.bf16.xpose.msra.mxu0 0
      %8018 = vmatprep.subr.bf16.mxu0 0
      %8019 = vmatpush1.bf16.xpose.msra.mxu0 0
      %8020 = vmatprep.subr.bf16.mxu0 0
      %8021 = vmatpush1.bf16.xpose.msra.mxu0 0
      %8022 = vmatprep.subr.bf16.mxu0 0
      %8023 = vmatpush1.bf16.xpose.msra.mxu0 0
      %8024 = vmatprep.subr.bf16.mxu0 0
      %8025 = vmatpush1.bf16.xpose.msra.mxu0 0
      %8026 = vmatprep.subr.bf16.mxu0 0
      %8027 = vmatpush1.bf16.xpose.msra.mxu0 0
      %8028 = vmatprep.subr.bf16.mxu0 0
      %8029 = vmatpush1.bf16.xpose.msra.mxu0 0
      %8030 = vmatprep.subr.bf16.mxu0 0
      %8031 = vmatpush1.bf16.xpose.msra.mxu0 0
      %8032 = vmatprep.subr.bf16.mxu0 0
      %8033 = vmatpush1.bf16.xpose.msra.mxu0 0
      %8034 = vmatprep.subr.bf16.mxu0 0
      %8035 = vmatpush1.bf16.xpose.msra.mxu0 0
      %8036 = vmatprep.subr.bf16.mxu0 0
      %8037 = vmatpush1.bf16.xpose.msra.mxu0 0
      %8038 = vmatprep.subr.bf16.mxu0 0
      %8039 = vmatpush1.bf16.xpose.msra.mxu0 0
      %8040 = vmatprep.mubr.bf16.mxu0 0
      %8041 = vmatmul.mubr.bf16.gmra.mrb[0].mxu0 %v8003
      %v8042 = vpop.f32.mrb[0].mxu0
      %v8043 = vadd.f32 0.0, %v8042
      %v8044 = vpop.f32.mrb[0].mxu0
      %v8045 = vpop.f32.mrb[0].mxu0
      %v8046 = vadd.f32 0.0, %v8045
      %v8047 = vpop.f32.mrb[0].mxu0
      %8048 = vdwg.mxu0
      %8049 = vrot.lane.b32.xlu0 %v1946, 124
      %v8050 = vpop.permute.xlu0 %8049
      %8051 = vrot.lane.b32.xlu0 %v1946, 116
      %v8052 = vpop.permute.xlu0 %8051
      %v8054 = vsel %vm1962, %v8050, 0
      %v8057 = vsel %vm1962, %v8052, 0
      %8059 = vmatprep.subr.bf16.mxu0 0
      %8060 = vmatpush1.bf16.xpose.msra.mxu0 %v8057
      %8061 = vmatprep.subr.bf16.mxu0 0
      %8062 = vmatpush1.bf16.xpose.msra.mxu0 0
      %8063 = vmatprep.subr.bf16.mxu0 0
      %8064 = vmatpush1.bf16.xpose.msra.mxu0 0
      %8065 = vmatprep.subr.bf16.mxu0 0
      %8066 = vmatpush1.bf16.xpose.msra.mxu0 0
      %8067 = vmatprep.subr.bf16.mxu0 0
      %8068 = vmatpush1.bf16.xpose.msra.mxu0 0
      %8069 = vmatprep.subr.bf16.mxu0 0
      %8070 = vmatpush1.bf16.xpose.msra.mxu0 0
      %8071 = vmatprep.subr.bf16.mxu0 0
      %8072 = vmatpush1.bf16.xpose.msra.mxu0 0
      %8073 = vmatprep.subr.bf16.mxu0 0
      %8074 = vmatpush1.bf16.xpose.msra.mxu0 0
      %8075 = vmatprep.subr.bf16.mxu0 0
      %8076 = vmatpush1.bf16.xpose.msra.mxu0 0
      %8077 = vmatprep.subr.bf16.mxu0 0
      %8078 = vmatpush1.bf16.xpose.msra.mxu0 0
      %8079 = vmatprep.subr.bf16.mxu0 0
      %8080 = vmatpush1.bf16.xpose.msra.mxu0 0
      %8081 = vmatprep.subr.bf16.mxu0 0
      %8082 = vmatpush1.bf16.xpose.msra.mxu0 0
      %8083 = vmatprep.subr.bf16.mxu0 0
      %8084 = vmatpush1.bf16.xpose.msra.mxu0 0
      %8085 = vmatprep.subr.bf16.mxu0 0
      %8086 = vmatpush1.bf16.xpose.msra.mxu0 0
      %8087 = vmatprep.subr.bf16.mxu0 0
      %8088 = vmatpush1.bf16.xpose.msra.mxu0 0
      %8089 = vmatprep.subr.bf16.mxu0 0
      %8090 = vmatpush1.bf16.xpose.msra.mxu0 0
      %8091 = vmatprep.mubr.bf16.mxu0 0
      %8092 = vmatmul.mubr.bf16.gmra.mrb[0].mxu0 %v8054
      %v8093 = vpop.f32.mrb[0].mxu0
      %v8094 = vadd.f32 0.0, %v8093
      %v8095 = vpop.f32.mrb[0].mxu0
      %v8096 = vpop.f32.mrb[0].mxu0
      %v8097 = vadd.f32 0.0, %v8096
      %v8098 = vpop.f32.mrb[0].mxu0
      %8099 = vdwg.mxu0
      %8100 = vrot.lane.b32.xlu0 %v1947, 124
      %v8101 = vpop.permute.xlu0 %8100
      %8102 = vrot.lane.b32.xlu0 %v1947, 116
      %v8103 = vpop.permute.xlu0 %8102
      %v8105 = vsel %vm1962, %v8101, 0
      %v8108 = vsel %vm1962, %v8103, 0
      %8110 = vmatprep.subr.bf16.mxu0 0
      %8111 = vmatpush1.bf16.xpose.msra.mxu0 %v8108
      %8112 = vmatprep.subr.bf16.mxu0 0
      %8113 = vmatpush1.bf16.xpose.msra.mxu0 0
      %8114 = vmatprep.subr.bf16.mxu0 0
      %8115 = vmatpush1.bf16.xpose.msra.mxu0 0
      %8116 = vmatprep.subr.bf16.mxu0 0
      %8117 = vmatpush1.bf16.xpose.msra.mxu0 0
      %8118 = vmatprep.subr.bf16.mxu0 0
      %8119 = vmatpush1.bf16.xpose.msra.mxu0 0
      %8120 = vmatprep.subr.bf16.mxu0 0
      %8121 = vmatpush1.bf16.xpose.msra.mxu0 0
      %8122 = vmatprep.subr.bf16.mxu0 0
      %8123 = vmatpush1.bf16.xpose.msra.mxu0 0
      %8124 = vmatprep.subr.bf16.mxu0 0
      %8125 = vmatpush1.bf16.xpose.msra.mxu0 0
      %8126 = vmatprep.subr.bf16.mxu0 0
      %8127 = vmatpush1.bf16.xpose.msra.mxu0 0
      %8128 = vmatprep.subr.bf16.mxu0 0
      %8129 = vmatpush1.bf16.xpose.msra.mxu0 0
      %8130 = vmatprep.subr.bf16.mxu0 0
      %8131 = vmatpush1.bf16.xpose.msra.mxu0 0
      %8132 = vmatprep.subr.bf16.mxu0 0
      %8133 = vmatpush1.bf16.xpose.msra.mxu0 0
      %8134 = vmatprep.subr.bf16.mxu0 0
      %8135 = vmatpush1.bf16.xpose.msra.mxu0 0
      %8136 = vmatprep.subr.bf16.mxu0 0
      %8137 = vmatpush1.bf16.xpose.msra.mxu0 0
      %8138 = vmatprep.subr.bf16.mxu0 0
      %8139 = vmatpush1.bf16.xpose.msra.mxu0 0
      %8140 = vmatprep.subr.bf16.mxu0 0
      %8141 = vmatpush1.bf16.xpose.msra.mxu0 0
      %8142 = vmatprep.mubr.bf16.mxu0 0
      %8143 = vmatmul.mubr.bf16.gmra.mrb[0].mxu0 %v8105
      %v8144 = vpop.f32.mrb[0].mxu0
      %v8145 = vadd.f32 0.0, %v8144
      %v8146 = vpop.f32.mrb[0].mxu0
      %v8147 = vpop.f32.mrb[0].mxu0
      %v8148 = vadd.f32 0.0, %v8147
      %v8149 = vpop.f32.mrb[0].mxu0
      %8150 = vdwg.mxu0
      %8151 = vrot.lane.b32.xlu0 %v1948, 124
      %v8152 = vpop.permute.xlu0 %8151
      %8153 = vrot.lane.b32.xlu0 %v1948, 116
      %v8154 = vpop.permute.xlu0 %8153
      %v8156 = vsel %vm1962, %v8152, 0
      %v8159 = vsel %vm1962, %v8154, 0
      %8161 = vmatprep.subr.bf16.mxu0 0
      %8162 = vmatpush1.bf16.xpose.msra.mxu0 %v8159
      %8163 = vmatprep.subr.bf16.mxu0 0
      %8164 = vmatpush1.bf16.xpose.msra.mxu0 0
      %8165 = vmatprep.subr.bf16.mxu0 0
      %8166 = vmatpush1.bf16.xpose.msra.mxu0 0
      %8167 = vmatprep.subr.bf16.mxu0 0
      %8168 = vmatpush1.bf16.xpose.msra.mxu0 0
      %8169 = vmatprep.subr.bf16.mxu0 0
      %8170 = vmatpush1.bf16.xpose.msra.mxu0 0
      %8171 = vmatprep.subr.bf16.mxu0 0
      %8172 = vmatpush1.bf16.xpose.msra.mxu0 0
      %8173 = vmatprep.subr.bf16.mxu0 0
      %8174 = vmatpush1.bf16.xpose.msra.mxu0 0
      %8175 = vmatprep.subr.bf16.mxu0 0
      %8176 = vmatpush1.bf16.xpose.msra.mxu0 0
      %8177 = vmatprep.subr.bf16.mxu0 0
      %8178 = vmatpush1.bf16.xpose.msra.mxu0 0
      %8179 = vmatprep.subr.bf16.mxu0 0
      %8180 = vmatpush1.bf16.xpose.msra.mxu0 0
      %8181 = vmatprep.subr.bf16.mxu0 0
      %8182 = vmatpush1.bf16.xpose.msra.mxu0 0
      %8183 = vmatprep.subr.bf16.mxu0 0
      %8184 = vmatpush1.bf16.xpose.msra.mxu0 0
      %8185 = vmatprep.subr.bf16.mxu0 0
      %8186 = vmatpush1.bf16.xpose.msra.mxu0 0
      %8187 = vmatprep.subr.bf16.mxu0 0
      %8188 = vmatpush1.bf16.xpose.msra.mxu0 0
      %8189 = vmatprep.subr.bf16.mxu0 0
      %8190 = vmatpush1.bf16.xpose.msra.mxu0 0
      %8191 = vmatprep.subr.bf16.mxu0 0
      %8192 = vmatpush1.bf16.xpose.msra.mxu0 0
      %8193 = vmatprep.mubr.bf16.mxu0 0
      %8194 = vmatmul.mubr.bf16.gmra.mrb[0].mxu0 %v8156
      %v8195 = vpop.f32.mrb[0].mxu0
      %v8196 = vadd.f32 0.0, %v8195
      %v8197 = vpop.f32.mrb[0].mxu0
      %v8198 = vpop.f32.mrb[0].mxu0
      %v8199 = vadd.f32 0.0, %v8198
      %v8200 = vpop.f32.mrb[0].mxu0
      %8201 = vdwg.mxu0
      %8202 = vrot.lane.b32.xlu0 %v1949, 124
      %v8203 = vpop.permute.xlu0 %8202
      %8204 = vrot.lane.b32.xlu0 %v1949, 116
      %v8205 = vpop.permute.xlu0 %8204
      %v8207 = vsel %vm1962, %v8203, 0
      %v8210 = vsel %vm1962, %v8205, 0
      %8212 = vmatprep.subr.bf16.mxu0 0
      %8213 = vmatpush1.bf16.xpose.msra.mxu0 %v8210
      %8214 = vmatprep.subr.bf16.mxu0 0
      %8215 = vmatpush1.bf16.xpose.msra.mxu0 0
      %8216 = vmatprep.subr.bf16.mxu0 0
      %8217 = vmatpush1.bf16.xpose.msra.mxu0 0
      %8218 = vmatprep.subr.bf16.mxu0 0
      %8219 = vmatpush1.bf16.xpose.msra.mxu0 0
      %8220 = vmatprep.subr.bf16.mxu0 0
      %8221 = vmatpush1.bf16.xpose.msra.mxu0 0
      %8222 = vmatprep.subr.bf16.mxu0 0
      %8223 = vmatpush1.bf16.xpose.msra.mxu0 0
      %8224 = vmatprep.subr.bf16.mxu0 0
      %8225 = vmatpush1.bf16.xpose.msra.mxu0 0
      %8226 = vmatprep.subr.bf16.mxu0 0
      %8227 = vmatpush1.bf16.xpose.msra.mxu0 0
      %8228 = vmatprep.subr.bf16.mxu0 0
      %8229 = vmatpush1.bf16.xpose.msra.mxu0 0
      %8230 = vmatprep.subr.bf16.mxu0 0
      %8231 = vmatpush1.bf16.xpose.msra.mxu0 0
      %8232 = vmatprep.subr.bf16.mxu0 0
      %8233 = vmatpush1.bf16.xpose.msra.mxu0 0
      %8234 = vmatprep.subr.bf16.mxu0 0
      %8235 = vmatpush1.bf16.xpose.msra.mxu0 0
      %8236 = vmatprep.subr.bf16.mxu0 0
      %8237 = vmatpush1.bf16.xpose.msra.mxu0 0
      %8238 = vmatprep.subr.bf16.mxu0 0
      %8239 = vmatpush1.bf16.xpose.msra.mxu0 0
      %8240 = vmatprep.subr.bf16.mxu0 0
      %8241 = vmatpush1.bf16.xpose.msra.mxu0 0
      %8242 = vmatprep.subr.bf16.mxu0 0
      %8243 = vmatpush1.bf16.xpose.msra.mxu0 0
      %8244 = vmatprep.mubr.bf16.mxu0 0
      %8245 = vmatmul.mubr.bf16.gmra.mrb[0].mxu0 %v8207
      %v8246 = vpop.f32.mrb[0].mxu0
      %v8247 = vadd.f32 0.0, %v8246
      %v8248 = vpop.f32.mrb[0].mxu0
      %v8249 = vpop.f32.mrb[0].mxu0
      %v8250 = vadd.f32 0.0, %v8249
      %v8251 = vpop.f32.mrb[0].mxu0
      %8252 = vdwg.mxu0
      %8253 = vrot.lane.b32.xlu0 %v1950, 124
      %v8254 = vpop.permute.xlu0 %8253
      %8255 = vrot.lane.b32.xlu0 %v1950, 116
      %v8256 = vpop.permute.xlu0 %8255
      %v8258 = vsel %vm1962, %v8254, 0
      %v8261 = vsel %vm1962, %v8256, 0
      %8263 = vmatprep.subr.bf16.mxu0 0
      %8264 = vmatpush1.bf16.xpose.msra.mxu0 %v8261
      %8265 = vmatprep.subr.bf16.mxu0 0
      %8266 = vmatpush1.bf16.xpose.msra.mxu0 0
      %8267 = vmatprep.subr.bf16.mxu0 0
      %8268 = vmatpush1.bf16.xpose.msra.mxu0 0
      %8269 = vmatprep.subr.bf16.mxu0 0
      %8270 = vmatpush1.bf16.xpose.msra.mxu0 0
      %8271 = vmatprep.subr.bf16.mxu0 0
      %8272 = vmatpush1.bf16.xpose.msra.mxu0 0
      %8273 = vmatprep.subr.bf16.mxu0 0
      %8274 = vmatpush1.bf16.xpose.msra.mxu0 0
      %8275 = vmatprep.subr.bf16.mxu0 0
      %8276 = vmatpush1.bf16.xpose.msra.mxu0 0
      %8277 = vmatprep.subr.bf16.mxu0 0
      %8278 = vmatpush1.bf16.xpose.msra.mxu0 0
      %8279 = vmatprep.subr.bf16.mxu0 0
      %8280 = vmatpush1.bf16.xpose.msra.mxu0 0
      %8281 = vmatprep.subr.bf16.mxu0 0
      %8282 = vmatpush1.bf16.xpose.msra.mxu0 0
      %8283 = vmatprep.subr.bf16.mxu0 0
      %8284 = vmatpush1.bf16.xpose.msra.mxu0 0
      %8285 = vmatprep.subr.bf16.mxu0 0
      %8286 = vmatpush1.bf16.xpose.msra.mxu0 0
      %8287 = vmatprep.subr.bf16.mxu0 0
      %8288 = vmatpush1.bf16.xpose.msra.mxu0 0
      %8289 = vmatprep.subr.bf16.mxu0 0
      %8290 = vmatpush1.bf16.xpose.msra.mxu0 0
      %8291 = vmatprep.subr.bf16.mxu0 0
      %8292 = vmatpush1.bf16.xpose.msra.mxu0 0
      %8293 = vmatprep.subr.bf16.mxu0 0
      %8294 = vmatpush1.bf16.xpose.msra.mxu0 0
      %8295 = vmatprep.mubr.bf16.mxu0 0
      %8296 = vmatmul.mubr.bf16.gmra.mrb[0].mxu0 %v8258
      %v8297 = vpop.f32.mrb[0].mxu0
      %v8298 = vadd.f32 0.0, %v8297
      %v8299 = vpop.f32.mrb[0].mxu0
      %v8300 = vpop.f32.mrb[0].mxu0
      %v8301 = vadd.f32 0.0, %v8300
      %v8302 = vpop.f32.mrb[0].mxu0
      %8303 = vdwg.mxu0
      %8304 = vrot.lane.b32.xlu0 %v1951, 124
      %v8305 = vpop.permute.xlu0 %8304
      %8306 = vrot.lane.b32.xlu0 %v1951, 116
      %v8307 = vpop.permute.xlu0 %8306
      %v8309 = vsel %vm1962, %v8305, 0
      %v8312 = vsel %vm1962, %v8307, 0
      %8314 = vmatprep.subr.bf16.mxu0 0
      %8315 = vmatpush1.bf16.xpose.msra.mxu0 %v8312
      %8316 = vmatprep.subr.bf16.mxu0 0
      %8317 = vmatpush1.bf16.xpose.msra.mxu0 0
      %8318 = vmatprep.subr.bf16.mxu0 0
      %8319 = vmatpush1.bf16.xpose.msra.mxu0 0
      %8320 = vmatprep.subr.bf16.mxu0 0
      %8321 = vmatpush1.bf16.xpose.msra.mxu0 0
      %8322 = vmatprep.subr.bf16.mxu0 0
      %8323 = vmatpush1.bf16.xpose.msra.mxu0 0
      %8324 = vmatprep.subr.bf16.mxu0 0
      %8325 = vmatpush1.bf16.xpose.msra.mxu0 0
      %8326 = vmatprep.subr.bf16.mxu0 0
      %8327 = vmatpush1.bf16.xpose.msra.mxu0 0
      %8328 = vmatprep.subr.bf16.mxu0 0
      %8329 = vmatpush1.bf16.xpose.msra.mxu0 0
      %8330 = vmatprep.subr.bf16.mxu0 0
      %8331 = vmatpush1.bf16.xpose.msra.mxu0 0
      %8332 = vmatprep.subr.bf16.mxu0 0
      %8333 = vmatpush1.bf16.xpose.msra.mxu0 0
      %8334 = vmatprep.subr.bf16.mxu0 0
      %8335 = vmatpush1.bf16.xpose.msra.mxu0 0
      %8336 = vmatprep.subr.bf16.mxu0 0
      %8337 = vmatpush1.bf16.xpose.msra.mxu0 0
      %8338 = vmatprep.subr.bf16.mxu0 0
      %8339 = vmatpush1.bf16.xpose.msra.mxu0 0
      %8340 = vmatprep.subr.bf16.mxu0 0
      %8341 = vmatpush1.bf16.xpose.msra.mxu0 0
      %8342 = vmatprep.subr.bf16.mxu0 0
      %8343 = vmatpush1.bf16.xpose.msra.mxu0 0
      %8344 = vmatprep.subr.bf16.mxu0 0
      %8345 = vmatpush1.bf16.xpose.msra.mxu0 0
      %8346 = vmatprep.mubr.bf16.mxu0 0
      %8347 = vmatmul.mubr.bf16.gmra.mrb[0].mxu0 %v8309
      %v8348 = vpop.f32.mrb[0].mxu0
      %v8349 = vadd.f32 0.0, %v8348
      %v8350 = vpop.f32.mrb[0].mxu0
      %v8351 = vpop.f32.mrb[0].mxu0
      %v8352 = vadd.f32 0.0, %v8351
      %v8353 = vpop.f32.mrb[0].mxu0
      %8354 = vdwg.mxu0
      %8355 = vrot.lane.b32.xlu0 %v1952, 124
      %v8356 = vpop.permute.xlu0 %8355
      %8357 = vrot.lane.b32.xlu0 %v1952, 116
      %v8358 = vpop.permute.xlu0 %8357
      %v8360 = vsel %vm1962, %v8356, 0
      %v8363 = vsel %vm1962, %v8358, 0
      %8365 = vmatprep.subr.bf16.mxu0 0
      %8366 = vmatpush1.bf16.xpose.msra.mxu0 %v8363
      %8367 = vmatprep.subr.bf16.mxu0 0
      %8368 = vmatpush1.bf16.xpose.msra.mxu0 0
      %8369 = vmatprep.subr.bf16.mxu0 0
      %8370 = vmatpush1.bf16.xpose.msra.mxu0 0
      %8371 = vmatprep.subr.bf16.mxu0 0
      %8372 = vmatpush1.bf16.xpose.msra.mxu0 0
      %8373 = vmatprep.subr.bf16.mxu0 0
      %8374 = vmatpush1.bf16.xpose.msra.mxu0 0
      %8375 = vmatprep.subr.bf16.mxu0 0
      %8376 = vmatpush1.bf16.xpose.msra.mxu0 0
      %8377 = vmatprep.subr.bf16.mxu0 0
      %8378 = vmatpush1.bf16.xpose.msra.mxu0 0
      %8379 = vmatprep.subr.bf16.mxu0 0
      %8380 = vmatpush1.bf16.xpose.msra.mxu0 0
      %8381 = vmatprep.subr.bf16.mxu0 0
      %8382 = vmatpush1.bf16.xpose.msra.mxu0 0
      %8383 = vmatprep.subr.bf16.mxu0 0
      %8384 = vmatpush1.bf16.xpose.msra.mxu0 0
      %8385 = vmatprep.subr.bf16.mxu0 0
      %8386 = vmatpush1.bf16.xpose.msra.mxu0 0
      %8387 = vmatprep.subr.bf16.mxu0 0
      %8388 = vmatpush1.bf16.xpose.msra.mxu0 0
      %8389 = vmatprep.subr.bf16.mxu0 0
      %8390 = vmatpush1.bf16.xpose.msra.mxu0 0
      %8391 = vmatprep.subr.bf16.mxu0 0
      %8392 = vmatpush1.bf16.xpose.msra.mxu0 0
      %8393 = vmatprep.subr.bf16.mxu0 0
      %8394 = vmatpush1.bf16.xpose.msra.mxu0 0
      %8395 = vmatprep.subr.bf16.mxu0 0
      %8396 = vmatpush1.bf16.xpose.msra.mxu0 0
      %8397 = vmatprep.mubr.bf16.mxu0 0
      %8398 = vmatmul.mubr.bf16.gmra.mrb[0].mxu0 %v8360
      %v8399 = vpop.f32.mrb[0].mxu0
      %v8400 = vadd.f32 0.0, %v8399
      %v8401 = vpop.f32.mrb[0].mxu0
      %v8402 = vpop.f32.mrb[0].mxu0
      %v8403 = vadd.f32 0.0, %v8402
      %v8404 = vpop.f32.mrb[0].mxu0
      %8405 = vdwg.mxu0
      %8406 = vrot.lane.b32.xlu0 %v1953, 124
      %v8407 = vpop.permute.xlu0 %8406
      %8408 = vrot.lane.b32.xlu0 %v1953, 116
      %v8409 = vpop.permute.xlu0 %8408
      %v8411 = vsel %vm1962, %v8407, 0
      %v8414 = vsel %vm1962, %v8409, 0
      %8416 = vmatprep.subr.bf16.mxu0 0
      %8417 = vmatpush1.bf16.xpose.msra.mxu0 %v8414
      %8418 = vmatprep.subr.bf16.mxu0 0
      %8419 = vmatpush1.bf16.xpose.msra.mxu0 0
      %8420 = vmatprep.subr.bf16.mxu0 0
      %8421 = vmatpush1.bf16.xpose.msra.mxu0 0
      %8422 = vmatprep.subr.bf16.mxu0 0
      %8423 = vmatpush1.bf16.xpose.msra.mxu0 0
      %8424 = vmatprep.subr.bf16.mxu0 0
      %8425 = vmatpush1.bf16.xpose.msra.mxu0 0
      %8426 = vmatprep.subr.bf16.mxu0 0
      %8427 = vmatpush1.bf16.xpose.msra.mxu0 0
      %8428 = vmatprep.subr.bf16.mxu0 0
      %8429 = vmatpush1.bf16.xpose.msra.mxu0 0
      %8430 = vmatprep.subr.bf16.mxu0 0
      %8431 = vmatpush1.bf16.xpose.msra.mxu0 0
      %8432 = vmatprep.subr.bf16.mxu0 0
      %8433 = vmatpush1.bf16.xpose.msra.mxu0 0
      %8434 = vmatprep.subr.bf16.mxu0 0
      %8435 = vmatpush1.bf16.xpose.msra.mxu0 0
      %8436 = vmatprep.subr.bf16.mxu0 0
      %8437 = vmatpush1.bf16.xpose.msra.mxu0 0
      %8438 = vmatprep.subr.bf16.mxu0 0
      %8439 = vmatpush1.bf16.xpose.msra.mxu0 0
      %8440 = vmatprep.subr.bf16.mxu0 0
      %8441 = vmatpush1.bf16.xpose.msra.mxu0 0
      %8442 = vmatprep.subr.bf16.mxu0 0
      %8443 = vmatpush1.bf16.xpose.msra.mxu0 0
      %8444 = vmatprep.subr.bf16.mxu0 0
      %8445 = vmatpush1.bf16.xpose.msra.mxu0 0
      %8446 = vmatprep.subr.bf16.mxu0 0
      %8447 = vmatpush1.bf16.xpose.msra.mxu0 0
      %8448 = vmatprep.mubr.bf16.mxu0 0
      %8449 = vmatmul.mubr.bf16.gmra.mrb[0].mxu0 %v8411
      %v8450 = vpop.f32.mrb[0].mxu0
      %v8451 = vadd.f32 0.0, %v8450
      %v8452 = vpop.f32.mrb[0].mxu0
      %v8453 = vpop.f32.mrb[0].mxu0
      %v8454 = vadd.f32 0.0, %v8453
      %v8455 = vpop.f32.mrb[0].mxu0
      %8456 = vdwg.mxu0
      %8457 = vrot.lane.b32.xlu0 %v1954, 124
      %v8458 = vpop.permute.xlu0 %8457
      %8459 = vrot.lane.b32.xlu0 %v1954, 116
      %v8460 = vpop.permute.xlu0 %8459
      %v8462 = vsel %vm1962, %v8458, 0
      %v8465 = vsel %vm1962, %v8460, 0
      %8467 = vmatprep.subr.bf16.mxu0 0
      %8468 = vmatpush1.bf16.xpose.msra.mxu0 %v8465
      %8469 = vmatprep.subr.bf16.mxu0 0
      %8470 = vmatpush1.bf16.xpose.msra.mxu0 0
      %8471 = vmatprep.subr.bf16.mxu0 0
      %8472 = vmatpush1.bf16.xpose.msra.mxu0 0
      %8473 = vmatprep.subr.bf16.mxu0 0
      %8474 = vmatpush1.bf16.xpose.msra.mxu0 0
      %8475 = vmatprep.subr.bf16.mxu0 0
      %8476 = vmatpush1.bf16.xpose.msra.mxu0 0
      %8477 = vmatprep.subr.bf16.mxu0 0
      %8478 = vmatpush1.bf16.xpose.msra.mxu0 0
      %8479 = vmatprep.subr.bf16.mxu0 0
      %8480 = vmatpush1.bf16.xpose.msra.mxu0 0
      %8481 = vmatprep.subr.bf16.mxu0 0
      %8482 = vmatpush1.bf16.xpose.msra.mxu0 0
      %8483 = vmatprep.subr.bf16.mxu0 0
      %8484 = vmatpush1.bf16.xpose.msra.mxu0 0
      %8485 = vmatprep.subr.bf16.mxu0 0
      %8486 = vmatpush1.bf16.xpose.msra.mxu0 0
      %8487 = vmatprep.subr.bf16.mxu0 0
      %8488 = vmatpush1.bf16.xpose.msra.mxu0 0
      %8489 = vmatprep.subr.bf16.mxu0 0
      %8490 = vmatpush1.bf16.xpose.msra.mxu0 0
      %8491 = vmatprep.subr.bf16.mxu0 0
      %8492 = vmatpush1.bf16.xpose.msra.mxu0 0
      %8493 = vmatprep.subr.bf16.mxu0 0
      %8494 = vmatpush1.bf16.xpose.msra.mxu0 0
      %8495 = vmatprep.subr.bf16.mxu0 0
      %8496 = vmatpush1.bf16.xpose.msra.mxu0 0
      %8497 = vmatprep.subr.bf16.mxu0 0
      %8498 = vmatpush1.bf16.xpose.msra.mxu0 0
      %8499 = vmatprep.mubr.bf16.mxu0 0
      %8500 = vmatmul.mubr.bf16.gmra.mrb[0].mxu0 %v8462
      %v8501 = vpop.f32.mrb[0].mxu0
      %v8502 = vadd.f32 0.0, %v8501
      %v8503 = vpop.f32.mrb[0].mxu0
      %v8504 = vpop.f32.mrb[0].mxu0
      %v8505 = vadd.f32 0.0, %v8504
      %v8506 = vpop.f32.mrb[0].mxu0
      %8507 = vdwg.mxu0
      %8508 = vrot.lane.b32.xlu0 %v1955, 124
      %v8509 = vpop.permute.xlu0 %8508
      %8510 = vrot.lane.b32.xlu0 %v1955, 116
      %v8511 = vpop.permute.xlu0 %8510
      %v8513 = vsel %vm1962, %v8509, 0
      %v8516 = vsel %vm1962, %v8511, 0
      %8518 = vmatprep.subr.bf16.mxu0 0
      %8519 = vmatpush1.bf16.xpose.msra.mxu0 %v8516
      %8520 = vmatprep.subr.bf16.mxu0 0
      %8521 = vmatpush1.bf16.xpose.msra.mxu0 0
      %8522 = vmatprep.subr.bf16.mxu0 0
      %8523 = vmatpush1.bf16.xpose.msra.mxu0 0
      %8524 = vmatprep.subr.bf16.mxu0 0
      %8525 = vmatpush1.bf16.xpose.msra.mxu0 0
      %8526 = vmatprep.subr.bf16.mxu0 0
      %8527 = vmatpush1.bf16.xpose.msra.mxu0 0
      %8528 = vmatprep.subr.bf16.mxu0 0
      %8529 = vmatpush1.bf16.xpose.msra.mxu0 0
      %8530 = vmatprep.subr.bf16.mxu0 0
      %8531 = vmatpush1.bf16.xpose.msra.mxu0 0
      %8532 = vmatprep.subr.bf16.mxu0 0
      %8533 = vmatpush1.bf16.xpose.msra.mxu0 0
      %8534 = vmatprep.subr.bf16.mxu0 0
      %8535 = vmatpush1.bf16.xpose.msra.mxu0 0
      %8536 = vmatprep.subr.bf16.mxu0 0
      %8537 = vmatpush1.bf16.xpose.msra.mxu0 0
      %8538 = vmatprep.subr.bf16.mxu0 0
      %8539 = vmatpush1.bf16.xpose.msra.mxu0 0
      %8540 = vmatprep.subr.bf16.mxu0 0
      %8541 = vmatpush1.bf16.xpose.msra.mxu0 0
      %8542 = vmatprep.subr.bf16.mxu0 0
      %8543 = vmatpush1.bf16.xpose.msra.mxu0 0
      %8544 = vmatprep.subr.bf16.mxu0 0
      %8545 = vmatpush1.bf16.xpose.msra.mxu0 0
      %8546 = vmatprep.subr.bf16.mxu0 0
      %8547 = vmatpush1.bf16.xpose.msra.mxu0 0
      %8548 = vmatprep.subr.bf16.mxu0 0
      %8549 = vmatpush1.bf16.xpose.msra.mxu0 0
      %8550 = vmatprep.mubr.bf16.mxu0 0
      %8551 = vmatmul.mubr.bf16.gmra.mrb[0].mxu0 %v8513
      %v8552 = vpop.f32.mrb[0].mxu0
      %v8553 = vadd.f32 0.0, %v8552
      %v8554 = vpop.f32.mrb[0].mxu0
      %v8555 = vpop.f32.mrb[0].mxu0
      %v8556 = vadd.f32 0.0, %v8555
      %v8557 = vpop.f32.mrb[0].mxu0
      %8558 = vdwg.mxu0
      %8559 = vrot.lane.b32.xlu0 %v1956, 124
      %v8560 = vpop.permute.xlu0 %8559
      %8561 = vrot.lane.b32.xlu0 %v1956, 116
      %v8562 = vpop.permute.xlu0 %8561
      %v8564 = vsel %vm1962, %v8560, 0
      %v8567 = vsel %vm1962, %v8562, 0
      %8569 = vmatprep.subr.bf16.mxu0 0
      %8570 = vmatpush1.bf16.xpose.msra.mxu0 %v8567
      %8571 = vmatprep.subr.bf16.mxu0 0
      %8572 = vmatpush1.bf16.xpose.msra.mxu0 0
      %8573 = vmatprep.subr.bf16.mxu0 0
      %8574 = vmatpush1.bf16.xpose.msra.mxu0 0
      %8575 = vmatprep.subr.bf16.mxu0 0
      %8576 = vmatpush1.bf16.xpose.msra.mxu0 0
      %8577 = vmatprep.subr.bf16.mxu0 0
      %8578 = vmatpush1.bf16.xpose.msra.mxu0 0
      %8579 = vmatprep.subr.bf16.mxu0 0
      %8580 = vmatpush1.bf16.xpose.msra.mxu0 0
      %8581 = vmatprep.subr.bf16.mxu0 0
      %8582 = vmatpush1.bf16.xpose.msra.mxu0 0
      %8583 = vmatprep.subr.bf16.mxu0 0
      %8584 = vmatpush1.bf16.xpose.msra.mxu0 0
      %8585 = vmatprep.subr.bf16.mxu0 0
      %8586 = vmatpush1.bf16.xpose.msra.mxu0 0
      %8587 = vmatprep.subr.bf16.mxu0 0
      %8588 = vmatpush1.bf16.xpose.msra.mxu0 0
      %8589 = vmatprep.subr.bf16.mxu0 0
      %8590 = vmatpush1.bf16.xpose.msra.mxu0 0
      %8591 = vmatprep.subr.bf16.mxu0 0
      %8592 = vmatpush1.bf16.xpose.msra.mxu0 0
      %8593 = vmatprep.subr.bf16.mxu0 0
      %8594 = vmatpush1.bf16.xpose.msra.mxu0 0
      %8595 = vmatprep.subr.bf16.mxu0 0
      %8596 = vmatpush1.bf16.xpose.msra.mxu0 0
      %8597 = vmatprep.subr.bf16.mxu0 0
      %8598 = vmatpush1.bf16.xpose.msra.mxu0 0
      %8599 = vmatprep.subr.bf16.mxu0 0
      %8600 = vmatpush1.bf16.xpose.msra.mxu0 0
      %8601 = vmatprep.mubr.bf16.mxu0 0
      %8602 = vmatmul.mubr.bf16.gmra.mrb[0].mxu0 %v8564
      %v8603 = vpop.f32.mrb[0].mxu0
      %v8604 = vadd.f32 0.0, %v8603
      %v8605 = vpop.f32.mrb[0].mxu0
      %v8606 = vpop.f32.mrb[0].mxu0
      %v8607 = vadd.f32 0.0, %v8606
      %v8608 = vpop.f32.mrb[0].mxu0
      %8609 = vdwg.mxu0
      %8610 = vrot.lane.b32.xlu0 %v1957, 124
      %v8611 = vpop.permute.xlu0 %8610
      %8612 = vrot.lane.b32.xlu0 %v1957, 116
      %v8613 = vpop.permute.xlu0 %8612
      %v8615 = vsel %vm1962, %v8611, 0
      %v8618 = vsel %vm1962, %v8613, 0
      %8620 = vmatprep.subr.bf16.mxu0 0
      %8621 = vmatpush1.bf16.xpose.msra.mxu0 %v8618
      %8622 = vmatprep.subr.bf16.mxu0 0
      %8623 = vmatpush1.bf16.xpose.msra.mxu0 0
      %8624 = vmatprep.subr.bf16.mxu0 0
      %8625 = vmatpush1.bf16.xpose.msra.mxu0 0
      %8626 = vmatprep.subr.bf16.mxu0 0
      %8627 = vmatpush1.bf16.xpose.msra.mxu0 0
      %8628 = vmatprep.subr.bf16.mxu0 0
      %8629 = vmatpush1.bf16.xpose.msra.mxu0 0
      %8630 = vmatprep.subr.bf16.mxu0 0
      %8631 = vmatpush1.bf16.xpose.msra.mxu0 0
      %8632 = vmatprep.subr.bf16.mxu0 0
      %8633 = vmatpush1.bf16.xpose.msra.mxu0 0
      %8634 = vmatprep.subr.bf16.mxu0 0
      %8635 = vmatpush1.bf16.xpose.msra.mxu0 0
      %8636 = vmatprep.subr.bf16.mxu0 0
      %8637 = vmatpush1.bf16.xpose.msra.mxu0 0
      %8638 = vmatprep.subr.bf16.mxu0 0
      %8639 = vmatpush1.bf16.xpose.msra.mxu0 0
      %8640 = vmatprep.subr.bf16.mxu0 0
      %8641 = vmatpush1.bf16.xpose.msra.mxu0 0
      %8642 = vmatprep.subr.bf16.mxu0 0
      %8643 = vmatpush1.bf16.xpose.msra.mxu0 0
      %8644 = vmatprep.subr.bf16.mxu0 0
      %8645 = vmatpush1.bf16.xpose.msra.mxu0 0
      %8646 = vmatprep.subr.bf16.mxu0 0
      %8647 = vmatpush1.bf16.xpose.msra.mxu0 0
      %8648 = vmatprep.subr.bf16.mxu0 0
      %8649 = vmatpush1.bf16.xpose.msra.mxu0 0
      %8650 = vmatprep.subr.bf16.mxu0 0
      %8651 = vmatpush1.bf16.xpose.msra.mxu0 0
      %8652 = vmatprep.mubr.bf16.mxu0 0
      %8653 = vmatmul.mubr.bf16.gmra.mrb[0].mxu0 %v8615
      %v8654 = vpop.f32.mrb[0].mxu0
      %v8655 = vadd.f32 0.0, %v8654
      %v8656 = vpop.f32.mrb[0].mxu0
      %v8657 = vpop.f32.mrb[0].mxu0
      %v8658 = vadd.f32 0.0, %v8657
      %v8659 = vpop.f32.mrb[0].mxu0
      %8660 = vdwg.mxu0
      %8661 = vrot.lane.b32.xlu0 %v1958, 124
      %v8662 = vpop.permute.xlu0 %8661
      %8663 = vrot.lane.b32.xlu0 %v1958, 116
      %v8664 = vpop.permute.xlu0 %8663
      %v8666 = vsel %vm1962, %v8662, 0
      %v8669 = vsel %vm1962, %v8664, 0
      %8671 = vmatprep.subr.bf16.mxu0 0
      %8672 = vmatpush1.bf16.xpose.msra.mxu0 %v8669
      %8673 = vmatprep.subr.bf16.mxu0 0
      %8674 = vmatpush1.bf16.xpose.msra.mxu0 0
      %8675 = vmatprep.subr.bf16.mxu0 0
      %8676 = vmatpush1.bf16.xpose.msra.mxu0 0
      %8677 = vmatprep.subr.bf16.mxu0 0
      %8678 = vmatpush1.bf16.xpose.msra.mxu0 0
      %8679 = vmatprep.subr.bf16.mxu0 0
      %8680 = vmatpush1.bf16.xpose.msra.mxu0 0
      %8681 = vmatprep.subr.bf16.mxu0 0
      %8682 = vmatpush1.bf16.xpose.msra.mxu0 0
      %8683 = vmatprep.subr.bf16.mxu0 0
      %8684 = vmatpush1.bf16.xpose.msra.mxu0 0
      %8685 = vmatprep.subr.bf16.mxu0 0
      %8686 = vmatpush1.bf16.xpose.msra.mxu0 0
      %8687 = vmatprep.subr.bf16.mxu0 0
      %8688 = vmatpush1.bf16.xpose.msra.mxu0 0
      %8689 = vmatprep.subr.bf16.mxu0 0
      %8690 = vmatpush1.bf16.xpose.msra.mxu0 0
      %8691 = vmatprep.subr.bf16.mxu0 0
      %8692 = vmatpush1.bf16.xpose.msra.mxu0 0
      %8693 = vmatprep.subr.bf16.mxu0 0
      %8694 = vmatpush1.bf16.xpose.msra.mxu0 0
      %8695 = vmatprep.subr.bf16.mxu0 0
      %8696 = vmatpush1.bf16.xpose.msra.mxu0 0
      %8697 = vmatprep.subr.bf16.mxu0 0
      %8698 = vmatpush1.bf16.xpose.msra.mxu0 0
      %8699 = vmatprep.subr.bf16.mxu0 0
      %8700 = vmatpush1.bf16.xpose.msra.mxu0 0
      %8701 = vmatprep.subr.bf16.mxu0 0
      %8702 = vmatpush1.bf16.xpose.msra.mxu0 0
      %8703 = vmatprep.mubr.bf16.mxu0 0
      %8704 = vmatmul.mubr.bf16.gmra.mrb[0].mxu0 %v8666
      %v8705 = vpop.f32.mrb[0].mxu0
      %v8706 = vadd.f32 0.0, %v8705
      %v8707 = vpop.f32.mrb[0].mxu0
      %v8708 = vpop.f32.mrb[0].mxu0
      %v8709 = vadd.f32 0.0, %v8708
      %v8710 = vpop.f32.mrb[0].mxu0
      %8711 = vdwg.mxu0
      %v8712 = vsel %vm1364, %v7941, -inf
      %8713 = vmax.xlane.f32.xlu0 %v8712
      %v8714 = vpop.xlane.xlu0 %8713
      %v8715 = vsel %vm1364, %v7944, -inf
      %8716 = vmax.xlane.f32.xlu0 %v8715
      %v8717 = vpop.xlane.xlu0 %8716
      %v8718 = vsel %vm1364, %v7992, -inf
      %8719 = vmax.xlane.f32.xlu0 %v8718
      %v8720 = vpop.xlane.xlu0 %8719
      %v8721 = vsel %vm1364, %v7995, -inf
      %8722 = vmax.xlane.f32.xlu0 %v8721
      %v8723 = vpop.xlane.xlu0 %8722
      %v8724 = vsel %vm1364, %v8043, -inf
      %8725 = vmax.xlane.f32.xlu0 %v8724
      %v8726 = vpop.xlane.xlu0 %8725
      %v8727 = vsel %vm1364, %v8046, -inf
      %8728 = vmax.xlane.f32.xlu0 %v8727
      %v8729 = vpop.xlane.xlu0 %8728
      %v8730 = vsel %vm1364, %v8094, -inf
      %8731 = vmax.xlane.f32.xlu0 %v8730
      %v8732 = vpop.xlane.xlu0 %8731
      %v8733 = vsel %vm1364, %v8097, -inf
      %8734 = vmax.xlane.f32.xlu0 %v8733
      %v8735 = vpop.xlane.xlu0 %8734
      %v8736 = vsel %vm1364, %v8145, -inf
      %8737 = vmax.xlane.f32.xlu0 %v8736
      %v8738 = vpop.xlane.xlu0 %8737
      %v8739 = vsel %vm1364, %v8148, -inf
      %8740 = vmax.xlane.f32.xlu0 %v8739
      %v8741 = vpop.xlane.xlu0 %8740
      %v8742 = vsel %vm1364, %v8196, -inf
      %8743 = vmax.xlane.f32.xlu0 %v8742
      %v8744 = vpop.xlane.xlu0 %8743
      %v8745 = vsel %vm1364, %v8199, -inf
      %8746 = vmax.xlane.f32.xlu0 %v8745
      %v8747 = vpop.xlane.xlu0 %8746
      %v8748 = vsel %vm1364, %v8247, -inf
      %8749 = vmax.xlane.f32.xlu0 %v8748
      %v8750 = vpop.xlane.xlu0 %8749
      %v8751 = vsel %vm1364, %v8250, -inf
      %8752 = vmax.xlane.f32.xlu0 %v8751
      %v8753 = vpop.xlane.xlu0 %8752
      %v8754 = vsel %vm1364, %v8298, -inf
      %8755 = vmax.xlane.f32.xlu0 %v8754
      %v8756 = vpop.xlane.xlu0 %8755
      %v8757 = vsel %vm1364, %v8301, -inf
      %8758 = vmax.xlane.f32.xlu0 %v8757
      %v8759 = vpop.xlane.xlu0 %8758
      %v8760 = vsel %vm1364, %v8349, -inf
      %8761 = vmax.xlane.f32.xlu0 %v8760
      %v8762 = vpop.xlane.xlu0 %8761
      %v8763 = vsel %vm1364, %v8352, -inf
      %8764 = vmax.xlane.f32.xlu0 %v8763
      %v8765 = vpop.xlane.xlu0 %8764
      %v8766 = vsel %vm1364, %v8400, -inf
      %8767 = vmax.xlane.f32.xlu0 %v8766
      %v8768 = vpop.xlane.xlu0 %8767
      %v8769 = vsel %vm1364, %v8403, -inf
      %8770 = vmax.xlane.f32.xlu0 %v8769
      %v8771 = vpop.xlane.xlu0 %8770
      %v8772 = vsel %vm1364, %v8451, -inf
      %8773 = vmax.xlane.f32.xlu0 %v8772
      %v8774 = vpop.xlane.xlu0 %8773
      %v8775 = vsel %vm1364, %v8454, -inf
      %8776 = vmax.xlane.f32.xlu0 %v8775
      %v8777 = vpop.xlane.xlu0 %8776
      %v8778 = vsel %vm1364, %v8502, -inf
      %8779 = vmax.xlane.f32.xlu0 %v8778
      %v8780 = vpop.xlane.xlu0 %8779
      %v8781 = vsel %vm1364, %v8505, -inf
      %8782 = vmax.xlane.f32.xlu0 %v8781
      %v8783 = vpop.xlane.xlu0 %8782
      %v8784 = vsel %vm1364, %v8553, -inf
      %8785 = vmax.xlane.f32.xlu0 %v8784
      %v8786 = vpop.xlane.xlu0 %8785
      %v8787 = vsel %vm1364, %v8556, -inf
      %8788 = vmax.xlane.f32.xlu0 %v8787
      %v8789 = vpop.xlane.xlu0 %8788
      %v8790 = vsel %vm1364, %v8604, -inf
      %8791 = vmax.xlane.f32.xlu0 %v8790
      %v8792 = vpop.xlane.xlu0 %8791
      %v8793 = vsel %vm1364, %v8607, -inf
      %8794 = vmax.xlane.f32.xlu0 %v8793
      %v8795 = vpop.xlane.xlu0 %8794
      %v8796 = vsel %vm1364, %v8655, -inf
      %8797 = vmax.xlane.f32.xlu0 %v8796
      %v8798 = vpop.xlane.xlu0 %8797
      %v8799 = vsel %vm1364, %v8658, -inf
      %8800 = vmax.xlane.f32.xlu0 %v8799
      %v8801 = vpop.xlane.xlu0 %8800
      %v8802 = vsel %vm1364, %v8706, -inf
      %8803 = vmax.xlane.f32.xlu0 %v8802
      %v8804 = vpop.xlane.xlu0 %8803
      %v8805 = vsel %vm1364, %v8709, -inf
      %8806 = vmax.xlane.f32.xlu0 %v8805
      %v8807 = vpop.xlane.xlu0 %8806
      %v8808 = vsub.f32 %v7941, %v8714
      %v8809 = vsub.f32 %v7944, %v8717
      %v8810 = vsub.f32 %v7992, %v8720
      %v8811 = vsub.f32 %v7995, %v8723
      %v8812 = vsub.f32 %v8043, %v8726
      %v8813 = vsub.f32 %v8046, %v8729
      %v8814 = vsub.f32 %v8094, %v8732
      %v8815 = vsub.f32 %v8097, %v8735
      %v8816 = vsub.f32 %v8145, %v8738
      %v8817 = vsub.f32 %v8148, %v8741
      %v8818 = vsub.f32 %v8196, %v8744
      %v8819 = vsub.f32 %v8199, %v8747
      %v8820 = vsub.f32 %v8247, %v8750
      %v8821 = vsub.f32 %v8250, %v8753
      %v8822 = vsub.f32 %v8298, %v8756
      %v8823 = vsub.f32 %v8301, %v8759
      %v8824 = vsub.f32 %v8349, %v8762
      %v8825 = vsub.f32 %v8352, %v8765
      %v8826 = vsub.f32 %v8400, %v8768
      %v8827 = vsub.f32 %v8403, %v8771
      %v8828 = vsub.f32 %v8451, %v8774
      %v8829 = vsub.f32 %v8454, %v8777
      %v8830 = vsub.f32 %v8502, %v8780
      %v8831 = vsub.f32 %v8505, %v8783
      %v8832 = vsub.f32 %v8553, %v8786
      %v8833 = vsub.f32 %v8556, %v8789
      %v8834 = vsub.f32 %v8604, %v8792
      %v8835 = vsub.f32 %v8607, %v8795
      %v8836 = vsub.f32 %v8655, %v8798
      %v8837 = vsub.f32 %v8658, %v8801
      %v8838 = vsub.f32 %v8706, %v8804
      %v8839 = vsub.f32 %v8709, %v8807
      %v8840 = vmul.f32 %v8808, 1.442695
      %v8841 = vpow.pop %v8840
      %v8842 = vmul.f32 %v8809, 1.442695
      %v8843 = vpow.pop %v8842
      %v8844 = vmul.f32 %v8810, 1.442695
      %v8845 = vpow.pop %v8844
      %v8846 = vmul.f32 %v8811, 1.442695
      %v8847 = vpow.pop %v8846
      %v8848 = vmul.f32 %v8812, 1.442695
      %v8849 = vpow.pop %v8848
      %v8850 = vmul.f32 %v8813, 1.442695
      %v8851 = vpow.pop %v8850
      %v8852 = vmul.f32 %v8814, 1.442695
      %v8853 = vpow.pop %v8852
      %v8854 = vmul.f32 %v8815, 1.442695
      %v8855 = vpow.pop %v8854
      %v8856 = vmul.f32 %v8816, 1.442695
      %v8857 = vpow.pop %v8856
      %v8858 = vmul.f32 %v8817, 1.442695
      %v8859 = vpow.pop %v8858
      %v8860 = vmul.f32 %v8818, 1.442695
      %v8861 = vpow.pop %v8860
      %v8862 = vmul.f32 %v8819, 1.442695
      %v8863 = vpow.pop %v8862
      %v8864 = vmul.f32 %v8820, 1.442695
      %v8865 = vpow.pop %v8864
      %v8866 = vmul.f32 %v8821, 1.442695
      %v8867 = vpow.pop %v8866
      %v8868 = vmul.f32 %v8822, 1.442695
      %v8869 = vpow.pop %v8868
      %v8870 = vmul.f32 %v8823, 1.442695
      %v8871 = vpow.pop %v8870
      %v8872 = vmul.f32 %v8824, 1.442695
      %v8873 = vpow.pop %v8872
      %v8874 = vmul.f32 %v8825, 1.442695
      %v8875 = vpow.pop %v8874
      %v8876 = vmul.f32 %v8826, 1.442695
      %v8877 = vpow.pop %v8876
      %v8878 = vmul.f32 %v8827, 1.442695
      %v8879 = vpow.pop %v8878
      %v8880 = vmul.f32 %v8828, 1.442695
      %v8881 = vpow.pop %v8880
      %v8882 = vmul.f32 %v8829, 1.442695
      %v8883 = vpow.pop %v8882
      %v8884 = vmul.f32 %v8830, 1.442695
      %v8885 = vpow.pop %v8884
      %v8886 = vmul.f32 %v8831, 1.442695
      %v8887 = vpow.pop %v8886
      %v8888 = vmul.f32 %v8832, 1.442695
      %v8889 = vpow.pop %v8888
      %v8890 = vmul.f32 %v8833, 1.442695
      %v8891 = vpow.pop %v8890
      %v8892 = vmul.f32 %v8834, 1.442695
      %v8893 = vpow.pop %v8892
      %v8894 = vmul.f32 %v8835, 1.442695
      %v8895 = vpow.pop %v8894
      %v8896 = vmul.f32 %v8836, 1.442695
      %v8897 = vpow.pop %v8896
      %v8898 = vmul.f32 %v8837, 1.442695
      %v8899 = vpow.pop %v8898
      %v8900 = vmul.f32 %v8838, 1.442695
      %v8901 = vpow.pop %v8900
      %v8902 = vmul.f32 %v8839, 1.442695
      %v8903 = vpow.pop %v8902
      %v8904 = vsel %vm1364, %v8841, 0.0
      %8905 = vadd.xlane.f32.xlu0 %v8904
      %v8906 = vpop.xlane.xlu0 %8905
      %v8907 = vsel %vm1364, %v8843, 0.0
      %8908 = vadd.xlane.f32.xlu0 %v8907
      %v8909 = vpop.xlane.xlu0 %8908
      %v8910 = vsel %vm1364, %v8845, 0.0
      %8911 = vadd.xlane.f32.xlu0 %v8910
      %v8912 = vpop.xlane.xlu0 %8911
      %v8913 = vsel %vm1364, %v8847, 0.0
      %8914 = vadd.xlane.f32.xlu0 %v8913
      %v8915 = vpop.xlane.xlu0 %8914
      %v8916 = vsel %vm1364, %v8849, 0.0
      %8917 = vadd.xlane.f32.xlu0 %v8916
      %v8918 = vpop.xlane.xlu0 %8917
      %v8919 = vsel %vm1364, %v8851, 0.0
      %8920 = vadd.xlane.f32.xlu0 %v8919
      %v8921 = vpop.xlane.xlu0 %8920
      %v8922 = vsel %vm1364, %v8853, 0.0
      %8923 = vadd.xlane.f32.xlu0 %v8922
      %v8924 = vpop.xlane.xlu0 %8923
      %v8925 = vsel %vm1364, %v8855, 0.0
      %8926 = vadd.xlane.f32.xlu0 %v8925
      %v8927 = vpop.xlane.xlu0 %8926
      %v8928 = vsel %vm1364, %v8857, 0.0
      %8929 = vadd.xlane.f32.xlu0 %v8928
      %v8930 = vpop.xlane.xlu0 %8929
      %v8931 = vsel %vm1364, %v8859, 0.0
      %8932 = vadd.xlane.f32.xlu0 %v8931
      %v8933 = vpop.xlane.xlu0 %8932
      %v8934 = vsel %vm1364, %v8861, 0.0
      %8935 = vadd.xlane.f32.xlu0 %v8934
      %v8936 = vpop.xlane.xlu0 %8935
      %v8937 = vsel %vm1364, %v8863, 0.0
      %8938 = vadd.xlane.f32.xlu0 %v8937
      %v8939 = vpop.xlane.xlu0 %8938
      %v8940 = vsel %vm1364, %v8865, 0.0
      %8941 = vadd.xlane.f32.xlu0 %v8940
      %v8942 = vpop.xlane.xlu0 %8941
      %v8943 = vsel %vm1364, %v8867, 0.0
      %8944 = vadd.xlane.f32.xlu0 %v8943
      %v8945 = vpop.xlane.xlu0 %8944
      %v8946 = vsel %vm1364, %v8869, 0.0
      %8947 = vadd.xlane.f32.xlu0 %v8946
      %v8948 = vpop.xlane.xlu0 %8947
      %v8949 = vsel %vm1364, %v8871, 0.0
      %8950 = vadd.xlane.f32.xlu0 %v8949
      %v8951 = vpop.xlane.xlu0 %8950
      %v8952 = vsel %vm1364, %v8873, 0.0
      %8953 = vadd.xlane.f32.xlu0 %v8952
      %v8954 = vpop.xlane.xlu0 %8953
      %v8955 = vsel %vm1364, %v8875, 0.0
      %8956 = vadd.xlane.f32.xlu0 %v8955
      %v8957 = vpop.xlane.xlu0 %8956
      %v8958 = vsel %vm1364, %v8877, 0.0
      %8959 = vadd.xlane.f32.xlu0 %v8958
      %v8960 = vpop.xlane.xlu0 %8959
      %v8961 = vsel %vm1364, %v8879, 0.0
      %8962 = vadd.xlane.f32.xlu0 %v8961
      %v8963 = vpop.xlane.xlu0 %8962
      %v8964 = vsel %vm1364, %v8881, 0.0
      %8965 = vadd.xlane.f32.xlu0 %v8964
      %v8966 = vpop.xlane.xlu0 %8965
      %v8967 = vsel %vm1364, %v8883, 0.0
      %8968 = vadd.xlane.f32.xlu0 %v8967
      %v8969 = vpop.xlane.xlu0 %8968
      %v8970 = vsel %vm1364, %v8885, 0.0
      %8971 = vadd.xlane.f32.xlu0 %v8970
      %v8972 = vpop.xlane.xlu0 %8971
      %v8973 = vsel %vm1364, %v8887, 0.0
      %8974 = vadd.xlane.f32.xlu0 %v8973
      %v8975 = vpop.xlane.xlu0 %8974
      %v8976 = vsel %vm1364, %v8889, 0.0
      %8977 = vadd.xlane.f32.xlu0 %v8976
      %v8978 = vpop.xlane.xlu0 %8977
      %v8979 = vsel %vm1364, %v8891, 0.0
      %8980 = vadd.xlane.f32.xlu0 %v8979
      %v8981 = vpop.xlane.xlu0 %8980
      %v8982 = vsel %vm1364, %v8893, 0.0
      %8983 = vadd.xlane.f32.xlu0 %v8982
      %v8984 = vpop.xlane.xlu0 %8983
      %v8985 = vsel %vm1364, %v8895, 0.0
      %8986 = vadd.xlane.f32.xlu0 %v8985
      %v8987 = vpop.xlane.xlu0 %8986
      %v8988 = vsel %vm1364, %v8897, 0.0
      %8989 = vadd.xlane.f32.xlu0 %v8988
      %v8990 = vpop.xlane.xlu0 %8989
      %v8991 = vsel %vm1364, %v8899, 0.0
      %8992 = vadd.xlane.f32.xlu0 %v8991
      %v8993 = vpop.xlane.xlu0 %8992
      %v8994 = vsel %vm1364, %v8901, 0.0
      %8995 = vadd.xlane.f32.xlu0 %v8994
      %v8996 = vpop.xlane.xlu0 %8995
      %v8997 = vsel %vm1364, %v8903, 0.0
      %8998 = vadd.xlane.f32.xlu0 %v8997
      %v8999 = vpop.xlane.xlu0 %8998
      %v9000 = vrcp.pop %v8906
      %v9001 = vrcp.pop %v8909
      %v9002 = vrcp.pop %v8912
      %v9003 = vrcp.pop %v8915
      %v9004 = vrcp.pop %v8918
      %v9005 = vrcp.pop %v8921
      %v9006 = vrcp.pop %v8924
      %v9007 = vrcp.pop %v8927
      %v9008 = vrcp.pop %v8930
      %v9009 = vrcp.pop %v8933
      %v9010 = vrcp.pop %v8936
      %v9011 = vrcp.pop %v8939
      %v9012 = vrcp.pop %v8942
      %v9013 = vrcp.pop %v8945
      %v9014 = vrcp.pop %v8948
      %v9015 = vrcp.pop %v8951
      %v9016 = vrcp.pop %v8954
      %v9017 = vrcp.pop %v8957
      %v9018 = vrcp.pop %v8960
      %v9019 = vrcp.pop %v8963
      %v9020 = vrcp.pop %v8966
      %v9021 = vrcp.pop %v8969
      %v9022 = vrcp.pop %v8972
      %v9023 = vrcp.pop %v8975
      %v9024 = vrcp.pop %v8978
      %v9025 = vrcp.pop %v8981
      %v9026 = vrcp.pop %v8984
      %v9027 = vrcp.pop %v8987
      %v9028 = vrcp.pop %v8990
      %v9029 = vrcp.pop %v8993
      %v9030 = vrcp.pop %v8996
      %v9031 = vrcp.pop %v8999
      %v9032 = vmul.f32 %v8841, %v9000
      %v9033 = vmul.f32 %v8843, %v9001
      %v9034 = vmul.f32 %v8845, %v9002
      %v9035 = vmul.f32 %v8847, %v9003
      %v9036 = vmul.f32 %v8849, %v9004
      %v9037 = vmul.f32 %v8851, %v9005
      %v9038 = vmul.f32 %v8853, %v9006
      %v9039 = vmul.f32 %v8855, %v9007
      %v9040 = vmul.f32 %v8857, %v9008
      %v9041 = vmul.f32 %v8859, %v9009
      %v9042 = vmul.f32 %v8861, %v9010
      %v9043 = vmul.f32 %v8863, %v9011
      %v9044 = vmul.f32 %v8865, %v9012
      %v9045 = vmul.f32 %v8867, %v9013
      %v9046 = vmul.f32 %v8869, %v9014
      %v9047 = vmul.f32 %v8871, %v9015
      %v9048 = vmul.f32 %v8873, %v9016
      %v9049 = vmul.f32 %v8875, %v9017
      %v9050 = vmul.f32 %v8877, %v9018
      %v9051 = vmul.f32 %v8879, %v9019
      %v9052 = vmul.f32 %v8881, %v9020
      %v9053 = vmul.f32 %v8883, %v9021
      %v9054 = vmul.f32 %v8885, %v9022
      %v9055 = vmul.f32 %v8887, %v9023
      %v9056 = vmul.f32 %v8889, %v9024
      %v9057 = vmul.f32 %v8891, %v9025
      %v9058 = vmul.f32 %v8893, %v9026
      %v9059 = vmul.f32 %v8895, %v9027
      %v9060 = vmul.f32 %v8897, %v9028
      %v9061 = vmul.f32 %v8899, %v9029
      %v9062 = vmul.f32 %v8901, %v9030
      %v9063 = vmul.f32 %v8903, %v9031
      %v9064 = vpack.c.bf16 %v9033, %v9032
      %v9065 = vpack.c.bf16 %v9035, %v9034
      %v9066 = vpack.c.bf16 %v9037, %v9036
      %v9067 = vpack.c.bf16 %v9039, %v9038
      %v9068 = vpack.c.bf16 %v9041, %v9040
      %v9069 = vpack.c.bf16 %v9043, %v9042
      %v9070 = vpack.c.bf16 %v9045, %v9044
      %v9071 = vpack.c.bf16 %v9047, %v9046
      %v9072 = vpack.c.bf16 %v9049, %v9048
      %v9073 = vpack.c.bf16 %v9051, %v9050
      %v9074 = vpack.c.bf16 %v9053, %v9052
      %v9075 = vpack.c.bf16 %v9055, %v9054
      %v9076 = vpack.c.bf16 %v9057, %v9056
      %v9077 = vpack.c.bf16 %v9059, %v9058
      %v9078 = vpack.c.bf16 %v9061, %v9060
      %v9079 = vpack.c.bf16 %v9063, %v9062
      %9080 = vrot.lane.b32.xlu0 %v1943, 108
      %v9081 = vpop.permute.xlu0 %9080
      %v9084 = vsel %vm1364, %v9064, 0
      %9086 = vmatprep.subr.bf16.mxu0 0
      %9087 = vmatpush1.bf16.msra.mxu0 %v9081
      %9088 = vmatprep.subr.bf16.mxu0 0
      %9089 = vmatpush1.bf16.msra.mxu0 0
      %9090 = vmatprep.subr.bf16.mxu0 0
      %9091 = vmatpush1.bf16.msra.mxu0 0
      %9092 = vmatprep.subr.bf16.mxu0 0
      %9093 = vmatpush1.bf16.msra.mxu0 0
      %9094 = vmatprep.subr.bf16.mxu0 0
      %9095 = vmatpush1.bf16.msra.mxu0 0
      %9096 = vmatprep.subr.bf16.mxu0 0
      %9097 = vmatpush1.bf16.msra.mxu0 0
      %9098 = vmatprep.subr.bf16.mxu0 0
      %9099 = vmatpush1.bf16.msra.mxu0 0
      %9100 = vmatprep.subr.bf16.mxu0 0
      %9101 = vmatpush1.bf16.msra.mxu0 0
      %9102 = vmatprep.subr.bf16.mxu0 0
      %9103 = vmatpush1.bf16.msra.mxu0 0
      %9104 = vmatprep.subr.bf16.mxu0 0
      %9105 = vmatpush1.bf16.msra.mxu0 0
      %9106 = vmatprep.subr.bf16.mxu0 0
      %9107 = vmatpush1.bf16.msra.mxu0 0
      %9108 = vmatprep.subr.bf16.mxu0 0
      %9109 = vmatpush1.bf16.msra.mxu0 0
      %9110 = vmatprep.subr.bf16.mxu0 0
      %9111 = vmatpush1.bf16.msra.mxu0 0
      %9112 = vmatprep.subr.bf16.mxu0 0
      %9113 = vmatpush1.bf16.msra.mxu0 0
      %9114 = vmatprep.subr.bf16.mxu0 0
      %9115 = vmatpush1.bf16.msra.mxu0 0
      %9116 = vmatprep.subr.bf16.mxu0 0
      %9117 = vmatpush1.bf16.msra.mxu0 0
      %9118 = vmatprep.mubr.bf16.mxu0 0
      %9119 = vmatmul.mubr.bf16.gmra.mrb[0].mxu0 %v9084
      %v9120 = vpop.f32.mrb[0].mxu0
      %v9121 = vadd.f32 0.0, %v9120
      %v9122 = vpop.f32.mrb[0].mxu0
      %v9123 = vpop.f32.mrb[0].mxu0
      %v9124 = vadd.f32 0.0, %v9123
      %v9125 = vpop.f32.mrb[0].mxu0
      %9126 = vdwg.mxu0
      %9127 = vrot.lane.b32.xlu0 %v1944, 108
      %v9128 = vpop.permute.xlu0 %9127
      %v9131 = vsel %vm1364, %v9065, 0
      %9133 = vmatprep.subr.bf16.mxu0 0
      %9134 = vmatpush1.bf16.msra.mxu0 %v9128
      %9135 = vmatprep.subr.bf16.mxu0 0
      %9136 = vmatpush1.bf16.msra.mxu0 0
      %9137 = vmatprep.subr.bf16.mxu0 0
      %9138 = vmatpush1.bf16.msra.mxu0 0
      %9139 = vmatprep.subr.bf16.mxu0 0
      %9140 = vmatpush1.bf16.msra.mxu0 0
      %9141 = vmatprep.subr.bf16.mxu0 0
      %9142 = vmatpush1.bf16.msra.mxu0 0
      %9143 = vmatprep.subr.bf16.mxu0 0
      %9144 = vmatpush1.bf16.msra.mxu0 0
      %9145 = vmatprep.subr.bf16.mxu0 0
      %9146 = vmatpush1.bf16.msra.mxu0 0
      %9147 = vmatprep.subr.bf16.mxu0 0
      %9148 = vmatpush1.bf16.msra.mxu0 0
      %9149 = vmatprep.subr.bf16.mxu0 0
      %9150 = vmatpush1.bf16.msra.mxu0 0
      %9151 = vmatprep.subr.bf16.mxu0 0
      %9152 = vmatpush1.bf16.msra.mxu0 0
      %9153 = vmatprep.subr.bf16.mxu0 0
      %9154 = vmatpush1.bf16.msra.mxu0 0
      %9155 = vmatprep.subr.bf16.mxu0 0
      %9156 = vmatpush1.bf16.msra.mxu0 0
      %9157 = vmatprep.subr.bf16.mxu0 0
      %9158 = vmatpush1.bf16.msra.mxu0 0
      %9159 = vmatprep.subr.bf16.mxu0 0
      %9160 = vmatpush1.bf16.msra.mxu0 0
      %9161 = vmatprep.subr.bf16.mxu0 0
      %9162 = vmatpush1.bf16.msra.mxu0 0
      %9163 = vmatprep.subr.bf16.mxu0 0
      %9164 = vmatpush1.bf16.msra.mxu0 0
      %9165 = vmatprep.mubr.bf16.mxu0 0
      %9166 = vmatmul.mubr.bf16.gmra.mrb[0].mxu0 %v9131
      %v9167 = vpop.f32.mrb[0].mxu0
      %v9168 = vadd.f32 0.0, %v9167
      %v9169 = vpop.f32.mrb[0].mxu0
      %v9170 = vpop.f32.mrb[0].mxu0
      %v9171 = vadd.f32 0.0, %v9170
      %v9172 = vpop.f32.mrb[0].mxu0
      %9173 = vdwg.mxu0
      %9174 = vrot.lane.b32.xlu0 %v1945, 108
      %v9175 = vpop.permute.xlu0 %9174
      %v9178 = vsel %vm1364, %v9066, 0
      %9180 = vmatprep.subr.bf16.mxu0 0
      %9181 = vmatpush1.bf16.msra.mxu0 %v9175
      %9182 = vmatprep.subr.bf16.mxu0 0
      %9183 = vmatpush1.bf16.msra.mxu0 0
      %9184 = vmatprep.subr.bf16.mxu0 0
      %9185 = vmatpush1.bf16.msra.mxu0 0
      %9186 = vmatprep.subr.bf16.mxu0 0
      %9187 = vmatpush1.bf16.msra.mxu0 0
      %9188 = vmatprep.subr.bf16.mxu0 0
      %9189 = vmatpush1.bf16.msra.mxu0 0
      %9190 = vmatprep.subr.bf16.mxu0 0
      %9191 = vmatpush1.bf16.msra.mxu0 0
      %9192 = vmatprep.subr.bf16.mxu0 0
      %9193 = vmatpush1.bf16.msra.mxu0 0
      %9194 = vmatprep.subr.bf16.mxu0 0
      %9195 = vmatpush1.bf16.msra.mxu0 0
      %9196 = vmatprep.subr.bf16.mxu0 0
      %9197 = vmatpush1.bf16.msra.mxu0 0
      %9198 = vmatprep.subr.bf16.mxu0 0
      %9199 = vmatpush1.bf16.msra.mxu0 0
      %9200 = vmatprep.subr.bf16.mxu0 0
      %9201 = vmatpush1.bf16.msra.mxu0 0
      %9202 = vmatprep.subr.bf16.mxu0 0
      %9203 = vmatpush1.bf16.msra.mxu0 0
      %9204 = vmatprep.subr.bf16.mxu0 0
      %9205 = vmatpush1.bf16.msra.mxu0 0
      %9206 = vmatprep.subr.bf16.mxu0 0
      %9207 = vmatpush1.bf16.msra.mxu0 0
      %9208 = vmatprep.subr.bf16.mxu0 0
      %9209 = vmatpush1.bf16.msra.mxu0 0
      %9210 = vmatprep.subr.bf16.mxu0 0
      %9211 = vmatpush1.bf16.msra.mxu0 0
      %9212 = vmatprep.mubr.bf16.mxu0 0
      %9213 = vmatmul.mubr.bf16.gmra.mrb[0].mxu0 %v9178
      %v9214 = vpop.f32.mrb[0].mxu0
      %v9215 = vadd.f32 0.0, %v9214
      %v9216 = vpop.f32.mrb[0].mxu0
      %v9217 = vpop.f32.mrb[0].mxu0
      %v9218 = vadd.f32 0.0, %v9217
      %v9219 = vpop.f32.mrb[0].mxu0
      %9220 = vdwg.mxu0
      %9221 = vrot.lane.b32.xlu0 %v1946, 108
      %v9222 = vpop.permute.xlu0 %9221
      %v9225 = vsel %vm1364, %v9067, 0
      %9227 = vmatprep.subr.bf16.mxu0 0
      %9228 = vmatpush1.bf16.msra.mxu0 %v9222
      %9229 = vmatprep.subr.bf16.mxu0 0
      %9230 = vmatpush1.bf16.msra.mxu0 0
      %9231 = vmatprep.subr.bf16.mxu0 0
      %9232 = vmatpush1.bf16.msra.mxu0 0
      %9233 = vmatprep.subr.bf16.mxu0 0
      %9234 = vmatpush1.bf16.msra.mxu0 0
      %9235 = vmatprep.subr.bf16.mxu0 0
      %9236 = vmatpush1.bf16.msra.mxu0 0
      %9237 = vmatprep.subr.bf16.mxu0 0
      %9238 = vmatpush1.bf16.msra.mxu0 0
      %9239 = vmatprep.subr.bf16.mxu0 0
      %9240 = vmatpush1.bf16.msra.mxu0 0
      %9241 = vmatprep.subr.bf16.mxu0 0
      %9242 = vmatpush1.bf16.msra.mxu0 0
      %9243 = vmatprep.subr.bf16.mxu0 0
      %9244 = vmatpush1.bf16.msra.mxu0 0
      %9245 = vmatprep.subr.bf16.mxu0 0
      %9246 = vmatpush1.bf16.msra.mxu0 0
      %9247 = vmatprep.subr.bf16.mxu0 0
      %9248 = vmatpush1.bf16.msra.mxu0 0
      %9249 = vmatprep.subr.bf16.mxu0 0
      %9250 = vmatpush1.bf16.msra.mxu0 0
      %9251 = vmatprep.subr.bf16.mxu0 0
      %9252 = vmatpush1.bf16.msra.mxu0 0
      %9253 = vmatprep.subr.bf16.mxu0 0
      %9254 = vmatpush1.bf16.msra.mxu0 0
      %9255 = vmatprep.subr.bf16.mxu0 0
      %9256 = vmatpush1.bf16.msra.mxu0 0
      %9257 = vmatprep.subr.bf16.mxu0 0
      %9258 = vmatpush1.bf16.msra.mxu0 0
      %9259 = vmatprep.mubr.bf16.mxu0 0
      %9260 = vmatmul.mubr.bf16.gmra.mrb[0].mxu0 %v9225
      %v9261 = vpop.f32.mrb[0].mxu0
      %v9262 = vadd.f32 0.0, %v9261
      %v9263 = vpop.f32.mrb[0].mxu0
      %v9264 = vpop.f32.mrb[0].mxu0
      %v9265 = vadd.f32 0.0, %v9264
      %v9266 = vpop.f32.mrb[0].mxu0
      %9267 = vdwg.mxu0
      %9268 = vrot.lane.b32.xlu0 %v1947, 108
      %v9269 = vpop.permute.xlu0 %9268
      %v9272 = vsel %vm1364, %v9068, 0
      %9274 = vmatprep.subr.bf16.mxu0 0
      %9275 = vmatpush1.bf16.msra.mxu0 %v9269
      %9276 = vmatprep.subr.bf16.mxu0 0
      %9277 = vmatpush1.bf16.msra.mxu0 0
      %9278 = vmatprep.subr.bf16.mxu0 0
      %9279 = vmatpush1.bf16.msra.mxu0 0
      %9280 = vmatprep.subr.bf16.mxu0 0
      %9281 = vmatpush1.bf16.msra.mxu0 0
      %9282 = vmatprep.subr.bf16.mxu0 0
      %9283 = vmatpush1.bf16.msra.mxu0 0
      %9284 = vmatprep.subr.bf16.mxu0 0
      %9285 = vmatpush1.bf16.msra.mxu0 0
      %9286 = vmatprep.subr.bf16.mxu0 0
      %9287 = vmatpush1.bf16.msra.mxu0 0
      %9288 = vmatprep.subr.bf16.mxu0 0
      %9289 = vmatpush1.bf16.msra.mxu0 0
      %9290 = vmatprep.subr.bf16.mxu0 0
      %9291 = vmatpush1.bf16.msra.mxu0 0
      %9292 = vmatprep.subr.bf16.mxu0 0
      %9293 = vmatpush1.bf16.msra.mxu0 0
      %9294 = vmatprep.subr.bf16.mxu0 0
      %9295 = vmatpush1.bf16.msra.mxu0 0
      %9296 = vmatprep.subr.bf16.mxu0 0
      %9297 = vmatpush1.bf16.msra.mxu0 0
      %9298 = vmatprep.subr.bf16.mxu0 0
      %9299 = vmatpush1.bf16.msra.mxu0 0
      %9300 = vmatprep.subr.bf16.mxu0 0
      %9301 = vmatpush1.bf16.msra.mxu0 0
      %9302 = vmatprep.subr.bf16.mxu0 0
      %9303 = vmatpush1.bf16.msra.mxu0 0
      %9304 = vmatprep.subr.bf16.mxu0 0
      %9305 = vmatpush1.bf16.msra.mxu0 0
      %9306 = vmatprep.mubr.bf16.mxu0 0
      %9307 = vmatmul.mubr.bf16.gmra.mrb[0].mxu0 %v9272
      %v9308 = vpop.f32.mrb[0].mxu0
      %v9309 = vadd.f32 0.0, %v9308
      %v9310 = vpop.f32.mrb[0].mxu0
      %v9311 = vpop.f32.mrb[0].mxu0
      %v9312 = vadd.f32 0.0, %v9311
      %v9313 = vpop.f32.mrb[0].mxu0
      %9314 = vdwg.mxu0
      %9315 = vrot.lane.b32.xlu0 %v1948, 108
      %v9316 = vpop.permute.xlu0 %9315
      %v9319 = vsel %vm1364, %v9069, 0
      %9321 = vmatprep.subr.bf16.mxu0 0
      %9322 = vmatpush1.bf16.msra.mxu0 %v9316
      %9323 = vmatprep.subr.bf16.mxu0 0
      %9324 = vmatpush1.bf16.msra.mxu0 0
      %9325 = vmatprep.subr.bf16.mxu0 0
      %9326 = vmatpush1.bf16.msra.mxu0 0
      %9327 = vmatprep.subr.bf16.mxu0 0
      %9328 = vmatpush1.bf16.msra.mxu0 0
      %9329 = vmatprep.subr.bf16.mxu0 0
      %9330 = vmatpush1.bf16.msra.mxu0 0
      %9331 = vmatprep.subr.bf16.mxu0 0
      %9332 = vmatpush1.bf16.msra.mxu0 0
      %9333 = vmatprep.subr.bf16.mxu0 0
      %9334 = vmatpush1.bf16.msra.mxu0 0
      %9335 = vmatprep.subr.bf16.mxu0 0
      %9336 = vmatpush1.bf16.msra.mxu0 0
      %9337 = vmatprep.subr.bf16.mxu0 0
      %9338 = vmatpush1.bf16.msra.mxu0 0
      %9339 = vmatprep.subr.bf16.mxu0 0
      %9340 = vmatpush1.bf16.msra.mxu0 0
      %9341 = vmatprep.subr.bf16.mxu0 0
      %9342 = vmatpush1.bf16.msra.mxu0 0
      %9343 = vmatprep.subr.bf16.mxu0 0
      %9344 = vmatpush1.bf16.msra.mxu0 0
      %9345 = vmatprep.subr.bf16.mxu0 0
      %9346 = vmatpush1.bf16.msra.mxu0 0
      %9347 = vmatprep.subr.bf16.mxu0 0
      %9348 = vmatpush1.bf16.msra.mxu0 0
      %9349 = vmatprep.subr.bf16.mxu0 0
      %9350 = vmatpush1.bf16.msra.mxu0 0
      %9351 = vmatprep.subr.bf16.mxu0 0
      %9352 = vmatpush1.bf16.msra.mxu0 0
      %9353 = vmatprep.mubr.bf16.mxu0 0
      %9354 = vmatmul.mubr.bf16.gmra.mrb[0].mxu0 %v9319
      %v9355 = vpop.f32.mrb[0].mxu0
      %v9356 = vadd.f32 0.0, %v9355
      %v9357 = vpop.f32.mrb[0].mxu0
      %v9358 = vpop.f32.mrb[0].mxu0
      %v9359 = vadd.f32 0.0, %v9358
      %v9360 = vpop.f32.mrb[0].mxu0
      %9361 = vdwg.mxu0
      %9362 = vrot.lane.b32.xlu0 %v1949, 108
      %v9363 = vpop.permute.xlu0 %9362
      %v9366 = vsel %vm1364, %v9070, 0
      %9368 = vmatprep.subr.bf16.mxu0 0
      %9369 = vmatpush1.bf16.msra.mxu0 %v9363
      %9370 = vmatprep.subr.bf16.mxu0 0
      %9371 = vmatpush1.bf16.msra.mxu0 0
      %9372 = vmatprep.subr.bf16.mxu0 0
      %9373 = vmatpush1.bf16.msra.mxu0 0
      %9374 = vmatprep.subr.bf16.mxu0 0
      %9375 = vmatpush1.bf16.msra.mxu0 0
      %9376 = vmatprep.subr.bf16.mxu0 0
      %9377 = vmatpush1.bf16.msra.mxu0 0
      %9378 = vmatprep.subr.bf16.mxu0 0
      %9379 = vmatpush1.bf16.msra.mxu0 0
      %9380 = vmatprep.subr.bf16.mxu0 0
      %9381 = vmatpush1.bf16.msra.mxu0 0
      %9382 = vmatprep.subr.bf16.mxu0 0
      %9383 = vmatpush1.bf16.msra.mxu0 0
      %9384 = vmatprep.subr.bf16.mxu0 0
      %9385 = vmatpush1.bf16.msra.mxu0 0
      %9386 = vmatprep.subr.bf16.mxu0 0
      %9387 = vmatpush1.bf16.msra.mxu0 0
      %9388 = vmatprep.subr.bf16.mxu0 0
      %9389 = vmatpush1.bf16.msra.mxu0 0
      %9390 = vmatprep.subr.bf16.mxu0 0
      %9391 = vmatpush1.bf16.msra.mxu0 0
      %9392 = vmatprep.subr.bf16.mxu0 0
      %9393 = vmatpush1.bf16.msra.mxu0 0
      %9394 = vmatprep.subr.bf16.mxu0 0
      %9395 = vmatpush1.bf16.msra.mxu0 0
      %9396 = vmatprep.subr.bf16.mxu0 0
      %9397 = vmatpush1.bf16.msra.mxu0 0
      %9398 = vmatprep.subr.bf16.mxu0 0
      %9399 = vmatpush1.bf16.msra.mxu0 0
      %9400 = vmatprep.mubr.bf16.mxu0 0
      %9401 = vmatmul.mubr.bf16.gmra.mrb[0].mxu0 %v9366
      %v9402 = vpop.f32.mrb[0].mxu0
      %v9403 = vadd.f32 0.0, %v9402
      %v9404 = vpop.f32.mrb[0].mxu0
      %v9405 = vpop.f32.mrb[0].mxu0
      %v9406 = vadd.f32 0.0, %v9405
      %v9407 = vpop.f32.mrb[0].mxu0
      %9408 = vdwg.mxu0
      %9409 = vrot.lane.b32.xlu0 %v1950, 108
      %v9410 = vpop.permute.xlu0 %9409
      %v9413 = vsel %vm1364, %v9071, 0
      %9415 = vmatprep.subr.bf16.mxu0 0
      %9416 = vmatpush1.bf16.msra.mxu0 %v9410
      %9417 = vmatprep.subr.bf16.mxu0 0
      %9418 = vmatpush1.bf16.msra.mxu0 0
      %9419 = vmatprep.subr.bf16.mxu0 0
      %9420 = vmatpush1.bf16.msra.mxu0 0
      %9421 = vmatprep.subr.bf16.mxu0 0
      %9422 = vmatpush1.bf16.msra.mxu0 0
      %9423 = vmatprep.subr.bf16.mxu0 0
      %9424 = vmatpush1.bf16.msra.mxu0 0
      %9425 = vmatprep.subr.bf16.mxu0 0
      %9426 = vmatpush1.bf16.msra.mxu0 0
      %9427 = vmatprep.subr.bf16.mxu0 0
      %9428 = vmatpush1.bf16.msra.mxu0 0
      %9429 = vmatprep.subr.bf16.mxu0 0
      %9430 = vmatpush1.bf16.msra.mxu0 0
      %9431 = vmatprep.subr.bf16.mxu0 0
      %9432 = vmatpush1.bf16.msra.mxu0 0
      %9433 = vmatprep.subr.bf16.mxu0 0
      %9434 = vmatpush1.bf16.msra.mxu0 0
      %9435 = vmatprep.subr.bf16.mxu0 0
      %9436 = vmatpush1.bf16.msra.mxu0 0
      %9437 = vmatprep.subr.bf16.mxu0 0
      %9438 = vmatpush1.bf16.msra.mxu0 0
      %9439 = vmatprep.subr.bf16.mxu0 0
      %9440 = vmatpush1.bf16.msra.mxu0 0
      %9441 = vmatprep.subr.bf16.mxu0 0
      %9442 = vmatpush1.bf16.msra.mxu0 0
      %9443 = vmatprep.subr.bf16.mxu0 0
      %9444 = vmatpush1.bf16.msra.mxu0 0
      %9445 = vmatprep.subr.bf16.mxu0 0
      %9446 = vmatpush1.bf16.msra.mxu0 0
      %9447 = vmatprep.mubr.bf16.mxu0 0
      %9448 = vmatmul.mubr.bf16.gmra.mrb[0].mxu0 %v9413
      %v9449 = vpop.f32.mrb[0].mxu0
      %v9450 = vadd.f32 0.0, %v9449
      %v9451 = vpop.f32.mrb[0].mxu0
      %v9452 = vpop.f32.mrb[0].mxu0
      %v9453 = vadd.f32 0.0, %v9452
      %v9454 = vpop.f32.mrb[0].mxu0
      %9455 = vdwg.mxu0
      %9456 = vrot.lane.b32.xlu0 %v1951, 108
      %v9457 = vpop.permute.xlu0 %9456
      %v9460 = vsel %vm1364, %v9072, 0
      %9462 = vmatprep.subr.bf16.mxu0 0
      %9463 = vmatpush1.bf16.msra.mxu0 %v9457
      %9464 = vmatprep.subr.bf16.mxu0 0
      %9465 = vmatpush1.bf16.msra.mxu0 0
      %9466 = vmatprep.subr.bf16.mxu0 0
      %9467 = vmatpush1.bf16.msra.mxu0 0
      %9468 = vmatprep.subr.bf16.mxu0 0
      %9469 = vmatpush1.bf16.msra.mxu0 0
      %9470 = vmatprep.subr.bf16.mxu0 0
      %9471 = vmatpush1.bf16.msra.mxu0 0
      %9472 = vmatprep.subr.bf16.mxu0 0
      %9473 = vmatpush1.bf16.msra.mxu0 0
      %9474 = vmatprep.subr.bf16.mxu0 0
      %9475 = vmatpush1.bf16.msra.mxu0 0
      %9476 = vmatprep.subr.bf16.mxu0 0
      %9477 = vmatpush1.bf16.msra.mxu0 0
      %9478 = vmatprep.subr.bf16.mxu0 0
      %9479 = vmatpush1.bf16.msra.mxu0 0
      %9480 = vmatprep.subr.bf16.mxu0 0
      %9481 = vmatpush1.bf16.msra.mxu0 0
      %9482 = vmatprep.subr.bf16.mxu0 0
      %9483 = vmatpush1.bf16.msra.mxu0 0
      %9484 = vmatprep.subr.bf16.mxu0 0
      %9485 = vmatpush1.bf16.msra.mxu0 0
      %9486 = vmatprep.subr.bf16.mxu0 0
      %9487 = vmatpush1.bf16.msra.mxu0 0
      %9488 = vmatprep.subr.bf16.mxu0 0
      %9489 = vmatpush1.bf16.msra.mxu0 0
      %9490 = vmatprep.subr.bf16.mxu0 0
      %9491 = vmatpush1.bf16.msra.mxu0 0
      %9492 = vmatprep.subr.bf16.mxu0 0
      %9493 = vmatpush1.bf16.msra.mxu0 0
      %9494 = vmatprep.mubr.bf16.mxu0 0
      %9495 = vmatmul.mubr.bf16.gmra.mrb[0].mxu0 %v9460
      %v9496 = vpop.f32.mrb[0].mxu0
      %v9497 = vadd.f32 0.0, %v9496
      %v9498 = vpop.f32.mrb[0].mxu0
      %v9499 = vpop.f32.mrb[0].mxu0
      %v9500 = vadd.f32 0.0, %v9499
      %v9501 = vpop.f32.mrb[0].mxu0
      %9502 = vdwg.mxu0
      %9503 = vrot.lane.b32.xlu0 %v1952, 108
      %v9504 = vpop.permute.xlu0 %9503
      %v9507 = vsel %vm1364, %v9073, 0
      %9509 = vmatprep.subr.bf16.mxu0 0
      %9510 = vmatpush1.bf16.msra.mxu0 %v9504
      %9511 = vmatprep.subr.bf16.mxu0 0
      %9512 = vmatpush1.bf16.msra.mxu0 0
      %9513 = vmatprep.subr.bf16.mxu0 0
      %9514 = vmatpush1.bf16.msra.mxu0 0
      %9515 = vmatprep.subr.bf16.mxu0 0
      %9516 = vmatpush1.bf16.msra.mxu0 0
      %9517 = vmatprep.subr.bf16.mxu0 0
      %9518 = vmatpush1.bf16.msra.mxu0 0
      %9519 = vmatprep.subr.bf16.mxu0 0
      %9520 = vmatpush1.bf16.msra.mxu0 0
      %9521 = vmatprep.subr.bf16.mxu0 0
      %9522 = vmatpush1.bf16.msra.mxu0 0
      %9523 = vmatprep.subr.bf16.mxu0 0
      %9524 = vmatpush1.bf16.msra.mxu0 0
      %9525 = vmatprep.subr.bf16.mxu0 0
      %9526 = vmatpush1.bf16.msra.mxu0 0
      %9527 = vmatprep.subr.bf16.mxu0 0
      %9528 = vmatpush1.bf16.msra.mxu0 0
      %9529 = vmatprep.subr.bf16.mxu0 0
      %9530 = vmatpush1.bf16.msra.mxu0 0
      %9531 = vmatprep.subr.bf16.mxu0 0
      %9532 = vmatpush1.bf16.msra.mxu0 0
      %9533 = vmatprep.subr.bf16.mxu0 0
      %9534 = vmatpush1.bf16.msra.mxu0 0
      %9535 = vmatprep.subr.bf16.mxu0 0
      %9536 = vmatpush1.bf16.msra.mxu0 0
      %9537 = vmatprep.subr.bf16.mxu0 0
      %9538 = vmatpush1.bf16.msra.mxu0 0
      %9539 = vmatprep.subr.bf16.mxu0 0
      %9540 = vmatpush1.bf16.msra.mxu0 0
      %9541 = vmatprep.mubr.bf16.mxu0 0
      %9542 = vmatmul.mubr.bf16.gmra.mrb[0].mxu0 %v9507
      %v9543 = vpop.f32.mrb[0].mxu0
      %v9544 = vadd.f32 0.0, %v9543
      %v9545 = vpop.f32.mrb[0].mxu0
      %v9546 = vpop.f32.mrb[0].mxu0
      %v9547 = vadd.f32 0.0, %v9546
      %v9548 = vpop.f32.mrb[0].mxu0
      %9549 = vdwg.mxu0
      %9550 = vrot.lane.b32.xlu0 %v1953, 108
      %v9551 = vpop.permute.xlu0 %9550
      %v9554 = vsel %vm1364, %v9074, 0
      %9556 = vmatprep.subr.bf16.mxu0 0
      %9557 = vmatpush1.bf16.msra.mxu0 %v9551
      %9558 = vmatprep.subr.bf16.mxu0 0
      %9559 = vmatpush1.bf16.msra.mxu0 0
      %9560 = vmatprep.subr.bf16.mxu0 0
      %9561 = vmatpush1.bf16.msra.mxu0 0
      %9562 = vmatprep.subr.bf16.mxu0 0
      %9563 = vmatpush1.bf16.msra.mxu0 0
      %9564 = vmatprep.subr.bf16.mxu0 0
      %9565 = vmatpush1.bf16.msra.mxu0 0
      %9566 = vmatprep.subr.bf16.mxu0 0
      %9567 = vmatpush1.bf16.msra.mxu0 0
      %9568 = vmatprep.subr.bf16.mxu0 0
      %9569 = vmatpush1.bf16.msra.mxu0 0
      %9570 = vmatprep.subr.bf16.mxu0 0
      %9571 = vmatpush1.bf16.msra.mxu0 0
      %9572 = vmatprep.subr.bf16.mxu0 0
      %9573 = vmatpush1.bf16.msra.mxu0 0
      %9574 = vmatprep.subr.bf16.mxu0 0
      %9575 = vmatpush1.bf16.msra.mxu0 0
      %9576 = vmatprep.subr.bf16.mxu0 0
      %9577 = vmatpush1.bf16.msra.mxu0 0
      %9578 = vmatprep.subr.bf16.mxu0 0
      %9579 = vmatpush1.bf16.msra.mxu0 0
      %9580 = vmatprep.subr.bf16.mxu0 0
      %9581 = vmatpush1.bf16.msra.mxu0 0
      %9582 = vmatprep.subr.bf16.mxu0 0
      %9583 = vmatpush1.bf16.msra.mxu0 0
      %9584 = vmatprep.subr.bf16.mxu0 0
      %9585 = vmatpush1.bf16.msra.mxu0 0
      %9586 = vmatprep.subr.bf16.mxu0 0
      %9587 = vmatpush1.bf16.msra.mxu0 0
      %9588 = vmatprep.mubr.bf16.mxu0 0
      %9589 = vmatmul.mubr.bf16.gmra.mrb[0].mxu0 %v9554
      %v9590 = vpop.f32.mrb[0].mxu0
      %v9591 = vadd.f32 0.0, %v9590
      %v9592 = vpop.f32.mrb[0].mxu0
      %v9593 = vpop.f32.mrb[0].mxu0
      %v9594 = vadd.f32 0.0, %v9593
      %v9595 = vpop.f32.mrb[0].mxu0
      %9596 = vdwg.mxu0
      %9597 = vrot.lane.b32.xlu0 %v1954, 108
      %v9598 = vpop.permute.xlu0 %9597
      %v9601 = vsel %vm1364, %v9075, 0
      %9603 = vmatprep.subr.bf16.mxu0 0
      %9604 = vmatpush1.bf16.msra.mxu0 %v9598
      %9605 = vmatprep.subr.bf16.mxu0 0
      %9606 = vmatpush1.bf16.msra.mxu0 0
      %9607 = vmatprep.subr.bf16.mxu0 0
      %9608 = vmatpush1.bf16.msra.mxu0 0
      %9609 = vmatprep.subr.bf16.mxu0 0
      %9610 = vmatpush1.bf16.msra.mxu0 0
      %9611 = vmatprep.subr.bf16.mxu0 0
      %9612 = vmatpush1.bf16.msra.mxu0 0
      %9613 = vmatprep.subr.bf16.mxu0 0
      %9614 = vmatpush1.bf16.msra.mxu0 0
      %9615 = vmatprep.subr.bf16.mxu0 0
      %9616 = vmatpush1.bf16.msra.mxu0 0
      %9617 = vmatprep.subr.bf16.mxu0 0
      %9618 = vmatpush1.bf16.msra.mxu0 0
      %9619 = vmatprep.subr.bf16.mxu0 0
      %9620 = vmatpush1.bf16.msra.mxu0 0
      %9621 = vmatprep.subr.bf16.mxu0 0
      %9622 = vmatpush1.bf16.msra.mxu0 0
      %9623 = vmatprep.subr.bf16.mxu0 0
      %9624 = vmatpush1.bf16.msra.mxu0 0
      %9625 = vmatprep.subr.bf16.mxu0 0
      %9626 = vmatpush1.bf16.msra.mxu0 0
      %9627 = vmatprep.subr.bf16.mxu0 0
      %9628 = vmatpush1.bf16.msra.mxu0 0
      %9629 = vmatprep.subr.bf16.mxu0 0
      %9630 = vmatpush1.bf16.msra.mxu0 0
      %9631 = vmatprep.subr.bf16.mxu0 0
      %9632 = vmatpush1.bf16.msra.mxu0 0
      %9633 = vmatprep.subr.bf16.mxu0 0
      %9634 = vmatpush1.bf16.msra.mxu0 0
      %9635 = vmatprep.mubr.bf16.mxu0 0
      %9636 = vmatmul.mubr.bf16.gmra.mrb[0].mxu0 %v9601
      %v9637 = vpop.f32.mrb[0].mxu0
      %v9638 = vadd.f32 0.0, %v9637
      %v9639 = vpop.f32.mrb[0].mxu0
      %v9640 = vpop.f32.mrb[0].mxu0
      %v9641 = vadd.f32 0.0, %v9640
      %v9642 = vpop.f32.mrb[0].mxu0
      %9643 = vdwg.mxu0
      %9644 = vrot.lane.b32.xlu0 %v1955, 108
      %v9645 = vpop.permute.xlu0 %9644
      %v9648 = vsel %vm1364, %v9076, 0
      %9650 = vmatprep.subr.bf16.mxu0 0
      %9651 = vmatpush1.bf16.msra.mxu0 %v9645
      %9652 = vmatprep.subr.bf16.mxu0 0
      %9653 = vmatpush1.bf16.msra.mxu0 0
      %9654 = vmatprep.subr.bf16.mxu0 0
      %9655 = vmatpush1.bf16.msra.mxu0 0
      %9656 = vmatprep.subr.bf16.mxu0 0
      %9657 = vmatpush1.bf16.msra.mxu0 0
      %9658 = vmatprep.subr.bf16.mxu0 0
      %9659 = vmatpush1.bf16.msra.mxu0 0
      %9660 = vmatprep.subr.bf16.mxu0 0
      %9661 = vmatpush1.bf16.msra.mxu0 0
      %9662 = vmatprep.subr.bf16.mxu0 0
      %9663 = vmatpush1.bf16.msra.mxu0 0
      %9664 = vmatprep.subr.bf16.mxu0 0
      %9665 = vmatpush1.bf16.msra.mxu0 0
      %9666 = vmatprep.subr.bf16.mxu0 0
      %9667 = vmatpush1.bf16.msra.mxu0 0
      %9668 = vmatprep.subr.bf16.mxu0 0
      %9669 = vmatpush1.bf16.msra.mxu0 0
      %9670 = vmatprep.subr.bf16.mxu0 0
      %9671 = vmatpush1.bf16.msra.mxu0 0
      %9672 = vmatprep.subr.bf16.mxu0 0
      %9673 = vmatpush1.bf16.msra.mxu0 0
      %9674 = vmatprep.subr.bf16.mxu0 0
      %9675 = vmatpush1.bf16.msra.mxu0 0
      %9676 = vmatprep.subr.bf16.mxu0 0
      %9677 = vmatpush1.bf16.msra.mxu0 0
      %9678 = vmatprep.subr.bf16.mxu0 0
      %9679 = vmatpush1.bf16.msra.mxu0 0
      %9680 = vmatprep.subr.bf16.mxu0 0
      %9681 = vmatpush1.bf16.msra.mxu0 0
      %9682 = vmatprep.mubr.bf16.mxu0 0
      %9683 = vmatmul.mubr.bf16.gmra.mrb[0].mxu0 %v9648
      %v9684 = vpop.f32.mrb[0].mxu0
      %v9685 = vadd.f32 0.0, %v9684
      %v9686 = vpop.f32.mrb[0].mxu0
      %v9687 = vpop.f32.mrb[0].mxu0
      %v9688 = vadd.f32 0.0, %v9687
      %v9689 = vpop.f32.mrb[0].mxu0
      %9690 = vdwg.mxu0
      %9691 = vrot.lane.b32.xlu0 %v1956, 108
      %v9692 = vpop.permute.xlu0 %9691
      %v9695 = vsel %vm1364, %v9077, 0
      %9697 = vmatprep.subr.bf16.mxu0 0
      %9698 = vmatpush1.bf16.msra.mxu0 %v9692
      %9699 = vmatprep.subr.bf16.mxu0 0
      %9700 = vmatpush1.bf16.msra.mxu0 0
      %9701 = vmatprep.subr.bf16.mxu0 0
      %9702 = vmatpush1.bf16.msra.mxu0 0
      %9703 = vmatprep.subr.bf16.mxu0 0
      %9704 = vmatpush1.bf16.msra.mxu0 0
      %9705 = vmatprep.subr.bf16.mxu0 0
      %9706 = vmatpush1.bf16.msra.mxu0 0
      %9707 = vmatprep.subr.bf16.mxu0 0
      %9708 = vmatpush1.bf16.msra.mxu0 0
      %9709 = vmatprep.subr.bf16.mxu0 0
      %9710 = vmatpush1.bf16.msra.mxu0 0
      %9711 = vmatprep.subr.bf16.mxu0 0
      %9712 = vmatpush1.bf16.msra.mxu0 0
      %9713 = vmatprep.subr.bf16.mxu0 0
      %9714 = vmatpush1.bf16.msra.mxu0 0
      %9715 = vmatprep.subr.bf16.mxu0 0
      %9716 = vmatpush1.bf16.msra.mxu0 0
      %9717 = vmatprep.subr.bf16.mxu0 0
      %9718 = vmatpush1.bf16.msra.mxu0 0
      %9719 = vmatprep.subr.bf16.mxu0 0
      %9720 = vmatpush1.bf16.msra.mxu0 0
      %9721 = vmatprep.subr.bf16.mxu0 0
      %9722 = vmatpush1.bf16.msra.mxu0 0
      %9723 = vmatprep.subr.bf16.mxu0 0
      %9724 = vmatpush1.bf16.msra.mxu0 0
      %9725 = vmatprep.subr.bf16.mxu0 0
      %9726 = vmatpush1.bf16.msra.mxu0 0
      %9727 = vmatprep.subr.bf16.mxu0 0
      %9728 = vmatpush1.bf16.msra.mxu0 0
      %9729 = vmatprep.mubr.bf16.mxu0 0
      %9730 = vmatmul.mubr.bf16.gmra.mrb[0].mxu0 %v9695
      %v9731 = vpop.f32.mrb[0].mxu0
      %v9732 = vadd.f32 0.0, %v9731
      %v9733 = vpop.f32.mrb[0].mxu0
      %v9734 = vpop.f32.mrb[0].mxu0
      %v9735 = vadd.f32 0.0, %v9734
      %v9736 = vpop.f32.mrb[0].mxu0
      %9737 = vdwg.mxu0
      %9738 = vrot.lane.b32.xlu0 %v1957, 108
      %v9739 = vpop.permute.xlu0 %9738
      %v9742 = vsel %vm1364, %v9078, 0
      %9744 = vmatprep.subr.bf16.mxu0 0
      %9745 = vmatpush1.bf16.msra.mxu0 %v9739
      %9746 = vmatprep.subr.bf16.mxu0 0
      %9747 = vmatpush1.bf16.msra.mxu0 0
      %9748 = vmatprep.subr.bf16.mxu0 0
      %9749 = vmatpush1.bf16.msra.mxu0 0
      %9750 = vmatprep.subr.bf16.mxu0 0
      %9751 = vmatpush1.bf16.msra.mxu0 0
      %9752 = vmatprep.subr.bf16.mxu0 0
      %9753 = vmatpush1.bf16.msra.mxu0 0
      %9754 = vmatprep.subr.bf16.mxu0 0
      %9755 = vmatpush1.bf16.msra.mxu0 0
      %9756 = vmatprep.subr.bf16.mxu0 0
      %9757 = vmatpush1.bf16.msra.mxu0 0
      %9758 = vmatprep.subr.bf16.mxu0 0
      %9759 = vmatpush1.bf16.msra.mxu0 0
      %9760 = vmatprep.subr.bf16.mxu0 0
      %9761 = vmatpush1.bf16.msra.mxu0 0
      %9762 = vmatprep.subr.bf16.mxu0 0
      %9763 = vmatpush1.bf16.msra.mxu0 0
      %9764 = vmatprep.subr.bf16.mxu0 0
      %9765 = vmatpush1.bf16.msra.mxu0 0
      %9766 = vmatprep.subr.bf16.mxu0 0
      %9767 = vmatpush1.bf16.msra.mxu0 0
      %9768 = vmatprep.subr.bf16.mxu0 0
      %9769 = vmatpush1.bf16.msra.mxu0 0
      %9770 = vmatprep.subr.bf16.mxu0 0
      %9771 = vmatpush1.bf16.msra.mxu0 0
      %9772 = vmatprep.subr.bf16.mxu0 0
      %9773 = vmatpush1.bf16.msra.mxu0 0
      %9774 = vmatprep.subr.bf16.mxu0 0
      %9775 = vmatpush1.bf16.msra.mxu0 0
      %9776 = vmatprep.mubr.bf16.mxu0 0
      %9777 = vmatmul.mubr.bf16.gmra.mrb[0].mxu0 %v9742
      %v9778 = vpop.f32.mrb[0].mxu0
      %v9779 = vadd.f32 0.0, %v9778
      %v9780 = vpop.f32.mrb[0].mxu0
      %v9781 = vpop.f32.mrb[0].mxu0
      %v9782 = vadd.f32 0.0, %v9781
      %v9783 = vpop.f32.mrb[0].mxu0
      %9784 = vdwg.mxu0
      %9785 = vrot.lane.b32.xlu0 %v1958, 108
      %v9786 = vpop.permute.xlu0 %9785
      %v9789 = vsel %vm1364, %v9079, 0
      %9791 = vmatprep.subr.bf16.mxu0 0
      %9792 = vmatpush1.bf16.msra.mxu0 %v9786
      %9793 = vmatprep.subr.bf16.mxu0 0
      %9794 = vmatpush1.bf16.msra.mxu0 0
      %9795 = vmatprep.subr.bf16.mxu0 0
      %9796 = vmatpush1.bf16.msra.mxu0 0
      %9797 = vmatprep.subr.bf16.mxu0 0
      %9798 = vmatpush1.bf16.msra.mxu0 0
      %9799 = vmatprep.subr.bf16.mxu0 0
      %9800 = vmatpush1.bf16.msra.mxu0 0
      %9801 = vmatprep.subr.bf16.mxu0 0
      %9802 = vmatpush1.bf16.msra.mxu0 0
      %9803 = vmatprep.subr.bf16.mxu0 0
      %9804 = vmatpush1.bf16.msra.mxu0 0
      %9805 = vmatprep.subr.bf16.mxu0 0
      %9806 = vmatpush1.bf16.msra.mxu0 0
      %9807 = vmatprep.subr.bf16.mxu0 0
      %9808 = vmatpush1.bf16.msra.mxu0 0
      %9809 = vmatprep.subr.bf16.mxu0 0
      %9810 = vmatpush1.bf16.msra.mxu0 0
      %9811 = vmatprep.subr.bf16.mxu0 0
      %9812 = vmatpush1.bf16.msra.mxu0 0
      %9813 = vmatprep.subr.bf16.mxu0 0
      %9814 = vmatpush1.bf16.msra.mxu0 0
      %9815 = vmatprep.subr.bf16.mxu0 0
      %9816 = vmatpush1.bf16.msra.mxu0 0
      %9817 = vmatprep.subr.bf16.mxu0 0
      %9818 = vmatpush1.bf16.msra.mxu0 0
      %9819 = vmatprep.subr.bf16.mxu0 0
      %9820 = vmatpush1.bf16.msra.mxu0 0
      %9821 = vmatprep.subr.bf16.mxu0 0
      %9822 = vmatpush1.bf16.msra.mxu0 0
      %9823 = vmatprep.mubr.bf16.mxu0 0
      %9824 = vmatmul.mubr.bf16.gmra.mrb[0].mxu0 %v9789
      %v9825 = vpop.f32.mrb[0].mxu0
      %v9826 = vadd.f32 0.0, %v9825
      %v9827 = vpop.f32.mrb[0].mxu0
      %v9828 = vpop.f32.mrb[0].mxu0
      %v9829 = vadd.f32 0.0, %v9828
      %v9830 = vpop.f32.mrb[0].mxu0
      %9831 = vdwg.mxu0
      %9864 = vrot.lane.b32.xlu0 %v9121, 4
      %v9865 = vpop.permute.xlu0 %9864
      %9866 = vrot.lane.b32.xlu0 %v9124, 4
      %v9867 = vpop.permute.xlu0 %9866
      %9868 = vrot.lane.b32.xlu0 %v9168, 4
      %v9869 = vpop.permute.xlu0 %9868
      %9870 = vrot.lane.b32.xlu0 %v9171, 4
      %v9871 = vpop.permute.xlu0 %9870
      %9872 = vrot.lane.b32.xlu0 %v9215, 4
      %v9873 = vpop.permute.xlu0 %9872
      %9874 = vrot.lane.b32.xlu0 %v9218, 4
      %v9875 = vpop.permute.xlu0 %9874
      %9876 = vrot.lane.b32.xlu0 %v9262, 4
      %v9877 = vpop.permute.xlu0 %9876
      %9878 = vrot.lane.b32.xlu0 %v9265, 4
      %v9879 = vpop.permute.xlu0 %9878
      %9880 = vrot.lane.b32.xlu0 %v9309, 4
      %v9881 = vpop.permute.xlu0 %9880
      %9882 = vrot.lane.b32.xlu0 %v9312, 4
      %v9883 = vpop.permute.xlu0 %9882
      %9884 = vrot.lane.b32.xlu0 %v9356, 4
      %v9885 = vpop.permute.xlu0 %9884
      %9886 = vrot.lane.b32.xlu0 %v9359, 4
      %v9887 = vpop.permute.xlu0 %9886
      %9888 = vrot.lane.b32.xlu0 %v9403, 4
      %v9889 = vpop.permute.xlu0 %9888
      %9890 = vrot.lane.b32.xlu0 %v9406, 4
      %v9891 = vpop.permute.xlu0 %9890
      %9892 = vrot.lane.b32.xlu0 %v9450, 4
      %v9893 = vpop.permute.xlu0 %9892
      %9894 = vrot.lane.b32.xlu0 %v9453, 4
      %v9895 = vpop.permute.xlu0 %9894
      %9896 = vrot.lane.b32.xlu0 %v9497, 4
      %v9897 = vpop.permute.xlu0 %9896
      %9898 = vrot.lane.b32.xlu0 %v9500, 4
      %v9899 = vpop.permute.xlu0 %9898
      %9900 = vrot.lane.b32.xlu0 %v9544, 4
      %v9901 = vpop.permute.xlu0 %9900
      %9902 = vrot.lane.b32.xlu0 %v9547, 4
      %v9903 = vpop.permute.xlu0 %9902
      %9904 = vrot.lane.b32.xlu0 %v9591, 4
      %v9905 = vpop.permute.xlu0 %9904
      %9906 = vrot.lane.b32.xlu0 %v9594, 4
      %v9907 = vpop.permute.xlu0 %9906
      %9908 = vrot.lane.b32.xlu0 %v9638, 4
      %v9909 = vpop.permute.xlu0 %9908
      %9910 = vrot.lane.b32.xlu0 %v9641, 4
      %v9911 = vpop.permute.xlu0 %9910
      %9912 = vrot.lane.b32.xlu0 %v9685, 4
      %v9913 = vpop.permute.xlu0 %9912
      %9914 = vrot.lane.b32.xlu0 %v9688, 4
      %v9915 = vpop.permute.xlu0 %9914
      %9916 = vrot.lane.b32.xlu0 %v9732, 4
      %v9917 = vpop.permute.xlu0 %9916
      %9918 = vrot.lane.b32.xlu0 %v9735, 4
      %v9919 = vpop.permute.xlu0 %9918
      %9920 = vrot.lane.b32.xlu0 %v9779, 4
      %v9921 = vpop.permute.xlu0 %9920
      %9922 = vrot.lane.b32.xlu0 %v9782, 4
      %v9923 = vpop.permute.xlu0 %9922
      %9924 = vrot.lane.b32.xlu0 %v9826, 4
      %v9925 = vpop.permute.xlu0 %9924
      %9926 = vrot.lane.b32.xlu0 %v9829, 4
      %v9927 = vpop.permute.xlu0 %9926
      %v9960 = vsel %vm1962, %v7185, %v9865
      %v9961 = vsel %vm1962, %v7188, %v9867
      %v9962 = vsel %vm1962, %v7232, %v9869
      %v9963 = vsel %vm1962, %v7235, %v9871
      %v9964 = vsel %vm1962, %v7279, %v9873
      %v9965 = vsel %vm1962, %v7282, %v9875
      %v9966 = vsel %vm1962, %v7326, %v9877
      %v9967 = vsel %vm1962, %v7329, %v9879
      %v9968 = vsel %vm1962, %v7373, %v9881
      %v9969 = vsel %vm1962, %v7376, %v9883
      %v9970 = vsel %vm1962, %v7420, %v9885
      %v9971 = vsel %vm1962, %v7423, %v9887
      %v9972 = vsel %vm1962, %v7467, %v9889
      %v9973 = vsel %vm1962, %v7470, %v9891
      %v9974 = vsel %vm1962, %v7514, %v9893
      %v9975 = vsel %vm1962, %v7517, %v9895
      %v9976 = vsel %vm1962, %v7561, %v9897
      %v9977 = vsel %vm1962, %v7564, %v9899
      %v9978 = vsel %vm1962, %v7608, %v9901
      %v9979 = vsel %vm1962, %v7611, %v9903
      %v9980 = vsel %vm1962, %v7655, %v9905
      %v9981 = vsel %vm1962, %v7658, %v9907
      %v9982 = vsel %vm1962, %v7702, %v9909
      %v9983 = vsel %vm1962, %v7705, %v9911
      %v9984 = vsel %vm1962, %v7749, %v9913
      %v9985 = vsel %vm1962, %v7752, %v9915
      %v9986 = vsel %vm1962, %v7796, %v9917
      %v9987 = vsel %vm1962, %v7799, %v9919
      %v9988 = vsel %vm1962, %v7843, %v9921
      %v9989 = vsel %vm1962, %v7846, %v9923
      %v9990 = vsel %vm1962, %v7890, %v9925
      %v9991 = vsel %vm1962, %v7893, %v9927
      %9992 = vxpose.xlu0.b32.start [1/16] %v9960, 128
      %9993 = vxpose.xlu0.b32.cont [2/16] %v9961, 128
      %9994 = vxpose.xlu0.b32.cont [3/16] 0.0, 128
      %9995 = vxpose.xlu0.b32.cont [4/16] 0.0, 128
      %9996 = vxpose.xlu0.b32.cont [5/16] 0.0, 128
      %9997 = vxpose.xlu0.b32.cont [6/16] 0.0, 128
      %9998 = vxpose.xlu0.b32.cont [7/16] 0.0, 128
      %9999 = vxpose.xlu0.b32.cont [8/16] 0.0, 128
      %10000 = vxpose.xlu0.b32.cont [9/16] 0.0, 128
      %10001 = vxpose.xlu0.b32.cont [10/16] 0.0, 128
      %10002 = vxpose.xlu0.b32.cont [11/16] 0.0, 128
      %10003 = vxpose.xlu0.b32.cont [12/16] 0.0, 128
      %10004 = vxpose.xlu0.b32.cont [13/16] 0.0, 128
      %10005 = vxpose.xlu0.b32.cont [14/16] 0.0, 128
      %10006 = vxpose.xlu0.b32.cont [15/16] 0.0, 128
      %10007 = vxpose.xlu0.b32.end [16/16] 0.0, 128
      %v10008 = vpop.trf.xlu0
      %v10009 = vpop.trf.xlu0
      %v10010 = vpop.trf.xlu0
      %v10011 = vpop.trf.xlu0
      %v10012 = vpop.trf.xlu0
      %v10013 = vpop.trf.xlu0
      %v10014 = vpop.trf.xlu0
      %v10015 = vpop.trf.xlu0
      %v10016 = vpop.trf.xlu0
      %v10017 = vpop.trf.xlu0
      %v10018 = vpop.trf.xlu0
      %v10019 = vpop.trf.xlu0
      %v10020 = vpop.trf.xlu0
      %v10021 = vpop.trf.xlu0
      %v10022 = vpop.trf.xlu0
      %v10023 = vpop.trf.xlu0
      %10024 = vxpose.xlu0.b32.start [1/16] %v9962, 128
      %10025 = vxpose.xlu0.b32.cont [2/16] %v9963, 128
      %10026 = vxpose.xlu0.b32.cont [3/16] 0.0, 128
      %10027 = vxpose.xlu0.b32.cont [4/16] 0.0, 128
      %10028 = vxpose.xlu0.b32.cont [5/16] 0.0, 128
      %10029 = vxpose.xlu0.b32.cont [6/16] 0.0, 128
      %10030 = vxpose.xlu0.b32.cont [7/16] 0.0, 128
      %10031 = vxpose.xlu0.b32.cont [8/16] 0.0, 128
      %10032 = vxpose.xlu0.b32.cont [9/16] 0.0, 128
      %10033 = vxpose.xlu0.b32.cont [10/16] 0.0, 128
      %10034 = vxpose.xlu0.b32.cont [11/16] 0.0, 128
      %10035 = vxpose.xlu0.b32.cont [12/16] 0.0, 128
      %10036 = vxpose.xlu0.b32.cont [13/16] 0.0, 128
      %10037 = vxpose.xlu0.b32.cont [14/16] 0.0, 128
      %10038 = vxpose.xlu0.b32.cont [15/16] 0.0, 128
      %10039 = vxpose.xlu0.b32.end [16/16] 0.0, 128
      %v10040 = vpop.trf.xlu0
      %v10041 = vpop.trf.xlu0
      %v10042 = vpop.trf.xlu0
      %v10043 = vpop.trf.xlu0
      %v10044 = vpop.trf.xlu0
      %v10045 = vpop.trf.xlu0
      %v10046 = vpop.trf.xlu0
      %v10047 = vpop.trf.xlu0
      %v10048 = vpop.trf.xlu0
      %v10049 = vpop.trf.xlu0
      %v10050 = vpop.trf.xlu0
      %v10051 = vpop.trf.xlu0
      %v10052 = vpop.trf.xlu0
      %v10053 = vpop.trf.xlu0
      %v10054 = vpop.trf.xlu0
      %v10055 = vpop.trf.xlu0
      %10056 = vxpose.xlu0.b32.start [1/16] %v9964, 128
      %10057 = vxpose.xlu0.b32.cont [2/16] %v9965, 128
      %10058 = vxpose.xlu0.b32.cont [3/16] 0.0, 128
      %10059 = vxpose.xlu0.b32.cont [4/16] 0.0, 128
      %10060 = vxpose.xlu0.b32.cont [5/16] 0.0, 128
      %10061 = vxpose.xlu0.b32.cont [6/16] 0.0, 128
      %10062 = vxpose.xlu0.b32.cont [7/16] 0.0, 128
      %10063 = vxpose.xlu0.b32.cont [8/16] 0.0, 128
      %10064 = vxpose.xlu0.b32.cont [9/16] 0.0, 128
      %10065 = vxpose.xlu0.b32.cont [10/16] 0.0, 128
      %10066 = vxpose.xlu0.b32.cont [11/16] 0.0, 128
      %10067 = vxpose.xlu0.b32.cont [12/16] 0.0, 128
      %10068 = vxpose.xlu0.b32.cont [13/16] 0.0, 128
      %10069 = vxpose.xlu0.b32.cont [14/16] 0.0, 128
      %10070 = vxpose.xlu0.b32.cont [15/16] 0.0, 128
      %10071 = vxpose.xlu0.b32.end [16/16] 0.0, 128
      %v10072 = vpop.trf.xlu0
      %v10073 = vpop.trf.xlu0
      %v10074 = vpop.trf.xlu0
      %v10075 = vpop.trf.xlu0
      %v10076 = vpop.trf.xlu0
      %v10077 = vpop.trf.xlu0
      %v10078 = vpop.trf.xlu0
      %v10079 = vpop.trf.xlu0
      %v10080 = vpop.trf.xlu0
      %v10081 = vpop.trf.xlu0
      %v10082 = vpop.trf.xlu0
      %v10083 = vpop.trf.xlu0
      %v10084 = vpop.trf.xlu0
      %v10085 = vpop.trf.xlu0
      %v10086 = vpop.trf.xlu0
      %v10087 = vpop.trf.xlu0
      %10088 = vxpose.xlu0.b32.start [1/16] %v9966, 128
      %10089 = vxpose.xlu0.b32.cont [2/16] %v9967, 128
      %10090 = vxpose.xlu0.b32.cont [3/16] 0.0, 128
      %10091 = vxpose.xlu0.b32.cont [4/16] 0.0, 128
      %10092 = vxpose.xlu0.b32.cont [5/16] 0.0, 128
      %10093 = vxpose.xlu0.b32.cont [6/16] 0.0, 128
      %10094 = vxpose.xlu0.b32.cont [7/16] 0.0, 128
      %10095 = vxpose.xlu0.b32.cont [8/16] 0.0, 128
      %10096 = vxpose.xlu0.b32.cont [9/16] 0.0, 128
      %10097 = vxpose.xlu0.b32.cont [10/16] 0.0, 128
      %10098 = vxpose.xlu0.b32.cont [11/16] 0.0, 128
      %10099 = vxpose.xlu0.b32.cont [12/16] 0.0, 128
      %10100 = vxpose.xlu0.b32.cont [13/16] 0.0, 128
      %10101 = vxpose.xlu0.b32.cont [14/16] 0.0, 128
      %10102 = vxpose.xlu0.b32.cont [15/16] 0.0, 128
      %10103 = vxpose.xlu0.b32.end [16/16] 0.0, 128
      %v10104 = vpop.trf.xlu0
      %v10105 = vpop.trf.xlu0
      %v10106 = vpop.trf.xlu0
      %v10107 = vpop.trf.xlu0
      %v10108 = vpop.trf.xlu0
      %v10109 = vpop.trf.xlu0
      %v10110 = vpop.trf.xlu0
      %v10111 = vpop.trf.xlu0
      %v10112 = vpop.trf.xlu0
      %v10113 = vpop.trf.xlu0
      %v10114 = vpop.trf.xlu0
      %v10115 = vpop.trf.xlu0
      %v10116 = vpop.trf.xlu0
      %v10117 = vpop.trf.xlu0
      %v10118 = vpop.trf.xlu0
      %v10119 = vpop.trf.xlu0
      %10120 = vxpose.xlu0.b32.start [1/16] %v9968, 128
      %10121 = vxpose.xlu0.b32.cont [2/16] %v9969, 128
      %10122 = vxpose.xlu0.b32.cont [3/16] 0.0, 128
      %10123 = vxpose.xlu0.b32.cont [4/16] 0.0, 128
      %10124 = vxpose.xlu0.b32.cont [5/16] 0.0, 128
      %10125 = vxpose.xlu0.b32.cont [6/16] 0.0, 128
      %10126 = vxpose.xlu0.b32.cont [7/16] 0.0, 128
      %10127 = vxpose.xlu0.b32.cont [8/16] 0.0, 128
      %10128 = vxpose.xlu0.b32.cont [9/16] 0.0, 128
      %10129 = vxpose.xlu0.b32.cont [10/16] 0.0, 128
      %10130 = vxpose.xlu0.b32.cont [11/16] 0.0, 128
      %10131 = vxpose.xlu0.b32.cont [12/16] 0.0, 128
      %10132 = vxpose.xlu0.b32.cont [13/16] 0.0, 128
      %10133 = vxpose.xlu0.b32.cont [14/16] 0.0, 128
      %10134 = vxpose.xlu0.b32.cont [15/16] 0.0, 128
      %10135 = vxpose.xlu0.b32.end [16/16] 0.0, 128
      %v10136 = vpop.trf.xlu0
      %v10137 = vpop.trf.xlu0
      %v10138 = vpop.trf.xlu0
      %v10139 = vpop.trf.xlu0
      %v10140 = vpop.trf.xlu0
      %v10141 = vpop.trf.xlu0
      %v10142 = vpop.trf.xlu0
      %v10143 = vpop.trf.xlu0
      %v10144 = vpop.trf.xlu0
      %v10145 = vpop.trf.xlu0
      %v10146 = vpop.trf.xlu0
      %v10147 = vpop.trf.xlu0
      %v10148 = vpop.trf.xlu0
      %v10149 = vpop.trf.xlu0
      %v10150 = vpop.trf.xlu0
      %v10151 = vpop.trf.xlu0
      %10152 = vxpose.xlu0.b32.start [1/16] %v9970, 128
      %10153 = vxpose.xlu0.b32.cont [2/16] %v9971, 128
      %10154 = vxpose.xlu0.b32.cont [3/16] 0.0, 128
      %10155 = vxpose.xlu0.b32.cont [4/16] 0.0, 128
      %10156 = vxpose.xlu0.b32.cont [5/16] 0.0, 128
      %10157 = vxpose.xlu0.b32.cont [6/16] 0.0, 128
      %10158 = vxpose.xlu0.b32.cont [7/16] 0.0, 128
      %10159 = vxpose.xlu0.b32.cont [8/16] 0.0, 128
      %10160 = vxpose.xlu0.b32.cont [9/16] 0.0, 128
      %10161 = vxpose.xlu0.b32.cont [10/16] 0.0, 128
      %10162 = vxpose.xlu0.b32.cont [11/16] 0.0, 128
      %10163 = vxpose.xlu0.b32.cont [12/16] 0.0, 128
      %10164 = vxpose.xlu0.b32.cont [13/16] 0.0, 128
      %10165 = vxpose.xlu0.b32.cont [14/16] 0.0, 128
      %10166 = vxpose.xlu0.b32.cont [15/16] 0.0, 128
      %10167 = vxpose.xlu0.b32.end [16/16] 0.0, 128
      %v10168 = vpop.trf.xlu0
      %v10169 = vpop.trf.xlu0
      %v10170 = vpop.trf.xlu0
      %v10171 = vpop.trf.xlu0
      %v10172 = vpop.trf.xlu0
      %v10173 = vpop.trf.xlu0
      %v10174 = vpop.trf.xlu0
      %v10175 = vpop.trf.xlu0
      %v10176 = vpop.trf.xlu0
      %v10177 = vpop.trf.xlu0
      %v10178 = vpop.trf.xlu0
      %v10179 = vpop.trf.xlu0
      %v10180 = vpop.trf.xlu0
      %v10181 = vpop.trf.xlu0
      %v10182 = vpop.trf.xlu0
      %v10183 = vpop.trf.xlu0
      %10184 = vxpose.xlu0.b32.start [1/16] %v9972, 128
      %10185 = vxpose.xlu0.b32.cont [2/16] %v9973, 128
      %10186 = vxpose.xlu0.b32.cont [3/16] 0.0, 128
      %10187 = vxpose.xlu0.b32.cont [4/16] 0.0, 128
      %10188 = vxpose.xlu0.b32.cont [5/16] 0.0, 128
      %10189 = vxpose.xlu0.b32.cont [6/16] 0.0, 128
      %10190 = vxpose.xlu0.b32.cont [7/16] 0.0, 128
      %10191 = vxpose.xlu0.b32.cont [8/16] 0.0, 128
      %10192 = vxpose.xlu0.b32.cont [9/16] 0.0, 128
      %10193 = vxpose.xlu0.b32.cont [10/16] 0.0, 128
      %10194 = vxpose.xlu0.b32.cont [11/16] 0.0, 128
      %10195 = vxpose.xlu0.b32.cont [12/16] 0.0, 128
      %10196 = vxpose.xlu0.b32.cont [13/16] 0.0, 128
      %10197 = vxpose.xlu0.b32.cont [14/16] 0.0, 128
      %10198 = vxpose.xlu0.b32.cont [15/16] 0.0, 128
      %10199 = vxpose.xlu0.b32.end [16/16] 0.0, 128
      %v10200 = vpop.trf.xlu0
      %v10201 = vpop.trf.xlu0
      %v10202 = vpop.trf.xlu0
      %v10203 = vpop.trf.xlu0
      %v10204 = vpop.trf.xlu0
      %v10205 = vpop.trf.xlu0
      %v10206 = vpop.trf.xlu0
      %v10207 = vpop.trf.xlu0
      %v10208 = vpop.trf.xlu0
      %v10209 = vpop.trf.xlu0
      %v10210 = vpop.trf.xlu0
      %v10211 = vpop.trf.xlu0
      %v10212 = vpop.trf.xlu0
      %v10213 = vpop.trf.xlu0
      %v10214 = vpop.trf.xlu0
      %v10215 = vpop.trf.xlu0
      %10216 = vxpose.xlu0.b32.start [1/16] %v9974, 128
      %10217 = vxpose.xlu0.b32.cont [2/16] %v9975, 128
      %10218 = vxpose.xlu0.b32.cont [3/16] 0.0, 128
      %10219 = vxpose.xlu0.b32.cont [4/16] 0.0, 128
      %10220 = vxpose.xlu0.b32.cont [5/16] 0.0, 128
      %10221 = vxpose.xlu0.b32.cont [6/16] 0.0, 128
      %10222 = vxpose.xlu0.b32.cont [7/16] 0.0, 128
      %10223 = vxpose.xlu0.b32.cont [8/16] 0.0, 128
      %10224 = vxpose.xlu0.b32.cont [9/16] 0.0, 128
      %10225 = vxpose.xlu0.b32.cont [10/16] 0.0, 128
      %10226 = vxpose.xlu0.b32.cont [11/16] 0.0, 128
      %10227 = vxpose.xlu0.b32.cont [12/16] 0.0, 128
      %10228 = vxpose.xlu0.b32.cont [13/16] 0.0, 128
      %10229 = vxpose.xlu0.b32.cont [14/16] 0.0, 128
      %10230 = vxpose.xlu0.b32.cont [15/16] 0.0, 128
      %10231 = vxpose.xlu0.b32.end [16/16] 0.0, 128
      %v10232 = vpop.trf.xlu0
      %v10233 = vpop.trf.xlu0
      %v10234 = vpop.trf.xlu0
      %v10235 = vpop.trf.xlu0
      %v10236 = vpop.trf.xlu0
      %v10237 = vpop.trf.xlu0
      %v10238 = vpop.trf.xlu0
      %v10239 = vpop.trf.xlu0
      %v10240 = vpop.trf.xlu0
      %v10241 = vpop.trf.xlu0
      %v10242 = vpop.trf.xlu0
      %v10243 = vpop.trf.xlu0
      %v10244 = vpop.trf.xlu0
      %v10245 = vpop.trf.xlu0
      %v10246 = vpop.trf.xlu0
      %v10247 = vpop.trf.xlu0
      %10248 = vxpose.xlu0.b32.start [1/16] %v9976, 128
      %10249 = vxpose.xlu0.b32.cont [2/16] %v9977, 128
      %10250 = vxpose.xlu0.b32.cont [3/16] 0.0, 128
      %10251 = vxpose.xlu0.b32.cont [4/16] 0.0, 128
      %10252 = vxpose.xlu0.b32.cont [5/16] 0.0, 128
      %10253 = vxpose.xlu0.b32.cont [6/16] 0.0, 128
      %10254 = vxpose.xlu0.b32.cont [7/16] 0.0, 128
      %10255 = vxpose.xlu0.b32.cont [8/16] 0.0, 128
      %10256 = vxpose.xlu0.b32.cont [9/16] 0.0, 128
      %10257 = vxpose.xlu0.b32.cont [10/16] 0.0, 128
      %10258 = vxpose.xlu0.b32.cont [11/16] 0.0, 128
      %10259 = vxpose.xlu0.b32.cont [12/16] 0.0, 128
      %10260 = vxpose.xlu0.b32.cont [13/16] 0.0, 128
      %10261 = vxpose.xlu0.b32.cont [14/16] 0.0, 128
      %10262 = vxpose.xlu0.b32.cont [15/16] 0.0, 128
      %10263 = vxpose.xlu0.b32.end [16/16] 0.0, 128
      %v10264 = vpop.trf.xlu0
      %v10265 = vpop.trf.xlu0
      %v10266 = vpop.trf.xlu0
      %v10267 = vpop.trf.xlu0
      %v10268 = vpop.trf.xlu0
      %v10269 = vpop.trf.xlu0
      %v10270 = vpop.trf.xlu0
      %v10271 = vpop.trf.xlu0
      %v10272 = vpop.trf.xlu0
      %v10273 = vpop.trf.xlu0
      %v10274 = vpop.trf.xlu0
      %v10275 = vpop.trf.xlu0
      %v10276 = vpop.trf.xlu0
      %v10277 = vpop.trf.xlu0
      %v10278 = vpop.trf.xlu0
      %v10279 = vpop.trf.xlu0
      %10280 = vxpose.xlu0.b32.start [1/16] %v9978, 128
      %10281 = vxpose.xlu0.b32.cont [2/16] %v9979, 128
      %10282 = vxpose.xlu0.b32.cont [3/16] 0.0, 128
      %10283 = vxpose.xlu0.b32.cont [4/16] 0.0, 128
      %10284 = vxpose.xlu0.b32.cont [5/16] 0.0, 128
      %10285 = vxpose.xlu0.b32.cont [6/16] 0.0, 128
      %10286 = vxpose.xlu0.b32.cont [7/16] 0.0, 128
      %10287 = vxpose.xlu0.b32.cont [8/16] 0.0, 128
      %10288 = vxpose.xlu0.b32.cont [9/16] 0.0, 128
      %10289 = vxpose.xlu0.b32.cont [10/16] 0.0, 128
      %10290 = vxpose.xlu0.b32.cont [11/16] 0.0, 128
      %10291 = vxpose.xlu0.b32.cont [12/16] 0.0, 128
      %10292 = vxpose.xlu0.b32.cont [13/16] 0.0, 128
      %10293 = vxpose.xlu0.b32.cont [14/16] 0.0, 128
      %10294 = vxpose.xlu0.b32.cont [15/16] 0.0, 128
      %10295 = vxpose.xlu0.b32.end [16/16] 0.0, 128
      %v10296 = vpop.trf.xlu0
      %v10297 = vpop.trf.xlu0
      %v10298 = vpop.trf.xlu0
      %v10299 = vpop.trf.xlu0
      %v10300 = vpop.trf.xlu0
      %v10301 = vpop.trf.xlu0
      %v10302 = vpop.trf.xlu0
      %v10303 = vpop.trf.xlu0
      %v10304 = vpop.trf.xlu0
      %v10305 = vpop.trf.xlu0
      %v10306 = vpop.trf.xlu0
      %v10307 = vpop.trf.xlu0
      %v10308 = vpop.trf.xlu0
      %v10309 = vpop.trf.xlu0
      %v10310 = vpop.trf.xlu0
      %v10311 = vpop.trf.xlu0
      %10312 = vxpose.xlu0.b32.start [1/16] %v9980, 128
      %10313 = vxpose.xlu0.b32.cont [2/16] %v9981, 128
      %10314 = vxpose.xlu0.b32.cont [3/16] 0.0, 128
      %10315 = vxpose.xlu0.b32.cont [4/16] 0.0, 128
      %10316 = vxpose.xlu0.b32.cont [5/16] 0.0, 128
      %10317 = vxpose.xlu0.b32.cont [6/16] 0.0, 128
      %10318 = vxpose.xlu0.b32.cont [7/16] 0.0, 128
      %10319 = vxpose.xlu0.b32.cont [8/16] 0.0, 128
      %10320 = vxpose.xlu0.b32.cont [9/16] 0.0, 128
      %10321 = vxpose.xlu0.b32.cont [10/16] 0.0, 128
      %10322 = vxpose.xlu0.b32.cont [11/16] 0.0, 128
      %10323 = vxpose.xlu0.b32.cont [12/16] 0.0, 128
      %10324 = vxpose.xlu0.b32.cont [13/16] 0.0, 128
      %10325 = vxpose.xlu0.b32.cont [14/16] 0.0, 128
      %10326 = vxpose.xlu0.b32.cont [15/16] 0.0, 128
      %10327 = vxpose.xlu0.b32.end [16/16] 0.0, 128
      %v10328 = vpop.trf.xlu0
      %v10329 = vpop.trf.xlu0
      %v10330 = vpop.trf.xlu0
      %v10331 = vpop.trf.xlu0
      %v10332 = vpop.trf.xlu0
      %v10333 = vpop.trf.xlu0
      %v10334 = vpop.trf.xlu0
      %v10335 = vpop.trf.xlu0
      %v10336 = vpop.trf.xlu0
      %v10337 = vpop.trf.xlu0
      %v10338 = vpop.trf.xlu0
      %v10339 = vpop.trf.xlu0
      %v10340 = vpop.trf.xlu0
      %v10341 = vpop.trf.xlu0
      %v10342 = vpop.trf.xlu0
      %v10343 = vpop.trf.xlu0
      %10344 = vxpose.xlu0.b32.start [1/16] %v9982, 128
      %10345 = vxpose.xlu0.b32.cont [2/16] %v9983, 128
      %10346 = vxpose.xlu0.b32.cont [3/16] 0.0, 128
      %10347 = vxpose.xlu0.b32.cont [4/16] 0.0, 128
      %10348 = vxpose.xlu0.b32.cont [5/16] 0.0, 128
      %10349 = vxpose.xlu0.b32.cont [6/16] 0.0, 128
      %10350 = vxpose.xlu0.b32.cont [7/16] 0.0, 128
      %10351 = vxpose.xlu0.b32.cont [8/16] 0.0, 128
      %10352 = vxpose.xlu0.b32.cont [9/16] 0.0, 128
      %10353 = vxpose.xlu0.b32.cont [10/16] 0.0, 128
      %10354 = vxpose.xlu0.b32.cont [11/16] 0.0, 128
      %10355 = vxpose.xlu0.b32.cont [12/16] 0.0, 128
      %10356 = vxpose.xlu0.b32.cont [13/16] 0.0, 128
      %10357 = vxpose.xlu0.b32.cont [14/16] 0.0, 128
      %10358 = vxpose.xlu0.b32.cont [15/16] 0.0, 128
      %10359 = vxpose.xlu0.b32.end [16/16] 0.0, 128
      %v10360 = vpop.trf.xlu0
      %v10361 = vpop.trf.xlu0
      %v10362 = vpop.trf.xlu0
      %v10363 = vpop.trf.xlu0
      %v10364 = vpop.trf.xlu0
      %v10365 = vpop.trf.xlu0
      %v10366 = vpop.trf.xlu0
      %v10367 = vpop.trf.xlu0
      %v10368 = vpop.trf.xlu0
      %v10369 = vpop.trf.xlu0
      %v10370 = vpop.trf.xlu0
      %v10371 = vpop.trf.xlu0
      %v10372 = vpop.trf.xlu0
      %v10373 = vpop.trf.xlu0
      %v10374 = vpop.trf.xlu0
      %v10375 = vpop.trf.xlu0
      %10376 = vxpose.xlu0.b32.start [1/16] %v9984, 128
      %10377 = vxpose.xlu0.b32.cont [2/16] %v9985, 128
      %10378 = vxpose.xlu0.b32.cont [3/16] 0.0, 128
      %10379 = vxpose.xlu0.b32.cont [4/16] 0.0, 128
      %10380 = vxpose.xlu0.b32.cont [5/16] 0.0, 128
      %10381 = vxpose.xlu0.b32.cont [6/16] 0.0, 128
      %10382 = vxpose.xlu0.b32.cont [7/16] 0.0, 128
      %10383 = vxpose.xlu0.b32.cont [8/16] 0.0, 128
      %10384 = vxpose.xlu0.b32.cont [9/16] 0.0, 128
      %10385 = vxpose.xlu0.b32.cont [10/16] 0.0, 128
      %10386 = vxpose.xlu0.b32.cont [11/16] 0.0, 128
      %10387 = vxpose.xlu0.b32.cont [12/16] 0.0, 128
      %10388 = vxpose.xlu0.b32.cont [13/16] 0.0, 128
      %10389 = vxpose.xlu0.b32.cont [14/16] 0.0, 128
      %10390 = vxpose.xlu0.b32.cont [15/16] 0.0, 128
      %10391 = vxpose.xlu0.b32.end [16/16] 0.0, 128
      %v10392 = vpop.trf.xlu0
      %v10393 = vpop.trf.xlu0
      %v10394 = vpop.trf.xlu0
      %v10395 = vpop.trf.xlu0
      %v10396 = vpop.trf.xlu0
      %v10397 = vpop.trf.xlu0
      %v10398 = vpop.trf.xlu0
      %v10399 = vpop.trf.xlu0
      %v10400 = vpop.trf.xlu0
      %v10401 = vpop.trf.xlu0
      %v10402 = vpop.trf.xlu0
      %v10403 = vpop.trf.xlu0
      %v10404 = vpop.trf.xlu0
      %v10405 = vpop.trf.xlu0
      %v10406 = vpop.trf.xlu0
      %v10407 = vpop.trf.xlu0
      %10408 = vxpose.xlu0.b32.start [1/16] %v9986, 128
      %10409 = vxpose.xlu0.b32.cont [2/16] %v9987, 128
      %10410 = vxpose.xlu0.b32.cont [3/16] 0.0, 128
      %10411 = vxpose.xlu0.b32.cont [4/16] 0.0, 128
      %10412 = vxpose.xlu0.b32.cont [5/16] 0.0, 128
      %10413 = vxpose.xlu0.b32.cont [6/16] 0.0, 128
      %10414 = vxpose.xlu0.b32.cont [7/16] 0.0, 128
      %10415 = vxpose.xlu0.b32.cont [8/16] 0.0, 128
      %10416 = vxpose.xlu0.b32.cont [9/16] 0.0, 128
      %10417 = vxpose.xlu0.b32.cont [10/16] 0.0, 128
      %10418 = vxpose.xlu0.b32.cont [11/16] 0.0, 128
      %10419 = vxpose.xlu0.b32.cont [12/16] 0.0, 128
      %10420 = vxpose.xlu0.b32.cont [13/16] 0.0, 128
      %10421 = vxpose.xlu0.b32.cont [14/16] 0.0, 128
      %10422 = vxpose.xlu0.b32.cont [15/16] 0.0, 128
      %10423 = vxpose.xlu0.b32.end [16/16] 0.0, 128
      %v10424 = vpop.trf.xlu0
      %v10425 = vpop.trf.xlu0
      %v10426 = vpop.trf.xlu0
      %v10427 = vpop.trf.xlu0
      %v10428 = vpop.trf.xlu0
      %v10429 = vpop.trf.xlu0
      %v10430 = vpop.trf.xlu0
      %v10431 = vpop.trf.xlu0
      %v10432 = vpop.trf.xlu0
      %v10433 = vpop.trf.xlu0
      %v10434 = vpop.trf.xlu0
      %v10435 = vpop.trf.xlu0
      %v10436 = vpop.trf.xlu0
      %v10437 = vpop.trf.xlu0
      %v10438 = vpop.trf.xlu0
      %v10439 = vpop.trf.xlu0
      %10440 = vxpose.xlu0.b32.start [1/16] %v9988, 128
      %10441 = vxpose.xlu0.b32.cont [2/16] %v9989, 128
      %10442 = vxpose.xlu0.b32.cont [3/16] 0.0, 128
      %10443 = vxpose.xlu0.b32.cont [4/16] 0.0, 128
      %10444 = vxpose.xlu0.b32.cont [5/16] 0.0, 128
      %10445 = vxpose.xlu0.b32.cont [6/16] 0.0, 128
      %10446 = vxpose.xlu0.b32.cont [7/16] 0.0, 128
      %10447 = vxpose.xlu0.b32.cont [8/16] 0.0, 128
      %10448 = vxpose.xlu0.b32.cont [9/16] 0.0, 128
      %10449 = vxpose.xlu0.b32.cont [10/16] 0.0, 128
      %10450 = vxpose.xlu0.b32.cont [11/16] 0.0, 128
      %10451 = vxpose.xlu0.b32.cont [12/16] 0.0, 128
      %10452 = vxpose.xlu0.b32.cont [13/16] 0.0, 128
      %10453 = vxpose.xlu0.b32.cont [14/16] 0.0, 128
      %10454 = vxpose.xlu0.b32.cont [15/16] 0.0, 128
      %10455 = vxpose.xlu0.b32.end [16/16] 0.0, 128
      %v10456 = vpop.trf.xlu0
      %v10457 = vpop.trf.xlu0
      %v10458 = vpop.trf.xlu0
      %v10459 = vpop.trf.xlu0
      %v10460 = vpop.trf.xlu0
      %v10461 = vpop.trf.xlu0
      %v10462 = vpop.trf.xlu0
      %v10463 = vpop.trf.xlu0
      %v10464 = vpop.trf.xlu0
      %v10465 = vpop.trf.xlu0
      %v10466 = vpop.trf.xlu0
      %v10467 = vpop.trf.xlu0
      %v10468 = vpop.trf.xlu0
      %v10469 = vpop.trf.xlu0
      %v10470 = vpop.trf.xlu0
      %v10471 = vpop.trf.xlu0
      %10472 = vxpose.xlu0.b32.start [1/16] %v9990, 128
      %10473 = vxpose.xlu0.b32.cont [2/16] %v9991, 128
      %10474 = vxpose.xlu0.b32.cont [3/16] 0.0, 128
      %10475 = vxpose.xlu0.b32.cont [4/16] 0.0, 128
      %10476 = vxpose.xlu0.b32.cont [5/16] 0.0, 128
      %10477 = vxpose.xlu0.b32.cont [6/16] 0.0, 128
      %10478 = vxpose.xlu0.b32.cont [7/16] 0.0, 128
      %10479 = vxpose.xlu0.b32.cont [8/16] 0.0, 128
      %10480 = vxpose.xlu0.b32.cont [9/16] 0.0, 128
      %10481 = vxpose.xlu0.b32.cont [10/16] 0.0, 128
      %10482 = vxpose.xlu0.b32.cont [11/16] 0.0, 128
      %10483 = vxpose.xlu0.b32.cont [12/16] 0.0, 128
      %10484 = vxpose.xlu0.b32.cont [13/16] 0.0, 128
      %10485 = vxpose.xlu0.b32.cont [14/16] 0.0, 128
      %10486 = vxpose.xlu0.b32.cont [15/16] 0.0, 128
      %10487 = vxpose.xlu0.b32.end [16/16] 0.0, 128
      %v10488 = vpop.trf.xlu0
      %v10489 = vpop.trf.xlu0
      %v10490 = vpop.trf.xlu0
      %v10491 = vpop.trf.xlu0
      %v10492 = vpop.trf.xlu0
      %v10493 = vpop.trf.xlu0
      %v10494 = vpop.trf.xlu0
      %v10495 = vpop.trf.xlu0
      %v10496 = vpop.trf.xlu0
      %v10497 = vpop.trf.xlu0
      %v10498 = vpop.trf.xlu0
      %v10499 = vpop.trf.xlu0
      %v10500 = vpop.trf.xlu0
      %v10501 = vpop.trf.xlu0
      %v10502 = vpop.trf.xlu0
      %v10503 = vpop.trf.xlu0
      %10504 = vxpose.xlu0.b32.start [1/16] %v10008, 128
      %10505 = vxpose.xlu0.b32.cont [2/16] %v10040, 128
      %10506 = vxpose.xlu0.b32.cont [3/16] %v10072, 128
      %10507 = vxpose.xlu0.b32.cont [4/16] %v10104, 128
      %10508 = vxpose.xlu0.b32.cont [5/16] %v10136, 128
      %10509 = vxpose.xlu0.b32.cont [6/16] %v10168, 128
      %10510 = vxpose.xlu0.b32.cont [7/16] %v10200, 128
      %10511 = vxpose.xlu0.b32.cont [8/16] %v10232, 128
      %10512 = vxpose.xlu0.b32.cont [9/16] %v10264, 128
      %10513 = vxpose.xlu0.b32.cont [10/16] %v10296, 128
      %10514 = vxpose.xlu0.b32.cont [11/16] %v10328, 128
      %10515 = vxpose.xlu0.b32.cont [12/16] %v10360, 128
      %10516 = vxpose.xlu0.b32.cont [13/16] %v10392, 128
      %10517 = vxpose.xlu0.b32.cont [14/16] %v10424, 128
      %10518 = vxpose.xlu0.b32.cont [15/16] %v10456, 128
      %10519 = vxpose.xlu0.b32.end [16/16] %v10488, 128
      %v10520 = vpop.trf.xlu0
      %v10521 = vpop.trf.xlu0
      %v10522 = vpop.trf.xlu0
      %v10523 = vpop.trf.xlu0
      %v10524 = vpop.trf.xlu0
      %v10525 = vpop.trf.xlu0
      %v10526 = vpop.trf.xlu0
      %v10527 = vpop.trf.xlu0
      %v10528 = vpop.trf.xlu0
      %v10529 = vpop.trf.xlu0
      %v10530 = vpop.trf.xlu0
      %v10531 = vpop.trf.xlu0
      %v10532 = vpop.trf.xlu0
      %v10533 = vpop.trf.xlu0
      %v10534 = vpop.trf.xlu0
      %v10535 = vpop.trf.xlu0
      %10538 = vrot.lane.b32.xlu0 %v10520, 120
      %v10539 = vpop.permute.xlu0 %10538
      %10540 = vrot.lane.b32.xlu0 %v10521, 120
      %v10541 = vpop.permute.xlu0 %10540
      %10544 = vrot.lane.b32.xlu0 %v10520, 112
      %v10545 = vpop.permute.xlu0 %10544
      %10546 = vrot.lane.b32.xlu0 %v10521, 112
      %v10547 = vpop.permute.xlu0 %10546
      %10550 = vrot.lane.b32.xlu0 %v10520, 104
      %v10551 = vpop.permute.xlu0 %10550
      %10552 = vrot.lane.b32.xlu0 %v10521, 104
      %v10553 = vpop.permute.xlu0 %10552
      %10556 = vrot.lane.b32.xlu0 %v10520, 96
      %v10557 = vpop.permute.xlu0 %10556
      %10558 = vrot.lane.b32.xlu0 %v10521, 96
      %v10559 = vpop.permute.xlu0 %10558
      %10562 = vrot.lane.b32.xlu0 %v10520, 88
      %v10563 = vpop.permute.xlu0 %10562
      %10564 = vrot.lane.b32.xlu0 %v10521, 88
      %v10565 = vpop.permute.xlu0 %10564
      %10568 = vrot.lane.b32.xlu0 %v10520, 80
      %v10569 = vpop.permute.xlu0 %10568
      %10570 = vrot.lane.b32.xlu0 %v10521, 80
      %v10571 = vpop.permute.xlu0 %10570
      %10574 = vrot.lane.b32.xlu0 %v10520, 72
      %v10575 = vpop.permute.xlu0 %10574
      %10576 = vrot.lane.b32.xlu0 %v10521, 72
      %v10577 = vpop.permute.xlu0 %10576
      %10580 = vrot.lane.b32.xlu0 %v10520, 64
      %v10581 = vpop.permute.xlu0 %10580
      %10582 = vrot.lane.b32.xlu0 %v10521, 64
      %v10583 = vpop.permute.xlu0 %10582
      %10586 = vrot.lane.b32.xlu0 %v10520, 56
      %v10587 = vpop.permute.xlu0 %10586
      %10588 = vrot.lane.b32.xlu0 %v10521, 56
      %v10589 = vpop.permute.xlu0 %10588
      %10592 = vrot.lane.b32.xlu0 %v10520, 48
      %v10593 = vpop.permute.xlu0 %10592
      %10594 = vrot.lane.b32.xlu0 %v10521, 48
      %v10595 = vpop.permute.xlu0 %10594
      %10598 = vrot.lane.b32.xlu0 %v10520, 40
      %v10599 = vpop.permute.xlu0 %10598
      %10600 = vrot.lane.b32.xlu0 %v10521, 40
      %v10601 = vpop.permute.xlu0 %10600
      %10604 = vrot.lane.b32.xlu0 %v10520, 32
      %v10605 = vpop.permute.xlu0 %10604
      %10606 = vrot.lane.b32.xlu0 %v10521, 32
      %v10607 = vpop.permute.xlu0 %10606
      %10610 = vrot.lane.b32.xlu0 %v10520, 24
      %v10611 = vpop.permute.xlu0 %10610
      %10612 = vrot.lane.b32.xlu0 %v10521, 24
      %v10613 = vpop.permute.xlu0 %10612
      %10616 = vrot.lane.b32.xlu0 %v10520, 16
      %v10617 = vpop.permute.xlu0 %10616
      %10618 = vrot.lane.b32.xlu0 %v10521, 16
      %v10619 = vpop.permute.xlu0 %10618
      %10622 = vrot.lane.b32.xlu0 %v10520, 8
      %v10623 = vpop.permute.xlu0 %10622
      %10624 = vrot.lane.b32.xlu0 %v10521, 8
      %v10625 = vpop.permute.xlu0 %10624
      %v10628 = vcombine.low %v10520, %v10545
      %v10629 = vcombine.high %v10520, %v10545
      %v10631 = vunpack.c.l.s4 1983009808
      %v10632 = vunpack.c.0.s8 %v10631
      %v10633 = vlaneseq
      %v10634 = vshrl.u32 %v10633, 7
      %v10635 = vsub.s32 %v10632, %v10634
      %v10636 = vrot.slane %v10628, %v10635
      %v10638 = vunpack.c.l.s4 1983009808
      %v10639 = vunpack.c.0.s8 %v10638
      %v10640 = vlaneseq
      %v10641 = vshrl.u32 %v10640, 7
      %v10642 = vsub.s32 %v10639, %v10641
      %v10643 = vrot.slane %v10629, %v10642
      %v10644 = vcombine.low %v10539, %v10551
      %v10645 = vcombine.high %v10539, %v10551
      %v10647 = vunpack.c.l.s4 1983009808
      %v10648 = vunpack.c.0.s8 %v10647
      %v10649 = vlaneseq
      %v10650 = vshrl.u32 %v10649, 7
      %v10651 = vsub.s32 %v10648, %v10650
      %v10652 = vrot.slane %v10644, %v10651
      %v10654 = vunpack.c.l.s4 1983009808
      %v10655 = vunpack.c.0.s8 %v10654
      %v10656 = vlaneseq
      %v10657 = vshrl.u32 %v10656, 7
      %v10658 = vsub.s32 %v10655, %v10657
      %v10659 = vrot.slane %v10645, %v10658
      %v10660 = vcombine.low %v10557, %v10569
      %v10661 = vcombine.high %v10557, %v10569
      %v10663 = vunpack.c.l.s4 1983009808
      %v10664 = vunpack.c.0.s8 %v10663
      %v10665 = vlaneseq
      %v10666 = vshrl.u32 %v10665, 7
      %v10667 = vsub.s32 %v10664, %v10666
      %v10668 = vrot.slane %v10660, %v10667
      %v10670 = vunpack.c.l.s4 1983009808
      %v10671 = vunpack.c.0.s8 %v10670
      %v10672 = vlaneseq
      %v10673 = vshrl.u32 %v10672, 7
      %v10674 = vsub.s32 %v10671, %v10673
      %v10675 = vrot.slane %v10661, %v10674
      %v10676 = vcombine.low %v10563, %v10575
      %v10677 = vcombine.high %v10563, %v10575
      %v10679 = vunpack.c.l.s4 1983009808
      %v10680 = vunpack.c.0.s8 %v10679
      %v10681 = vlaneseq
      %v10682 = vshrl.u32 %v10681, 7
      %v10683 = vsub.s32 %v10680, %v10682
      %v10684 = vrot.slane %v10676, %v10683
      %v10686 = vunpack.c.l.s4 1983009808
      %v10687 = vunpack.c.0.s8 %v10686
      %v10688 = vlaneseq
      %v10689 = vshrl.u32 %v10688, 7
      %v10690 = vsub.s32 %v10687, %v10689
      %v10691 = vrot.slane %v10677, %v10690
      %v10692 = vcombine.low %v10636, %v10652
      %v10693 = vcombine.high %v10636, %v10652
      %v10695 = vunpack.c.l.s4 1934713408
      %v10696 = vunpack.c.0.s8 %v10695
      %v10697 = vlaneseq
      %v10698 = vshrl.u32 %v10697, 7
      %v10699 = vsub.s32 %v10696, %v10698
      %v10700 = vrot.slane %v10692, %v10699
      %v10702 = vunpack.c.l.s4 1934713408
      %v10703 = vunpack.c.0.s8 %v10702
      %v10704 = vlaneseq
      %v10705 = vshrl.u32 %v10704, 7
      %v10706 = vsub.s32 %v10703, %v10705
      %v10707 = vrot.slane %v10693, %v10706
      %v10708 = vcombine.low %v10643, %v10659
      %v10709 = vcombine.high %v10643, %v10659
      %v10711 = vunpack.c.l.s4 1934713408
      %v10712 = vunpack.c.0.s8 %v10711
      %v10713 = vlaneseq
      %v10714 = vshrl.u32 %v10713, 7
      %v10715 = vsub.s32 %v10712, %v10714
      %v10716 = vrot.slane %v10708, %v10715
      %v10718 = vunpack.c.l.s4 1934713408
      %v10719 = vunpack.c.0.s8 %v10718
      %v10720 = vlaneseq
      %v10721 = vshrl.u32 %v10720, 7
      %v10722 = vsub.s32 %v10719, %v10721
      %v10723 = vrot.slane %v10709, %v10722
      %v10724 = vcombine.low %v10668, %v10684
      %v10725 = vcombine.high %v10668, %v10684
      %v10727 = vunpack.c.l.s4 1934713408
      %v10728 = vunpack.c.0.s8 %v10727
      %v10729 = vlaneseq
      %v10730 = vshrl.u32 %v10729, 7
      %v10731 = vsub.s32 %v10728, %v10730
      %v10732 = vrot.slane %v10724, %v10731
      %v10734 = vunpack.c.l.s4 1934713408
      %v10735 = vunpack.c.0.s8 %v10734
      %v10736 = vlaneseq
      %v10737 = vshrl.u32 %v10736, 7
      %v10738 = vsub.s32 %v10735, %v10737
      %v10739 = vrot.slane %v10725, %v10738
      %v10740 = vcombine.low %v10675, %v10691
      %v10741 = vcombine.high %v10675, %v10691
      %v10743 = vunpack.c.l.s4 1934713408
      %v10744 = vunpack.c.0.s8 %v10743
      %v10745 = vlaneseq
      %v10746 = vshrl.u32 %v10745, 7
      %v10747 = vsub.s32 %v10744, %v10746
      %v10748 = vrot.slane %v10740, %v10747
      %v10750 = vunpack.c.l.s4 1934713408
      %v10751 = vunpack.c.0.s8 %v10750
      %v10752 = vlaneseq
      %v10753 = vshrl.u32 %v10752, 7
      %v10754 = vsub.s32 %v10751, %v10753
      %v10755 = vrot.slane %v10741, %v10754
      %v10756 = vcombine.low %v10700, %v10732
      %v10757 = vcombine.high %v10700, %v10732
      %v10758 = vcombine.low %v10707, %v10739
      %v10759 = vcombine.high %v10707, %v10739
      %v10760 = vcombine.low %v10716, %v10748
      %v10761 = vcombine.high %v10716, %v10748
      %v10762 = vcombine.low %v10723, %v10755
      %v10763 = vcombine.high %v10723, %v10755
      %v10764 = vcombine.low %v10581, %v10593
      %v10765 = vcombine.high %v10581, %v10593
      %v10767 = vunpack.c.l.s4 1983009808
      %v10768 = vunpack.c.0.s8 %v10767
      %v10769 = vlaneseq
      %v10770 = vshrl.u32 %v10769, 7
      %v10771 = vsub.s32 %v10768, %v10770
      %v10772 = vrot.slane %v10764, %v10771
      %v10774 = vunpack.c.l.s4 1983009808
      %v10775 = vunpack.c.0.s8 %v10774
      %v10776 = vlaneseq
      %v10777 = vshrl.u32 %v10776, 7
      %v10778 = vsub.s32 %v10775, %v10777
      %v10779 = vrot.slane %v10765, %v10778
      %v10780 = vcombine.low %v10587, %v10599
      %v10781 = vcombine.high %v10587, %v10599
      %v10783 = vunpack.c.l.s4 1983009808
      %v10784 = vunpack.c.0.s8 %v10783
      %v10785 = vlaneseq
      %v10786 = vshrl.u32 %v10785, 7
      %v10787 = vsub.s32 %v10784, %v10786
      %v10788 = vrot.slane %v10780, %v10787
      %v10790 = vunpack.c.l.s4 1983009808
      %v10791 = vunpack.c.0.s8 %v10790
      %v10792 = vlaneseq
      %v10793 = vshrl.u32 %v10792, 7
      %v10794 = vsub.s32 %v10791, %v10793
      %v10795 = vrot.slane %v10781, %v10794
      %v10796 = vcombine.low %v10605, %v10617
      %v10797 = vcombine.high %v10605, %v10617
      %v10799 = vunpack.c.l.s4 1983009808
      %v10800 = vunpack.c.0.s8 %v10799
      %v10801 = vlaneseq
      %v10802 = vshrl.u32 %v10801, 7
      %v10803 = vsub.s32 %v10800, %v10802
      %v10804 = vrot.slane %v10796, %v10803
      %v10806 = vunpack.c.l.s4 1983009808
      %v10807 = vunpack.c.0.s8 %v10806
      %v10808 = vlaneseq
      %v10809 = vshrl.u32 %v10808, 7
      %v10810 = vsub.s32 %v10807, %v10809
      %v10811 = vrot.slane %v10797, %v10810
      %v10812 = vcombine.low %v10611, %v10623
      %v10813 = vcombine.high %v10611, %v10623
      %v10815 = vunpack.c.l.s4 1983009808
      %v10816 = vunpack.c.0.s8 %v10815
      %v10817 = vlaneseq
      %v10818 = vshrl.u32 %v10817, 7
      %v10819 = vsub.s32 %v10816, %v10818
      %v10820 = vrot.slane %v10812, %v10819
      %v10822 = vunpack.c.l.s4 1983009808
      %v10823 = vunpack.c.0.s8 %v10822
      %v10824 = vlaneseq
      %v10825 = vshrl.u32 %v10824, 7
      %v10826 = vsub.s32 %v10823, %v10825
      %v10827 = vrot.slane %v10813, %v10826
      %v10828 = vcombine.low %v10772, %v10788
      %v10829 = vcombine.high %v10772, %v10788
      %v10831 = vunpack.c.l.s4 1934713408
      %v10832 = vunpack.c.0.s8 %v10831
      %v10833 = vlaneseq
      %v10834 = vshrl.u32 %v10833, 7
      %v10835 = vsub.s32 %v10832, %v10834
      %v10836 = vrot.slane %v10828, %v10835
      %v10838 = vunpack.c.l.s4 1934713408
      %v10839 = vunpack.c.0.s8 %v10838
      %v10840 = vlaneseq
      %v10841 = vshrl.u32 %v10840, 7
      %v10842 = vsub.s32 %v10839, %v10841
      %v10843 = vrot.slane %v10829, %v10842
      %v10844 = vcombine.low %v10779, %v10795
      %v10845 = vcombine.high %v10779, %v10795
      %v10847 = vunpack.c.l.s4 1934713408
      %v10848 = vunpack.c.0.s8 %v10847
      %v10849 = vlaneseq
      %v10850 = vshrl.u32 %v10849, 7
      %v10851 = vsub.s32 %v10848, %v10850
      %v10852 = vrot.slane %v10844, %v10851
      %v10854 = vunpack.c.l.s4 1934713408
      %v10855 = vunpack.c.0.s8 %v10854
      %v10856 = vlaneseq
      %v10857 = vshrl.u32 %v10856, 7
      %v10858 = vsub.s32 %v10855, %v10857
      %v10859 = vrot.slane %v10845, %v10858
      %v10860 = vcombine.low %v10804, %v10820
      %v10861 = vcombine.high %v10804, %v10820
      %v10863 = vunpack.c.l.s4 1934713408
      %v10864 = vunpack.c.0.s8 %v10863
      %v10865 = vlaneseq
      %v10866 = vshrl.u32 %v10865, 7
      %v10867 = vsub.s32 %v10864, %v10866
      %v10868 = vrot.slane %v10860, %v10867
      %v10870 = vunpack.c.l.s4 1934713408
      %v10871 = vunpack.c.0.s8 %v10870
      %v10872 = vlaneseq
      %v10873 = vshrl.u32 %v10872, 7
      %v10874 = vsub.s32 %v10871, %v10873
      %v10875 = vrot.slane %v10861, %v10874
      %v10876 = vcombine.low %v10811, %v10827
      %v10877 = vcombine.high %v10811, %v10827
      %v10879 = vunpack.c.l.s4 1934713408
      %v10880 = vunpack.c.0.s8 %v10879
      %v10881 = vlaneseq
      %v10882 = vshrl.u32 %v10881, 7
      %v10883 = vsub.s32 %v10880, %v10882
      %v10884 = vrot.slane %v10876, %v10883
      %v10886 = vunpack.c.l.s4 1934713408
      %v10887 = vunpack.c.0.s8 %v10886
      %v10888 = vlaneseq
      %v10889 = vshrl.u32 %v10888, 7
      %v10890 = vsub.s32 %v10887, %v10889
      %v10891 = vrot.slane %v10877, %v10890
      %v10892 = vcombine.low %v10836, %v10868
      %v10893 = vcombine.high %v10836, %v10868
      %v10894 = vcombine.low %v10843, %v10875
      %v10895 = vcombine.high %v10843, %v10875
      %v10896 = vcombine.low %v10852, %v10884
      %v10897 = vcombine.high %v10852, %v10884
      %v10898 = vcombine.low %v10859, %v10891
      %v10899 = vcombine.high %v10859, %v10891
      %v10900 = vcombine.low %v10521, %v10547
      %v10901 = vcombine.high %v10521, %v10547
      %v10903 = vunpack.c.l.s4 1983009808
      %v10904 = vunpack.c.0.s8 %v10903
      %v10905 = vlaneseq
      %v10906 = vshrl.u32 %v10905, 7
      %v10907 = vsub.s32 %v10904, %v10906
      %v10908 = vrot.slane %v10900, %v10907
      %v10910 = vunpack.c.l.s4 1983009808
      %v10911 = vunpack.c.0.s8 %v10910
      %v10912 = vlaneseq
      %v10913 = vshrl.u32 %v10912, 7
      %v10914 = vsub.s32 %v10911, %v10913
      %v10915 = vrot.slane %v10901, %v10914
      %v10916 = vcombine.low %v10541, %v10553
      %v10917 = vcombine.high %v10541, %v10553
      %v10919 = vunpack.c.l.s4 1983009808
      %v10920 = vunpack.c.0.s8 %v10919
      %v10921 = vlaneseq
      %v10922 = vshrl.u32 %v10921, 7
      %v10923 = vsub.s32 %v10920, %v10922
      %v10924 = vrot.slane %v10916, %v10923
      %v10926 = vunpack.c.l.s4 1983009808
      %v10927 = vunpack.c.0.s8 %v10926
      %v10928 = vlaneseq
      %v10929 = vshrl.u32 %v10928, 7
      %v10930 = vsub.s32 %v10927, %v10929
      %v10931 = vrot.slane %v10917, %v10930
      %v10932 = vcombine.low %v10559, %v10571
      %v10933 = vcombine.high %v10559, %v10571
      %v10935 = vunpack.c.l.s4 1983009808
      %v10936 = vunpack.c.0.s8 %v10935
      %v10937 = vlaneseq
      %v10938 = vshrl.u32 %v10937, 7
      %v10939 = vsub.s32 %v10936, %v10938
      %v10940 = vrot.slane %v10932, %v10939
      %v10942 = vunpack.c.l.s4 1983009808
      %v10943 = vunpack.c.0.s8 %v10942
      %v10944 = vlaneseq
      %v10945 = vshrl.u32 %v10944, 7
      %v10946 = vsub.s32 %v10943, %v10945
      %v10947 = vrot.slane %v10933, %v10946
      %v10948 = vcombine.low %v10565, %v10577
      %v10949 = vcombine.high %v10565, %v10577
      %v10951 = vunpack.c.l.s4 1983009808
      %v10952 = vunpack.c.0.s8 %v10951
      %v10953 = vlaneseq
      %v10954 = vshrl.u32 %v10953, 7
      %v10955 = vsub.s32 %v10952, %v10954
      %v10956 = vrot.slane %v10948, %v10955
      %v10958 = vunpack.c.l.s4 1983009808
      %v10959 = vunpack.c.0.s8 %v10958
      %v10960 = vlaneseq
      %v10961 = vshrl.u32 %v10960, 7
      %v10962 = vsub.s32 %v10959, %v10961
      %v10963 = vrot.slane %v10949, %v10962
      %v10964 = vcombine.low %v10908, %v10924
      %v10965 = vcombine.high %v10908, %v10924
      %v10967 = vunpack.c.l.s4 1934713408
      %v10968 = vunpack.c.0.s8 %v10967
      %v10969 = vlaneseq
      %v10970 = vshrl.u32 %v10969, 7
      %v10971 = vsub.s32 %v10968, %v10970
      %v10972 = vrot.slane %v10964, %v10971
      %v10974 = vunpack.c.l.s4 1934713408
      %v10975 = vunpack.c.0.s8 %v10974
      %v10976 = vlaneseq
      %v10977 = vshrl.u32 %v10976, 7
      %v10978 = vsub.s32 %v10975, %v10977
      %v10979 = vrot.slane %v10965, %v10978
      %v10980 = vcombine.low %v10915, %v10931
      %v10981 = vcombine.high %v10915, %v10931
      %v10983 = vunpack.c.l.s4 1934713408
      %v10984 = vunpack.c.0.s8 %v10983
      %v10985 = vlaneseq
      %v10986 = vshrl.u32 %v10985, 7
      %v10987 = vsub.s32 %v10984, %v10986
      %v10988 = vrot.slane %v10980, %v10987
      %v10990 = vunpack.c.l.s4 1934713408
      %v10991 = vunpack.c.0.s8 %v10990
      %v10992 = vlaneseq
      %v10993 = vshrl.u32 %v10992, 7
      %v10994 = vsub.s32 %v10991, %v10993
      %v10995 = vrot.slane %v10981, %v10994
      %v10996 = vcombine.low %v10940, %v10956
      %v10997 = vcombine.high %v10940, %v10956
      %v10999 = vunpack.c.l.s4 1934713408
      %v11000 = vunpack.c.0.s8 %v10999
      %v11001 = vlaneseq
      %v11002 = vshrl.u32 %v11001, 7
      %v11003 = vsub.s32 %v11000, %v11002
      %v11004 = vrot.slane %v10996, %v11003
      %v11006 = vunpack.c.l.s4 1934713408
      %v11007 = vunpack.c.0.s8 %v11006
      %v11008 = vlaneseq
      %v11009 = vshrl.u32 %v11008, 7
      %v11010 = vsub.s32 %v11007, %v11009
      %v11011 = vrot.slane %v10997, %v11010
      %v11012 = vcombine.low %v10947, %v10963
      %v11013 = vcombine.high %v10947, %v10963
      %v11015 = vunpack.c.l.s4 1934713408
      %v11016 = vunpack.c.0.s8 %v11015
      %v11017 = vlaneseq
      %v11018 = vshrl.u32 %v11017, 7
      %v11019 = vsub.s32 %v11016, %v11018
      %v11020 = vrot.slane %v11012, %v11019
      %v11022 = vunpack.c.l.s4 1934713408
      %v11023 = vunpack.c.0.s8 %v11022
      %v11024 = vlaneseq
      %v11025 = vshrl.u32 %v11024, 7
      %v11026 = vsub.s32 %v11023, %v11025
      %v11027 = vrot.slane %v11013, %v11026
      %v11028 = vcombine.low %v10972, %v11004
      %v11029 = vcombine.high %v10972, %v11004
      %v11030 = vcombine.low %v10979, %v11011
      %v11031 = vcombine.high %v10979, %v11011
      %v11032 = vcombine.low %v10988, %v11020
      %v11033 = vcombine.high %v10988, %v11020
      %v11034 = vcombine.low %v10995, %v11027
      %v11035 = vcombine.high %v10995, %v11027
      %v11036 = vcombine.low %v10583, %v10595
      %v11037 = vcombine.high %v10583, %v10595
      %v11039 = vunpack.c.l.s4 1983009808
      %v11040 = vunpack.c.0.s8 %v11039
      %v11041 = vlaneseq
      %v11042 = vshrl.u32 %v11041, 7
      %v11043 = vsub.s32 %v11040, %v11042
      %v11044 = vrot.slane %v11036, %v11043
      %v11046 = vunpack.c.l.s4 1983009808
      %v11047 = vunpack.c.0.s8 %v11046
      %v11048 = vlaneseq
      %v11049 = vshrl.u32 %v11048, 7
      %v11050 = vsub.s32 %v11047, %v11049
      %v11051 = vrot.slane %v11037, %v11050
      %v11052 = vcombine.low %v10589, %v10601
      %v11053 = vcombine.high %v10589, %v10601
      %v11055 = vunpack.c.l.s4 1983009808
      %v11056 = vunpack.c.0.s8 %v11055
      %v11057 = vlaneseq
      %v11058 = vshrl.u32 %v11057, 7
      %v11059 = vsub.s32 %v11056, %v11058
      %v11060 = vrot.slane %v11052, %v11059
      %v11062 = vunpack.c.l.s4 1983009808
      %v11063 = vunpack.c.0.s8 %v11062
      %v11064 = vlaneseq
      %v11065 = vshrl.u32 %v11064, 7
      %v11066 = vsub.s32 %v11063, %v11065
      %v11067 = vrot.slane %v11053, %v11066
      %v11068 = vcombine.low %v10607, %v10619
      %v11069 = vcombine.high %v10607, %v10619
      %v11071 = vunpack.c.l.s4 1983009808
      %v11072 = vunpack.c.0.s8 %v11071
      %v11073 = vlaneseq
      %v11074 = vshrl.u32 %v11073, 7
      %v11075 = vsub.s32 %v11072, %v11074
      %v11076 = vrot.slane %v11068, %v11075
      %v11078 = vunpack.c.l.s4 1983009808
      %v11079 = vunpack.c.0.s8 %v11078
      %v11080 = vlaneseq
      %v11081 = vshrl.u32 %v11080, 7
      %v11082 = vsub.s32 %v11079, %v11081
      %v11083 = vrot.slane %v11069, %v11082
      %v11084 = vcombine.low %v10613, %v10625
      %v11085 = vcombine.high %v10613, %v10625
      %v11087 = vunpack.c.l.s4 1983009808
      %v11088 = vunpack.c.0.s8 %v11087
      %v11089 = vlaneseq
      %v11090 = vshrl.u32 %v11089, 7
      %v11091 = vsub.s32 %v11088, %v11090
      %v11092 = vrot.slane %v11084, %v11091
      %v11094 = vunpack.c.l.s4 1983009808
      %v11095 = vunpack.c.0.s8 %v11094
      %v11096 = vlaneseq
      %v11097 = vshrl.u32 %v11096, 7
      %v11098 = vsub.s32 %v11095, %v11097
      %v11099 = vrot.slane %v11085, %v11098
      %v11100 = vcombine.low %v11044, %v11060
      %v11101 = vcombine.high %v11044, %v11060
      %v11103 = vunpack.c.l.s4 1934713408
      %v11104 = vunpack.c.0.s8 %v11103
      %v11105 = vlaneseq
      %v11106 = vshrl.u32 %v11105, 7
      %v11107 = vsub.s32 %v11104, %v11106
      %v11108 = vrot.slane %v11100, %v11107
      %v11110 = vunpack.c.l.s4 1934713408
      %v11111 = vunpack.c.0.s8 %v11110
      %v11112 = vlaneseq
      %v11113 = vshrl.u32 %v11112, 7
      %v11114 = vsub.s32 %v11111, %v11113
      %v11115 = vrot.slane %v11101, %v11114
      %v11116 = vcombine.low %v11051, %v11067
      %v11117 = vcombine.high %v11051, %v11067
      %v11119 = vunpack.c.l.s4 1934713408
      %v11120 = vunpack.c.0.s8 %v11119
      %v11121 = vlaneseq
      %v11122 = vshrl.u32 %v11121, 7
      %v11123 = vsub.s32 %v11120, %v11122
      %v11124 = vrot.slane %v11116, %v11123
      %v11126 = vunpack.c.l.s4 1934713408
      %v11127 = vunpack.c.0.s8 %v11126
      %v11128 = vlaneseq
      %v11129 = vshrl.u32 %v11128, 7
      %v11130 = vsub.s32 %v11127, %v11129
      %v11131 = vrot.slane %v11117, %v11130
      %v11132 = vcombine.low %v11076, %v11092
      %v11133 = vcombine.high %v11076, %v11092
      %v11135 = vunpack.c.l.s4 1934713408
      %v11136 = vunpack.c.0.s8 %v11135
      %v11137 = vlaneseq
      %v11138 = vshrl.u32 %v11137, 7
      %v11139 = vsub.s32 %v11136, %v11138
      %v11140 = vrot.slane %v11132, %v11139
      %v11142 = vunpack.c.l.s4 1934713408
      %v11143 = vunpack.c.0.s8 %v11142
      %v11144 = vlaneseq
      %v11145 = vshrl.u32 %v11144, 7
      %v11146 = vsub.s32 %v11143, %v11145
      %v11147 = vrot.slane %v11133, %v11146
      %v11148 = vcombine.low %v11083, %v11099
      %v11149 = vcombine.high %v11083, %v11099
      %v11151 = vunpack.c.l.s4 1934713408
      %v11152 = vunpack.c.0.s8 %v11151
      %v11153 = vlaneseq
      %v11154 = vshrl.u32 %v11153, 7
      %v11155 = vsub.s32 %v11152, %v11154
      %v11156 = vrot.slane %v11148, %v11155
      %v11158 = vunpack.c.l.s4 1934713408
      %v11159 = vunpack.c.0.s8 %v11158
      %v11160 = vlaneseq
      %v11161 = vshrl.u32 %v11160, 7
      %v11162 = vsub.s32 %v11159, %v11161
      %v11163 = vrot.slane %v11149, %v11162
      %v11164 = vcombine.low %v11108, %v11140
      %v11165 = vcombine.high %v11108, %v11140
      %v11166 = vcombine.low %v11115, %v11147
      %v11167 = vcombine.high %v11115, %v11147
      %v11168 = vcombine.low %v11124, %v11156
      %v11169 = vcombine.high %v11124, %v11156
      %v11170 = vcombine.low %v11131, %v11163
      %v11171 = vcombine.high %v11131, %v11163
      %11204 = vrot.lane.b32.xlu0 %v10756, 8
      %v11205 = vpop.permute.xlu0 %11204
      %11206 = vrot.lane.b32.xlu0 %v10892, 8
      %v11207 = vpop.permute.xlu0 %11206
      %11208 = vrot.lane.b32.xlu0 %v10757, 8
      %v11209 = vpop.permute.xlu0 %11208
      %11210 = vrot.lane.b32.xlu0 %v10893, 8
      %v11211 = vpop.permute.xlu0 %11210
      %11212 = vrot.lane.b32.xlu0 %v10758, 8
      %v11213 = vpop.permute.xlu0 %11212
      %11214 = vrot.lane.b32.xlu0 %v10894, 8
      %v11215 = vpop.permute.xlu0 %11214
      %11216 = vrot.lane.b32.xlu0 %v10759, 8
      %v11217 = vpop.permute.xlu0 %11216
      %11218 = vrot.lane.b32.xlu0 %v10895, 8
      %v11219 = vpop.permute.xlu0 %11218
      %11220 = vrot.lane.b32.xlu0 %v10760, 8
      %v11221 = vpop.permute.xlu0 %11220
      %11222 = vrot.lane.b32.xlu0 %v10896, 8
      %v11223 = vpop.permute.xlu0 %11222
      %11224 = vrot.lane.b32.xlu0 %v10761, 8
      %v11225 = vpop.permute.xlu0 %11224
      %11226 = vrot.lane.b32.xlu0 %v10897, 8
      %v11227 = vpop.permute.xlu0 %11226
      %11228 = vrot.lane.b32.xlu0 %v10762, 8
      %v11229 = vpop.permute.xlu0 %11228
      %11230 = vrot.lane.b32.xlu0 %v10898, 8
      %v11231 = vpop.permute.xlu0 %11230
      %11232 = vrot.lane.b32.xlu0 %v10763, 8
      %v11233 = vpop.permute.xlu0 %11232
      %11234 = vrot.lane.b32.xlu0 %v10899, 8
      %v11235 = vpop.permute.xlu0 %11234
      %11236 = vrot.lane.b32.xlu0 %v11028, 8
      %v11237 = vpop.permute.xlu0 %11236
      %11238 = vrot.lane.b32.xlu0 %v11164, 8
      %v11239 = vpop.permute.xlu0 %11238
      %11240 = vrot.lane.b32.xlu0 %v11029, 8
      %v11241 = vpop.permute.xlu0 %11240
      %11242 = vrot.lane.b32.xlu0 %v11165, 8
      %v11243 = vpop.permute.xlu0 %11242
      %11244 = vrot.lane.b32.xlu0 %v11030, 8
      %v11245 = vpop.permute.xlu0 %11244
      %11246 = vrot.lane.b32.xlu0 %v11166, 8
      %v11247 = vpop.permute.xlu0 %11246
      %11248 = vrot.lane.b32.xlu0 %v11031, 8
      %v11249 = vpop.permute.xlu0 %11248
      %11250 = vrot.lane.b32.xlu0 %v11167, 8
      %v11251 = vpop.permute.xlu0 %11250
      %11252 = vrot.lane.b32.xlu0 %v11032, 8
      %v11253 = vpop.permute.xlu0 %11252
      %11254 = vrot.lane.b32.xlu0 %v11168, 8
      %v11255 = vpop.permute.xlu0 %11254
      %11256 = vrot.lane.b32.xlu0 %v11033, 8
      %v11257 = vpop.permute.xlu0 %11256
      %11258 = vrot.lane.b32.xlu0 %v11169, 8
      %v11259 = vpop.permute.xlu0 %11258
      %11260 = vrot.lane.b32.xlu0 %v11034, 8
      %v11261 = vpop.permute.xlu0 %11260
      %11262 = vrot.lane.b32.xlu0 %v11170, 8
      %v11263 = vpop.permute.xlu0 %11262
      %11264 = vrot.lane.b32.xlu0 %v11035, 8
      %v11265 = vpop.permute.xlu0 %11264
      %11266 = vrot.lane.b32.xlu0 %v11171, 8
      %v11267 = vpop.permute.xlu0 %11266
      %v11300 = vsel %vm1325, %v5944, %v11205
      %v11301 = vsel %vm1325, %v5945, %v11207
      %v11302 = vsel %vm1325, %v5946, %v11209
      %v11303 = vsel %vm1325, %v5947, %v11211
      %v11304 = vsel %vm1325, %v5948, %v11213
      %v11305 = vsel %vm1325, %v5949, %v11215
      %v11306 = vsel %vm1325, %v5950, %v11217
      %v11307 = vsel %vm1325, %v5951, %v11219
      %v11308 = vsel %vm1325, %v5952, %v11221
      %v11309 = vsel %vm1325, %v5953, %v11223
      %v11310 = vsel %vm1325, %v5954, %v11225
      %v11311 = vsel %vm1325, %v5955, %v11227
      %v11312 = vsel %vm1325, %v5956, %v11229
      %v11313 = vsel %vm1325, %v5957, %v11231
      %v11314 = vsel %vm1325, %v5958, %v11233
      %v11315 = vsel %vm1325, %v5959, %v11235
      %v11316 = vsel %vm1325, %v5960, %v11237
      %v11317 = vsel %vm1325, %v5961, %v11239
      %v11318 = vsel %vm1325, %v5962, %v11241
      %v11319 = vsel %vm1325, %v5963, %v11243
      %v11320 = vsel %vm1325, %v5964, %v11245
      %v11321 = vsel %vm1325, %v5965, %v11247
      %v11322 = vsel %vm1325, %v5966, %v11249
      %v11323 = vsel %vm1325, %v5967, %v11251
      %v11324 = vsel %vm1325, %v5968, %v11253
      %v11325 = vsel %vm1325, %v5969, %v11255
      %v11326 = vsel %vm1325, %v5970, %v11257
      %v11327 = vsel %vm1325, %v5971, %v11259
      %v11328 = vsel %vm1325, %v5972, %v11261
      %v11329 = vsel %vm1325, %v5973, %v11263
      %v11330 = vsel %vm1325, %v5974, %v11265
      %v11331 = vsel %vm1325, %v5975, %v11267
      %v11332 = vpack.c.bf16 %v11301, %v11300
      %v11333 = vpack.c.bf16 %v11303, %v11302
      %v11334 = vpack.c.bf16 %v11305, %v11304
      %v11335 = vpack.c.bf16 %v11307, %v11306
      %v11336 = vpack.c.bf16 %v11309, %v11308
      %v11337 = vpack.c.bf16 %v11311, %v11310
      %v11338 = vpack.c.bf16 %v11313, %v11312
      %v11339 = vpack.c.bf16 %v11315, %v11314
      %v11340 = vpack.c.bf16 %v11317, %v11316
      %v11341 = vpack.c.bf16 %v11319, %v11318
      %v11342 = vpack.c.bf16 %v11321, %v11320
      %v11343 = vpack.c.bf16 %v11323, %v11322
      %v11344 = vpack.c.bf16 %v11325, %v11324
      %v11345 = vpack.c.bf16 %v11327, %v11326
      %v11346 = vpack.c.bf16 %v11329, %v11328
      %v11347 = vpack.c.bf16 %v11331, %v11330
      %v11348 = vld [vmem:[%s2] sm:$0xf]
      %v11349 = vld [vmem:[%s2 + $0x4] sm:$0xf]
      %v11350 = vld [vmem:[%s3] sm:$0x1]
      %v11352 = vlaneseq
      %v11353 = vshrl.u32 %v11352, 7
      %v11354 = vsub.s32 0, %v11353
      %v11355 = vrot.slane %v11350, %v11354
      %v11359 = vunpack.c.l.b16 %v11348
      %v11360 = vunpack.c.l.b16 %v11349
      %v11361 = vpack.c.b16 %v11360, %v11359
      %v11364 = vsel %vm1364, %v11332, 0
      %v11367 = vsel %vm1364, %v11333, 0
      %v11370 = vsel %vm1364, %v11334, 0
      %v11373 = vsel %vm1364, %v11335, 0
      %v11376 = vsel %vm1364, %v11336, 0
      %v11379 = vsel %vm1364, %v11337, 0
      %v11382 = vsel %vm1364, %v11338, 0
      %v11385 = vsel %vm1364, %v11339, 0
      %v11388 = vsel %vm1364, %v11340, 0
      %v11391 = vsel %vm1364, %v11341, 0
      %v11394 = vsel %vm1364, %v11342, 0
      %v11397 = vsel %vm1364, %v11343, 0
      %v11400 = vsel %vm1364, %v11344, 0
      %v11403 = vsel %vm1364, %v11345, 0
      %v11406 = vsel %vm1364, %v11346, 0
      %v11409 = vsel %vm1364, %v11347, 0
      %11411 = vmatprep.subr.bf16.mxu0 0
      %11412 = vmatpush1.bf16.msra.mxu0 %v11361
      %11413 = vmatprep.subr.bf16.mxu0 0
      %11414 = vmatpush1.bf16.msra.mxu0 0
      %11415 = vmatprep.subr.bf16.mxu0 0
      %11416 = vmatpush1.bf16.msra.mxu0 0
      %11417 = vmatprep.subr.bf16.mxu0 0
      %11418 = vmatpush1.bf16.msra.mxu0 0
      %11419 = vmatprep.subr.bf16.mxu0 0
      %11420 = vmatpush1.bf16.msra.mxu0 0
      %11421 = vmatprep.subr.bf16.mxu0 0
      %11422 = vmatpush1.bf16.msra.mxu0 0
      %11423 = vmatprep.subr.bf16.mxu0 0
      %11424 = vmatpush1.bf16.msra.mxu0 0
      %11425 = vmatprep.subr.bf16.mxu0 0
      %11426 = vmatpush1.bf16.msra.mxu0 0
      %11427 = vmatprep.subr.bf16.mxu0 0
      %11428 = vmatpush1.bf16.msra.mxu0 0
      %11429 = vmatprep.subr.bf16.mxu0 0
      %11430 = vmatpush1.bf16.msra.mxu0 0
      %11431 = vmatprep.subr.bf16.mxu0 0
      %11432 = vmatpush1.bf16.msra.mxu0 0
      %11433 = vmatprep.subr.bf16.mxu0 0
      %11434 = vmatpush1.bf16.msra.mxu0 0
      %11435 = vmatprep.subr.bf16.mxu0 0
      %11436 = vmatpush1.bf16.msra.mxu0 0
      %11437 = vmatprep.subr.bf16.mxu0 0
      %11438 = vmatpush1.bf16.msra.mxu0 0
      %11439 = vmatprep.subr.bf16.mxu0 0
      %11440 = vmatpush1.bf16.msra.mxu0 0
      %11441 = vmatprep.subr.bf16.mxu0 0
      %11442 = vmatpush1.bf16.msra.mxu0 0
      %11443 = vmatprep.mubr.bf16.mxu0 0
      %11444 = vmatmul.mubr.bf16.gmra.mrb[0].mxu0 %v11364
      %v11445 = vpop.f32.mrb[0].mxu0
      %v11446 = vadd.f32 %v11355, %v11445
      %v11447 = vpop.f32.mrb[0].mxu0
      %v11448 = vpop.f32.mrb[0].mxu0
      %v11449 = vadd.f32 %v11355, %v11448
      %v11450 = vpop.f32.mrb[0].mxu0
      %11451 = vmatprep.mubr.bf16.mxu0 0
      %11452 = vmatmul.mubr.bf16.gmra.mrb[0].mxu0 %v11367
      %v11453 = vpop.f32.mrb[0].mxu0
      %v11454 = vadd.f32 %v11355, %v11453
      %v11455 = vpop.f32.mrb[0].mxu0
      %v11456 = vpop.f32.mrb[0].mxu0
      %v11457 = vadd.f32 %v11355, %v11456
      %v11458 = vpop.f32.mrb[0].mxu0
      %11459 = vmatprep.mubr.bf16.mxu0 0
      %11460 = vmatmul.mubr.bf16.gmra.mrb[0].mxu0 %v11370
      %v11461 = vpop.f32.mrb[0].mxu0
      %v11462 = vadd.f32 %v11355, %v11461
      %v11463 = vpop.f32.mrb[0].mxu0
      %v11464 = vpop.f32.mrb[0].mxu0
      %v11465 = vadd.f32 %v11355, %v11464
      %v11466 = vpop.f32.mrb[0].mxu0
      %11467 = vmatprep.mubr.bf16.mxu0 0
      %11468 = vmatmul.mubr.bf16.gmra.mrb[0].mxu0 %v11373
      %v11469 = vpop.f32.mrb[0].mxu0
      %v11470 = vadd.f32 %v11355, %v11469
      %v11471 = vpop.f32.mrb[0].mxu0
      %v11472 = vpop.f32.mrb[0].mxu0
      %v11473 = vadd.f32 %v11355, %v11472
      %v11474 = vpop.f32.mrb[0].mxu0
      %11475 = vmatprep.mubr.bf16.mxu0 0
      %11476 = vmatmul.mubr.bf16.gmra.mrb[0].mxu0 %v11376
      %v11477 = vpop.f32.mrb[0].mxu0
      %v11478 = vadd.f32 %v11355, %v11477
      %v11479 = vpop.f32.mrb[0].mxu0
      %v11480 = vpop.f32.mrb[0].mxu0
      %v11481 = vadd.f32 %v11355, %v11480
      %v11482 = vpop.f32.mrb[0].mxu0
      %11483 = vmatprep.mubr.bf16.mxu0 0
      %11484 = vmatmul.mubr.bf16.gmra.mrb[0].mxu0 %v11379
      %v11485 = vpop.f32.mrb[0].mxu0
      %v11486 = vadd.f32 %v11355, %v11485
      %v11487 = vpop.f32.mrb[0].mxu0
      %v11488 = vpop.f32.mrb[0].mxu0
      %v11489 = vadd.f32 %v11355, %v11488
      %v11490 = vpop.f32.mrb[0].mxu0
      %11491 = vmatprep.mubr.bf16.mxu0 0
      %11492 = vmatmul.mubr.bf16.gmra.mrb[0].mxu0 %v11382
      %v11493 = vpop.f32.mrb[0].mxu0
      %v11494 = vadd.f32 %v11355, %v11493
      %v11495 = vpop.f32.mrb[0].mxu0
      %v11496 = vpop.f32.mrb[0].mxu0
      %v11497 = vadd.f32 %v11355, %v11496
      %v11498 = vpop.f32.mrb[0].mxu0
      %11499 = vmatprep.mubr.bf16.mxu0 0
      %11500 = vmatmul.mubr.bf16.gmra.mrb[0].mxu0 %v11385
      %v11501 = vpop.f32.mrb[0].mxu0
      %v11502 = vadd.f32 %v11355, %v11501
      %v11503 = vpop.f32.mrb[0].mxu0
      %v11504 = vpop.f32.mrb[0].mxu0
      %v11505 = vadd.f32 %v11355, %v11504
      %v11506 = vpop.f32.mrb[0].mxu0
      %11507 = vmatprep.mubr.bf16.mxu0 0
      %11508 = vmatmul.mubr.bf16.gmra.mrb[0].mxu0 %v11388
      %v11509 = vpop.f32.mrb[0].mxu0
      %v11510 = vadd.f32 %v11355, %v11509
      %v11511 = vpop.f32.mrb[0].mxu0
      %v11512 = vpop.f32.mrb[0].mxu0
      %v11513 = vadd.f32 %v11355, %v11512
      %v11514 = vpop.f32.mrb[0].mxu0
      %11515 = vmatprep.mubr.bf16.mxu0 0
      %11516 = vmatmul.mubr.bf16.gmra.mrb[0].mxu0 %v11391
      %v11517 = vpop.f32.mrb[0].mxu0
      %v11518 = vadd.f32 %v11355, %v11517
      %v11519 = vpop.f32.mrb[0].mxu0
      %v11520 = vpop.f32.mrb[0].mxu0
      %v11521 = vadd.f32 %v11355, %v11520
      %v11522 = vpop.f32.mrb[0].mxu0
      %11523 = vmatprep.mubr.bf16.mxu0 0
      %11524 = vmatmul.mubr.bf16.gmra.mrb[0].mxu0 %v11394
      %v11525 = vpop.f32.mrb[0].mxu0
      %v11526 = vadd.f32 %v11355, %v11525
      %v11527 = vpop.f32.mrb[0].mxu0
      %v11528 = vpop.f32.mrb[0].mxu0
      %v11529 = vadd.f32 %v11355, %v11528
      %v11530 = vpop.f32.mrb[0].mxu0
      %11531 = vmatprep.mubr.bf16.mxu0 0
      %11532 = vmatmul.mubr.bf16.gmra.mrb[0].mxu0 %v11397
      %v11533 = vpop.f32.mrb[0].mxu0
      %v11534 = vadd.f32 %v11355, %v11533
      %v11535 = vpop.f32.mrb[0].mxu0
      %v11536 = vpop.f32.mrb[0].mxu0
      %v11537 = vadd.f32 %v11355, %v11536
      %v11538 = vpop.f32.mrb[0].mxu0
      %11539 = vmatprep.mubr.bf16.mxu0 0
      %11540 = vmatmul.mubr.bf16.gmra.mrb[0].mxu0 %v11400
      %v11541 = vpop.f32.mrb[0].mxu0
      %v11542 = vadd.f32 %v11355, %v11541
      %v11543 = vpop.f32.mrb[0].mxu0
      %v11544 = vpop.f32.mrb[0].mxu0
      %v11545 = vadd.f32 %v11355, %v11544
      %v11546 = vpop.f32.mrb[0].mxu0
      %11547 = vmatprep.mubr.bf16.mxu0 0
      %11548 = vmatmul.mubr.bf16.gmra.mrb[0].mxu0 %v11403
      %v11549 = vpop.f32.mrb[0].mxu0
      %v11550 = vadd.f32 %v11355, %v11549
      %v11551 = vpop.f32.mrb[0].mxu0
      %v11552 = vpop.f32.mrb[0].mxu0
      %v11553 = vadd.f32 %v11355, %v11552
      %v11554 = vpop.f32.mrb[0].mxu0
      %11555 = vmatprep.mubr.bf16.mxu0 0
      %11556 = vmatmul.mubr.bf16.gmra.mrb[0].mxu0 %v11406
      %v11557 = vpop.f32.mrb[0].mxu0
      %v11558 = vadd.f32 %v11355, %v11557
      %v11559 = vpop.f32.mrb[0].mxu0
      %v11560 = vpop.f32.mrb[0].mxu0
      %v11561 = vadd.f32 %v11355, %v11560
      %v11562 = vpop.f32.mrb[0].mxu0
      %11563 = vmatprep.mubr.bf16.mxu0 0
      %11564 = vmatmul.mubr.bf16.gmra.mrb[0].mxu0 %v11409
      %v11565 = vpop.f32.mrb[0].mxu0
      %v11566 = vadd.f32 %v11355, %v11565
      %v11567 = vpop.f32.mrb[0].mxu0
      %v11568 = vpop.f32.mrb[0].mxu0
      %v11569 = vadd.f32 %v11355, %v11568
      %v11570 = vpop.f32.mrb[0].mxu0
      %11571 = vdwg.mxu0
      %11572 = vst.msk [vmem:[%s197] sm:$0xff] %vm327, %v11446
      %11573 = vst.msk [vmem:[%s197 + $0x8] sm:$0xff] %vm327, %v11449
      %11574 = vst.msk [vmem:[%s197 + $0x10] sm:$0xff] %vm327, %v11454
      %11575 = vst.msk [vmem:[%s197 + $0x18] sm:$0xff] %vm327, %v11457
      %11576 = vst.msk [vmem:[%s197 + $0x20] sm:$0xff] %vm327, %v11462
      %11577 = vst.msk [vmem:[%s197 + $0x28] sm:$0xff] %vm327, %v11465
      %11578 = vst.msk [vmem:[%s197 + $0x30] sm:$0xff] %vm327, %v11470
      %11579 = vst.msk [vmem:[%s197 + $0x38] sm:$0xff] %vm327, %v11473
      %11580 = vst.msk [vmem:[%s197 + $0x40] sm:$0xff] %vm327, %v11478
      %11581 = vst.msk [vmem:[%s197 + $0x48] sm:$0xff] %vm327, %v11481
      %11582 = vst.msk [vmem:[%s197 + $0x50] sm:$0xff] %vm327, %v11486
      %11583 = vst.msk [vmem:[%s197 + $0x58] sm:$0xff] %vm327, %v11489
      %11584 = vst.msk [vmem:[%s197 + $0x60] sm:$0xff] %vm327, %v11494
      %11585 = vst.msk [vmem:[%s197 + $0x68] sm:$0xff] %vm327, %v11497
      %11586 = vst.msk [vmem:[%s197 + $0x70] sm:$0xff] %vm327, %v11502
      %11587 = vst.msk [vmem:[%s197 + $0x78] sm:$0xff] %vm327, %v11505
      %11588 = vst.msk [vmem:[%s197 + $0x80] sm:$0xff] %vm327, %v11510
      %11589 = vst.msk [vmem:[%s197 + $0x88] sm:$0xff] %vm327, %v11513
      %11590 = vst.msk [vmem:[%s197 + $0x90] sm:$0xff] %vm327, %v11518
      %11591 = vst.msk [vmem:[%s197 + $0x98] sm:$0xff] %vm327, %v11521
      %11592 = vst.msk [vmem:[%s197 + $0xa0] sm:$0xff] %vm327, %v11526
      %11593 = vst.msk [vmem:[%s197 + $0xa8] sm:$0xff] %vm327, %v11529
      %11594 = vst.msk [vmem:[%s197 + $0xb0] sm:$0xff] %vm327, %v11534
      %11595 = vst.msk [vmem:[%s197 + $0xb8] sm:$0xff] %vm327, %v11537
      %11596 = vst.msk [vmem:[%s197 + $0xc0] sm:$0xff] %vm327, %v11542
      %11597 = vst.msk [vmem:[%s197 + $0xc8] sm:$0xff] %vm327, %v11545
      %11598 = vst.msk [vmem:[%s197 + $0xd0] sm:$0xff] %vm327, %v11550
      %11599 = vst.msk [vmem:[%s197 + $0xd8] sm:$0xff] %vm327, %v11553
      %11600 = vst.msk [vmem:[%s197 + $0xe0] sm:$0xff] %vm327, %v11558
      %11601 = vst.msk [vmem:[%s197 + $0xe8] sm:$0xff] %vm327, %v11561
      %11602 = vst.msk [vmem:[%s197 + $0xf0] sm:$0xff] %vm327, %v11566
      %11603 = vst.msk [vmem:[%s197 + $0xf8] sm:$0xff] %vm327, %v11569
      %p11604 = scmp.lt.s32.totalorder %s15, 1
      %s11605 = scalar_select %p11604, %s15, 1
      %s11606 = smul.addr %s11605, 32
      %s11607 = smul.addr %s11606, 8
      %s11608 = scalar_lea.vmem %s4, %s11607
      // Predicated region
      $region37: #{tpu_custom_call.1} parent=35 // pred_check
        %p11609 = pneg %p122
      $region38: #{tpu_custom_call.1} parent=35 // pred_check_branch
        %11611 = sbr.rel (%p11609) target = $region40
      $region39: #{tpu_custom_call.1} parent=35 // pred_region
        _
      $region40: #{tpu_custom_call.1} parent=35 // pred_fallthru
        _
    $region36: #{tpu_custom_call.1} parent=5 // pred_fallthru
      _
    %p11612 = scmp.le.s32.totalorder 2, %s10
    // Predicated region
    $region41: #{tpu_custom_call.1} parent=5 // pred_check
      %p11613 = pneg %p11612
    $region42: #{tpu_custom_call.1} parent=5 // pred_check_branch
      %11615 = sbr.rel (%p11613) target = $region44
    $region43: #{tpu_custom_call.1} parent=5 // pred_region
      %s11616 = ssub.s32 %s10, 2
      // Predicated region
      $region45: #{tpu_custom_call.1} parent=43 // pred_check
        %p11617 = pneg %p128
      $region46: #{tpu_custom_call.1} parent=43 // pred_check_branch
        %11619 = sbr.rel (%p11617) target = $region48
      $region47: #{tpu_custom_call.1} parent=43 // pred_region
        %p11620 = scmp.lt.s32.totalorder %s16, 1
        %s11621 = scalar_select %p11620, %s16, 1
        %s11622 = smul.addr %s11621, 32
        %s11623 = smul.addr %s11622, 8
        %s11624 = scalar_lea.vmem %s4, %s11623
      $region48: #{tpu_custom_call.1} parent=43 // pred_fallthru
        _
    $region44: #{tpu_custom_call.1} parent=5 // pred_fallthru
      _
  $region6: #{tpu_custom_call.1} parent=0 // loop_footer
    %s14 = sadd.s32 1, %s10
  $region7: #{tpu_custom_call.1} parent=0 // loop_footer_branch
    %9 = sbr.rel target = $region3
  $region8: #{tpu_custom_call.1} parent=0 // loop_exit
    _

</llo_original>
